<compile_context>
chip_gen: v6e
topology: v6e:2x2x1
jax: 0.10.0
libtpu: 0.0.40
codegen_flags: <defaults>
</compile_context>

<pallas_src>
import functools
import math

import jax
import jax.numpy as jnp
from jax import lax
from jax.experimental import pallas as pl
from jax.experimental.pallas import tpu as pltpu

_F32 = jnp.float32
_BF16 = jnp.bfloat16


# --------------------------------------------------------------------------
# small helpers
# --------------------------------------------------------------------------
def _erf(x):
    """Abramowitz & Stegun 7.1.26 polynomial erf (max abs err 1.5e-7).

    Keeps the exact (non-tanh) GELU semantics of PyTorch's default nn.GELU()
    while the exp() goes to the EUP slot.
    # TODO(synk): switch to lax.erf if/when Mosaic lowers it on all targets.
    """
    a1, a2, a3, a4, a5 = (0.254829592, -0.284496736, 1.421413741,
                          -1.453152027, 1.061405429)
    p = 0.3275911
    sgn = jnp.where(x >= 0.0, 1.0, -1.0)
    ax = jnp.abs(x)
    t = 1.0 / (1.0 + p * ax)
    poly = ((((a5 * t + a4) * t + a3) * t + a2) * t + a1) * t
    return sgn * (1.0 - poly * jnp.exp(-ax * ax))


def _gelu_exact(x):
    return 0.5 * x * (1.0 + _erf(x * (1.0 / math.sqrt(2.0))))


@functools.lru_cache(maxsize=None)
def _vmem_capacity_bytes():
    try:
        return int(pltpu.get_tpu_info().vmem_capacity_bytes)
    except Exception:
        return 64 << 20          # conservative: v7x has 64 MiB per TensorCore


def _pick_row_tile(m, stream_row_bytes, resident_bytes, *,
                   max_rows=1024, min_grid=2):
    """Largest row tile (multiple of 8 dividing m, or m itself) whose
    double-buffered row streams fit in the VMEM left after the single-buffered
    resident blocks; prefer >= min_grid grid steps so megacore can shard the
    row axis.  (Measured: 512-1024-row tiles reach ~85% of HBM roofline vs
    ~29% at 128.)"""
    usable = int(_vmem_capacity_bytes() * 0.6)         # headroom for scratch
    budget = max(usable - resident_bytes, 2 << 20)
    cands = sorted({d for d in range(8, min(m, max_rows) + 1, 8)
                    if m % d == 0} | {m}, reverse=True)
    # TODO(synk): pad M to a multiple of 256 (masked last tile) when M has no
    # multiple-of-8 divisor (e.g. B*197 ViT tokens) instead of grid=1 fallback.
    fits = [t for t in cands if 2 * t * stream_row_bytes <= budget]
    if not fits:
        return cands[-1]
    for t in fits:
        if m // t >= min_grid:
            return t
    return fits[0]


def _pick_q_tile(n, c, *, max_rows=512):
    """Query-row tile for attention: scores tile (tq, N) f32 + resident K/V
    blocks must stay within a VMEM budget."""
    usable = int(_vmem_capacity_bytes() * 0.5)
    kv_bytes = 2 * (2 * n * c * 2)                     # K & V blocks, 2-buffered, bf16
    budget = max(usable - kv_bytes, 1 << 20)
    cands = sorted({d for d in range(8, min(n, max_rows) + 1, 8)
                    if n % d == 0} | {n}, reverse=True)
    for t in cands:
        need = 2 * t * n * 4 + 2 * 2 * t * c * 2 + 2 * t * c * 4
        if need <= budget:
            return t
    return cands[-1]


def _vmem_limit(est_bytes):
    """Only raise the scoped VMEM limit when the estimate exceeds every
    generation's default; cap generation-aware (e.g. ~40 MiB on v7x's 64 MiB)."""
    if est_bytes <= (12 << 20):
        return None
    total = _vmem_capacity_bytes()
    cap = max(min(int(total * 0.625), total - (16 << 20)), 16 << 20)
    return int(min(est_bytes + (4 << 20), cap))


# --------------------------------------------------------------------------
# single-buffered constant blocks (weights / biases / LN params)
# --------------------------------------------------------------------------
_BUFFERED_ONE = "unprobed"


def _single_buffer_mode():
    """pl.Buffered(1) keeps constant-index blocks single-buffered: the default
    2-deep pipeline would double their VMEM footprint for no benefit (the block
    index never changes).  Probed once so the script still runs on jax versions
    that reject buffer_count=1."""
    global _BUFFERED_ONE
    if _BUFFERED_ONE == "unprobed":
        try:
            mode = pl.Buffered(1)

            def _probe_kernel(x_ref, w_ref, o_ref):
                o_ref[...] = x_ref[...] + w_ref[...]

            probe = pl.pallas_call(
                _probe_kernel,
                out_shape=jax.ShapeDtypeStruct((16, 128), jnp.float32),
                grid_spec=pltpu.PrefetchScalarGridSpec(
                    num_scalar_prefetch=0,
                    grid=(2,),
                    in_specs=[pl.BlockSpec((8, 128), lambda i: (i, 0)),
                              pl.BlockSpec((8, 128), lambda i: (0, 0),
                                           pipeline_mode=mode)],
                    out_specs=pl.BlockSpec((8, 128), lambda i: (i, 0)),
                ),
            )
            jax.block_until_ready(probe(jnp.zeros((16, 128), jnp.float32),
                                        jnp.zeros((8, 128), jnp.float32)))
            _BUFFERED_ONE = mode
        except Exception:
            _BUFFERED_ONE = None
    return _BUFFERED_ONE


def _const_spec(shape, index_map):
    mode = _single_buffer_mode()
    if mode is None:
        return pl.BlockSpec(shape, index_map)
    return pl.BlockSpec(shape, index_map, pipeline_mode=mode)


# --------------------------------------------------------------------------
# Kernel 1: fused LayerNorm + QKV Linear   (x f32 -> qkv bf16, (M, 3C))
# --------------------------------------------------------------------------
def _ln_linear_kernel(x_ref, g_ref, b_ref, w_ref, bias_ref, o_ref, *, eps):
    x = x_ref[...]                                        # (tm, Cin) f32
    inv_c = 1.0 / float(x.shape[-1])
    mean = jnp.sum(x, axis=-1, keepdims=True) * inv_c
    xc = x - mean
    var = jnp.sum(xc * xc, axis=-1, keepdims=True) * inv_c   # population var
    y = xc * lax.rsqrt(var + eps) * g_ref[...] + b_ref[...]
    z = jnp.dot(y.astype(_BF16), w_ref[...],              # bf16 MXU, f32 acc
                preferred_element_type=_F32)
    o_ref[...] = (z + bias_ref[...]).astype(o_ref.dtype)


def _ln_linear(x2, gamma, beta, w, bias, *, eps, out_dtype):
    # TODO(synk): add a second "parallel" grid axis tiling cout for very large
    # C*mlp so the resident weight block stays well under v7x's 64 MiB VMEM.
    m, cin = x2.shape
    cout = w.shape[1]
    out_isz = jnp.dtype(out_dtype).itemsize
    resident = w.size * w.dtype.itemsize + (bias.size + gamma.size + beta.size) * 4
    stream_row = cin * x2.dtype.itemsize + cout * out_isz
    tm = _pick_row_tile(m, stream_row, resident)
    est = resident + 2 * tm * stream_row + tm * (2 * cin + cout) * 4 + (2 << 20)
    kernel = functools.partial(_ln_linear_kernel, eps=eps)
    return pl.pallas_call(
        kernel,
        out_shape=jax.ShapeDtypeStruct((m, cout), out_dtype),
        grid_spec=pltpu.PrefetchScalarGridSpec(
            num_scalar_prefetch=0,
            grid=(m // tm,),
            in_specs=[
                pl.BlockSpec((tm, cin), lambda i: (i, 0)),
                _const_spec((1, cin), lambda i: (0, 0)),
                _const_spec((1, cin), lambda i: (0, 0)),
                _const_spec((cin, cout), lambda i: (0, 0)),
                _const_spec((1, cout), lambda i: (0, 0)),
            ],
            out_specs=pl.BlockSpec((tm, cout), lambda i: (i, 0)),
        ),
        compiler_params=pltpu.CompilerParams(
            dimension_semantics=("parallel",),
            vmem_limit_bytes=_vmem_limit(est),
        ),
    )(x2, gamma, beta, w, bias)


# --------------------------------------------------------------------------
# Kernel 2: multi-head attention, lane-dense (tq, C) output, no transposes
# --------------------------------------------------------------------------
def _attention_kernel(q_ref, k_ref, v_ref, o_ref, *, heads, scale):
    q = q_ref[0]                                          # (tq, C) bf16
    k = k_ref[0]                                          # (N,  C) bf16
    v = v_ref[0]                                          # (N,  C) bf16
    dh = q.shape[-1] // heads
    outs = []
    # TODO(synk): pack several heads into one MXU issue (block-diag / head-fused
    # contraction) -- a Dh-wide contraction underfeeds the 256x256 MXUs on
    # v6e/v7x; and switch to a KV-tiled online-softmax (flash) loop before this
    # is used at sequence lengths where the (tq, N) f32 score tile gets large.
    for h in range(heads):
        sl = slice(h * dh, (h + 1) * dh)
        s = lax.dot_general(q[:, sl], k[:, sl], (((1,), (1,)), ((), ())),
                            preferred_element_type=_F32) * scale      # (tq, N)
        mx = jnp.max(s, axis=-1, keepdims=True)
        p = jnp.exp(s - mx)
        l = jnp.sum(p, axis=-1, keepdims=True)
        oh = jnp.dot(p.astype(_BF16), v[:, sl], preferred_element_type=_F32)
        # normalize AFTER the PV matmul: EUP reciprocal + one Newton step
        # instead of dividing the (tq, N) prob matrix on the VPU.
        r = pl.reciprocal(l, approx=True)
        r = r * (2.0 - l * r)
        outs.append(oh * r)
    o_ref[0] = jnp.concatenate(outs, axis=-1).astype(o_ref.dtype)  # (tq, C)


def _attention(qkv3, *, heads, scale):
    b, n, c3 = qkv3.shape
    c = c3 // 3
    tq = _pick_q_tile(n, c)
    est = (2 * 2 * n * c * 2          # K & V blocks, double-buffered, bf16
           + 2 * 2 * tq * c * 2       # q block + out block, double-buffered
           + 2 * tq * n * 4           # per-head scores / probs (f32)
           + tq * c * 4               # f32 output accumulator
           + (4 << 20))
    kernel = functools.partial(_attention_kernel, heads=heads, scale=float(scale))
    spec_io = pl.BlockSpec((1, tq, c), lambda bi, qi: (bi, qi, 0))
    return pl.pallas_call(
        kernel,
        out_shape=jax.ShapeDtypeStruct((b, n, c), _BF16),
        grid_spec=pltpu.PrefetchScalarGridSpec(
            num_scalar_prefetch=0,
            grid=(b, n // tq),
            in_specs=[
                spec_io,                                            # q columns
                pl.BlockSpec((1, n, c), lambda bi, qi: (bi, 0, 1)),  # k columns
                pl.BlockSpec((1, n, c), lambda bi, qi: (bi, 0, 2)),  # v columns
            ],
            out_specs=spec_io,
        ),
        compiler_params=pltpu.CompilerParams(
            dimension_semantics=("parallel", "parallel"),
            vmem_limit_bytes=_vmem_limit(est),
        ),
    )(qkv3, qkv3, qkv3)


# --------------------------------------------------------------------------
# Kernel 3: attention proj + residual + LN2 + fc1 + exact GELU (fused)
# --------------------------------------------------------------------------
def _proj_res_ln_fc1_kernel(o_ref, x_ref, wp_ref, bp_ref, g_ref, b_ref,
                            w1_ref, b1_ref, x1_ref, h_ref, *, eps):
    z = jnp.dot(o_ref[...], wp_ref[...], preferred_element_type=_F32)
    x1 = z + bp_ref[...] + x_ref[...]                     # f32 residual path
    x1_ref[...] = x1.astype(x1_ref.dtype)
    inv_c = 1.0 / float(x1.shape[-1])
    mean = jnp.sum(x1, axis=-1, keepdims=True) * inv_c
    xc = x1 - mean
    var = jnp.sum(xc * xc, axis=-1, keepdims=True) * inv_c
    y = xc * lax.rsqrt(var + eps) * g_ref[...] + b_ref[...]
    hh = jnp.dot(y.astype(_BF16), w1_ref[...],
                 preferred_element_type=_F32) + b1_ref[...]
    h_ref[...] = _gelu_exact(hh).astype(h_ref.dtype)


def _proj_res_ln_fc1(o2, x2, wp, bp, g, bvec, w1, b1, *, eps):
    m, c = x2.shape
    dmlp = w1.shape[1]
    resident = (wp.size + w1.size) * 2 + (bp.size + g.size + bvec.size + b1.size) * 4
    stream_row = c * 2 + c * 4 + c * 4 + dmlp * 2   # o in, x in, x1 out, h out
    tm = _pick_row_tile(m, stream_row, resident)
    est = resident + 2 * tm * stream_row + tm * (2 * c + dmlp) * 4 + (2 << 20)
    kernel = functools.partial(_proj_res_ln_fc1_kernel, eps=eps)
    return pl.pallas_call(
        kernel,
        out_shape=(jax.ShapeDtypeStruct((m, c), _F32),
                   jax.ShapeDtypeStruct((m, dmlp), _BF16)),
        grid_spec=pltpu.PrefetchScalarGridSpec(
            num_scalar_prefetch=0,
            grid=(m // tm,),
            in_specs=[
                pl.BlockSpec((tm, c), lambda i: (i, 0)),        # attention out
                pl.BlockSpec((tm, c), lambda i: (i, 0)),        # residual x
                _const_spec((c, c), lambda i: (0, 0)),          # w_proj
                _const_spec((1, c), lambda i: (0, 0)),          # b_proj
                _const_spec((1, c), lambda i: (0, 0)),          # ln2 gamma
                _const_spec((1, c), lambda i: (0, 0)),          # ln2 beta
                _const_spec((c, dmlp), lambda i: (0, 0)),       # w_fc1
                _const_spec((1, dmlp), lambda i: (0, 0)),       # b_fc1
            ],
            out_specs=[pl.BlockSpec((tm, c), lambda i: (i, 0)),
                       pl.BlockSpec((tm, dmlp), lambda i: (i, 0))],
        ),
        compiler_params=pltpu.CompilerParams(
            dimension_semantics=("parallel",),
            vmem_limit_bytes=_vmem_limit(est),
        ),
    )(o2, x2, wp, bp, g, bvec, w1, b1)


# --------------------------------------------------------------------------
# Kernel 4: fc2 + bias + second residual
# --------------------------------------------------------------------------
def _fc2_residual_kernel(h_ref, w_ref, bias_ref, res_ref, o_ref):
    z = jnp.dot(h_ref[...], w_ref[...], preferred_element_type=_F32)
    o_ref[...] = (z + bias_ref[...] + res_ref[...]).astype(o_ref.dtype)


def _fc2_residual(h, w, bias, res):
    m, dmlp = h.shape
    c = w.shape[1]
    resident = w.size * w.dtype.itemsize + bias.size * 4
    stream_row = dmlp * 2 + c * 4 + c * 4
    tm = _pick_row_tile(m, stream_row, resident)
    est = resident + 2 * tm * stream_row + tm * (dmlp + c) * 4 + (2 << 20)
    return pl.pallas_call(
        _fc2_residual_kernel,
        out_shape=jax.ShapeDtypeStruct((m, c), res.dtype),
        grid_spec=pltpu.PrefetchScalarGridSpec(
            num_scalar_prefetch=0,
            grid=(m // tm,),
            in_specs=[
                pl.BlockSpec((tm, dmlp), lambda i: (i, 0)),
                _const_spec((dmlp, c), lambda i: (0, 0)),
                _const_spec((1, c), lambda i: (0, 0)),
                pl.BlockSpec((tm, c), lambda i: (i, 0)),
            ],
            out_specs=pl.BlockSpec((tm, c), lambda i: (i, 0)),
        ),
        compiler_params=pltpu.CompilerParams(
            dimension_semantics=("parallel",),
            vmem_limit_bytes=_vmem_limit(est),
        ),
    )(h, w, bias, res)


# --------------------------------------------------------------------------
# Block.forward
# --------------------------------------------------------------------------
def _prep_params(params):
    out = {}
    for k, v in params.items():
        if k.startswith("w_"):
            out[k] = v.astype(_BF16)    # MXU peak is bf16; halves weight VMEM
        else:
            out[k] = v.astype(_F32)     # biases / LN params stay f32
    return out


def block_forward(x, params, *, heads, eps=1e-5):
    """Inference forward of the PyTorch `Block`.

    x: (B, N, C) float32.  Linear weights are stored as (in, out) ==
    torch `Linear.weight.T`.
    # TODO(synk): nn.Dropout / DropPath are identity at inference; training-mode
    # stochastic masking and the return_attention=True path are not implemented.
    """
    b, n, c = x.shape
    dh = c // heads
    m = b * n
    p = _prep_params(params)
    x2 = x.reshape(m, c).astype(_F32)

    # LN1 + qkv projection (fused).  Output stays in (M, 3C) = [q | k | v]
    # feature layout so attention can slice heads without any HBM transpose.
    qkv = _ln_linear(x2, p["ln1_g"], p["ln1_b"], p["w_qkv"], p["b_qkv"],
                     eps=eps, out_dtype=_BF16)                       # (M, 3C)

    # attention reads q/k/v column blocks of qkv directly and writes its output
    # already in (B, N, H*Dh) = (M, C) layout (lane-dense, no transposes).
    o = _attention(qkv.reshape(b, n, 3 * c), heads=heads, scale=dh ** -0.5)

    # proj + first residual + LN2 + fc1 + GELU, fused in one pass over rows.
    x1, hmid = _proj_res_ln_fc1(o.reshape(m, c), x2,
                                p["w_proj"], p["b_proj"],
                                p["ln2_g"], p["ln2_b"],
                                p["w_fc1"], p["b_fc1"], eps=eps)

    # fc2 + second residual.
    out = _fc2_residual(hmid, p["w_fc2"], p["b_fc2"], x1)
    return out.reshape(b, n, c)


# --------------------------------------------------------------------------
# pure-JAX references
# --------------------------------------------------------------------------
def _reference(x, params, *, heads, eps=1e-5, mirror=True):
    """mirror=True reproduces the kernels' numerics (bf16 matmul operands,
    bf16 storage of qkv / attention-out / fc1-act, unnormalized-softmax PV
    followed by *1/l); mirror=False is the exact float32 PyTorch forward."""
    f32, bf16 = jnp.float32, jnp.bfloat16
    b, n, c = x.shape
    h = heads
    dh = c // h
    hp = lax.Precision.HIGHEST

    cast = (lambda t: t.astype(bf16)) if mirror else (lambda t: t)
    store = (lambda t: t.astype(bf16).astype(f32)) if mirror else (lambda t: t)

    def mm(a, w_):
        if mirror:
            return jnp.einsum("...k,kd->...d", cast(a), cast(w_),
                              preferred_element_type=f32)
        return jnp.einsum("...k,kd->...d", a, w_, precision=hp)

    def ln(z, g, bt):
        mu = jnp.mean(z, axis=-1, keepdims=True)
        var = jnp.mean((z - mu) ** 2, axis=-1, keepdims=True)
        return (z - mu) / jnp.sqrt(var + eps) * g.reshape(-1) + bt.reshape(-1)

    y = ln(x, params["ln1_g"], params["ln1_b"])
    qkv = store(mm(y, params["w_qkv"]) + params["b_qkv"].reshape(-1))
    qkv = qkv.reshape(b, n, 3, h, dh).transpose(2, 0, 3, 1, 4)
    q, k, v = qkv[0], qkv[1], qkv[2]

    if mirror:
        s = jnp.einsum("bhnd,bhmd->bhnm", cast(q), cast(k),
                       preferred_element_type=f32) * (dh ** -0.5)
        mx = jnp.max(s, axis=-1, keepdims=True)
        p = jnp.exp(s - mx)
        l = jnp.sum(p, axis=-1, keepdims=True)
        o = jnp.einsum("bhnm,bhmd->bhnd", cast(p), cast(v),
                       preferred_element_type=f32) / l
    else:
        s = jnp.einsum("bhnd,bhmd->bhnm", q, k, precision=hp) * (dh ** -0.5)
        p = jax.nn.softmax(s, axis=-1)
        o = jnp.einsum("bhnm,bhmd->bhnd", p, v, precision=hp)

    o = store(o.transpose(0, 2, 1, 3).reshape(b, n, c))
    x1 = x + mm(o, params["w_proj"]) + params["b_proj"].reshape(-1)
    y2 = ln(x1, params["ln2_g"], params["ln2_b"])
    hmid = jax.nn.gelu(mm(y2, params["w_fc1"]) + params["b_fc1"].reshape(-1),
                       approximate=False)
    hmid = store(hmid)
    return x1 + mm(hmid, params["w_fc2"]) + params["b_fc2"].reshape(-1)


if __name__ == "__main__":
    key = jax.random.PRNGKey(0)
    ks = jax.random.split(key, 12)

    # Small shapes implied by the module: (B, N, dim) tokens, `heads`, `mlp_dim`.
    B, N, dim, heads, mlp_dim = 2, 128, 256, 4, 512

    x = jax.random.normal(ks[0], (B, N, dim), dtype=jnp.float32)

    def w(k_, shape, scale):
        return (scale * jax.random.normal(k_, shape)).astype(jnp.float32)

    params = dict(
        ln1_g=(1.0 + 0.1 * jax.random.normal(ks[1], (dim,))).reshape(1, dim).astype(jnp.float32),
        ln1_b=(0.1 * jax.random.normal(ks[2], (dim,))).reshape(1, dim).astype(jnp.float32),
        w_qkv=w(ks[3], (dim, 3 * dim), dim ** -0.5),
        b_qkv=w(ks[4], (1, 3 * dim), 0.02),
        w_proj=w(ks[5], (dim, dim), dim ** -0.5),
        b_proj=w(ks[6], (1, dim), 0.02),
        ln2_g=(1.0 + 0.1 * jax.random.normal(ks[7], (dim,))).reshape(1, dim).astype(jnp.float32),
        ln2_b=(0.1 * jax.random.normal(ks[8], (dim,))).reshape(1, dim).astype(jnp.float32),
        w_fc1=w(ks[9], (dim, mlp_dim), dim ** -0.5),
        b_fc1=w(ks[10], (1, mlp_dim), 0.02),
        w_fc2=w(ks[11], (mlp_dim, dim), mlp_dim ** -0.5),
        b_fc2=jnp.zeros((1, dim), jnp.float32),
    )

    fwd = jax.jit(functools.partial(block_forward, heads=heads))
    out = jax.block_until_ready(fwd(x, params))
    assert out.shape == (B, N, dim)

    # Tight check against a reference that mirrors the kernels' bf16 matmul
    # operands / bf16 activation storage (verifies kernel structure + numerics).
    ref_mirror = _reference(x, params, heads=heads, mirror=True)
    err_m = float(jnp.max(jnp.abs(out - ref_mirror)))
    assert jnp.allclose(out, ref_mirror, atol=5e-3, rtol=5e-3), (
        f"mismatch vs bf16-mirrored reference: {err_m}")

    # Loose sanity check against the exact float32 PyTorch semantics (bf16
    # MXU matmuls account for the gap).
    ref_f32 = _reference(x, params, heads=heads, mirror=False)
    err_f = float(jnp.max(jnp.abs(out - ref_f32)))
    assert jnp.allclose(out, ref_f32, atol=1e-1, rtol=1e-1), (
        f"mismatch vs float32 reference: {err_f}")

    print("KERNEL_OK")
</pallas_src>

<mosaic_0001>
module attributes {stable_mosaic.version = 11 : i64} {
  func.func @_attention_kernel(%arg0: i32, %arg1: i32, %arg2: memref<1x128x256xbf16, #tpu.memory_space<vmem>>, %arg3: memref<1x128x256xbf16, #tpu.memory_space<vmem>>, %arg4: memref<1x128x256xbf16, #tpu.memory_space<vmem>>, %arg5: memref<1x128x256xbf16, #tpu.memory_space<vmem>>) attributes {dimension_semantics = [#tpu.dimension_semantics<parallel>, #tpu.dimension_semantics<parallel>], iteration_bounds = array<i64: 2, 1>, scalar_prefetch = 0 : i64, scratch_operands = 0 : i64, tpu.core_type = #tpu.core_type<tc>, window_params = [{transform_indices = @transform_0, window_bounds = array<i64: 1, 128, 256>}, {transform_indices = @transform_1, window_bounds = array<i64: 1, 128, 256>}, {transform_indices = @transform_2, window_bounds = array<i64: 1, 128, 256>}, {transform_indices = @transform_3, window_bounds = array<i64: 1, 128, 256>}]} {
    %c0 = arith.constant 0 : index
    %c0_0 = arith.constant 0 : index
    %c0_1 = arith.constant 0 : index
    %0 = vector.load %arg2[%c0, %c0_0, %c0_1] : memref<1x128x256xbf16, #tpu.memory_space<vmem>>, vector<1x128x256xbf16>
    %1 = vector.shape_cast %0 : vector<1x128x256xbf16> to vector<128x256xbf16>
    %c0_2 = arith.constant 0 : index
    %c0_3 = arith.constant 0 : index
    %c0_4 = arith.constant 0 : index
    %2 = vector.load %arg3[%c0_2, %c0_3, %c0_4] : memref<1x128x256xbf16, #tpu.memory_space<vmem>>, vector<1x128x256xbf16>
    %3 = vector.shape_cast %2 : vector<1x128x256xbf16> to vector<128x256xbf16>
    %c0_5 = arith.constant 0 : index
    %c0_6 = arith.constant 0 : index
    %c0_7 = arith.constant 0 : index
    %4 = vector.load %arg4[%c0_5, %c0_6, %c0_7] : memref<1x128x256xbf16, #tpu.memory_space<vmem>>, vector<1x128x256xbf16>
    %5 = vector.shape_cast %4 : vector<1x128x256xbf16> to vector<128x256xbf16>
    %6 = vector.extract_strided_slice %1 {offsets = [0, 0], sizes = [128, 64], strides = [1, 1]} : vector<128x256xbf16> to vector<128x64xbf16>
    %7 = vector.extract_strided_slice %3 {offsets = [0, 0], sizes = [128, 64], strides = [1, 1]} : vector<128x256xbf16> to vector<128x64xbf16>
    %cst = arith.constant dense<0.000000e+00> : vector<128x128xf32>
    %8 = tpu.matmul %6, %7, %cst {dimension_numbers = #tpu.dot_dimension_numbers<[1], [1], [0], [0], [0, 0, 1, 0], [], []>} : vector<128x64xbf16>, vector<128x64xbf16>, vector<128x128xf32> -> vector<128x128xf32>
    %cst_8 = arith.constant 1.250000e-01 : f32
    %9 = vector.broadcast %cst_8 : f32 to vector<128x128xf32>
    %10 = arith.mulf %8, %9 : vector<128x128xf32>
    %cst_9 = arith.constant dense<0xFF800000> : vector<128xf32>
    %11 = vector.multi_reduction <maximumf>, %10, %cst_9 [1] : vector<128x128xf32> to vector<128xf32>
    %12 = vector.shape_cast %11 : vector<128xf32> to vector<128x1xf32>
    %13 = vector.broadcast %12 : vector<128x1xf32> to vector<128x128xf32>
    %14 = arith.subf %10, %13 : vector<128x128xf32>
    %15 = math.exp %14 : vector<128x128xf32>
    %cst_10 = arith.constant dense<0.000000e+00> : vector<128xf32>
    %16 = vector.multi_reduction <add>, %15, %cst_10 [1] : vector<128x128xf32> to vector<128xf32>
    %17 = vector.shape_cast %16 : vector<128xf32> to vector<128x1xf32>
    %18 = arith.truncf %15 : vector<128x128xf32> to vector<128x128xbf16>
    %19 = vector.extract_strided_slice %5 {offsets = [0, 0], sizes = [128, 64], strides = [1, 1]} : vector<128x256xbf16> to vector<128x64xbf16>
    %cst_11 = arith.constant dense<0.000000e+00> : vector<128x64xf32>
    %20 = tpu.matmul %18, %19, %cst_11 {dimension_numbers = #tpu.dot_dimension_numbers<[1], [0], [0], [1], [0, 0, 1, 1], [], []>} : vector<128x128xbf16>, vector<128x64xbf16>, vector<128x64xf32> -> vector<128x64xf32>
    %21 = tpu.reciprocal %17 {approx = true} : vector<128x1xf32> -> vector<128x1xf32>
    %22 = arith.mulf %17, %21 : vector<128x1xf32>
    %cst_12 = arith.constant 2.000000e+00 : f32
    %23 = vector.broadcast %cst_12 : f32 to vector<128x1xf32>
    %24 = arith.subf %23, %22 : vector<128x1xf32>
    %25 = arith.mulf %21, %24 : vector<128x1xf32>
    %26 = vector.broadcast %25 : vector<128x1xf32> to vector<128x64xf32>
    %27 = arith.mulf %20, %26 : vector<128x64xf32>
    %28 = vector.extract_strided_slice %1 {offsets = [0, 64], sizes = [128, 64], strides = [1, 1]} : vector<128x256xbf16> to vector<128x64xbf16>
    %29 = vector.extract_strided_slice %3 {offsets = [0, 64], sizes = [128, 64], strides = [1, 1]} : vector<128x256xbf16> to vector<128x64xbf16>
    %cst_13 = arith.constant dense<0.000000e+00> : vector<128x128xf32>
    %30 = tpu.matmul %28, %29, %cst_13 {dimension_numbers = #tpu.dot_dimension_numbers<[1], [1], [0], [0], [0, 0, 1, 0], [], []>} : vector<128x64xbf16>, vector<128x64xbf16>, vector<128x128xf32> -> vector<128x128xf32>
    %cst_14 = arith.constant 1.250000e-01 : f32
    %31 = vector.broadcast %cst_14 : f32 to vector<128x128xf32>
    %32 = arith.mulf %30, %31 : vector<128x128xf32>
    %cst_15 = arith.constant dense<0xFF800000> : vector<128xf32>
    %33 = vector.multi_reduction <maximumf>, %32, %cst_15 [1] : vector<128x128xf32> to vector<128xf32>
    %34 = vector.shape_cast %33 : vector<128xf32> to vector<128x1xf32>
    %35 = vector.broadcast %34 : vector<128x1xf32> to vector<128x128xf32>
    %36 = arith.subf %32, %35 : vector<128x128xf32>
    %37 = math.exp %36 : vector<128x128xf32>
    %cst_16 = arith.constant dense<0.000000e+00> : vector<128xf32>
    %38 = vector.multi_reduction <add>, %37, %cst_16 [1] : vector<128x128xf32> to vector<128xf32>
    %39 = vector.shape_cast %38 : vector<128xf32> to vector<128x1xf32>
    %40 = arith.truncf %37 : vector<128x128xf32> to vector<128x128xbf16>
    %41 = vector.extract_strided_slice %5 {offsets = [0, 64], sizes = [128, 64], strides = [1, 1]} : vector<128x256xbf16> to vector<128x64xbf16>
    %cst_17 = arith.constant dense<0.000000e+00> : vector<128x64xf32>
    %42 = tpu.matmul %40, %41, %cst_17 {dimension_numbers = #tpu.dot_dimension_numbers<[1], [0], [0], [1], [0, 0, 1, 1], [], []>} : vector<128x128xbf16>, vector<128x64xbf16>, vector<128x64xf32> -> vector<128x64xf32>
    %43 = tpu.reciprocal %39 {approx = true} : vector<128x1xf32> -> vector<128x1xf32>
    %44 = arith.mulf %39, %43 : vector<128x1xf32>
    %cst_18 = arith.constant 2.000000e+00 : f32
    %45 = vector.broadcast %cst_18 : f32 to vector<128x1xf32>
    %46 = arith.subf %45, %44 : vector<128x1xf32>
    %47 = arith.mulf %43, %46 : vector<128x1xf32>
    %48 = vector.broadcast %47 : vector<128x1xf32> to vector<128x64xf32>
    %49 = arith.mulf %42, %48 : vector<128x64xf32>
    %50 = vector.extract_strided_slice %1 {offsets = [0, 128], sizes = [128, 64], strides = [1, 1]} : vector<128x256xbf16> to vector<128x64xbf16>
    %51 = vector.extract_strided_slice %3 {offsets = [0, 128], sizes = [128, 64], strides = [1, 1]} : vector<128x256xbf16> to vector<128x64xbf16>
    %cst_19 = arith.constant dense<0.000000e+00> : vector<128x128xf32>
    %52 = tpu.matmul %50, %51, %cst_19 {dimension_numbers = #tpu.dot_dimension_numbers<[1], [1], [0], [0], [0, 0, 1, 0], [], []>} : vector<128x64xbf16>, vector<128x64xbf16>, vector<128x128xf32> -> vector<128x128xf32>
    %cst_20 = arith.constant 1.250000e-01 : f32
    %53 = vector.broadcast %cst_20 : f32 to vector<128x128xf32>
    %54 = arith.mulf %52, %53 : vector<128x128xf32>
    %cst_21 = arith.constant dense<0xFF800000> : vector<128xf32>
    %55 = vector.multi_reduction <maximumf>, %54, %cst_21 [1] : vector<128x128xf32> to vector<128xf32>
    %56 = vector.shape_cast %55 : vector<128xf32> to vector<128x1xf32>
    %57 = vector.broadcast %56 : vector<128x1xf32> to vector<128x128xf32>
    %58 = arith.subf %54, %57 : vector<128x128xf32>
    %59 = math.exp %58 : vector<128x128xf32>
    %cst_22 = arith.constant dense<0.000000e+00> : vector<128xf32>
    %60 = vector.multi_reduction <add>, %59, %cst_22 [1] : vector<128x128xf32> to vector<128xf32>
    %61 = vector.shape_cast %60 : vector<128xf32> to vector<128x1xf32>
    %62 = arith.truncf %59 : vector<128x128xf32> to vector<128x128xbf16>
    %63 = vector.extract_strided_slice %5 {offsets = [0, 128], sizes = [128, 64], strides = [1, 1]} : vector<128x256xbf16> to vector<128x64xbf16>
    %cst_23 = arith.constant dense<0.000000e+00> : vector<128x64xf32>
    %64 = tpu.matmul %62, %63, %cst_23 {dimension_numbers = #tpu.dot_dimension_numbers<[1], [0], [0], [1], [0, 0, 1, 1], [], []>} : vector<128x128xbf16>, vector<128x64xbf16>, vector<128x64xf32> -> vector<128x64xf32>
    %65 = tpu.reciprocal %61 {approx = true} : vector<128x1xf32> -> vector<128x1xf32>
    %66 = arith.mulf %61, %65 : vector<128x1xf32>
    %cst_24 = arith.constant 2.000000e+00 : f32
    %67 = vector.broadcast %cst_24 : f32 to vector<128x1xf32>
    %68 = arith.subf %67, %66 : vector<128x1xf32>
    %69 = arith.mulf %65, %68 : vector<128x1xf32>
    %70 = vector.broadcast %69 : vector<128x1xf32> to vector<128x64xf32>
    %71 = arith.mulf %64, %70 : vector<128x64xf32>
    %72 = vector.extract_strided_slice %1 {offsets = [0, 192], sizes = [128, 64], strides = [1, 1]} : vector<128x256xbf16> to vector<128x64xbf16>
    %73 = vector.extract_strided_slice %3 {offsets = [0, 192], sizes = [128, 64], strides = [1, 1]} : vector<128x256xbf16> to vector<128x64xbf16>
    %cst_25 = arith.constant dense<0.000000e+00> : vector<128x128xf32>
    %74 = tpu.matmul %72, %73, %cst_25 {dimension_numbers = #tpu.dot_dimension_numbers<[1], [1], [0], [0], [0, 0, 1, 0], [], []>} : vector<128x64xbf16>, vector<128x64xbf16>, vector<128x128xf32> -> vector<128x128xf32>
    %cst_26 = arith.constant 1.250000e-01 : f32
    %75 = vector.broadcast %cst_26 : f32 to vector<128x128xf32>
    %76 = arith.mulf %74, %75 : vector<128x128xf32>
    %cst_27 = arith.constant dense<0xFF800000> : vector<128xf32>
    %77 = vector.multi_reduction <maximumf>, %76, %cst_27 [1] : vector<128x128xf32> to vector<128xf32>
    %78 = vector.shape_cast %77 : vector<128xf32> to vector<128x1xf32>
    %79 = vector.broadcast %78 : vector<128x1xf32> to vector<128x128xf32>
    %80 = arith.subf %76, %79 : vector<128x128xf32>
    %81 = math.exp %80 : vector<128x128xf32>
    %cst_28 = arith.constant dense<0.000000e+00> : vector<128xf32>
    %82 = vector.multi_reduction <add>, %81, %cst_28 [1] : vector<128x128xf32> to vector<128xf32>
    %83 = vector.shape_cast %82 : vector<128xf32> to vector<128x1xf32>
    %84 = arith.truncf %81 : vector<128x128xf32> to vector<128x128xbf16>
    %85 = vector.extract_strided_slice %5 {offsets = [0, 192], sizes = [128, 64], strides = [1, 1]} : vector<128x256xbf16> to vector<128x64xbf16>
    %cst_29 = arith.constant dense<0.000000e+00> : vector<128x64xf32>
    %86 = tpu.matmul %84, %85, %cst_29 {dimension_numbers = #tpu.dot_dimension_numbers<[1], [0], [0], [1], [0, 0, 1, 1], [], []>} : vector<128x128xbf16>, vector<128x64xbf16>, vector<128x64xf32> -> vector<128x64xf32>
    %87 = tpu.reciprocal %83 {approx = true} : vector<128x1xf32> -> vector<128x1xf32>
    %88 = arith.mulf %83, %87 : vector<128x1xf32>
    %cst_30 = arith.constant 2.000000e+00 : f32
    %89 = vector.broadcast %cst_30 : f32 to vector<128x1xf32>
    %90 = arith.subf %89, %88 : vector<128x1xf32>
    %91 = arith.mulf %87, %90 : vector<128x1xf32>
    %92 = vector.broadcast %91 : vector<128x1xf32> to vector<128x64xf32>
    %93 = arith.mulf %86, %92 : vector<128x64xf32>
    %94 = tpu.concatenate %27, %49, %71, %93 in 1 : vector<128x64xf32>, vector<128x64xf32>, vector<128x64xf32>, vector<128x64xf32> -> vector<128x256xf32>
    %95 = arith.truncf %94 : vector<128x256xf32> to vector<128x256xbf16>
    %c0_31 = arith.constant 0 : index
    %c0_32 = arith.constant 0 : index
    %c0_33 = arith.constant 0 : index
    %96 = vector.load %arg5[%c0_31, %c0_32, %c0_33] : memref<1x128x256xbf16, #tpu.memory_space<vmem>>, vector<1x128x256xbf16>
    %97 = vector.shape_cast %96 : vector<1x128x256xbf16> to vector<128x256xbf16>
    %98 = vector.shape_cast %95 : vector<128x256xbf16> to vector<1x128x256xbf16>
    tpu.vector_store %arg5[%c0_31, %c0_32, %c0_33], %98 {strides = array<i32>} : memref<1x128x256xbf16, #tpu.memory_space<vmem>>, vector<1x128x256xbf16>,
    return
  }
  func.func @transform_0(%arg0: i32, %arg1: i32) -> (i32, i32, i32) {
    %c0_i32 = arith.constant 0 : i32
    %c0_i32_0 = arith.constant 0 : i32
    return %arg0, %arg1, %c0_i32 : i32, i32, i32
  }
  func.func @transform_1(%arg0: i32, %arg1: i32) -> (i32, i32, i32) {
    %c0_i32 = arith.constant 0 : i32
    %c1_i32 = arith.constant 1 : i32
    %c0_i32_0 = arith.constant 0 : i32
    return %arg0, %c0_i32, %c1_i32 : i32, i32, i32
  }
  func.func @transform_2(%arg0: i32, %arg1: i32) -> (i32, i32, i32) {
    %c0_i32 = arith.constant 0 : i32
    %c2_i32 = arith.constant 2 : i32
    %c0_i32_0 = arith.constant 0 : i32
    return %arg0, %c0_i32, %c2_i32 : i32, i32, i32
  }
  func.func @transform_3(%arg0: i32, %arg1: i32) -> (i32, i32, i32) {
    %c0_i32 = arith.constant 0 : i32
    %c0_i32_0 = arith.constant 0 : i32
    return %arg0, %arg1, %c0_i32 : i32, i32, i32
  }
}

module attributes {stable_mosaic.version = 11 : i64} {
  func.func @_ln_linear_kernel(%arg0: i32, %arg1: memref<128x256xf32, #tpu.memory_space<vmem>>, %arg2: memref<1x256xf32, #tpu.memory_space<vmem>>, %arg3: memref<1x256xf32, #tpu.memory_space<vmem>>, %arg4: memref<256x768xbf16, #tpu.memory_space<vmem>>, %arg5: memref<1x768xf32, #tpu.memory_space<vmem>>, %arg6: memref<128x768xbf16, #tpu.memory_space<vmem>>) attributes {dimension_semantics = [#tpu.dimension_semantics<parallel>], iteration_bounds = array<i64: 2>, scalar_prefetch = 0 : i64, scratch_operands = 0 : i64, tpu.core_type = #tpu.core_type<tc>, window_params = [{transform_indices = @transform_0, window_bounds = array<i64: 128, 256>}, {pipeline_mode = #tpu.pipeline_mode<synchronous>, transform_indices = @transform_1, window_bounds = array<i64: 1, 256>}, {pipeline_mode = #tpu.pipeline_mode<synchronous>, transform_indices = @transform_2, window_bounds = array<i64: 1, 256>}, {pipeline_mode = #tpu.pipeline_mode<synchronous>, transform_indices = @transform_3, window_bounds = array<i64: 256, 768>}, {pipeline_mode = #tpu.pipeline_mode<synchronous>, transform_indices = @transform_4, window_bounds = array<i64: 1, 768>}, {transform_indices = @transform_5, window_bounds = array<i64: 128, 768>}]} {
    %c0 = arith.constant 0 : index
    %c0_0 = arith.constant 0 : index
    %0 = vector.load %arg1[%c0, %c0_0] : memref<128x256xf32, #tpu.memory_space<vmem>>, vector<128x256xf32>
    %cst = arith.constant dense<0.000000e+00> : vector<128xf32>
    %1 = vector.multi_reduction <add>, %0, %cst [1] : vector<128x256xf32> to vector<128xf32>
    %2 = vector.shape_cast %1 : vector<128xf32> to vector<128x1xf32>
    %cst_1 = arith.constant 3.906250e-03 : f32
    %3 = vector.broadcast %cst_1 : f32 to vector<128x1xf32>
    %4 = arith.mulf %2, %3 : vector<128x1xf32>
    %5 = vector.broadcast %4 : vector<128x1xf32> to vector<128x256xf32>
    %6 = arith.subf %0, %5 : vector<128x256xf32>
    %7 = arith.mulf %6, %6 : vector<128x256xf32>
    %cst_2 = arith.constant dense<0.000000e+00> : vector<128xf32>
    %8 = vector.multi_reduction <add>, %7, %cst_2 [1] : vector<128x256xf32> to vector<128xf32>
    %9 = vector.shape_cast %8 : vector<128xf32> to vector<128x1xf32>
    %cst_3 = arith.constant 3.906250e-03 : f32
    %10 = vector.broadcast %cst_3 : f32 to vector<128x1xf32>
    %11 = arith.mulf %9, %10 : vector<128x1xf32>
    %cst_4 = arith.constant 9.99999974E-6 : f32
    %12 = vector.broadcast %cst_4 : f32 to vector<128x1xf32>
    %13 = arith.addf %11, %12 : vector<128x1xf32>
    %14 = math.rsqrt %13 : vector<128x1xf32>
    %15 = vector.broadcast %14 : vector<128x1xf32> to vector<128x256xf32>
    %16 = arith.mulf %6, %15 : vector<128x256xf32>
    %c0_5 = arith.constant 0 : index
    %c0_6 = arith.constant 0 : index
    %17 = vector.load %arg2[%c0_5, %c0_6] : memref<1x256xf32, #tpu.memory_space<vmem>>, vector<1x256xf32>
    %18 = vector.broadcast %17 : vector<1x256xf32> to vector<128x256xf32>
    %19 = arith.mulf %16, %18 : vector<128x256xf32>
    %c0_7 = arith.constant 0 : index
    %c0_8 = arith.constant 0 : index
    %20 = vector.load %arg3[%c0_7, %c0_8] : memref<1x256xf32, #tpu.memory_space<vmem>>, vector<1x256xf32>
    %21 = vector.broadcast %20 : vector<1x256xf32> to vector<128x256xf32>
    %22 = arith.addf %19, %21 : vector<128x256xf32>
    %23 = arith.truncf %22 : vector<128x256xf32> to vector<128x256xbf16>
    %c0_9 = arith.constant 0 : index
    %c0_10 = arith.constant 0 : index
    %24 = vector.load %arg4[%c0_9, %c0_10] : memref<256x768xbf16, #tpu.memory_space<vmem>>, vector<256x768xbf16>
    %cst_11 = arith.constant dense<0.000000e+00> : vector<128x768xf32>
    %25 = tpu.matmul %23, %24, %cst_11 {dimension_numbers = #tpu.dot_dimension_numbers<[1], [0], [0], [1], [0, 0, 1, 1], [], []>} : vector<128x256xbf16>, vector<256x768xbf16>, vector<128x768xf32> -> vector<128x768xf32>
    %c0_12 = arith.constant 0 : index
    %c0_13 = arith.constant 0 : index
    %26 = vector.load %arg5[%c0_12, %c0_13] : memref<1x768xf32, #tpu.memory_space<vmem>>, vector<1x768xf32>
    %27 = vector.broadcast %26 : vector<1x768xf32> to vector<128x768xf32>
    %28 = arith.addf %25, %27 : vector<128x768xf32>
    %29 = arith.truncf %28 : vector<128x768xf32> to vector<128x768xbf16>
    %c0_14 = arith.constant 0 : index
    %c0_15 = arith.constant 0 : index
    %30 = vector.load %arg6[%c0_14, %c0_15] : memref<128x768xbf16, #tpu.memory_space<vmem>>, vector<128x768xbf16>
    tpu.vector_store %arg6[%c0_14, %c0_15], %29 {strides = array<i32>} : memref<128x768xbf16, #tpu.memory_space<vmem>>, vector<128x768xbf16>,
    return
  }
  func.func @transform_0(%arg0: i32) -> (i32, i32) {
    %c0_i32 = arith.constant 0 : i32
    %c0_i32_0 = arith.constant 0 : i32
    return %arg0, %c0_i32 : i32, i32
  }
  func.func @transform_1(%arg0: i32) -> (i32, i32) {
    %c0_i32 = arith.constant 0 : i32
    %c0_i32_0 = arith.constant 0 : i32
    %c0_i32_1 = arith.constant 0 : i32
    return %c0_i32, %c0_i32_0 : i32, i32
  }
  func.func @transform_2(%arg0: i32) -> (i32, i32) {
    %c0_i32 = arith.constant 0 : i32
    %c0_i32_0 = arith.constant 0 : i32
    %c0_i32_1 = arith.constant 0 : i32
    return %c0_i32, %c0_i32_0 : i32, i32
  }
  func.func @transform_3(%arg0: i32) -> (i32, i32) {
    %c0_i32 = arith.constant 0 : i32
    %c0_i32_0 = arith.constant 0 : i32
    %c0_i32_1 = arith.constant 0 : i32
    return %c0_i32, %c0_i32_0 : i32, i32
  }
  func.func @transform_4(%arg0: i32) -> (i32, i32) {
    %c0_i32 = arith.constant 0 : i32
    %c0_i32_0 = arith.constant 0 : i32
    %c0_i32_1 = arith.constant 0 : i32
    return %c0_i32, %c0_i32_0 : i32, i32
  }
  func.func @transform_5(%arg0: i32) -> (i32, i32) {
    %c0_i32 = arith.constant 0 : i32
    %c0_i32_0 = arith.constant 0 : i32
    return %arg0, %c0_i32 : i32, i32
  }
}

module attributes {stable_mosaic.version = 11 : i64} {
  func.func @_proj_res_ln_fc1_kernel(%arg0: i32, %arg1: memref<128x256xbf16, #tpu.memory_space<vmem>>, %arg2: memref<128x256xf32, #tpu.memory_space<vmem>>, %arg3: memref<256x256xbf16, #tpu.memory_space<vmem>>, %arg4: memref<1x256xf32, #tpu.memory_space<vmem>>, %arg5: memref<1x256xf32, #tpu.memory_space<vmem>>, %arg6: memref<1x256xf32, #tpu.memory_space<vmem>>, %arg7: memref<256x512xbf16, #tpu.memory_space<vmem>>, %arg8: memref<1x512xf32, #tpu.memory_space<vmem>>, %arg9: memref<128x256xf32, #tpu.memory_space<vmem>>, %arg10: memref<128x512xbf16, #tpu.memory_space<vmem>>) attributes {dimension_semantics = [#tpu.dimension_semantics<parallel>], iteration_bounds = array<i64: 2>, scalar_prefetch = 0 : i64, scratch_operands = 0 : i64, tpu.core_type = #tpu.core_type<tc>, window_params = [{transform_indices = @transform_0, window_bounds = array<i64: 128, 256>}, {transform_indices = @transform_1, window_bounds = array<i64: 128, 256>}, {pipeline_mode = #tpu.pipeline_mode<synchronous>, transform_indices = @transform_2, window_bounds = array<i64: 256, 256>}, {pipeline_mode = #tpu.pipeline_mode<synchronous>, transform_indices = @transform_3, window_bounds = array<i64: 1, 256>}, {pipeline_mode = #tpu.pipeline_mode<synchronous>, transform_indices = @transform_4, window_bounds = array<i64: 1, 256>}, {pipeline_mode = #tpu.pipeline_mode<synchronous>, transform_indices = @transform_5, window_bounds = array<i64: 1, 256>}, {pipeline_mode = #tpu.pipeline_mode<synchronous>, transform_indices = @transform_6, window_bounds = array<i64: 256, 512>}, {pipeline_mode = #tpu.pipeline_mode<synchronous>, transform_indices = @transform_7, window_bounds = array<i64: 1, 512>}, {transform_indices = @transform_8, window_bounds = array<i64: 128, 256>}, {transform_indices = @transform_9, window_bounds = array<i64: 128, 512>}]} {
    %c0 = arith.constant 0 : index
    %c0_0 = arith.constant 0 : index
    %0 = vector.load %arg1[%c0, %c0_0] : memref<128x256xbf16, #tpu.memory_space<vmem>>, vector<128x256xbf16>
    %c0_1 = arith.constant 0 : index
    %c0_2 = arith.constant 0 : index
    %1 = vector.load %arg3[%c0_1, %c0_2] : memref<256x256xbf16, #tpu.memory_space<vmem>>, vector<256x256xbf16>
    %cst = arith.constant dense<0.000000e+00> : vector<128x256xf32>
    %2 = tpu.matmul %0, %1, %cst {dimension_numbers = #tpu.dot_dimension_numbers<[1], [0], [0], [1], [0, 0, 1, 1], [], []>} : vector<128x256xbf16>, vector<256x256xbf16>, vector<128x256xf32> -> vector<128x256xf32>
    %c0_3 = arith.constant 0 : index
    %c0_4 = arith.constant 0 : index
    %3 = vector.load %arg4[%c0_3, %c0_4] : memref<1x256xf32, #tpu.memory_space<vmem>>, vector<1x256xf32>
    %4 = vector.broadcast %3 : vector<1x256xf32> to vector<128x256xf32>
    %5 = arith.addf %2, %4 : vector<128x256xf32>
    %c0_5 = arith.constant 0 : index
    %c0_6 = arith.constant 0 : index
    %6 = vector.load %arg2[%c0_5, %c0_6] : memref<128x256xf32, #tpu.memory_space<vmem>>, vector<128x256xf32>
    %7 = arith.addf %5, %6 : vector<128x256xf32>
    %c0_7 = arith.constant 0 : index
    %c0_8 = arith.constant 0 : index
    %8 = vector.load %arg9[%c0_7, %c0_8] : memref<128x256xf32, #tpu.memory_space<vmem>>, vector<128x256xf32>
    tpu.vector_store %arg9[%c0_7, %c0_8], %7 {strides = array<i32>} : memref<128x256xf32, #tpu.memory_space<vmem>>, vector<128x256xf32>,
    %cst_9 = arith.constant dense<0.000000e+00> : vector<128xf32>
    %9 = vector.multi_reduction <add>, %7, %cst_9 [1] : vector<128x256xf32> to vector<128xf32>
    %10 = vector.shape_cast %9 : vector<128xf32> to vector<128x1xf32>
    %cst_10 = arith.constant 3.906250e-03 : f32
    %11 = vector.broadcast %cst_10 : f32 to vector<128x1xf32>
    %12 = arith.mulf %10, %11 : vector<128x1xf32>
    %13 = vector.broadcast %12 : vector<128x1xf32> to vector<128x256xf32>
    %14 = arith.subf %7, %13 : vector<128x256xf32>
    %15 = arith.mulf %14, %14 : vector<128x256xf32>
    %cst_11 = arith.constant dense<0.000000e+00> : vector<128xf32>
    %16 = vector.multi_reduction <add>, %15, %cst_11 [1] : vector<128x256xf32> to vector<128xf32>
    %17 = vector.shape_cast %16 : vector<128xf32> to vector<128x1xf32>
    %cst_12 = arith.constant 3.906250e-03 : f32
    %18 = vector.broadcast %cst_12 : f32 to vector<128x1xf32>
    %19 = arith.mulf %17, %18 : vector<128x1xf32>
    %cst_13 = arith.constant 9.99999974E-6 : f32
    %20 = vector.broadcast %cst_13 : f32 to vector<128x1xf32>
    %21 = arith.addf %19, %20 : vector<128x1xf32>
    %22 = math.rsqrt %21 : vector<128x1xf32>
    %23 = vector.broadcast %22 : vector<128x1xf32> to vector<128x256xf32>
    %24 = arith.mulf %14, %23 : vector<128x256xf32>
    %c0_14 = arith.constant 0 : index
    %c0_15 = arith.constant 0 : index
    %25 = vector.load %arg5[%c0_14, %c0_15] : memref<1x256xf32, #tpu.memory_space<vmem>>, vector<1x256xf32>
    %26 = vector.broadcast %25 : vector<1x256xf32> to vector<128x256xf32>
    %27 = arith.mulf %24, %26 : vector<128x256xf32>
    %c0_16 = arith.constant 0 : index
    %c0_17 = arith.constant 0 : index
    %28 = vector.load %arg6[%c0_16, %c0_17] : memref<1x256xf32, #tpu.memory_space<vmem>>, vector<1x256xf32>
    %29 = vector.broadcast %28 : vector<1x256xf32> to vector<128x256xf32>
    %30 = arith.addf %27, %29 : vector<128x256xf32>
    %31 = arith.truncf %30 : vector<128x256xf32> to vector<128x256xbf16>
    %c0_18 = arith.constant 0 : index
    %c0_19 = arith.constant 0 : index
    %32 = vector.load %arg7[%c0_18, %c0_19] : memref<256x512xbf16, #tpu.memory_space<vmem>>, vector<256x512xbf16>
    %cst_20 = arith.constant dense<0.000000e+00> : vector<128x512xf32>
    %33 = tpu.matmul %31, %32, %cst_20 {dimension_numbers = #tpu.dot_dimension_numbers<[1], [0], [0], [1], [0, 0, 1, 1], [], []>} : vector<128x256xbf16>, vector<256x512xbf16>, vector<128x512xf32> -> vector<128x512xf32>
    %c0_21 = arith.constant 0 : index
    %c0_22 = arith.constant 0 : index
    %34 = vector.load %arg8[%c0_21, %c0_22] : memref<1x512xf32, #tpu.memory_space<vmem>>, vector<1x512xf32>
    %35 = vector.broadcast %34 : vector<1x512xf32> to vector<128x512xf32>
    %36 = arith.addf %33, %35 : vector<128x512xf32>
    %cst_23 = arith.constant 5.000000e-01 : f32
    %37 = vector.broadcast %cst_23 : f32 to vector<128x512xf32>
    %38 = arith.mulf %37, %36 : vector<128x512xf32>
    %cst_24 = arith.constant 0.707106769 : f32
    %39 = vector.broadcast %cst_24 : f32 to vector<128x512xf32>
    %40 = arith.mulf %36, %39 : vector<128x512xf32>
    %cst_25 = arith.constant 0.000000e+00 : f32
    %41 = vector.broadcast %cst_25 : f32 to vector<128x512xf32>
    %42 = arith.cmpf oge, %40, %41 : vector<128x512xf32>
    %cst_26 = arith.constant 1.000000e+00 : f32
    %cst_27 = arith.constant -1.000000e+00 : f32
    %43 = vector.broadcast %cst_26 : f32 to vector<128x512xf32>
    %44 = vector.broadcast %cst_27 : f32 to vector<128x512xf32>
    %45 = arith.select %42, %43, %44 : vector<128x512xi1>, vector<128x512xf32>
    %46 = math.absf %40 : vector<128x512xf32>
    %cst_28 = arith.constant 0.327591091 : f32
    %47 = vector.broadcast %cst_28 : f32 to vector<128x512xf32>
    %48 = arith.mulf %47, %46 : vector<128x512xf32>
    %cst_29 = arith.constant 1.000000e+00 : f32
    %49 = vector.broadcast %cst_29 : f32 to vector<128x512xf32>
    %50 = arith.addf %49, %48 : vector<128x512xf32>
    %cst_30 = arith.constant 1.000000e+00 : f32
    %51 = vector.broadcast %cst_30 : f32 to vector<128x512xf32>
    %52 = arith.divf %51, %50 : vector<128x512xf32>
    %cst_31 = arith.constant 1.06140542 : f32
    %53 = vector.broadcast %cst_31 : f32 to vector<128x512xf32>
    %54 = arith.mulf %53, %52 : vector<128x512xf32>
    %cst_32 = arith.constant -1.45315206 : f32
    %55 = vector.broadcast %cst_32 : f32 to vector<128x512xf32>
    %56 = arith.addf %54, %55 : vector<128x512xf32>
    %57 = arith.mulf %56, %52 : vector<128x512xf32>
    %cst_33 = arith.constant 1.42141378 : f32
    %58 = vector.broadcast %cst_33 : f32 to vector<128x512xf32>
    %59 = arith.addf %57, %58 : vector<128x512xf32>
    %60 = arith.mulf %59, %52 : vector<128x512xf32>
    %cst_34 = arith.constant -0.284496725 : f32
    %61 = vector.broadcast %cst_34 : f32 to vector<128x512xf32>
    %62 = arith.addf %60, %61 : vector<128x512xf32>
    %63 = arith.mulf %62, %52 : vector<128x512xf32>
    %cst_35 = arith.constant 0.254829586 : f32
    %64 = vector.broadcast %cst_35 : f32 to vector<128x512xf32>
    %65 = arith.addf %63, %64 : vector<128x512xf32>
    %66 = arith.mulf %65, %52 : vector<128x512xf32>
    %cst_36 = arith.constant 0.000000e+00 : f32
    %67 = vector.broadcast %cst_36 : f32 to vector<128x512xf32>
    %68 = arith.subf %67, %46 : vector<128x512xf32>
    %69 = arith.mulf %68, %46 : vector<128x512xf32>
    %70 = math.exp %69 : vector<128x512xf32>
    %71 = arith.mulf %66, %70 : vector<128x512xf32>
    %cst_37 = arith.constant 1.000000e+00 : f32
    %72 = vector.broadcast %cst_37 : f32 to vector<128x512xf32>
    %73 = arith.subf %72, %71 : vector<128x512xf32>
    %74 = arith.mulf %45, %73 : vector<128x512xf32>
    %cst_38 = arith.constant 1.000000e+00 : f32
    %75 = vector.broadcast %cst_38 : f32 to vector<128x512xf32>
    %76 = arith.addf %75, %74 : vector<128x512xf32>
    %77 = arith.mulf %38, %76 : vector<128x512xf32>
    %78 = arith.truncf %77 : vector<128x512xf32> to vector<128x512xbf16>
    %c0_39 = arith.constant 0 : index
    %c0_40 = arith.constant 0 : index
    %79 = vector.load %arg10[%c0_39, %c0_40] : memref<128x512xbf16, #tpu.memory_space<vmem>>, vector<128x512xbf16>
    tpu.vector_store %arg10[%c0_39, %c0_40], %78 {strides = array<i32>} : memref<128x512xbf16, #tpu.memory_space<vmem>>, vector<128x512xbf16>,
    return
  }
  func.func @transform_0(%arg0: i32) -> (i32, i32) {
    %c0_i32 = arith.constant 0 : i32
    %c0_i32_0 = arith.constant 0 : i32
    return %arg0, %c0_i32 : i32, i32
  }
  func.func @transform_1(%arg0: i32) -> (i32, i32) {
    %c0_i32 = arith.constant 0 : i32
    %c0_i32_0 = arith.constant 0 : i32
    return %arg0, %c0_i32 : i32, i32
  }
  func.func @transform_2(%arg0: i32) -> (i32, i32) {
    %c0_i32 = arith.constant 0 : i32
    %c0_i32_0 = arith.constant 0 : i32
    %c0_i32_1 = arith.constant 0 : i32
    return %c0_i32, %c0_i32_0 : i32, i32
  }
  func.func @transform_3(%arg0: i32) -> (i32, i32) {
    %c0_i32 = arith.constant 0 : i32
    %c0_i32_0 = arith.constant 0 : i32
    %c0_i32_1 = arith.constant 0 : i32
    return %c0_i32, %c0_i32_0 : i32, i32
  }
  func.func @transform_4(%arg0: i32) -> (i32, i32) {
    %c0_i32 = arith.constant 0 : i32
    %c0_i32_0 = arith.constant 0 : i32
    %c0_i32_1 = arith.constant 0 : i32
    return %c0_i32, %c0_i32_0 : i32, i32
  }
  func.func @transform_5(%arg0: i32) -> (i32, i32) {
    %c0_i32 = arith.constant 0 : i32
    %c0_i32_0 = arith.constant 0 : i32
    %c0_i32_1 = arith.constant 0 : i32
    return %c0_i32, %c0_i32_0 : i32, i32
  }
  func.func @transform_6(%arg0: i32) -> (i32, i32) {
    %c0_i32 = arith.constant 0 : i32
    %c0_i32_0 = arith.constant 0 : i32
    %c0_i32_1 = arith.constant 0 : i32
    return %c0_i32, %c0_i32_0 : i32, i32
  }
  func.func @transform_7(%arg0: i32) -> (i32, i32) {
    %c0_i32 = arith.constant 0 : i32
    %c0_i32_0 = arith.constant 0 : i32
    %c0_i32_1 = arith.constant 0 : i32
    return %c0_i32, %c0_i32_0 : i32, i32
  }
  func.func @transform_8(%arg0: i32) -> (i32, i32) {
    %c0_i32 = arith.constant 0 : i32
    %c0_i32_0 = arith.constant 0 : i32
    return %arg0, %c0_i32 : i32, i32
  }
  func.func @transform_9(%arg0: i32) -> (i32, i32) {
    %c0_i32 = arith.constant 0 : i32
    %c0_i32_0 = arith.constant 0 : i32
    return %arg0, %c0_i32 : i32, i32
  }
}

module attributes {stable_mosaic.version = 11 : i64} {
  func.func @_fc2_residual_kernel(%arg0: i32, %arg1: memref<128x512xbf16, #tpu.memory_space<vmem>>, %arg2: memref<512x256xbf16, #tpu.memory_space<vmem>>, %arg3: memref<1x256xf32, #tpu.memory_space<vmem>>, %arg4: memref<128x256xf32, #tpu.memory_space<vmem>>, %arg5: memref<128x256xf32, #tpu.memory_space<vmem>>) attributes {dimension_semantics = [#tpu.dimension_semantics<parallel>], iteration_bounds = array<i64: 2>, scalar_prefetch = 0 : i64, scratch_operands = 0 : i64, tpu.core_type = #tpu.core_type<tc>, window_params = [{transform_indices = @transform_0, window_bounds = array<i64: 128, 512>}, {pipeline_mode = #tpu.pipeline_mode<synchronous>, transform_indices = @transform_1, window_bounds = array<i64: 512, 256>}, {pipeline_mode = #tpu.pipeline_mode<synchronous>, transform_indices = @transform_2, window_bounds = array<i64: 1, 256>}, {transform_indices = @transform_3, window_bounds = array<i64: 128, 256>}, {transform_indices = @transform_4, window_bounds = array<i64: 128, 256>}]} {
    %c0 = arith.constant 0 : index
    %c0_0 = arith.constant 0 : index
    %0 = vector.load %arg1[%c0, %c0_0] : memref<128x512xbf16, #tpu.memory_space<vmem>>, vector<128x512xbf16>
    %c0_1 = arith.constant 0 : index
    %c0_2 = arith.constant 0 : index
    %1 = vector.load %arg2[%c0_1, %c0_2] : memref<512x256xbf16, #tpu.memory_space<vmem>>, vector<512x256xbf16>
    %cst = arith.constant dense<0.000000e+00> : vector<128x256xf32>
    %2 = tpu.matmul %0, %1, %cst {dimension_numbers = #tpu.dot_dimension_numbers<[1], [0], [0], [1], [0, 0, 1, 1], [], []>} : vector<128x512xbf16>, vector<512x256xbf16>, vector<128x256xf32> -> vector<128x256xf32>
    %c0_3 = arith.constant 0 : index
    %c0_4 = arith.constant 0 : index
    %3 = vector.load %arg3[%c0_3, %c0_4] : memref<1x256xf32, #tpu.memory_space<vmem>>, vector<1x256xf32>
    %4 = vector.broadcast %3 : vector<1x256xf32> to vector<128x256xf32>
    %5 = arith.addf %2, %4 : vector<128x256xf32>
    %c0_5 = arith.constant 0 : index
    %c0_6 = arith.constant 0 : index
    %6 = vector.load %arg4[%c0_5, %c0_6] : memref<128x256xf32, #tpu.memory_space<vmem>>, vector<128x256xf32>
    %7 = arith.addf %5, %6 : vector<128x256xf32>
    %c0_7 = arith.constant 0 : index
    %c0_8 = arith.constant 0 : index
    %8 = vector.load %arg5[%c0_7, %c0_8] : memref<128x256xf32, #tpu.memory_space<vmem>>, vector<128x256xf32>
    tpu.vector_store %arg5[%c0_7, %c0_8], %7 {strides = array<i32>} : memref<128x256xf32, #tpu.memory_space<vmem>>, vector<128x256xf32>,
    return
  }
  func.func @transform_0(%arg0: i32) -> (i32, i32) {
    %c0_i32 = arith.constant 0 : i32
    %c0_i32_0 = arith.constant 0 : i32
    return %arg0, %c0_i32 : i32, i32
  }
  func.func @transform_1(%arg0: i32) -> (i32, i32) {
    %c0_i32 = arith.constant 0 : i32
    %c0_i32_0 = arith.constant 0 : i32
    %c0_i32_1 = arith.constant 0 : i32
    return %c0_i32, %c0_i32_0 : i32, i32
  }
  func.func @transform_2(%arg0: i32) -> (i32, i32) {
    %c0_i32 = arith.constant 0 : i32
    %c0_i32_0 = arith.constant 0 : i32
    %c0_i32_1 = arith.constant 0 : i32
    return %c0_i32, %c0_i32_0 : i32, i32
  }
  func.func @transform_3(%arg0: i32) -> (i32, i32) {
    %c0_i32 = arith.constant 0 : i32
    %c0_i32_0 = arith.constant 0 : i32
    return %arg0, %c0_i32 : i32, i32
  }
  func.func @transform_4(%arg0: i32) -> (i32, i32) {
    %c0_i32 = arith.constant 0 : i32
    %c0_i32_0 = arith.constant 0 : i32
    return %arg0, %c0_i32 : i32, i32
  }
}

</mosaic_0001>

<llo_original>
// kernel: block_forward.4
$region0: #{block_forward.4}
  #allocation0 [shape = 'u32[]', space=smem, size = 0x4, offset = 0x4, fixed_abs, tag = 'smem constant byte address 0x4 - core index']
  #allocation1 [shape = 'u32[144,128]{1,0:T(1,128)}', space=vmem, size = 0x12000, scoped, tag = 'internal scratch']
  %s0 = inlined_call_operand.vmem [shape: f32[256,256], index: 0, kind: input, shape index: {}]
  %s1 = inlined_call_operand.vmem [shape: f32[1,256], index: 1, kind: input, shape index: {}]
  %s2 = inlined_call_operand.vmem [shape: f32[1,256], index: 2, kind: input, shape index: {}]
  %s3 = inlined_call_operand.vmem [shape: bf16[256,768], index: 3, kind: input, shape index: {}]
  %s4 = inlined_call_operand.vmem [shape: f32[1,768], index: 4, kind: input, shape index: {}]
  %s5 = inlined_call_operand.vmem [shape: bf16[256,768], index: 5, kind: output, shape index: {}]
  %s6 = sld [smem:[#allocation0]]
  $region53: #{block_forward.4} parent=0
    _
  %s8 = ssub.s32 1, %s6
  %s9 = scalar_select 0, %s8, %s6
  loop: start=0, step=1, limit=4
  $region2: #{block_forward.4} parent=0 // loop_pre_header
    _
  $region3: #{block_forward.4} parent=0 // loop_header
    %s11 = sphi 0, %s15
    %p12 = scmp.ge.s32.totalorder %s11, 4
    %s21 = sphi 0, %s23
    %s24 = sphi 0, %s21
    %s25 = sphi 0, %s24
    %s41 = sphi 0, %s25
    %s45 = sphi 0, %s45
    %s47 = sphi 0, %s45
    %s48 = sphi 0, %s47
    %s62 = sphi 0, %s48
    %s66 = sphi 0, %s66
    %s68 = sphi 0, %s66
    %s69 = sphi 0, %s68
    %s83 = sphi 0, %s69
    %s87 = sphi 0, %s87
    %s89 = sphi 0, %s87
    %s90 = sphi 0, %s89
    %s104 = sphi 0, %s90
    %s108 = sphi 0, %s108
    %s110 = sphi 0, %s108
    %s111 = sphi 0, %s110
    %s125 = sphi 0, %s111
    %s131 = sphi 0, %s133
    %s134 = sphi 0, %s131
    %s135 = sphi 0, %s134
    %s151 = sphi 0, %s135
  $region4: #{block_forward.4} parent=0 // loop_header_branch
    %14 = sbr.rel (%p12) target = $region8
  $region5: #{block_forward.4} parent=0 // loop_body
    %s16 = ssub.s32 %s11, 1
    %s17 = ssub.s32 %s11, 2
    %s18 = sadd.s32 %s11, 1
    %s19 = ssub.s32 %s11, %s18
    %p20 = scmp.eq.s32.totalorder %s19, 0
    %s22 = sadd.s32 %s21, 1
    %s23 = scalar_select %p20, %s21, %s22
    %p26 = pneg %p20
    %p27 = scmp.eq.s32.totalorder %s11, 1
    %p28 = por %p26, %p27
    %p29 = scmp.ne.s32.totalorder %s21, %s24
    %p30 = scmp.eq.s32.totalorder %s11, 0
    %p31 = por %p29, %p30
    %p32 = scmp.ne.s32.totalorder %s21, %s24
    %p33 = scmp.eq.s32.totalorder %s16, 1
    %p34 = por %p32, %p33
    %p35 = scmp.ne.s32.totalorder %s24, %s25
    %p36 = scmp.eq.s32.totalorder %s16, 0
    %p37 = por %p35, %p36
    %p38 = scmp.ne.s32.totalorder %s24, %s25
    %p39 = scmp.eq.s32.totalorder %s17, 1
    %p40 = por %p38, %p39
    %p42 = scmp.ne.s32.totalorder %s25, %s41
    %p43 = scmp.eq.s32.totalorder %s17, 0
    %p44 = por %p42, %p43
    %s46 = sadd.s32 %s45, 1
    %p49 = scmp.eq.s32.totalorder %s11, 1
    %p50 = scmp.ne.s32.totalorder %s45, %s47
    %p51 = scmp.eq.s32.totalorder %s11, 0
    %p52 = por %p50, %p51
    %p53 = scmp.ne.s32.totalorder %s45, %s47
    %p54 = scmp.eq.s32.totalorder %s16, 1
    %p55 = por %p53, %p54
    %p56 = scmp.ne.s32.totalorder %s47, %s48
    %p57 = scmp.eq.s32.totalorder %s16, 0
    %p58 = por %p56, %p57
    %p59 = scmp.ne.s32.totalorder %s47, %s48
    %p60 = scmp.eq.s32.totalorder %s17, 1
    %p61 = por %p59, %p60
    %p63 = scmp.ne.s32.totalorder %s48, %s62
    %p64 = scmp.eq.s32.totalorder %s17, 0
    %p65 = por %p63, %p64
    %s67 = sadd.s32 %s66, 1
    %p70 = scmp.eq.s32.totalorder %s11, 1
    %p71 = scmp.ne.s32.totalorder %s66, %s68
    %p72 = scmp.eq.s32.totalorder %s11, 0
    %p73 = por %p71, %p72
    %p74 = scmp.ne.s32.totalorder %s66, %s68
    %p75 = scmp.eq.s32.totalorder %s16, 1
    %p76 = por %p74, %p75
    %p77 = scmp.ne.s32.totalorder %s68, %s69
    %p78 = scmp.eq.s32.totalorder %s16, 0
    %p79 = por %p77, %p78
    %p80 = scmp.ne.s32.totalorder %s68, %s69
    %p81 = scmp.eq.s32.totalorder %s17, 1
    %p82 = por %p80, %p81
    %p84 = scmp.ne.s32.totalorder %s69, %s83
    %p85 = scmp.eq.s32.totalorder %s17, 0
    %p86 = por %p84, %p85
    %s88 = sadd.s32 %s87, 1
    %p91 = scmp.eq.s32.totalorder %s11, 1
    %p92 = scmp.ne.s32.totalorder %s87, %s89
    %p93 = scmp.eq.s32.totalorder %s11, 0
    %p94 = por %p92, %p93
    %p95 = scmp.ne.s32.totalorder %s87, %s89
    %p96 = scmp.eq.s32.totalorder %s16, 1
    %p97 = por %p95, %p96
    %p98 = scmp.ne.s32.totalorder %s89, %s90
    %p99 = scmp.eq.s32.totalorder %s16, 0
    %p100 = por %p98, %p99
    %p101 = scmp.ne.s32.totalorder %s89, %s90
    %p102 = scmp.eq.s32.totalorder %s17, 1
    %p103 = por %p101, %p102
    %p105 = scmp.ne.s32.totalorder %s90, %s104
    %p106 = scmp.eq.s32.totalorder %s17, 0
    %p107 = por %p105, %p106
    %s109 = sadd.s32 %s108, 1
    %p112 = scmp.eq.s32.totalorder %s11, 1
    %p113 = scmp.ne.s32.totalorder %s108, %s110
    %p114 = scmp.eq.s32.totalorder %s11, 0
    %p115 = por %p113, %p114
    %p116 = scmp.ne.s32.totalorder %s108, %s110
    %p117 = scmp.eq.s32.totalorder %s16, 1
    %p118 = por %p116, %p117
    %p119 = scmp.ne.s32.totalorder %s110, %s111
    %p120 = scmp.eq.s32.totalorder %s16, 0
    %p121 = por %p119, %p120
    %p122 = scmp.ne.s32.totalorder %s110, %s111
    %p123 = scmp.eq.s32.totalorder %s17, 1
    %p124 = por %p122, %p123
    %p126 = scmp.ne.s32.totalorder %s111, %s125
    %p127 = scmp.eq.s32.totalorder %s17, 0
    %p128 = por %p126, %p127
    %s129 = ssub.s32 %s11, %s18
    %p130 = scmp.eq.s32.totalorder %s129, 0
    %s132 = sadd.s32 %s131, 1
    %s133 = scalar_select %p130, %s131, %s132
    %p136 = pneg %p130
    %p137 = scmp.eq.s32.totalorder %s11, 1
    %p138 = por %p136, %p137
    %p139 = scmp.ne.s32.totalorder %s131, %s134
    %p140 = scmp.eq.s32.totalorder %s11, 0
    %p141 = por %p139, %p140
    %p142 = scmp.ne.s32.totalorder %s131, %s134
    %p143 = scmp.eq.s32.totalorder %s16, 1
    %p144 = por %p142, %p143
    %p145 = scmp.ne.s32.totalorder %s134, %s135
    %p146 = scmp.eq.s32.totalorder %s16, 0
    %p147 = por %p145, %p146
    %p148 = scmp.ne.s32.totalorder %s134, %s135
    %p149 = scmp.eq.s32.totalorder %s17, 1
    %p150 = por %p148, %p149
    %p152 = scmp.ne.s32.totalorder %s135, %s151
    %p153 = scmp.eq.s32.totalorder %s17, 0
    %p154 = por %p152, %p153
    %p155 = scmp.le.s32.totalorder 1, %s11
    %p156 = scmp.lt.s32.totalorder %s11, 3
    %p157 = pnand %p155, %p156
    %p158 = pneg %p157
    // Predicated region
    $region9: #{block_forward.4} parent=5 // pred_check
      _
    $region10: #{block_forward.4} parent=5 // pred_check_branch
      %160 = sbr.rel (%p157) target = $region12
    $region11: #{block_forward.4} parent=5 // pred_region
      %s161 = ssub.s32 %s11, 1
      // Predicated region
      $region13: #{block_forward.4} parent=11 // pred_check
        %p162 = pneg %p58
      $region14: #{block_forward.4} parent=11 // pred_check_branch
        %164 = sbr.rel (%p162) target = $region16
      $region15: #{block_forward.4} parent=11 // pred_region
        _
      $region16: #{block_forward.4} parent=11 // pred_fallthru
        _
      // Predicated region
      $region17: #{block_forward.4} parent=11 // pred_check
        %p165 = pneg %p79
      $region18: #{block_forward.4} parent=11 // pred_check_branch
        %167 = sbr.rel (%p165) target = $region20
      $region19: #{block_forward.4} parent=11 // pred_region
        _
      $region20: #{block_forward.4} parent=11 // pred_fallthru
        _
      // Predicated region
      $region21: #{block_forward.4} parent=11 // pred_check
        %p168 = pneg %p100
      $region22: #{block_forward.4} parent=11 // pred_check_branch
        %170 = sbr.rel (%p168) target = $region24
      $region23: #{block_forward.4} parent=11 // pred_region
        _
      $region24: #{block_forward.4} parent=11 // pred_fallthru
        _
      // Predicated region
      $region25: #{block_forward.4} parent=11 // pred_check
        %p171 = pneg %p121
      $region26: #{block_forward.4} parent=11 // pred_check_branch
        %173 = sbr.rel (%p171) target = $region28
      $region27: #{block_forward.4} parent=11 // pred_region
        _
      $region28: #{block_forward.4} parent=11 // pred_fallthru
        _
    $region12: #{block_forward.4} parent=5 // pred_fallthru
      _
    %p174 = scmp.lt.s32.totalorder %s11, 2
    // Predicated region
    $region29: #{block_forward.4} parent=5 // pred_check
      %p175 = pneg %p174
    $region30: #{block_forward.4} parent=5 // pred_check_branch
      %177 = sbr.rel (%p175) target = $region32
    $region31: #{block_forward.4} parent=5 // pred_region
      // Predicated region
      $region33: #{block_forward.4} parent=31 // pred_check
        %p178 = pneg %p31
      $region34: #{block_forward.4} parent=31 // pred_check_branch
        %180 = sbr.rel (%p178) target = $region36
      $region35: #{block_forward.4} parent=31 // pred_region
        %s181 = smul.u32 16, %s11
        %p182 = scmp.lt.s32.totalorder %s181, 31
        %s183 = scalar_select %p182, %s181, 31
        %s184 = smul.addr %s183, 2
        %s185 = smul.addr %s184, 8
        %s186 = scalar_lea.vmem %s0, %s185
        %s187 = smul.u32 16, %s11
      $region36: #{block_forward.4} parent=31 // pred_fallthru
        _
    $region32: #{block_forward.4} parent=5 // pred_fallthru
      _
    %p188 = scmp.le.s32.totalorder 1, %s11
    %p189 = scmp.lt.s32.totalorder %s11, 3
    %p190 = pnand %p188, %p189
    %p191 = pneg %p190
    // Predicated region
    $region37: #{block_forward.4} parent=5 // pred_check
      _
    $region38: #{block_forward.4} parent=5 // pred_check_branch
      %193 = sbr.rel (%p190) target = $region40
    $region39: #{block_forward.4} parent=5 // pred_region
      %s194 = ssub.s32 %s11, 1
      %s195 = smul.u32 16, %s16
      %p196 = scmp.lt.s32.totalorder %s195, 31
      %s197 = scalar_select %p196, %s195, 31
      %s198 = smul.addr %s197, 2
      %s199 = smul.addr %s198, 8
      %s200 = scalar_lea.vmem %s0, %s199
      %p201 = pneg %p37
      %p202 = pneg %p34
      %p203 = pneg %p58
      %p204 = pneg %p55
      %p205 = pneg %p79
      %p206 = pneg %p76
      %p207 = pneg %p100
      %p208 = pneg %p97
      %p209 = pneg %p121
      %p210 = pneg %p118
      %p211 = pneg %p147
      %p212 = pneg %p144
      %s213 = smul.u32 16, %s16
      %p214 = scmp.lt.s32.totalorder %s213, 31
      %s215 = scalar_select %p214, %s213, 31
      %s216 = smul.addr %s215, 6
      %s217 = smul.addr %s216, 4
      %s218 = scalar_lea.vmem %s5, %s217
      %s219 = smul.u32 16, %s16
      %p220 = scmp.lt.s32.totalorder %s219, 31
      %s221 = scalar_select %p220, %s219, 31
      %s222 = smul.addr %s221, 2
      %s223 = smul.addr %s222, 8
      %s224 = scalar_lea.vmem %s0, %s223
      %s225 = smul.u32 16, %s16
      %s226 = smul.u32 16, %s16
      %p227 = scmp.lt.s32.totalorder %s226, 31
      %s228 = scalar_select %p227, %s226, 31
      %s229 = smul.addr %s228, 6
      %s230 = smul.addr %s229, 4
      %s231 = scalar_lea.vmem %s5, %s230
      %s232 = smul.u32 16, %s16
      %v233 = vld [vmem:[%s224] sm:$0xff]
      %v234 = vld [vmem:[%s224 + $0x8] sm:$0xff]
      %v235 = vld [vmem:[%s224 + $0x10] sm:$0xff]
      %v236 = vld [vmem:[%s224 + $0x18] sm:$0xff]
      %v237 = vld [vmem:[%s224 + $0x20] sm:$0xff]
      %v238 = vld [vmem:[%s224 + $0x28] sm:$0xff]
      %v239 = vld [vmem:[%s224 + $0x30] sm:$0xff]
      %v240 = vld [vmem:[%s224 + $0x38] sm:$0xff]
      %v241 = vld [vmem:[%s224 + $0x40] sm:$0xff]
      %v242 = vld [vmem:[%s224 + $0x48] sm:$0xff]
      %v243 = vld [vmem:[%s224 + $0x50] sm:$0xff]
      %v244 = vld [vmem:[%s224 + $0x58] sm:$0xff]
      %v245 = vld [vmem:[%s224 + $0x60] sm:$0xff]
      %v246 = vld [vmem:[%s224 + $0x68] sm:$0xff]
      %v247 = vld [vmem:[%s224 + $0x70] sm:$0xff]
      %v248 = vld [vmem:[%s224 + $0x78] sm:$0xff]
      %v249 = vld [vmem:[%s224 + $0x80] sm:$0xff]
      %v250 = vld [vmem:[%s224 + $0x88] sm:$0xff]
      %v251 = vld [vmem:[%s224 + $0x90] sm:$0xff]
      %v252 = vld [vmem:[%s224 + $0x98] sm:$0xff]
      %v253 = vld [vmem:[%s224 + $0xa0] sm:$0xff]
      %v254 = vld [vmem:[%s224 + $0xa8] sm:$0xff]
      %v255 = vld [vmem:[%s224 + $0xb0] sm:$0xff]
      %v256 = vld [vmem:[%s224 + $0xb8] sm:$0xff]
      %v257 = vld [vmem:[%s224 + $0xc0] sm:$0xff]
      %v258 = vld [vmem:[%s224 + $0xc8] sm:$0xff]
      %v259 = vld [vmem:[%s224 + $0xd0] sm:$0xff]
      %v260 = vld [vmem:[%s224 + $0xd8] sm:$0xff]
      %v261 = vld [vmem:[%s224 + $0xe0] sm:$0xff]
      %v262 = vld [vmem:[%s224 + $0xe8] sm:$0xff]
      %v263 = vld [vmem:[%s224 + $0xf0] sm:$0xff]
      %v264 = vld [vmem:[%s224 + $0xf8] sm:$0xff]
      %v265 = vadd.f32 %v233, %v234
      %266 = vadd.xlane.f32.xlu0 %v265
      %v267 = vpop.xlane.xlu0 %266
      %v268 = vadd.f32 %v235, %v236
      %269 = vadd.xlane.f32.xlu0 %v268
      %v270 = vpop.xlane.xlu0 %269
      %v271 = vadd.f32 %v237, %v238
      %272 = vadd.xlane.f32.xlu0 %v271
      %v273 = vpop.xlane.xlu0 %272
      %v274 = vadd.f32 %v239, %v240
      %275 = vadd.xlane.f32.xlu0 %v274
      %v276 = vpop.xlane.xlu0 %275
      %v277 = vadd.f32 %v241, %v242
      %278 = vadd.xlane.f32.xlu0 %v277
      %v279 = vpop.xlane.xlu0 %278
      %v280 = vadd.f32 %v243, %v244
      %281 = vadd.xlane.f32.xlu0 %v280
      %v282 = vpop.xlane.xlu0 %281
      %v283 = vadd.f32 %v245, %v246
      %284 = vadd.xlane.f32.xlu0 %v283
      %v285 = vpop.xlane.xlu0 %284
      %v286 = vadd.f32 %v247, %v248
      %287 = vadd.xlane.f32.xlu0 %v286
      %v288 = vpop.xlane.xlu0 %287
      %v289 = vadd.f32 %v249, %v250
      %290 = vadd.xlane.f32.xlu0 %v289
      %v291 = vpop.xlane.xlu0 %290
      %v292 = vadd.f32 %v251, %v252
      %293 = vadd.xlane.f32.xlu0 %v292
      %v294 = vpop.xlane.xlu0 %293
      %v295 = vadd.f32 %v253, %v254
      %296 = vadd.xlane.f32.xlu0 %v295
      %v297 = vpop.xlane.xlu0 %296
      %v298 = vadd.f32 %v255, %v256
      %299 = vadd.xlane.f32.xlu0 %v298
      %v300 = vpop.xlane.xlu0 %299
      %v301 = vadd.f32 %v257, %v258
      %302 = vadd.xlane.f32.xlu0 %v301
      %v303 = vpop.xlane.xlu0 %302
      %v304 = vadd.f32 %v259, %v260
      %305 = vadd.xlane.f32.xlu0 %v304
      %v306 = vpop.xlane.xlu0 %305
      %v307 = vadd.f32 %v261, %v262
      %308 = vadd.xlane.f32.xlu0 %v307
      %v309 = vpop.xlane.xlu0 %308
      %v310 = vadd.f32 %v263, %v264
      %311 = vadd.xlane.f32.xlu0 %v310
      %v312 = vpop.xlane.xlu0 %311
      %v313 = vmul.f32 %v267, 0.00390625
      %v314 = vmul.f32 %v270, 0.00390625
      %v315 = vmul.f32 %v273, 0.00390625
      %v316 = vmul.f32 %v276, 0.00390625
      %v317 = vmul.f32 %v279, 0.00390625
      %v318 = vmul.f32 %v282, 0.00390625
      %v319 = vmul.f32 %v285, 0.00390625
      %v320 = vmul.f32 %v288, 0.00390625
      %v321 = vmul.f32 %v291, 0.00390625
      %v322 = vmul.f32 %v294, 0.00390625
      %v323 = vmul.f32 %v297, 0.00390625
      %v324 = vmul.f32 %v300, 0.00390625
      %v325 = vmul.f32 %v303, 0.00390625
      %v326 = vmul.f32 %v306, 0.00390625
      %v327 = vmul.f32 %v309, 0.00390625
      %v328 = vmul.f32 %v312, 0.00390625
      %v329 = vsub.f32 %v233, %v313
      %v330 = vsub.f32 %v234, %v313
      %v331 = vsub.f32 %v235, %v314
      %v332 = vsub.f32 %v236, %v314
      %v333 = vsub.f32 %v237, %v315
      %v334 = vsub.f32 %v238, %v315
      %v335 = vsub.f32 %v239, %v316
      %v336 = vsub.f32 %v240, %v316
      %v337 = vsub.f32 %v241, %v317
      %v338 = vsub.f32 %v242, %v317
      %v339 = vsub.f32 %v243, %v318
      %v340 = vsub.f32 %v244, %v318
      %v341 = vsub.f32 %v245, %v319
      %v342 = vsub.f32 %v246, %v319
      %v343 = vsub.f32 %v247, %v320
      %v344 = vsub.f32 %v248, %v320
      %v345 = vsub.f32 %v249, %v321
      %v346 = vsub.f32 %v250, %v321
      %v347 = vsub.f32 %v251, %v322
      %v348 = vsub.f32 %v252, %v322
      %v349 = vsub.f32 %v253, %v323
      %v350 = vsub.f32 %v254, %v323
      %v351 = vsub.f32 %v255, %v324
      %v352 = vsub.f32 %v256, %v324
      %v353 = vsub.f32 %v257, %v325
      %v354 = vsub.f32 %v258, %v325
      %v355 = vsub.f32 %v259, %v326
      %v356 = vsub.f32 %v260, %v326
      %v357 = vsub.f32 %v261, %v327
      %v358 = vsub.f32 %v262, %v327
      %v359 = vsub.f32 %v263, %v328
      %v360 = vsub.f32 %v264, %v328
      %v361 = vmul.f32 %v329, %v329
      %v362 = vmul.f32 %v330, %v330
      %v363 = vmul.f32 %v331, %v331
      %v364 = vmul.f32 %v332, %v332
      %v365 = vmul.f32 %v333, %v333
      %v366 = vmul.f32 %v334, %v334
      %v367 = vmul.f32 %v335, %v335
      %v368 = vmul.f32 %v336, %v336
      %v369 = vmul.f32 %v337, %v337
      %v370 = vmul.f32 %v338, %v338
      %v371 = vmul.f32 %v339, %v339
      %v372 = vmul.f32 %v340, %v340
      %v373 = vmul.f32 %v341, %v341
      %v374 = vmul.f32 %v342, %v342
      %v375 = vmul.f32 %v343, %v343
      %v376 = vmul.f32 %v344, %v344
      %v377 = vmul.f32 %v345, %v345
      %v378 = vmul.f32 %v346, %v346
      %v379 = vmul.f32 %v347, %v347
      %v380 = vmul.f32 %v348, %v348
      %v381 = vmul.f32 %v349, %v349
      %v382 = vmul.f32 %v350, %v350
      %v383 = vmul.f32 %v351, %v351
      %v384 = vmul.f32 %v352, %v352
      %v385 = vmul.f32 %v353, %v353
      %v386 = vmul.f32 %v354, %v354
      %v387 = vmul.f32 %v355, %v355
      %v388 = vmul.f32 %v356, %v356
      %v389 = vmul.f32 %v357, %v357
      %v390 = vmul.f32 %v358, %v358
      %v391 = vmul.f32 %v359, %v359
      %v392 = vmul.f32 %v360, %v360
      %v393 = vadd.f32 %v361, %v362
      %394 = vadd.xlane.f32.xlu0 %v393
      %v395 = vpop.xlane.xlu0 %394
      %v396 = vadd.f32 %v363, %v364
      %397 = vadd.xlane.f32.xlu0 %v396
      %v398 = vpop.xlane.xlu0 %397
      %v399 = vadd.f32 %v365, %v366
      %400 = vadd.xlane.f32.xlu0 %v399
      %v401 = vpop.xlane.xlu0 %400
      %v402 = vadd.f32 %v367, %v368
      %403 = vadd.xlane.f32.xlu0 %v402
      %v404 = vpop.xlane.xlu0 %403
      %v405 = vadd.f32 %v369, %v370
      %406 = vadd.xlane.f32.xlu0 %v405
      %v407 = vpop.xlane.xlu0 %406
      %v408 = vadd.f32 %v371, %v372
      %409 = vadd.xlane.f32.xlu0 %v408
      %v410 = vpop.xlane.xlu0 %409
      %v411 = vadd.f32 %v373, %v374
      %412 = vadd.xlane.f32.xlu0 %v411
      %v413 = vpop.xlane.xlu0 %412
      %v414 = vadd.f32 %v375, %v376
      %415 = vadd.xlane.f32.xlu0 %v414
      %v416 = vpop.xlane.xlu0 %415
      %v417 = vadd.f32 %v377, %v378
      %418 = vadd.xlane.f32.xlu0 %v417
      %v419 = vpop.xlane.xlu0 %418
      %v420 = vadd.f32 %v379, %v380
      %421 = vadd.xlane.f32.xlu0 %v420
      %v422 = vpop.xlane.xlu0 %421
      %v423 = vadd.f32 %v381, %v382
      %424 = vadd.xlane.f32.xlu0 %v423
      %v425 = vpop.xlane.xlu0 %424
      %v426 = vadd.f32 %v383, %v384
      %427 = vadd.xlane.f32.xlu0 %v426
      %v428 = vpop.xlane.xlu0 %427
      %v429 = vadd.f32 %v385, %v386
      %430 = vadd.xlane.f32.xlu0 %v429
      %v431 = vpop.xlane.xlu0 %430
      %v432 = vadd.f32 %v387, %v388
      %433 = vadd.xlane.f32.xlu0 %v432
      %v434 = vpop.xlane.xlu0 %433
      %v435 = vadd.f32 %v389, %v390
      %436 = vadd.xlane.f32.xlu0 %v435
      %v437 = vpop.xlane.xlu0 %436
      %v438 = vadd.f32 %v391, %v392
      %439 = vadd.xlane.f32.xlu0 %v438
      %v440 = vpop.xlane.xlu0 %439
      %v441 = vmul.f32 %v395, 0.00390625
      %v442 = vmul.f32 %v398, 0.00390625
      %v443 = vmul.f32 %v401, 0.00390625
      %v444 = vmul.f32 %v404, 0.00390625
      %v445 = vmul.f32 %v407, 0.00390625
      %v446 = vmul.f32 %v410, 0.00390625
      %v447 = vmul.f32 %v413, 0.00390625
      %v448 = vmul.f32 %v416, 0.00390625
      %v449 = vmul.f32 %v419, 0.00390625
      %v450 = vmul.f32 %v422, 0.00390625
      %v451 = vmul.f32 %v425, 0.00390625
      %v452 = vmul.f32 %v428, 0.00390625
      %v453 = vmul.f32 %v431, 0.00390625
      %v454 = vmul.f32 %v434, 0.00390625
      %v455 = vmul.f32 %v437, 0.00390625
      %v456 = vmul.f32 %v440, 0.00390625
      %v457 = vadd.f32 %v441, 1e-05
      %v458 = vadd.f32 %v442, 1e-05
      %v459 = vadd.f32 %v443, 1e-05
      %v460 = vadd.f32 %v444, 1e-05
      %v461 = vadd.f32 %v445, 1e-05
      %v462 = vadd.f32 %v446, 1e-05
      %v463 = vadd.f32 %v447, 1e-05
      %v464 = vadd.f32 %v448, 1e-05
      %v465 = vadd.f32 %v449, 1e-05
      %v466 = vadd.f32 %v450, 1e-05
      %v467 = vadd.f32 %v451, 1e-05
      %v468 = vadd.f32 %v452, 1e-05
      %v469 = vadd.f32 %v453, 1e-05
      %v470 = vadd.f32 %v454, 1e-05
      %v471 = vadd.f32 %v455, 1e-05
      %v472 = vadd.f32 %v456, 1e-05
      %v473 = vrsqrt.pop %v457
      %v474 = vrsqrt.pop %v458
      %v475 = vrsqrt.pop %v459
      %v476 = vrsqrt.pop %v460
      %v477 = vrsqrt.pop %v461
      %v478 = vrsqrt.pop %v462
      %v479 = vrsqrt.pop %v463
      %v480 = vrsqrt.pop %v464
      %v481 = vrsqrt.pop %v465
      %v482 = vrsqrt.pop %v466
      %v483 = vrsqrt.pop %v467
      %v484 = vrsqrt.pop %v468
      %v485 = vrsqrt.pop %v469
      %v486 = vrsqrt.pop %v470
      %v487 = vrsqrt.pop %v471
      %v488 = vrsqrt.pop %v472
      %v489 = vmul.f32 %v329, %v473
      %v490 = vmul.f32 %v330, %v473
      %v491 = vmul.f32 %v331, %v474
      %v492 = vmul.f32 %v332, %v474
      %v493 = vmul.f32 %v333, %v475
      %v494 = vmul.f32 %v334, %v475
      %v495 = vmul.f32 %v335, %v476
      %v496 = vmul.f32 %v336, %v476
      %v497 = vmul.f32 %v337, %v477
      %v498 = vmul.f32 %v338, %v477
      %v499 = vmul.f32 %v339, %v478
      %v500 = vmul.f32 %v340, %v478
      %v501 = vmul.f32 %v341, %v479
      %v502 = vmul.f32 %v342, %v479
      %v503 = vmul.f32 %v343, %v480
      %v504 = vmul.f32 %v344, %v480
      %v505 = vmul.f32 %v345, %v481
      %v506 = vmul.f32 %v346, %v481
      %v507 = vmul.f32 %v347, %v482
      %v508 = vmul.f32 %v348, %v482
      %v509 = vmul.f32 %v349, %v483
      %v510 = vmul.f32 %v350, %v483
      %v511 = vmul.f32 %v351, %v484
      %v512 = vmul.f32 %v352, %v484
      %v513 = vmul.f32 %v353, %v485
      %v514 = vmul.f32 %v354, %v485
      %v515 = vmul.f32 %v355, %v486
      %v516 = vmul.f32 %v356, %v486
      %v517 = vmul.f32 %v357, %v487
      %v518 = vmul.f32 %v358, %v487
      %v519 = vmul.f32 %v359, %v488
      %v520 = vmul.f32 %v360, %v488
      %v521 = vld [vmem:[%s1] sm:$0x3]
      %v523 = vlaneseq
      %v524 = vshrl.u32 %v523, 7
      %v525 = vsub.s32 0, %v524
      %v526 = vrot.slane %v521, %v525
      %v527 = vlaneseq
      %v528 = vshrl.u32 %v527, 7
      %v529 = vsub.s32 1, %v528
      %v530 = vrot.slane %v521, %v529
      %v533 = vmul.f32 %v489, %v526
      %v534 = vmul.f32 %v490, %v530
      %v535 = vmul.f32 %v491, %v526
      %v536 = vmul.f32 %v492, %v530
      %v537 = vmul.f32 %v493, %v526
      %v538 = vmul.f32 %v494, %v530
      %v539 = vmul.f32 %v495, %v526
      %v540 = vmul.f32 %v496, %v530
      %v541 = vmul.f32 %v497, %v526
      %v542 = vmul.f32 %v498, %v530
      %v543 = vmul.f32 %v499, %v526
      %v544 = vmul.f32 %v500, %v530
      %v545 = vmul.f32 %v501, %v526
      %v546 = vmul.f32 %v502, %v530
      %v547 = vmul.f32 %v503, %v526
      %v548 = vmul.f32 %v504, %v530
      %v549 = vmul.f32 %v505, %v526
      %v550 = vmul.f32 %v506, %v530
      %v551 = vmul.f32 %v507, %v526
      %v552 = vmul.f32 %v508, %v530
      %v553 = vmul.f32 %v509, %v526
      %v554 = vmul.f32 %v510, %v530
      %v555 = vmul.f32 %v511, %v526
      %v556 = vmul.f32 %v512, %v530
      %v557 = vmul.f32 %v513, %v526
      %v558 = vmul.f32 %v514, %v530
      %v559 = vmul.f32 %v515, %v526
      %v560 = vmul.f32 %v516, %v530
      %v561 = vmul.f32 %v517, %v526
      %v562 = vmul.f32 %v518, %v530
      %v563 = vmul.f32 %v519, %v526
      %v564 = vmul.f32 %v520, %v530
      %v565 = vld [vmem:[%s2] sm:$0x3]
      %v567 = vlaneseq
      %v568 = vshrl.u32 %v567, 7
      %v569 = vsub.s32 0, %v568
      %v570 = vrot.slane %v565, %v569
      %v571 = vlaneseq
      %v572 = vshrl.u32 %v571, 7
      %v573 = vsub.s32 1, %v572
      %v574 = vrot.slane %v565, %v573
      %v577 = vadd.f32 %v533, %v570
      %v578 = vadd.f32 %v534, %v574
      %v579 = vadd.f32 %v535, %v570
      %v580 = vadd.f32 %v536, %v574
      %v581 = vadd.f32 %v537, %v570
      %v582 = vadd.f32 %v538, %v574
      %v583 = vadd.f32 %v539, %v570
      %v584 = vadd.f32 %v540, %v574
      %v585 = vadd.f32 %v541, %v570
      %v586 = vadd.f32 %v542, %v574
      %v587 = vadd.f32 %v543, %v570
      %v588 = vadd.f32 %v544, %v574
      %v589 = vadd.f32 %v545, %v570
      %v590 = vadd.f32 %v546, %v574
      %v591 = vadd.f32 %v547, %v570
      %v592 = vadd.f32 %v548, %v574
      %v593 = vadd.f32 %v549, %v570
      %v594 = vadd.f32 %v550, %v574
      %v595 = vadd.f32 %v551, %v570
      %v596 = vadd.f32 %v552, %v574
      %v597 = vadd.f32 %v553, %v570
      %v598 = vadd.f32 %v554, %v574
      %v599 = vadd.f32 %v555, %v570
      %v600 = vadd.f32 %v556, %v574
      %v601 = vadd.f32 %v557, %v570
      %v602 = vadd.f32 %v558, %v574
      %v603 = vadd.f32 %v559, %v570
      %v604 = vadd.f32 %v560, %v574
      %v605 = vadd.f32 %v561, %v570
      %v606 = vadd.f32 %v562, %v574
      %v607 = vadd.f32 %v563, %v570
      %v608 = vadd.f32 %v564, %v574
      %v609 = vpack.c.bf16 %v579, %v577
      %v610 = vpack.c.bf16 %v580, %v578
      %v611 = vpack.c.bf16 %v583, %v581
      %v612 = vpack.c.bf16 %v584, %v582
      %v613 = vpack.c.bf16 %v587, %v585
      %v614 = vpack.c.bf16 %v588, %v586
      %v615 = vpack.c.bf16 %v591, %v589
      %v616 = vpack.c.bf16 %v592, %v590
      %v617 = vpack.c.bf16 %v595, %v593
      %v618 = vpack.c.bf16 %v596, %v594
      %v619 = vpack.c.bf16 %v599, %v597
      %v620 = vpack.c.bf16 %v600, %v598
      %v621 = vpack.c.bf16 %v603, %v601
      %v622 = vpack.c.bf16 %v604, %v602
      %v623 = vpack.c.bf16 %v607, %v605
      %v624 = vpack.c.bf16 %v608, %v606
      %v625 = vld [vmem:[%s3] sm:$0xff]
      %v626 = vld [vmem:[%s3 + $0x8] sm:$0xff]
      %v627 = vld [vmem:[%s3 + $0x10] sm:$0xff]
      %v628 = vld [vmem:[%s3 + $0x18] sm:$0xff]
      %v629 = vld [vmem:[%s3 + $0x20] sm:$0xff]
      %v630 = vld [vmem:[%s3 + $0x28] sm:$0xff]
      %v631 = vld [vmem:[%s3 + $0x30] sm:$0xff]
      %v632 = vld [vmem:[%s3 + $0x38] sm:$0xff]
      %v633 = vld [vmem:[%s3 + $0x40] sm:$0xff]
      %v634 = vld [vmem:[%s3 + $0x48] sm:$0xff]
      %v635 = vld [vmem:[%s3 + $0x50] sm:$0xff]
      %v636 = vld [vmem:[%s3 + $0x58] sm:$0xff]
      %v637 = vld [vmem:[%s3 + $0x60] sm:$0xff]
      %v638 = vld [vmem:[%s3 + $0x68] sm:$0xff]
      %v639 = vld [vmem:[%s3 + $0x70] sm:$0xff]
      %v640 = vld [vmem:[%s3 + $0x78] sm:$0xff]
      %v641 = vld [vmem:[%s3 + $0x80] sm:$0xff]
      %v642 = vld [vmem:[%s3 + $0x88] sm:$0xff]
      %v643 = vld [vmem:[%s3 + $0x90] sm:$0xff]
      %v644 = vld [vmem:[%s3 + $0x98] sm:$0xff]
      %v645 = vld [vmem:[%s3 + $0xa0] sm:$0xff]
      %v646 = vld [vmem:[%s3 + $0xa8] sm:$0xff]
      %v647 = vld [vmem:[%s3 + $0xb0] sm:$0xff]
      %v648 = vld [vmem:[%s3 + $0xb8] sm:$0xff]
      %v649 = vld [vmem:[%s3 + $0xc0] sm:$0xff]
      %v650 = vld [vmem:[%s3 + $0xc8] sm:$0xff]
      %v651 = vld [vmem:[%s3 + $0xd0] sm:$0xff]
      %v652 = vld [vmem:[%s3 + $0xd8] sm:$0xff]
      %v653 = vld [vmem:[%s3 + $0xe0] sm:$0xff]
      %v654 = vld [vmem:[%s3 + $0xe8] sm:$0xff]
      %v655 = vld [vmem:[%s3 + $0xf0] sm:$0xff]
      %v656 = vld [vmem:[%s3 + $0xf8] sm:$0xff]
      %v657 = vld [vmem:[%s3 + $0x100] sm:$0xff]
      %v658 = vld [vmem:[%s3 + $0x108] sm:$0xff]
      %v659 = vld [vmem:[%s3 + $0x110] sm:$0xff]
      %v660 = vld [vmem:[%s3 + $0x118] sm:$0xff]
      %v661 = vld [vmem:[%s3 + $0x120] sm:$0xff]
      %v662 = vld [vmem:[%s3 + $0x128] sm:$0xff]
      %v663 = vld [vmem:[%s3 + $0x130] sm:$0xff]
      %v664 = vld [vmem:[%s3 + $0x138] sm:$0xff]
      %v665 = vld [vmem:[%s3 + $0x140] sm:$0xff]
      %v666 = vld [vmem:[%s3 + $0x148] sm:$0xff]
      %v667 = vld [vmem:[%s3 + $0x150] sm:$0xff]
      %v668 = vld [vmem:[%s3 + $0x158] sm:$0xff]
      %v669 = vld [vmem:[%s3 + $0x160] sm:$0xff]
      %v670 = vld [vmem:[%s3 + $0x168] sm:$0xff]
      %v671 = vld [vmem:[%s3 + $0x170] sm:$0xff]
      %v672 = vld [vmem:[%s3 + $0x178] sm:$0xff]
      %v673 = vld [vmem:[%s3 + $0x180] sm:$0xff]
      %v674 = vld [vmem:[%s3 + $0x188] sm:$0xff]
      %v675 = vld [vmem:[%s3 + $0x190] sm:$0xff]
      %v676 = vld [vmem:[%s3 + $0x198] sm:$0xff]
      %v677 = vld [vmem:[%s3 + $0x1a0] sm:$0xff]
      %v678 = vld [vmem:[%s3 + $0x1a8] sm:$0xff]
      %v679 = vld [vmem:[%s3 + $0x1b0] sm:$0xff]
      %v680 = vld [vmem:[%s3 + $0x1b8] sm:$0xff]
      %v681 = vld [vmem:[%s3 + $0x1c0] sm:$0xff]
      %v682 = vld [vmem:[%s3 + $0x1c8] sm:$0xff]
      %v683 = vld [vmem:[%s3 + $0x1d0] sm:$0xff]
      %v684 = vld [vmem:[%s3 + $0x1d8] sm:$0xff]
      %v685 = vld [vmem:[%s3 + $0x1e0] sm:$0xff]
      %v686 = vld [vmem:[%s3 + $0x1e8] sm:$0xff]
      %v687 = vld [vmem:[%s3 + $0x1f0] sm:$0xff]
      %v688 = vld [vmem:[%s3 + $0x1f8] sm:$0xff]
      %v689 = vld [vmem:[%s3 + $0x200] sm:$0xff]
      %v690 = vld [vmem:[%s3 + $0x208] sm:$0xff]
      %v691 = vld [vmem:[%s3 + $0x210] sm:$0xff]
      %v692 = vld [vmem:[%s3 + $0x218] sm:$0xff]
      %v693 = vld [vmem:[%s3 + $0x220] sm:$0xff]
      %v694 = vld [vmem:[%s3 + $0x228] sm:$0xff]
      %v695 = vld [vmem:[%s3 + $0x230] sm:$0xff]
      %v696 = vld [vmem:[%s3 + $0x238] sm:$0xff]
      %v697 = vld [vmem:[%s3 + $0x240] sm:$0xff]
      %v698 = vld [vmem:[%s3 + $0x248] sm:$0xff]
      %v699 = vld [vmem:[%s3 + $0x250] sm:$0xff]
      %v700 = vld [vmem:[%s3 + $0x258] sm:$0xff]
      %v701 = vld [vmem:[%s3 + $0x260] sm:$0xff]
      %v702 = vld [vmem:[%s3 + $0x268] sm:$0xff]
      %v703 = vld [vmem:[%s3 + $0x270] sm:$0xff]
      %v704 = vld [vmem:[%s3 + $0x278] sm:$0xff]
      %v705 = vld [vmem:[%s3 + $0x280] sm:$0xff]
      %v706 = vld [vmem:[%s3 + $0x288] sm:$0xff]
      %v707 = vld [vmem:[%s3 + $0x290] sm:$0xff]
      %v708 = vld [vmem:[%s3 + $0x298] sm:$0xff]
      %v709 = vld [vmem:[%s3 + $0x2a0] sm:$0xff]
      %v710 = vld [vmem:[%s3 + $0x2a8] sm:$0xff]
      %v711 = vld [vmem:[%s3 + $0x2b0] sm:$0xff]
      %v712 = vld [vmem:[%s3 + $0x2b8] sm:$0xff]
      %v713 = vld [vmem:[%s3 + $0x2c0] sm:$0xff]
      %v714 = vld [vmem:[%s3 + $0x2c8] sm:$0xff]
      %v715 = vld [vmem:[%s3 + $0x2d0] sm:$0xff]
      %v716 = vld [vmem:[%s3 + $0x2d8] sm:$0xff]
      %v717 = vld [vmem:[%s3 + $0x2e0] sm:$0xff]
      %v718 = vld [vmem:[%s3 + $0x2e8] sm:$0xff]
      %v719 = vld [vmem:[%s3 + $0x2f0] sm:$0xff]
      %v720 = vld [vmem:[%s3 + $0x2f8] sm:$0xff]
      %v721 = vld [vmem:[%s4] sm:$0x3f]
      %v723 = vlaneseq
      %v724 = vshrl.u32 %v723, 7
      %v725 = vsub.s32 0, %v724
      %v726 = vrot.slane %v721, %v725
      %v727 = vlaneseq
      %v728 = vshrl.u32 %v727, 7
      %v729 = vsub.s32 1, %v728
      %v730 = vrot.slane %v721, %v729
      %v731 = vlaneseq
      %v732 = vshrl.u32 %v731, 7
      %v733 = vsub.s32 2, %v732
      %v734 = vrot.slane %v721, %v733
      %v735 = vlaneseq
      %v736 = vshrl.u32 %v735, 7
      %v737 = vsub.s32 3, %v736
      %v738 = vrot.slane %v721, %v737
      %v739 = vlaneseq
      %v740 = vshrl.u32 %v739, 7
      %v741 = vsub.s32 4, %v740
      %v742 = vrot.slane %v721, %v741
      %v743 = vlaneseq
      %v744 = vshrl.u32 %v743, 7
      %v745 = vsub.s32 5, %v744
      %v746 = vrot.slane %v721, %v745
      %v849 = vunpack.c.l.b16 %v625
      %v850 = vunpack.c.h.b16 %v625
      %v851 = vunpack.c.l.b16 %v626
      %v852 = vunpack.c.h.b16 %v626
      %v853 = vunpack.c.l.b16 %v627
      %v854 = vunpack.c.h.b16 %v627
      %v855 = vunpack.c.l.b16 %v628
      %v856 = vunpack.c.h.b16 %v628
      %v857 = vunpack.c.l.b16 %v629
      %v858 = vunpack.c.h.b16 %v629
      %v859 = vunpack.c.l.b16 %v630
      %v860 = vunpack.c.h.b16 %v630
      %v861 = vunpack.c.l.b16 %v631
      %v862 = vunpack.c.h.b16 %v631
      %v863 = vunpack.c.l.b16 %v632
      %v864 = vunpack.c.h.b16 %v632
      %v865 = vunpack.c.l.b16 %v633
      %v866 = vunpack.c.h.b16 %v633
      %v867 = vunpack.c.l.b16 %v634
      %v868 = vunpack.c.h.b16 %v634
      %v869 = vunpack.c.l.b16 %v635
      %v870 = vunpack.c.h.b16 %v635
      %v871 = vunpack.c.l.b16 %v636
      %v872 = vunpack.c.h.b16 %v636
      %v873 = vunpack.c.l.b16 %v637
      %v874 = vunpack.c.h.b16 %v637
      %v875 = vunpack.c.l.b16 %v638
      %v876 = vunpack.c.h.b16 %v638
      %v877 = vunpack.c.l.b16 %v639
      %v878 = vunpack.c.h.b16 %v639
      %v879 = vunpack.c.l.b16 %v640
      %v880 = vunpack.c.h.b16 %v640
      %v881 = vunpack.c.l.b16 %v641
      %v882 = vunpack.c.h.b16 %v641
      %v883 = vunpack.c.l.b16 %v642
      %v884 = vunpack.c.h.b16 %v642
      %v885 = vunpack.c.l.b16 %v643
      %v886 = vunpack.c.h.b16 %v643
      %v887 = vunpack.c.l.b16 %v644
      %v888 = vunpack.c.h.b16 %v644
      %v889 = vunpack.c.l.b16 %v645
      %v890 = vunpack.c.h.b16 %v645
      %v891 = vunpack.c.l.b16 %v646
      %v892 = vunpack.c.h.b16 %v646
      %v893 = vunpack.c.l.b16 %v647
      %v894 = vunpack.c.h.b16 %v647
      %v895 = vunpack.c.l.b16 %v648
      %v896 = vunpack.c.h.b16 %v648
      %v897 = vunpack.c.l.b16 %v649
      %v898 = vunpack.c.h.b16 %v649
      %v899 = vunpack.c.l.b16 %v650
      %v900 = vunpack.c.h.b16 %v650
      %v901 = vunpack.c.l.b16 %v651
      %v902 = vunpack.c.h.b16 %v651
      %v903 = vunpack.c.l.b16 %v652
      %v904 = vunpack.c.h.b16 %v652
      %v905 = vunpack.c.l.b16 %v653
      %v906 = vunpack.c.h.b16 %v653
      %v907 = vunpack.c.l.b16 %v654
      %v908 = vunpack.c.h.b16 %v654
      %v909 = vunpack.c.l.b16 %v655
      %v910 = vunpack.c.h.b16 %v655
      %v911 = vunpack.c.l.b16 %v656
      %v912 = vunpack.c.h.b16 %v656
      %v913 = vunpack.c.l.b16 %v657
      %v914 = vunpack.c.h.b16 %v657
      %v915 = vunpack.c.l.b16 %v658
      %v916 = vunpack.c.h.b16 %v658
      %v917 = vunpack.c.l.b16 %v659
      %v918 = vunpack.c.h.b16 %v659
      %v919 = vunpack.c.l.b16 %v660
      %v920 = vunpack.c.h.b16 %v660
      %v921 = vunpack.c.l.b16 %v661
      %v922 = vunpack.c.h.b16 %v661
      %v923 = vunpack.c.l.b16 %v662
      %v924 = vunpack.c.h.b16 %v662
      %v925 = vunpack.c.l.b16 %v663
      %v926 = vunpack.c.h.b16 %v663
      %v927 = vunpack.c.l.b16 %v664
      %v928 = vunpack.c.h.b16 %v664
      %v929 = vunpack.c.l.b16 %v665
      %v930 = vunpack.c.h.b16 %v665
      %v931 = vunpack.c.l.b16 %v666
      %v932 = vunpack.c.h.b16 %v666
      %v933 = vunpack.c.l.b16 %v667
      %v934 = vunpack.c.h.b16 %v667
      %v935 = vunpack.c.l.b16 %v668
      %v936 = vunpack.c.h.b16 %v668
      %v937 = vunpack.c.l.b16 %v669
      %v938 = vunpack.c.h.b16 %v669
      %v939 = vunpack.c.l.b16 %v670
      %v940 = vunpack.c.h.b16 %v670
      %v941 = vunpack.c.l.b16 %v671
      %v942 = vunpack.c.h.b16 %v671
      %v943 = vunpack.c.l.b16 %v672
      %v944 = vunpack.c.h.b16 %v672
      %v945 = vunpack.c.l.b16 %v673
      %v946 = vunpack.c.h.b16 %v673
      %v947 = vunpack.c.l.b16 %v674
      %v948 = vunpack.c.h.b16 %v674
      %v949 = vunpack.c.l.b16 %v675
      %v950 = vunpack.c.h.b16 %v675
      %v951 = vunpack.c.l.b16 %v676
      %v952 = vunpack.c.h.b16 %v676
      %v953 = vunpack.c.l.b16 %v677
      %v954 = vunpack.c.h.b16 %v677
      %v955 = vunpack.c.l.b16 %v678
      %v956 = vunpack.c.h.b16 %v678
      %v957 = vunpack.c.l.b16 %v679
      %v958 = vunpack.c.h.b16 %v679
      %v959 = vunpack.c.l.b16 %v680
      %v960 = vunpack.c.h.b16 %v680
      %v961 = vunpack.c.l.b16 %v681
      %v962 = vunpack.c.h.b16 %v681
      %v963 = vunpack.c.l.b16 %v682
      %v964 = vunpack.c.h.b16 %v682
      %v965 = vunpack.c.l.b16 %v683
      %v966 = vunpack.c.h.b16 %v683
      %v967 = vunpack.c.l.b16 %v684
      %v968 = vunpack.c.h.b16 %v684
      %v969 = vunpack.c.l.b16 %v685
      %v970 = vunpack.c.h.b16 %v685
      %v971 = vunpack.c.l.b16 %v686
      %v972 = vunpack.c.h.b16 %v686
      %v973 = vunpack.c.l.b16 %v687
      %v974 = vunpack.c.h.b16 %v687
      %v975 = vunpack.c.l.b16 %v688
      %v976 = vunpack.c.h.b16 %v688
      %v977 = vunpack.c.l.b16 %v689
      %v978 = vunpack.c.h.b16 %v689
      %v979 = vunpack.c.l.b16 %v690
      %v980 = vunpack.c.h.b16 %v690
      %v981 = vunpack.c.l.b16 %v691
      %v982 = vunpack.c.h.b16 %v691
      %v983 = vunpack.c.l.b16 %v692
      %v984 = vunpack.c.h.b16 %v692
      %v985 = vunpack.c.l.b16 %v693
      %v986 = vunpack.c.h.b16 %v693
      %v987 = vunpack.c.l.b16 %v694
      %v988 = vunpack.c.h.b16 %v694
      %v989 = vunpack.c.l.b16 %v695
      %v990 = vunpack.c.h.b16 %v695
      %v991 = vunpack.c.l.b16 %v696
      %v992 = vunpack.c.h.b16 %v696
      %v993 = vunpack.c.l.b16 %v697
      %v994 = vunpack.c.h.b16 %v697
      %v995 = vunpack.c.l.b16 %v698
      %v996 = vunpack.c.h.b16 %v698
      %v997 = vunpack.c.l.b16 %v699
      %v998 = vunpack.c.h.b16 %v699
      %v999 = vunpack.c.l.b16 %v700
      %v1000 = vunpack.c.h.b16 %v700
      %v1001 = vunpack.c.l.b16 %v701
      %v1002 = vunpack.c.h.b16 %v701
      %v1003 = vunpack.c.l.b16 %v702
      %v1004 = vunpack.c.h.b16 %v702
      %v1005 = vunpack.c.l.b16 %v703
      %v1006 = vunpack.c.h.b16 %v703
      %v1007 = vunpack.c.l.b16 %v704
      %v1008 = vunpack.c.h.b16 %v704
      %v1009 = vunpack.c.l.b16 %v705
      %v1010 = vunpack.c.h.b16 %v705
      %v1011 = vunpack.c.l.b16 %v706
      %v1012 = vunpack.c.h.b16 %v706
      %v1013 = vunpack.c.l.b16 %v707
      %v1014 = vunpack.c.h.b16 %v707
      %v1015 = vunpack.c.l.b16 %v708
      %v1016 = vunpack.c.h.b16 %v708
      %v1017 = vunpack.c.l.b16 %v709
      %v1018 = vunpack.c.h.b16 %v709
      %v1019 = vunpack.c.l.b16 %v710
      %v1020 = vunpack.c.h.b16 %v710
      %v1021 = vunpack.c.l.b16 %v711
      %v1022 = vunpack.c.h.b16 %v711
      %v1023 = vunpack.c.l.b16 %v712
      %v1024 = vunpack.c.h.b16 %v712
      %v1025 = vunpack.c.l.b16 %v713
      %v1026 = vunpack.c.h.b16 %v713
      %v1027 = vunpack.c.l.b16 %v714
      %v1028 = vunpack.c.h.b16 %v714
      %v1029 = vunpack.c.l.b16 %v715
      %v1030 = vunpack.c.h.b16 %v715
      %v1031 = vunpack.c.l.b16 %v716
      %v1032 = vunpack.c.h.b16 %v716
      %v1033 = vunpack.c.l.b16 %v717
      %v1034 = vunpack.c.h.b16 %v717
      %v1035 = vunpack.c.l.b16 %v718
      %v1036 = vunpack.c.h.b16 %v718
      %v1037 = vunpack.c.l.b16 %v719
      %v1038 = vunpack.c.h.b16 %v719
      %v1039 = vunpack.c.l.b16 %v720
      %v1040 = vunpack.c.h.b16 %v720
      %v1041 = vpack.c.b16 %v855, %v849
      %v1042 = vpack.c.b16 %v856, %v850
      %v1043 = vpack.c.b16 %v857, %v851
      %v1044 = vpack.c.b16 %v858, %v852
      %v1045 = vpack.c.b16 %v859, %v853
      %v1046 = vpack.c.b16 %v860, %v854
      %v1047 = vpack.c.b16 %v867, %v861
      %v1048 = vpack.c.b16 %v868, %v862
      %v1049 = vpack.c.b16 %v869, %v863
      %v1050 = vpack.c.b16 %v870, %v864
      %v1051 = vpack.c.b16 %v871, %v865
      %v1052 = vpack.c.b16 %v872, %v866
      %v1053 = vpack.c.b16 %v879, %v873
      %v1054 = vpack.c.b16 %v880, %v874
      %v1055 = vpack.c.b16 %v881, %v875
      %v1056 = vpack.c.b16 %v882, %v876
      %v1057 = vpack.c.b16 %v883, %v877
      %v1058 = vpack.c.b16 %v884, %v878
      %v1059 = vpack.c.b16 %v891, %v885
      %v1060 = vpack.c.b16 %v892, %v886
      %v1061 = vpack.c.b16 %v893, %v887
      %v1062 = vpack.c.b16 %v894, %v888
      %v1063 = vpack.c.b16 %v895, %v889
      %v1064 = vpack.c.b16 %v896, %v890
      %v1065 = vpack.c.b16 %v903, %v897
      %v1066 = vpack.c.b16 %v904, %v898
      %v1067 = vpack.c.b16 %v905, %v899
      %v1068 = vpack.c.b16 %v906, %v900
      %v1069 = vpack.c.b16 %v907, %v901
      %v1070 = vpack.c.b16 %v908, %v902
      %v1071 = vpack.c.b16 %v915, %v909
      %v1072 = vpack.c.b16 %v916, %v910
      %v1073 = vpack.c.b16 %v917, %v911
      %v1074 = vpack.c.b16 %v918, %v912
      %v1075 = vpack.c.b16 %v919, %v913
      %v1076 = vpack.c.b16 %v920, %v914
      %v1077 = vpack.c.b16 %v927, %v921
      %v1078 = vpack.c.b16 %v928, %v922
      %v1079 = vpack.c.b16 %v929, %v923
      %v1080 = vpack.c.b16 %v930, %v924
      %v1081 = vpack.c.b16 %v931, %v925
      %v1082 = vpack.c.b16 %v932, %v926
      %v1083 = vpack.c.b16 %v939, %v933
      %v1084 = vpack.c.b16 %v940, %v934
      %v1085 = vpack.c.b16 %v941, %v935
      %v1086 = vpack.c.b16 %v942, %v936
      %v1087 = vpack.c.b16 %v943, %v937
      %v1088 = vpack.c.b16 %v944, %v938
      %v1089 = vpack.c.b16 %v951, %v945
      %v1090 = vpack.c.b16 %v952, %v946
      %v1091 = vpack.c.b16 %v953, %v947
      %v1092 = vpack.c.b16 %v954, %v948
      %v1093 = vpack.c.b16 %v955, %v949
      %v1094 = vpack.c.b16 %v956, %v950
      %v1095 = vpack.c.b16 %v963, %v957
      %v1096 = vpack.c.b16 %v964, %v958
      %v1097 = vpack.c.b16 %v965, %v959
      %v1098 = vpack.c.b16 %v966, %v960
      %v1099 = vpack.c.b16 %v967, %v961
      %v1100 = vpack.c.b16 %v968, %v962
      %v1101 = vpack.c.b16 %v975, %v969
      %v1102 = vpack.c.b16 %v976, %v970
      %v1103 = vpack.c.b16 %v977, %v971
      %v1104 = vpack.c.b16 %v978, %v972
      %v1105 = vpack.c.b16 %v979, %v973
      %v1106 = vpack.c.b16 %v980, %v974
      %v1107 = vpack.c.b16 %v987, %v981
      %v1108 = vpack.c.b16 %v988, %v982
      %v1109 = vpack.c.b16 %v989, %v983
      %v1110 = vpack.c.b16 %v990, %v984
      %v1111 = vpack.c.b16 %v991, %v985
      %v1112 = vpack.c.b16 %v992, %v986
      %v1113 = vpack.c.b16 %v999, %v993
      %v1114 = vpack.c.b16 %v1000, %v994
      %v1115 = vpack.c.b16 %v1001, %v995
      %v1116 = vpack.c.b16 %v1002, %v996
      %v1117 = vpack.c.b16 %v1003, %v997
      %v1118 = vpack.c.b16 %v1004, %v998
      %v1119 = vpack.c.b16 %v1011, %v1005
      %v1120 = vpack.c.b16 %v1012, %v1006
      %v1121 = vpack.c.b16 %v1013, %v1007
      %v1122 = vpack.c.b16 %v1014, %v1008
      %v1123 = vpack.c.b16 %v1015, %v1009
      %v1124 = vpack.c.b16 %v1016, %v1010
      %v1125 = vpack.c.b16 %v1023, %v1017
      %v1126 = vpack.c.b16 %v1024, %v1018
      %v1127 = vpack.c.b16 %v1025, %v1019
      %v1128 = vpack.c.b16 %v1026, %v1020
      %v1129 = vpack.c.b16 %v1027, %v1021
      %v1130 = vpack.c.b16 %v1028, %v1022
      %v1131 = vpack.c.b16 %v1035, %v1029
      %v1132 = vpack.c.b16 %v1036, %v1030
      %v1133 = vpack.c.b16 %v1037, %v1031
      %v1134 = vpack.c.b16 %v1038, %v1032
      %v1135 = vpack.c.b16 %v1039, %v1033
      %v1136 = vpack.c.b16 %v1040, %v1034
      %1233 = vmatprep.subr.bf16.mxu0 %v1084
      %1234 = vmatpush1.bf16.msra.mxu0 %v1083
      %1235 = vmatprep.subr.bf16.mxu0 %v1078
      %1236 = vmatpush1.bf16.msra.mxu0 %v1077
      %1237 = vmatprep.subr.bf16.mxu0 %v1072
      %1238 = vmatpush1.bf16.msra.mxu0 %v1071
      %1239 = vmatprep.subr.bf16.mxu0 %v1066
      %1240 = vmatpush1.bf16.msra.mxu0 %v1065
      %1241 = vmatprep.subr.bf16.mxu0 %v1060
      %1242 = vmatpush1.bf16.msra.mxu0 %v1059
      %1243 = vmatprep.subr.bf16.mxu0 %v1054
      %1244 = vmatpush1.bf16.msra.mxu0 %v1053
      %1245 = vmatprep.subr.bf16.mxu0 %v1048
      %1246 = vmatpush1.bf16.msra.mxu0 %v1047
      %1247 = vmatprep.subr.bf16.mxu0 %v1042
      %1248 = vmatpush1.bf16.msra.mxu0 %v1041
      %1249 = vmatprep.subr.bf16.mxu0 %v1132
      %1250 = vmatpush2.bf16.msra.mxu0 %v1131
      %1251 = vmatprep.subr.bf16.mxu0 %v1126
      %1252 = vmatpush2.bf16.msra.mxu0 %v1125
      %1253 = vmatprep.subr.bf16.mxu0 %v1120
      %1254 = vmatpush2.bf16.msra.mxu0 %v1119
      %1255 = vmatprep.subr.bf16.mxu0 %v1114
      %1256 = vmatpush2.bf16.msra.mxu0 %v1113
      %1257 = vmatprep.subr.bf16.mxu0 %v1108
      %1258 = vmatpush2.bf16.msra.mxu0 %v1107
      %1259 = vmatprep.subr.bf16.mxu0 %v1102
      %1260 = vmatpush2.bf16.msra.mxu0 %v1101
      %1261 = vmatprep.subr.bf16.mxu0 %v1096
      %1262 = vmatpush2.bf16.msra.mxu0 %v1095
      %1263 = vmatprep.subr.bf16.mxu0 %v1090
      %1264 = vmatpush2.bf16.msra.mxu0 %v1089
      %1265 = vmatprep.mubr.bf16.mxu0 %v610
      %1266 = vmatmul.mubr.bf16.gmra.mxu0 %v609
      %v1267 = vpop.f32.mrf.mxu0
      %v1268 = vadd.f32 %v726, %v1267
      %v1269 = vpop.f32.mrf.mxu0
      %v1270 = vadd.f32 %v730, %v1269
      %v1271 = vpop.f32.mrf.mxu0
      %v1272 = vadd.f32 %v726, %v1271
      %v1273 = vpop.f32.mrf.mxu0
      %v1274 = vadd.f32 %v730, %v1273
      %1275 = vmatprep.mubr.bf16.mxu0 %v612
      %1276 = vmatmul.mubr.bf16.gmra.mxu0 %v611
      %v1277 = vpop.f32.mrf.mxu0
      %v1278 = vadd.f32 %v726, %v1277
      %v1279 = vpop.f32.mrf.mxu0
      %v1280 = vadd.f32 %v730, %v1279
      %v1281 = vpop.f32.mrf.mxu0
      %v1282 = vadd.f32 %v726, %v1281
      %v1283 = vpop.f32.mrf.mxu0
      %v1284 = vadd.f32 %v730, %v1283
      %1285 = vmatprep.mubr.bf16.mxu0 %v614
      %1286 = vmatmul.mubr.bf16.gmra.mxu0 %v613
      %v1287 = vpop.f32.mrf.mxu0
      %v1288 = vadd.f32 %v726, %v1287
      %v1289 = vpop.f32.mrf.mxu0
      %v1290 = vadd.f32 %v730, %v1289
      %v1291 = vpop.f32.mrf.mxu0
      %v1292 = vadd.f32 %v726, %v1291
      %v1293 = vpop.f32.mrf.mxu0
      %v1294 = vadd.f32 %v730, %v1293
      %1295 = vmatprep.mubr.bf16.mxu0 %v616
      %1296 = vmatmul.mubr.bf16.gmra.mxu0 %v615
      %v1297 = vpop.f32.mrf.mxu0
      %v1298 = vadd.f32 %v726, %v1297
      %v1299 = vpop.f32.mrf.mxu0
      %v1300 = vadd.f32 %v730, %v1299
      %v1301 = vpop.f32.mrf.mxu0
      %v1302 = vadd.f32 %v726, %v1301
      %v1303 = vpop.f32.mrf.mxu0
      %v1304 = vadd.f32 %v730, %v1303
      %1305 = vmatprep.mubr.bf16.mxu0 %v618
      %1306 = vmatmul.mubr.bf16.gmra.mxu0 %v617
      %v1307 = vpop.f32.mrf.mxu0
      %v1308 = vadd.f32 %v726, %v1307
      %v1309 = vpop.f32.mrf.mxu0
      %v1310 = vadd.f32 %v730, %v1309
      %v1311 = vpop.f32.mrf.mxu0
      %v1312 = vadd.f32 %v726, %v1311
      %v1313 = vpop.f32.mrf.mxu0
      %v1314 = vadd.f32 %v730, %v1313
      %1315 = vmatprep.mubr.bf16.mxu0 %v620
      %1316 = vmatmul.mubr.bf16.gmra.mxu0 %v619
      %v1317 = vpop.f32.mrf.mxu0
      %v1318 = vadd.f32 %v726, %v1317
      %v1319 = vpop.f32.mrf.mxu0
      %v1320 = vadd.f32 %v730, %v1319
      %v1321 = vpop.f32.mrf.mxu0
      %v1322 = vadd.f32 %v726, %v1321
      %v1323 = vpop.f32.mrf.mxu0
      %v1324 = vadd.f32 %v730, %v1323
      %1325 = vmatprep.mubr.bf16.mxu0 %v622
      %1326 = vmatmul.mubr.bf16.gmra.mxu0 %v621
      %v1327 = vpop.f32.mrf.mxu0
      %v1328 = vadd.f32 %v726, %v1327
      %v1329 = vpop.f32.mrf.mxu0
      %v1330 = vadd.f32 %v730, %v1329
      %v1331 = vpop.f32.mrf.mxu0
      %v1332 = vadd.f32 %v726, %v1331
      %v1333 = vpop.f32.mrf.mxu0
      %v1334 = vadd.f32 %v730, %v1333
      %1335 = vmatprep.mubr.bf16.mxu0 %v624
      %1336 = vmatmul.mubr.bf16.gmra.mxu0 %v623
      %v1337 = vpop.f32.mrf.mxu0
      %v1338 = vadd.f32 %v726, %v1337
      %v1339 = vpop.f32.mrf.mxu0
      %v1340 = vadd.f32 %v730, %v1339
      %v1341 = vpop.f32.mrf.mxu0
      %v1342 = vadd.f32 %v726, %v1341
      %v1343 = vpop.f32.mrf.mxu0
      %v1344 = vadd.f32 %v730, %v1343
      %1345 = vdwg.mxu0
      %1346 = vmatprep.subr.bf16.mxu0 %v1086
      %1347 = vmatpush1.bf16.msra.mxu0 %v1085
      %1348 = vmatprep.subr.bf16.mxu0 %v1080
      %1349 = vmatpush1.bf16.msra.mxu0 %v1079
      %1350 = vmatprep.subr.bf16.mxu0 %v1074
      %1351 = vmatpush1.bf16.msra.mxu0 %v1073
      %1352 = vmatprep.subr.bf16.mxu0 %v1068
      %1353 = vmatpush1.bf16.msra.mxu0 %v1067
      %1354 = vmatprep.subr.bf16.mxu0 %v1062
      %1355 = vmatpush1.bf16.msra.mxu0 %v1061
      %1356 = vmatprep.subr.bf16.mxu0 %v1056
      %1357 = vmatpush1.bf16.msra.mxu0 %v1055
      %1358 = vmatprep.subr.bf16.mxu0 %v1050
      %1359 = vmatpush1.bf16.msra.mxu0 %v1049
      %1360 = vmatprep.subr.bf16.mxu0 %v1044
      %1361 = vmatpush1.bf16.msra.mxu0 %v1043
      %1362 = vmatprep.subr.bf16.mxu0 %v1134
      %1363 = vmatpush2.bf16.msra.mxu0 %v1133
      %1364 = vmatprep.subr.bf16.mxu0 %v1128
      %1365 = vmatpush2.bf16.msra.mxu0 %v1127
      %1366 = vmatprep.subr.bf16.mxu0 %v1122
      %1367 = vmatpush2.bf16.msra.mxu0 %v1121
      %1368 = vmatprep.subr.bf16.mxu0 %v1116
      %1369 = vmatpush2.bf16.msra.mxu0 %v1115
      %1370 = vmatprep.subr.bf16.mxu0 %v1110
      %1371 = vmatpush2.bf16.msra.mxu0 %v1109
      %1372 = vmatprep.subr.bf16.mxu0 %v1104
      %1373 = vmatpush2.bf16.msra.mxu0 %v1103
      %1374 = vmatprep.subr.bf16.mxu0 %v1098
      %1375 = vmatpush2.bf16.msra.mxu0 %v1097
      %1376 = vmatprep.subr.bf16.mxu0 %v1092
      %1377 = vmatpush2.bf16.msra.mxu0 %v1091
      %1378 = vmatprep.mubr.bf16.mxu0 %v610
      %1379 = vmatmul.mubr.bf16.gmra.mxu0 %v609
      %v1380 = vpop.f32.mrf.mxu0
      %v1381 = vadd.f32 %v734, %v1380
      %v1382 = vpop.f32.mrf.mxu0
      %v1383 = vadd.f32 %v738, %v1382
      %v1384 = vpop.f32.mrf.mxu0
      %v1385 = vadd.f32 %v734, %v1384
      %v1386 = vpop.f32.mrf.mxu0
      %v1387 = vadd.f32 %v738, %v1386
      %1388 = vmatprep.mubr.bf16.mxu0 %v612
      %1389 = vmatmul.mubr.bf16.gmra.mxu0 %v611
      %v1390 = vpop.f32.mrf.mxu0
      %v1391 = vadd.f32 %v734, %v1390
      %v1392 = vpop.f32.mrf.mxu0
      %v1393 = vadd.f32 %v738, %v1392
      %v1394 = vpop.f32.mrf.mxu0
      %v1395 = vadd.f32 %v734, %v1394
      %v1396 = vpop.f32.mrf.mxu0
      %v1397 = vadd.f32 %v738, %v1396
      %1398 = vmatprep.mubr.bf16.mxu0 %v614
      %1399 = vmatmul.mubr.bf16.gmra.mxu0 %v613
      %v1400 = vpop.f32.mrf.mxu0
      %v1401 = vadd.f32 %v734, %v1400
      %v1402 = vpop.f32.mrf.mxu0
      %v1403 = vadd.f32 %v738, %v1402
      %v1404 = vpop.f32.mrf.mxu0
      %v1405 = vadd.f32 %v734, %v1404
      %v1406 = vpop.f32.mrf.mxu0
      %v1407 = vadd.f32 %v738, %v1406
      %1408 = vmatprep.mubr.bf16.mxu0 %v616
      %1409 = vmatmul.mubr.bf16.gmra.mxu0 %v615
      %v1410 = vpop.f32.mrf.mxu0
      %v1411 = vadd.f32 %v734, %v1410
      %v1412 = vpop.f32.mrf.mxu0
      %v1413 = vadd.f32 %v738, %v1412
      %v1414 = vpop.f32.mrf.mxu0
      %v1415 = vadd.f32 %v734, %v1414
      %v1416 = vpop.f32.mrf.mxu0
      %v1417 = vadd.f32 %v738, %v1416
      %1418 = vmatprep.mubr.bf16.mxu0 %v618
      %1419 = vmatmul.mubr.bf16.gmra.mxu0 %v617
      %v1420 = vpop.f32.mrf.mxu0
      %v1421 = vadd.f32 %v734, %v1420
      %v1422 = vpop.f32.mrf.mxu0
      %v1423 = vadd.f32 %v738, %v1422
      %v1424 = vpop.f32.mrf.mxu0
      %v1425 = vadd.f32 %v734, %v1424
      %v1426 = vpop.f32.mrf.mxu0
      %v1427 = vadd.f32 %v738, %v1426
      %1428 = vmatprep.mubr.bf16.mxu0 %v620
      %1429 = vmatmul.mubr.bf16.gmra.mxu0 %v619
      %v1430 = vpop.f32.mrf.mxu0
      %v1431 = vadd.f32 %v734, %v1430
      %v1432 = vpop.f32.mrf.mxu0
      %v1433 = vadd.f32 %v738, %v1432
      %v1434 = vpop.f32.mrf.mxu0
      %v1435 = vadd.f32 %v734, %v1434
      %v1436 = vpop.f32.mrf.mxu0
      %v1437 = vadd.f32 %v738, %v1436
      %1438 = vmatprep.mubr.bf16.mxu0 %v622
      %1439 = vmatmul.mubr.bf16.gmra.mxu0 %v621
      %v1440 = vpop.f32.mrf.mxu0
      %v1441 = vadd.f32 %v734, %v1440
      %v1442 = vpop.f32.mrf.mxu0
      %v1443 = vadd.f32 %v738, %v1442
      %v1444 = vpop.f32.mrf.mxu0
      %v1445 = vadd.f32 %v734, %v1444
      %v1446 = vpop.f32.mrf.mxu0
      %v1447 = vadd.f32 %v738, %v1446
      %1448 = vmatprep.mubr.bf16.mxu0 %v624
      %1449 = vmatmul.mubr.bf16.gmra.mxu0 %v623
      %v1450 = vpop.f32.mrf.mxu0
      %v1451 = vadd.f32 %v734, %v1450
      %v1452 = vpop.f32.mrf.mxu0
      %v1453 = vadd.f32 %v738, %v1452
      %v1454 = vpop.f32.mrf.mxu0
      %v1455 = vadd.f32 %v734, %v1454
      %v1456 = vpop.f32.mrf.mxu0
      %v1457 = vadd.f32 %v738, %v1456
      %1458 = vdwg.mxu0
      %1459 = vmatprep.subr.bf16.mxu0 %v1088
      %1460 = vmatpush1.bf16.msra.mxu0 %v1087
      %1461 = vmatprep.subr.bf16.mxu0 %v1082
      %1462 = vmatpush1.bf16.msra.mxu0 %v1081
      %1463 = vmatprep.subr.bf16.mxu0 %v1076
      %1464 = vmatpush1.bf16.msra.mxu0 %v1075
      %1465 = vmatprep.subr.bf16.mxu0 %v1070
      %1466 = vmatpush1.bf16.msra.mxu0 %v1069
      %1467 = vmatprep.subr.bf16.mxu0 %v1064
      %1468 = vmatpush1.bf16.msra.mxu0 %v1063
      %1469 = vmatprep.subr.bf16.mxu0 %v1058
      %1470 = vmatpush1.bf16.msra.mxu0 %v1057
      %1471 = vmatprep.subr.bf16.mxu0 %v1052
      %1472 = vmatpush1.bf16.msra.mxu0 %v1051
      %1473 = vmatprep.subr.bf16.mxu0 %v1046
      %1474 = vmatpush1.bf16.msra.mxu0 %v1045
      %1475 = vmatprep.subr.bf16.mxu0 %v1136
      %1476 = vmatpush2.bf16.msra.mxu0 %v1135
      %1477 = vmatprep.subr.bf16.mxu0 %v1130
      %1478 = vmatpush2.bf16.msra.mxu0 %v1129
      %1479 = vmatprep.subr.bf16.mxu0 %v1124
      %1480 = vmatpush2.bf16.msra.mxu0 %v1123
      %1481 = vmatprep.subr.bf16.mxu0 %v1118
      %1482 = vmatpush2.bf16.msra.mxu0 %v1117
      %1483 = vmatprep.subr.bf16.mxu0 %v1112
      %1484 = vmatpush2.bf16.msra.mxu0 %v1111
      %1485 = vmatprep.subr.bf16.mxu0 %v1106
      %1486 = vmatpush2.bf16.msra.mxu0 %v1105
      %1487 = vmatprep.subr.bf16.mxu0 %v1100
      %1488 = vmatpush2.bf16.msra.mxu0 %v1099
      %1489 = vmatprep.subr.bf16.mxu0 %v1094
      %1490 = vmatpush2.bf16.msra.mxu0 %v1093
      %1491 = vmatprep.mubr.bf16.mxu0 %v610
      %1492 = vmatmul.mubr.bf16.gmra.mxu0 %v609
      %v1493 = vpop.f32.mrf.mxu0
      %v1494 = vadd.f32 %v742, %v1493
      %v1495 = vpop.f32.mrf.mxu0
      %v1496 = vadd.f32 %v746, %v1495
      %v1497 = vpop.f32.mrf.mxu0
      %v1498 = vadd.f32 %v742, %v1497
      %v1499 = vpop.f32.mrf.mxu0
      %v1500 = vadd.f32 %v746, %v1499
      %1501 = vmatprep.mubr.bf16.mxu0 %v612
      %1502 = vmatmul.mubr.bf16.gmra.mxu0 %v611
      %v1503 = vpop.f32.mrf.mxu0
      %v1504 = vadd.f32 %v742, %v1503
      %v1505 = vpop.f32.mrf.mxu0
      %v1506 = vadd.f32 %v746, %v1505
      %v1507 = vpop.f32.mrf.mxu0
      %v1508 = vadd.f32 %v742, %v1507
      %v1509 = vpop.f32.mrf.mxu0
      %v1510 = vadd.f32 %v746, %v1509
      %1511 = vmatprep.mubr.bf16.mxu0 %v614
      %1512 = vmatmul.mubr.bf16.gmra.mxu0 %v613
      %v1513 = vpop.f32.mrf.mxu0
      %v1514 = vadd.f32 %v742, %v1513
      %v1515 = vpop.f32.mrf.mxu0
      %v1516 = vadd.f32 %v746, %v1515
      %v1517 = vpop.f32.mrf.mxu0
      %v1518 = vadd.f32 %v742, %v1517
      %v1519 = vpop.f32.mrf.mxu0
      %v1520 = vadd.f32 %v746, %v1519
      %1521 = vmatprep.mubr.bf16.mxu0 %v616
      %1522 = vmatmul.mubr.bf16.gmra.mxu0 %v615
      %v1523 = vpop.f32.mrf.mxu0
      %v1524 = vadd.f32 %v742, %v1523
      %v1525 = vpop.f32.mrf.mxu0
      %v1526 = vadd.f32 %v746, %v1525
      %v1527 = vpop.f32.mrf.mxu0
      %v1528 = vadd.f32 %v742, %v1527
      %v1529 = vpop.f32.mrf.mxu0
      %v1530 = vadd.f32 %v746, %v1529
      %1531 = vmatprep.mubr.bf16.mxu0 %v618
      %1532 = vmatmul.mubr.bf16.gmra.mxu0 %v617
      %v1533 = vpop.f32.mrf.mxu0
      %v1534 = vadd.f32 %v742, %v1533
      %v1535 = vpop.f32.mrf.mxu0
      %v1536 = vadd.f32 %v746, %v1535
      %v1537 = vpop.f32.mrf.mxu0
      %v1538 = vadd.f32 %v742, %v1537
      %v1539 = vpop.f32.mrf.mxu0
      %v1540 = vadd.f32 %v746, %v1539
      %1541 = vmatprep.mubr.bf16.mxu0 %v620
      %1542 = vmatmul.mubr.bf16.gmra.mxu0 %v619
      %v1543 = vpop.f32.mrf.mxu0
      %v1544 = vadd.f32 %v742, %v1543
      %v1545 = vpop.f32.mrf.mxu0
      %v1546 = vadd.f32 %v746, %v1545
      %v1547 = vpop.f32.mrf.mxu0
      %v1548 = vadd.f32 %v742, %v1547
      %v1549 = vpop.f32.mrf.mxu0
      %v1550 = vadd.f32 %v746, %v1549
      %1551 = vmatprep.mubr.bf16.mxu0 %v622
      %1552 = vmatmul.mubr.bf16.gmra.mxu0 %v621
      %v1553 = vpop.f32.mrf.mxu0
      %v1554 = vadd.f32 %v742, %v1553
      %v1555 = vpop.f32.mrf.mxu0
      %v1556 = vadd.f32 %v746, %v1555
      %v1557 = vpop.f32.mrf.mxu0
      %v1558 = vadd.f32 %v742, %v1557
      %v1559 = vpop.f32.mrf.mxu0
      %v1560 = vadd.f32 %v746, %v1559
      %1561 = vmatprep.mubr.bf16.mxu0 %v624
      %1562 = vmatmul.mubr.bf16.gmra.mxu0 %v623
      %v1563 = vpop.f32.mrf.mxu0
      %v1564 = vadd.f32 %v742, %v1563
      %v1565 = vpop.f32.mrf.mxu0
      %v1566 = vadd.f32 %v746, %v1565
      %v1567 = vpop.f32.mrf.mxu0
      %v1568 = vadd.f32 %v742, %v1567
      %v1569 = vpop.f32.mrf.mxu0
      %v1570 = vadd.f32 %v746, %v1569
      %1571 = vdwg.mxu0
      %v1572 = vpack.c.bf16 %v1272, %v1268
      %v1573 = vpack.c.bf16 %v1274, %v1270
      %v1574 = vpack.c.bf16 %v1385, %v1381
      %v1575 = vpack.c.bf16 %v1387, %v1383
      %v1576 = vpack.c.bf16 %v1498, %v1494
      %v1577 = vpack.c.bf16 %v1500, %v1496
      %v1578 = vpack.c.bf16 %v1282, %v1278
      %v1579 = vpack.c.bf16 %v1284, %v1280
      %v1580 = vpack.c.bf16 %v1395, %v1391
      %v1581 = vpack.c.bf16 %v1397, %v1393
      %v1582 = vpack.c.bf16 %v1508, %v1504
      %v1583 = vpack.c.bf16 %v1510, %v1506
      %v1584 = vpack.c.bf16 %v1292, %v1288
      %v1585 = vpack.c.bf16 %v1294, %v1290
      %v1586 = vpack.c.bf16 %v1405, %v1401
      %v1587 = vpack.c.bf16 %v1407, %v1403
      %v1588 = vpack.c.bf16 %v1518, %v1514
      %v1589 = vpack.c.bf16 %v1520, %v1516
      %v1590 = vpack.c.bf16 %v1302, %v1298
      %v1591 = vpack.c.bf16 %v1304, %v1300
      %v1592 = vpack.c.bf16 %v1415, %v1411
      %v1593 = vpack.c.bf16 %v1417, %v1413
      %v1594 = vpack.c.bf16 %v1528, %v1524
      %v1595 = vpack.c.bf16 %v1530, %v1526
      %v1596 = vpack.c.bf16 %v1312, %v1308
      %v1597 = vpack.c.bf16 %v1314, %v1310
      %v1598 = vpack.c.bf16 %v1425, %v1421
      %v1599 = vpack.c.bf16 %v1427, %v1423
      %v1600 = vpack.c.bf16 %v1538, %v1534
      %v1601 = vpack.c.bf16 %v1540, %v1536
      %v1602 = vpack.c.bf16 %v1322, %v1318
      %v1603 = vpack.c.bf16 %v1324, %v1320
      %v1604 = vpack.c.bf16 %v1435, %v1431
      %v1605 = vpack.c.bf16 %v1437, %v1433
      %v1606 = vpack.c.bf16 %v1548, %v1544
      %v1607 = vpack.c.bf16 %v1550, %v1546
      %v1608 = vpack.c.bf16 %v1332, %v1328
      %v1609 = vpack.c.bf16 %v1334, %v1330
      %v1610 = vpack.c.bf16 %v1445, %v1441
      %v1611 = vpack.c.bf16 %v1447, %v1443
      %v1612 = vpack.c.bf16 %v1558, %v1554
      %v1613 = vpack.c.bf16 %v1560, %v1556
      %v1614 = vpack.c.bf16 %v1342, %v1338
      %v1615 = vpack.c.bf16 %v1344, %v1340
      %v1616 = vpack.c.bf16 %v1455, %v1451
      %v1617 = vpack.c.bf16 %v1457, %v1453
      %v1618 = vpack.c.bf16 %v1568, %v1564
      %v1619 = vpack.c.bf16 %v1570, %v1566
      %v1668 = vunpack.c.l.b16 %v1572
      %v1669 = vunpack.c.l.b16 %v1573
      %v1670 = vunpack.c.l.b16 %v1574
      %v1671 = vunpack.c.l.b16 %v1575
      %v1672 = vunpack.c.l.b16 %v1576
      %v1673 = vunpack.c.l.b16 %v1577
      %v1674 = vunpack.c.h.b16 %v1572
      %v1675 = vunpack.c.h.b16 %v1573
      %v1676 = vunpack.c.h.b16 %v1574
      %v1677 = vunpack.c.h.b16 %v1575
      %v1678 = vunpack.c.h.b16 %v1576
      %v1679 = vunpack.c.h.b16 %v1577
      %v1680 = vunpack.c.l.b16 %v1578
      %v1681 = vunpack.c.l.b16 %v1579
      %v1682 = vunpack.c.l.b16 %v1580
      %v1683 = vunpack.c.l.b16 %v1581
      %v1684 = vunpack.c.l.b16 %v1582
      %v1685 = vunpack.c.l.b16 %v1583
      %v1686 = vunpack.c.h.b16 %v1578
      %v1687 = vunpack.c.h.b16 %v1579
      %v1688 = vunpack.c.h.b16 %v1580
      %v1689 = vunpack.c.h.b16 %v1581
      %v1690 = vunpack.c.h.b16 %v1582
      %v1691 = vunpack.c.h.b16 %v1583
      %v1692 = vunpack.c.l.b16 %v1584
      %v1693 = vunpack.c.l.b16 %v1585
      %v1694 = vunpack.c.l.b16 %v1586
      %v1695 = vunpack.c.l.b16 %v1587
      %v1696 = vunpack.c.l.b16 %v1588
      %v1697 = vunpack.c.l.b16 %v1589
      %v1698 = vunpack.c.h.b16 %v1584
      %v1699 = vunpack.c.h.b16 %v1585
      %v1700 = vunpack.c.h.b16 %v1586
      %v1701 = vunpack.c.h.b16 %v1587
      %v1702 = vunpack.c.h.b16 %v1588
      %v1703 = vunpack.c.h.b16 %v1589
      %v1704 = vunpack.c.l.b16 %v1590
      %v1705 = vunpack.c.l.b16 %v1591
      %v1706 = vunpack.c.l.b16 %v1592
      %v1707 = vunpack.c.l.b16 %v1593
      %v1708 = vunpack.c.l.b16 %v1594
      %v1709 = vunpack.c.l.b16 %v1595
      %v1710 = vunpack.c.h.b16 %v1590
      %v1711 = vunpack.c.h.b16 %v1591
      %v1712 = vunpack.c.h.b16 %v1592
      %v1713 = vunpack.c.h.b16 %v1593
      %v1714 = vunpack.c.h.b16 %v1594
      %v1715 = vunpack.c.h.b16 %v1595
      %v1716 = vunpack.c.l.b16 %v1596
      %v1717 = vunpack.c.l.b16 %v1597
      %v1718 = vunpack.c.l.b16 %v1598
      %v1719 = vunpack.c.l.b16 %v1599
      %v1720 = vunpack.c.l.b16 %v1600
      %v1721 = vunpack.c.l.b16 %v1601
      %v1722 = vunpack.c.h.b16 %v1596
      %v1723 = vunpack.c.h.b16 %v1597
      %v1724 = vunpack.c.h.b16 %v1598
      %v1725 = vunpack.c.h.b16 %v1599
      %v1726 = vunpack.c.h.b16 %v1600
      %v1727 = vunpack.c.h.b16 %v1601
      %v1728 = vunpack.c.l.b16 %v1602
      %v1729 = vunpack.c.l.b16 %v1603
      %v1730 = vunpack.c.l.b16 %v1604
      %v1731 = vunpack.c.l.b16 %v1605
      %v1732 = vunpack.c.l.b16 %v1606
      %v1733 = vunpack.c.l.b16 %v1607
      %v1734 = vunpack.c.h.b16 %v1602
      %v1735 = vunpack.c.h.b16 %v1603
      %v1736 = vunpack.c.h.b16 %v1604
      %v1737 = vunpack.c.h.b16 %v1605
      %v1738 = vunpack.c.h.b16 %v1606
      %v1739 = vunpack.c.h.b16 %v1607
      %v1740 = vunpack.c.l.b16 %v1608
      %v1741 = vunpack.c.l.b16 %v1609
      %v1742 = vunpack.c.l.b16 %v1610
      %v1743 = vunpack.c.l.b16 %v1611
      %v1744 = vunpack.c.l.b16 %v1612
      %v1745 = vunpack.c.l.b16 %v1613
      %v1746 = vunpack.c.h.b16 %v1608
      %v1747 = vunpack.c.h.b16 %v1609
      %v1748 = vunpack.c.h.b16 %v1610
      %v1749 = vunpack.c.h.b16 %v1611
      %v1750 = vunpack.c.h.b16 %v1612
      %v1751 = vunpack.c.h.b16 %v1613
      %v1752 = vunpack.c.l.b16 %v1614
      %v1753 = vunpack.c.l.b16 %v1615
      %v1754 = vunpack.c.l.b16 %v1616
      %v1755 = vunpack.c.l.b16 %v1617
      %v1756 = vunpack.c.l.b16 %v1618
      %v1757 = vunpack.c.l.b16 %v1619
      %v1758 = vunpack.c.h.b16 %v1614
      %v1759 = vunpack.c.h.b16 %v1615
      %v1760 = vunpack.c.h.b16 %v1616
      %v1761 = vunpack.c.h.b16 %v1617
      %v1762 = vunpack.c.h.b16 %v1618
      %v1763 = vunpack.c.h.b16 %v1619
      %v1764 = vpack.c.b16 %v1669, %v1668
      %v1765 = vpack.c.b16 %v1671, %v1670
      %v1766 = vpack.c.b16 %v1673, %v1672
      %v1767 = vpack.c.b16 %v1675, %v1674
      %v1768 = vpack.c.b16 %v1677, %v1676
      %v1769 = vpack.c.b16 %v1679, %v1678
      %v1770 = vpack.c.b16 %v1681, %v1680
      %v1771 = vpack.c.b16 %v1683, %v1682
      %v1772 = vpack.c.b16 %v1685, %v1684
      %v1773 = vpack.c.b16 %v1687, %v1686
      %v1774 = vpack.c.b16 %v1689, %v1688
      %v1775 = vpack.c.b16 %v1691, %v1690
      %v1776 = vpack.c.b16 %v1693, %v1692
      %v1777 = vpack.c.b16 %v1695, %v1694
      %v1778 = vpack.c.b16 %v1697, %v1696
      %v1779 = vpack.c.b16 %v1699, %v1698
      %v1780 = vpack.c.b16 %v1701, %v1700
      %v1781 = vpack.c.b16 %v1703, %v1702
      %v1782 = vpack.c.b16 %v1705, %v1704
      %v1783 = vpack.c.b16 %v1707, %v1706
      %v1784 = vpack.c.b16 %v1709, %v1708
      %v1785 = vpack.c.b16 %v1711, %v1710
      %v1786 = vpack.c.b16 %v1713, %v1712
      %v1787 = vpack.c.b16 %v1715, %v1714
      %v1788 = vpack.c.b16 %v1717, %v1716
      %v1789 = vpack.c.b16 %v1719, %v1718
      %v1790 = vpack.c.b16 %v1721, %v1720
      %v1791 = vpack.c.b16 %v1723, %v1722
      %v1792 = vpack.c.b16 %v1725, %v1724
      %v1793 = vpack.c.b16 %v1727, %v1726
      %v1794 = vpack.c.b16 %v1729, %v1728
      %v1795 = vpack.c.b16 %v1731, %v1730
      %v1796 = vpack.c.b16 %v1733, %v1732
      %v1797 = vpack.c.b16 %v1735, %v1734
      %v1798 = vpack.c.b16 %v1737, %v1736
      %v1799 = vpack.c.b16 %v1739, %v1738
      %v1800 = vpack.c.b16 %v1741, %v1740
      %v1801 = vpack.c.b16 %v1743, %v1742
      %v1802 = vpack.c.b16 %v1745, %v1744
      %v1803 = vpack.c.b16 %v1747, %v1746
      %v1804 = vpack.c.b16 %v1749, %v1748
      %v1805 = vpack.c.b16 %v1751, %v1750
      %v1806 = vpack.c.b16 %v1753, %v1752
      %v1807 = vpack.c.b16 %v1755, %v1754
      %v1808 = vpack.c.b16 %v1757, %v1756
      %v1809 = vpack.c.b16 %v1759, %v1758
      %v1810 = vpack.c.b16 %v1761, %v1760
      %v1811 = vpack.c.b16 %v1763, %v1762
      %1860 = vst [vmem:[%s231] sm:$0xff] %v1764
      %1861 = vst [vmem:[%s231 + $0x8] sm:$0xff] %v1765
      %1862 = vst [vmem:[%s231 + $0x10] sm:$0xff] %v1766
      %1863 = vst [vmem:[%s231 + $0x18] sm:$0xff] %v1767
      %1864 = vst [vmem:[%s231 + $0x20] sm:$0xff] %v1768
      %1865 = vst [vmem:[%s231 + $0x28] sm:$0xff] %v1769
      %1866 = vst [vmem:[%s231 + $0x30] sm:$0xff] %v1770
      %1867 = vst [vmem:[%s231 + $0x38] sm:$0xff] %v1771
      %1868 = vst [vmem:[%s231 + $0x40] sm:$0xff] %v1772
      %1869 = vst [vmem:[%s231 + $0x48] sm:$0xff] %v1773
      %1870 = vst [vmem:[%s231 + $0x50] sm:$0xff] %v1774
      %1871 = vst [vmem:[%s231 + $0x58] sm:$0xff] %v1775
      %1872 = vst [vmem:[%s231 + $0x60] sm:$0xff] %v1776
      %1873 = vst [vmem:[%s231 + $0x68] sm:$0xff] %v1777
      %1874 = vst [vmem:[%s231 + $0x70] sm:$0xff] %v1778
      %1875 = vst [vmem:[%s231 + $0x78] sm:$0xff] %v1779
      %1876 = vst [vmem:[%s231 + $0x80] sm:$0xff] %v1780
      %1877 = vst [vmem:[%s231 + $0x88] sm:$0xff] %v1781
      %1878 = vst [vmem:[%s231 + $0x90] sm:$0xff] %v1782
      %1879 = vst [vmem:[%s231 + $0x98] sm:$0xff] %v1783
      %1880 = vst [vmem:[%s231 + $0xa0] sm:$0xff] %v1784
      %1881 = vst [vmem:[%s231 + $0xa8] sm:$0xff] %v1785
      %1882 = vst [vmem:[%s231 + $0xb0] sm:$0xff] %v1786
      %1883 = vst [vmem:[%s231 + $0xb8] sm:$0xff] %v1787
      %1884 = vst [vmem:[%s231 + $0xc0] sm:$0xff] %v1788
      %1885 = vst [vmem:[%s231 + $0xc8] sm:$0xff] %v1789
      %1886 = vst [vmem:[%s231 + $0xd0] sm:$0xff] %v1790
      %1887 = vst [vmem:[%s231 + $0xd8] sm:$0xff] %v1791
      %1888 = vst [vmem:[%s231 + $0xe0] sm:$0xff] %v1792
      %1889 = vst [vmem:[%s231 + $0xe8] sm:$0xff] %v1793
      %1890 = vst [vmem:[%s231 + $0xf0] sm:$0xff] %v1794
      %1891 = vst [vmem:[%s231 + $0xf8] sm:$0xff] %v1795
      %1892 = vst [vmem:[%s231 + $0x100] sm:$0xff] %v1796
      %1893 = vst [vmem:[%s231 + $0x108] sm:$0xff] %v1797
      %1894 = vst [vmem:[%s231 + $0x110] sm:$0xff] %v1798
      %1895 = vst [vmem:[%s231 + $0x118] sm:$0xff] %v1799
      %1896 = vst [vmem:[%s231 + $0x120] sm:$0xff] %v1800
      %1897 = vst [vmem:[%s231 + $0x128] sm:$0xff] %v1801
      %1898 = vst [vmem:[%s231 + $0x130] sm:$0xff] %v1802
      %1899 = vst [vmem:[%s231 + $0x138] sm:$0xff] %v1803
      %1900 = vst [vmem:[%s231 + $0x140] sm:$0xff] %v1804
      %1901 = vst [vmem:[%s231 + $0x148] sm:$0xff] %v1805
      %1902 = vst [vmem:[%s231 + $0x150] sm:$0xff] %v1806
      %1903 = vst [vmem:[%s231 + $0x158] sm:$0xff] %v1807
      %1904 = vst [vmem:[%s231 + $0x160] sm:$0xff] %v1808
      %1905 = vst [vmem:[%s231 + $0x168] sm:$0xff] %v1809
      %1906 = vst [vmem:[%s231 + $0x170] sm:$0xff] %v1810
      %1907 = vst [vmem:[%s231 + $0x178] sm:$0xff] %v1811
      %s1908 = smul.u32 16, %s16
      %p1909 = scmp.lt.s32.totalorder %s1908, 31
      %s1910 = scalar_select %p1909, %s1908, 31
      %s1911 = smul.addr %s1910, 6
      %s1912 = smul.addr %s1911, 4
      %s1913 = scalar_lea.vmem %s5, %s1912
      // Predicated region
      $region41: #{block_forward.4} parent=39 // pred_check
        %p1914 = pneg %p144
      $region42: #{block_forward.4} parent=39 // pred_check_branch
        %1916 = sbr.rel (%p1914) target = $region44
      $region43: #{block_forward.4} parent=39 // pred_region
        %s1917 = smul.u32 16, %s16
      $region44: #{block_forward.4} parent=39 // pred_fallthru
        _
    $region40: #{block_forward.4} parent=5 // pred_fallthru
      _
    %p1918 = scmp.le.s32.totalorder 2, %s11
    // Predicated region
    $region45: #{block_forward.4} parent=5 // pred_check
      %p1919 = pneg %p1918
    $region46: #{block_forward.4} parent=5 // pred_check_branch
      %1921 = sbr.rel (%p1919) target = $region48
    $region47: #{block_forward.4} parent=5 // pred_region
      %s1922 = ssub.s32 %s11, 2
      // Predicated region
      $region49: #{block_forward.4} parent=47 // pred_check
        %p1923 = pneg %p150
      $region50: #{block_forward.4} parent=47 // pred_check_branch
        %1925 = sbr.rel (%p1923) target = $region52
      $region51: #{block_forward.4} parent=47 // pred_region
        %s1926 = smul.u32 16, %s17
        %p1927 = scmp.lt.s32.totalorder %s1926, 31
        %s1928 = scalar_select %p1927, %s1926, 31
        %s1929 = smul.addr %s1928, 6
        %s1930 = smul.addr %s1929, 4
        %s1931 = scalar_lea.vmem %s5, %s1930
      $region52: #{block_forward.4} parent=47 // pred_fallthru
        _
    $region48: #{block_forward.4} parent=5 // pred_fallthru
      _
  $region6: #{block_forward.4} parent=0 // loop_footer
    %s15 = sadd.s32 1, %s11
  $region7: #{block_forward.4} parent=0 // loop_footer_branch
    %10 = sbr.rel target = $region3
  $region8: #{block_forward.4} parent=0 // loop_exit
    _

// kernel: block_forward.5
$region0: #{block_forward.5}
  #allocation0 [shape = 'u32[]', space=smem, size = 0x4, offset = 0x4, fixed_abs, tag = 'smem constant byte address 0x4 - core index']
  #allocation1 [shape = 'u32[144,128]{1,0:T(1,128)}', space=vmem, size = 0x12000, scoped, tag = 'internal scratch']
  %s0 = inlined_call_operand.vmem [shape: bf16[2,128,768], index: 0, kind: input, shape index: {}, may-alias: {0,1,2}]
  %s1 = inlined_call_operand.vmem [shape: bf16[2,128,768], index: 1, kind: input, shape index: {}, may-alias: {0,1,2}]
  %s2 = inlined_call_operand.vmem [shape: bf16[2,128,768], index: 2, kind: input, shape index: {}, may-alias: {0,1,2}]
  %s3 = inlined_call_operand.vmem [shape: bf16[2,128,256], index: 3, kind: output, shape index: {}]
  %s4 = sld [smem:[#allocation0]]
  $region159: #{block_forward.5} parent=0
    _
  %s6 = ssub.s32 1, %s4
  %s7 = scalar_select 0, %s6, %s4
  $region1: #{block_forward.5} parent=0
    #allocation2 [shape = 'u8[131072]{0}', space=vmem, size = 0x20000, scoped, tag = 'input window, operand 0']
    #allocation3 [shape = 'u8[131072]{0}', space=vmem, size = 0x20000, scoped, tag = 'input window, operand 1']
    #allocation4 [shape = 'u8[131072]{0}', space=vmem, size = 0x20000, scoped, tag = 'input window, operand 2']
    loop: start=0, step=1, limit=4
    $region2: #{block_forward.5} parent=1 // loop_pre_header
      _
    $region3: #{block_forward.5} parent=1 // loop_header
      %s9 = sphi 0, %s13
      %p10 = scmp.ge.s32.totalorder %s9, 4
      %s16 = sphi 0, %s28
      %s17 = sphi 0, %s24
      %s18 = sphi 0, %s16
      %s19 = sphi 0, %s17
      %s20 = sphi 0, %s18
      %s21 = sphi 0, %s19
      %s33 = sphi 0, %s35
      %s36 = sphi 0, %s33
      %s37 = sphi 0, %s36
      %s53 = sphi 0, %s37
      %s59 = sphi 0, %s61
      %s62 = sphi 0, %s59
      %s63 = sphi 0, %s62
      %s79 = sphi 0, %s63
      %s85 = sphi 0, %s87
      %s88 = sphi 0, %s85
      %s89 = sphi 0, %s88
      %s105 = sphi 0, %s89
      %s113 = sphi 0, %s115
      %s116 = sphi 0, %s113
      %s117 = sphi 0, %s116
      %s133 = sphi 0, %s117
    $region4: #{block_forward.5} parent=1 // loop_header_branch
      %12 = sbr.rel (%p10) target = $region8
    $region5: #{block_forward.5} parent=1 // loop_body
      %s14 = ssub.s32 %s9, 1
      %s15 = ssub.s32 %s9, 2
      %s22 = sadd.s32 1, %s17
      %p23 = scmp.ge.s32.totalorder %s22, 1
      %s24 = scalar_select %p23, 0, %s22
      %s25 = sadd.s32 1, %s16
      %s26 = scalar_select %p23, %s25, %s16
      %p27 = scmp.ge.s32.totalorder %s26, 2
      %s28 = scalar_select %p27, 0, %s26
      %s29 = ssub.s32 %s16, %s28
      %s30 = ssub.s32 %s17, %s24
      %s31 = sor.u32 %s29, %s30
      %p32 = scmp.eq.s32.totalorder %s31, 0
      %s34 = sadd.s32 %s33, 1
      %s35 = scalar_select %p32, %s33, %s34
      %p38 = pneg %p32
      %p39 = scmp.eq.s32.totalorder %s9, 1
      %p40 = por %p38, %p39
      %p41 = scmp.ne.s32.totalorder %s33, %s36
      %p42 = scmp.eq.s32.totalorder %s9, 0
      %p43 = por %p41, %p42
      %p44 = scmp.ne.s32.totalorder %s33, %s36
      %p45 = scmp.eq.s32.totalorder %s14, 1
      %p46 = por %p44, %p45
      %p47 = scmp.ne.s32.totalorder %s36, %s37
      %p48 = scmp.eq.s32.totalorder %s14, 0
      %p49 = por %p47, %p48
      %p50 = scmp.ne.s32.totalorder %s36, %s37
      %p51 = scmp.eq.s32.totalorder %s15, 1
      %p52 = por %p50, %p51
      %p54 = scmp.ne.s32.totalorder %s37, %s53
      %p55 = scmp.eq.s32.totalorder %s15, 0
      %p56 = por %p54, %p55
      %s57 = ssub.s32 %s16, %s28
      %p58 = scmp.eq.s32.totalorder %s57, 0
      %s60 = sadd.s32 %s59, 1
      %s61 = scalar_select %p58, %s59, %s60
      %p64 = pneg %p58
      %p65 = scmp.eq.s32.totalorder %s9, 1
      %p66 = por %p64, %p65
      %p67 = scmp.ne.s32.totalorder %s59, %s62
      %p68 = scmp.eq.s32.totalorder %s9, 0
      %p69 = por %p67, %p68
      %p70 = scmp.ne.s32.totalorder %s59, %s62
      %p71 = scmp.eq.s32.totalorder %s14, 1
      %p72 = por %p70, %p71
      %p73 = scmp.ne.s32.totalorder %s62, %s63
      %p74 = scmp.eq.s32.totalorder %s14, 0
      %p75 = por %p73, %p74
      %p76 = scmp.ne.s32.totalorder %s62, %s63
      %p77 = scmp.eq.s32.totalorder %s15, 1
      %p78 = por %p76, %p77
      %p80 = scmp.ne.s32.totalorder %s63, %s79
      %p81 = scmp.eq.s32.totalorder %s15, 0
      %p82 = por %p80, %p81
      %s83 = ssub.s32 %s16, %s28
      %p84 = scmp.eq.s32.totalorder %s83, 0
      %s86 = sadd.s32 %s85, 1
      %s87 = scalar_select %p84, %s85, %s86
      %p90 = pneg %p84
      %p91 = scmp.eq.s32.totalorder %s9, 1
      %p92 = por %p90, %p91
      %p93 = scmp.ne.s32.totalorder %s85, %s88
      %p94 = scmp.eq.s32.totalorder %s9, 0
      %p95 = por %p93, %p94
      %p96 = scmp.ne.s32.totalorder %s85, %s88
      %p97 = scmp.eq.s32.totalorder %s14, 1
      %p98 = por %p96, %p97
      %p99 = scmp.ne.s32.totalorder %s88, %s89
      %p100 = scmp.eq.s32.totalorder %s14, 0
      %p101 = por %p99, %p100
      %p102 = scmp.ne.s32.totalorder %s88, %s89
      %p103 = scmp.eq.s32.totalorder %s15, 1
      %p104 = por %p102, %p103
      %p106 = scmp.ne.s32.totalorder %s89, %s105
      %p107 = scmp.eq.s32.totalorder %s15, 0
      %p108 = por %p106, %p107
      %s109 = ssub.s32 %s16, %s28
      %s110 = ssub.s32 %s17, %s24
      %s111 = sor.u32 %s109, %s110
      %p112 = scmp.eq.s32.totalorder %s111, 0
      %s114 = sadd.s32 %s113, 1
      %s115 = scalar_select %p112, %s113, %s114
      %p118 = pneg %p112
      %p119 = scmp.eq.s32.totalorder %s9, 1
      %p120 = por %p118, %p119
      %p121 = scmp.ne.s32.totalorder %s113, %s116
      %p122 = scmp.eq.s32.totalorder %s9, 0
      %p123 = por %p121, %p122
      %p124 = scmp.ne.s32.totalorder %s113, %s116
      %p125 = scmp.eq.s32.totalorder %s14, 1
      %p126 = por %p124, %p125
      %p127 = scmp.ne.s32.totalorder %s116, %s117
      %p128 = scmp.eq.s32.totalorder %s14, 0
      %p129 = por %p127, %p128
      %p130 = scmp.ne.s32.totalorder %s116, %s117
      %p131 = scmp.eq.s32.totalorder %s15, 1
      %p132 = por %p130, %p131
      %p134 = scmp.ne.s32.totalorder %s117, %s133
      %p135 = scmp.eq.s32.totalorder %s15, 0
      %p136 = por %p134, %p135
      %p137 = scmp.le.s32.totalorder 1, %s9
      %p138 = scmp.lt.s32.totalorder %s9, 3
      %p139 = pnand %p137, %p138
      %p140 = pneg %p139
      // Predicated region
      $region9: #{block_forward.5} parent=5 // pred_check
        _
      $region10: #{block_forward.5} parent=5 // pred_check_branch
        %142 = sbr.rel (%p139) target = $region12
      $region11: #{block_forward.5} parent=5 // pred_region
        %s143 = ssub.s32 %s9, 1
      $region12: #{block_forward.5} parent=5 // pred_fallthru
        _
      %p144 = scmp.lt.s32.totalorder %s9, 2
      // Predicated region
      $region13: #{block_forward.5} parent=5 // pred_check
        %p145 = pneg %p144
      $region14: #{block_forward.5} parent=5 // pred_check_branch
        %147 = sbr.rel (%p145) target = $region16
      $region15: #{block_forward.5} parent=5 // pred_region
        // Predicated region
        $region17: #{block_forward.5} parent=15 // pred_check
          %p148 = pneg %p43
        $region18: #{block_forward.5} parent=15 // pred_check_branch
          %150 = sbr.rel (%p148) target = $region20
        $region19: #{block_forward.5} parent=15 // pred_region
          %s151 = sand.u32 %s33, 1
          %s152 = sand.u32 %s33, 1
          %s153 = smul.addr %s152, 128
          %s154 = scalar_lea.vmem [#allocation2], %s153
          %s155 = smul.u32 16, %s17
          %s156 = smul.addr %s155, 6
          %s157 = smul.addr %s16, 96
          %s158 = sadd.s32 %s156, %s157
          %s159 = smul.addr %s158, 4
          %s160 = scalar_lea.vmem %s0, %s159
          // Predicated region
          $region21: #{block_forward.5} parent=19 // pred_check
            _
          $region22: #{block_forward.5} parent=19 // pred_check_branch
            %162 = sbr.rel (0) target = $region24
          $region23: #{block_forward.5} parent=19 // pred_region
            // Predicated region
            $region25: #{block_forward.5} parent=23 // pred_check
              _
            $region26: #{block_forward.5} parent=23 // pred_check_branch
              %164 = sbr.rel (0) target = $region28
            $region27: #{block_forward.5} parent=23 // pred_region
              // Predicated region
              $region40: #{block_forward.5} parent=27 // pred_check
                _
              $region41: #{block_forward.5} parent=27 // pred_check_branch
                %210 = sbr.rel (0) target = $region43
              $region42: #{block_forward.5} parent=27 // pred_region
                loop: start=0, step=1, limit=1
                $region44: #{block_forward.5} parent=42 // loop_pre_header
                  _
                $region45: #{block_forward.5} parent=42 // loop_header
                  %s212 = sphi 0, %s216
                  %p213 = scmp.ge.s32.totalorder %s212, 1
                  %s217 = sphi %s160, %s160
                  %s218 = sphi %s154, %s154
                $region46: #{block_forward.5} parent=42 // loop_header_branch
                  %215 = sbr.rel (%p213) target = $region50
                $region47: #{block_forward.5} parent=42 // loop_body
                  %v219 = vld [vmem:[%s217] sm:$0xff]
                  %220 = vst [vmem:[%s218] sm:$0xff] %v219
                  %v221 = vld [vmem:[%s217 + $0x18] sm:$0xff]
                  %222 = vst [vmem:[%s218 + $0x8] sm:$0xff] %v221
                  %v223 = vld [vmem:[%s217 + $0x30] sm:$0xff]
                  %224 = vst [vmem:[%s218 + $0x10] sm:$0xff] %v223
                  %v225 = vld [vmem:[%s217 + $0x48] sm:$0xff]
                  %226 = vst [vmem:[%s218 + $0x18] sm:$0xff] %v225
                  %v227 = vld [vmem:[%s217 + $0x60] sm:$0xff]
                  %228 = vst [vmem:[%s218 + $0x20] sm:$0xff] %v227
                  %v229 = vld [vmem:[%s217 + $0x78] sm:$0xff]
                  %230 = vst [vmem:[%s218 + $0x28] sm:$0xff] %v229
                  %v231 = vld [vmem:[%s217 + $0x90] sm:$0xff]
                  %232 = vst [vmem:[%s218 + $0x30] sm:$0xff] %v231
                  %v233 = vld [vmem:[%s217 + $0xa8] sm:$0xff]
                  %234 = vst [vmem:[%s218 + $0x38] sm:$0xff] %v233
                  %v235 = vld [vmem:[%s217 + $0xc0] sm:$0xff]
                  %236 = vst [vmem:[%s218 + $0x40] sm:$0xff] %v235
                  %v237 = vld [vmem:[%s217 + $0xd8] sm:$0xff]
                  %238 = vst [vmem:[%s218 + $0x48] sm:$0xff] %v237
                  %v239 = vld [vmem:[%s217 + $0xf0] sm:$0xff]
                  %240 = vst [vmem:[%s218 + $0x50] sm:$0xff] %v239
                  %v241 = vld [vmem:[%s217 + $0x108] sm:$0xff]
                  %242 = vst [vmem:[%s218 + $0x58] sm:$0xff] %v241
                  %v243 = vld [vmem:[%s217 + $0x120] sm:$0xff]
                  %244 = vst [vmem:[%s218 + $0x60] sm:$0xff] %v243
                  %v245 = vld [vmem:[%s217 + $0x138] sm:$0xff]
                  %246 = vst [vmem:[%s218 + $0x68] sm:$0xff] %v245
                  %v247 = vld [vmem:[%s217 + $0x150] sm:$0xff]
                  %248 = vst [vmem:[%s218 + $0x70] sm:$0xff] %v247
                  %v249 = vld [vmem:[%s217 + $0x168] sm:$0xff]
                  %250 = vst [vmem:[%s218 + $0x78] sm:$0xff] %v249
                $region48: #{block_forward.5} parent=42 // loop_footer
                  %s216 = sadd.s32 1, %s212
                $region49: #{block_forward.5} parent=42 // loop_footer_branch
                  %211 = sbr.rel target = $region45
                $region50: #{block_forward.5} parent=42 // loop_exit
                  _
              $region43: #{block_forward.5} parent=27 // pred_fallthru
                _
              // Predicated region
              $region51: #{block_forward.5} parent=27 // pred_check
                _
              $region52: #{block_forward.5} parent=27 // pred_check_branch
                %252 = sbr.rel target = $region54
              $region53: #{block_forward.5} parent=27 // pred_region
                _
              $region54: #{block_forward.5} parent=27 // pred_fallthru
                _
            $region28: #{block_forward.5} parent=23 // pred_fallthru
              _
            // Predicated region
            $region29: #{block_forward.5} parent=23 // pred_check
              _
            $region30: #{block_forward.5} parent=23 // pred_check_branch
              %166 = sbr.rel target = $region32
            $region31: #{block_forward.5} parent=23 // pred_region
              %s168 = ssub.s32 256, 1
              loop: start=0, step=1, limit=1
              $region33: #{block_forward.5} parent=31 // loop_pre_header
                _
              $region34: #{block_forward.5} parent=31 // loop_header
                %s170 = sphi 0, %s174
                %p171 = scmp.ge.s32.totalorder %s170, 1
                %s175 = sphi %s160, %s160
                %s176 = sphi %s154, %s154
              $region35: #{block_forward.5} parent=31 // loop_header_branch
                %173 = sbr.rel (%p171) target = $region39
              $region36: #{block_forward.5} parent=31 // loop_body
                %v177 = vld [vmem:[%s175] sm:%s168]
                %178 = vst [vmem:[%s176] sm:%s168] %v177
                %v179 = vld [vmem:[%s175 + $0x18] sm:%s168]
                %180 = vst [vmem:[%s176 + $0x8] sm:%s168] %v179
                %v181 = vld [vmem:[%s175 + $0x30] sm:%s168]
                %182 = vst [vmem:[%s176 + $0x10] sm:%s168] %v181
                %v183 = vld [vmem:[%s175 + $0x48] sm:%s168]
                %184 = vst [vmem:[%s176 + $0x18] sm:%s168] %v183
                %v185 = vld [vmem:[%s175 + $0x60] sm:%s168]
                %186 = vst [vmem:[%s176 + $0x20] sm:%s168] %v185
                %v187 = vld [vmem:[%s175 + $0x78] sm:%s168]
                %188 = vst [vmem:[%s176 + $0x28] sm:%s168] %v187
                %v189 = vld [vmem:[%s175 + $0x90] sm:%s168]
                %190 = vst [vmem:[%s176 + $0x30] sm:%s168] %v189
                %v191 = vld [vmem:[%s175 + $0xa8] sm:%s168]
                %192 = vst [vmem:[%s176 + $0x38] sm:%s168] %v191
                %v193 = vld [vmem:[%s175 + $0xc0] sm:%s168]
                %194 = vst [vmem:[%s176 + $0x40] sm:%s168] %v193
                %v195 = vld [vmem:[%s175 + $0xd8] sm:%s168]
                %196 = vst [vmem:[%s176 + $0x48] sm:%s168] %v195
                %v197 = vld [vmem:[%s175 + $0xf0] sm:%s168]
                %198 = vst [vmem:[%s176 + $0x50] sm:%s168] %v197
                %v199 = vld [vmem:[%s175 + $0x108] sm:%s168]
                %200 = vst [vmem:[%s176 + $0x58] sm:%s168] %v199
                %v201 = vld [vmem:[%s175 + $0x120] sm:%s168]
                %202 = vst [vmem:[%s176 + $0x60] sm:%s168] %v201
                %v203 = vld [vmem:[%s175 + $0x138] sm:%s168]
                %204 = vst [vmem:[%s176 + $0x68] sm:%s168] %v203
                %v205 = vld [vmem:[%s175 + $0x150] sm:%s168]
                %206 = vst [vmem:[%s176 + $0x70] sm:%s168] %v205
                %v207 = vld [vmem:[%s175 + $0x168] sm:%s168]
                %208 = vst [vmem:[%s176 + $0x78] sm:%s168] %v207
              $region37: #{block_forward.5} parent=31 // loop_footer
                %s174 = sadd.s32 1, %s170
              $region38: #{block_forward.5} parent=31 // loop_footer_branch
                %169 = sbr.rel target = $region34
              $region39: #{block_forward.5} parent=31 // loop_exit
                _
            $region32: #{block_forward.5} parent=23 // pred_fallthru
              _
          $region24: #{block_forward.5} parent=19 // pred_fallthru
            _
          %253 = vnop
        $region20: #{block_forward.5} parent=15 // pred_fallthru
          _
        // Predicated region
        $region55: #{block_forward.5} parent=15 // pred_check
          %p254 = pneg %p69
        $region56: #{block_forward.5} parent=15 // pred_check_branch
          %256 = sbr.rel (%p254) target = $region58
        $region57: #{block_forward.5} parent=15 // pred_region
          %s257 = sand.u32 %s59, 1
          %s258 = sand.u32 %s59, 1
          %s259 = smul.addr %s258, 128
          %s260 = scalar_lea.vmem [#allocation3], %s259
          %s261 = smul.addr %s16, 96
          %s262 = sadd.s32 2, %s261
          %s263 = smul.addr %s262, 4
          %s264 = scalar_lea.vmem %s1, %s263
          // Predicated region
          $region59: #{block_forward.5} parent=57 // pred_check
            _
          $region60: #{block_forward.5} parent=57 // pred_check_branch
            %266 = sbr.rel (0) target = $region62
          $region61: #{block_forward.5} parent=57 // pred_region
            // Predicated region
            $region63: #{block_forward.5} parent=61 // pred_check
              _
            $region64: #{block_forward.5} parent=61 // pred_check_branch
              %268 = sbr.rel (0) target = $region66
            $region65: #{block_forward.5} parent=61 // pred_region
              // Predicated region
              $region78: #{block_forward.5} parent=65 // pred_check
                _
              $region79: #{block_forward.5} parent=65 // pred_check_branch
                %314 = sbr.rel (0) target = $region81
              $region80: #{block_forward.5} parent=65 // pred_region
                loop: start=0, step=1, limit=1
                $region82: #{block_forward.5} parent=80 // loop_pre_header
                  _
                $region83: #{block_forward.5} parent=80 // loop_header
                  %s316 = sphi 0, %s320
                  %p317 = scmp.ge.s32.totalorder %s316, 1
                  %s321 = sphi %s264, %s264
                  %s322 = sphi %s260, %s260
                $region84: #{block_forward.5} parent=80 // loop_header_branch
                  %319 = sbr.rel (%p317) target = $region88
                $region85: #{block_forward.5} parent=80 // loop_body
                  %v323 = vld [vmem:[%s321] sm:$0xff]
                  %324 = vst [vmem:[%s322] sm:$0xff] %v323
                  %v325 = vld [vmem:[%s321 + $0x18] sm:$0xff]
                  %326 = vst [vmem:[%s322 + $0x8] sm:$0xff] %v325
                  %v327 = vld [vmem:[%s321 + $0x30] sm:$0xff]
                  %328 = vst [vmem:[%s322 + $0x10] sm:$0xff] %v327
                  %v329 = vld [vmem:[%s321 + $0x48] sm:$0xff]
                  %330 = vst [vmem:[%s322 + $0x18] sm:$0xff] %v329
                  %v331 = vld [vmem:[%s321 + $0x60] sm:$0xff]
                  %332 = vst [vmem:[%s322 + $0x20] sm:$0xff] %v331
                  %v333 = vld [vmem:[%s321 + $0x78] sm:$0xff]
                  %334 = vst [vmem:[%s322 + $0x28] sm:$0xff] %v333
                  %v335 = vld [vmem:[%s321 + $0x90] sm:$0xff]
                  %336 = vst [vmem:[%s322 + $0x30] sm:$0xff] %v335
                  %v337 = vld [vmem:[%s321 + $0xa8] sm:$0xff]
                  %338 = vst [vmem:[%s322 + $0x38] sm:$0xff] %v337
                  %v339 = vld [vmem:[%s321 + $0xc0] sm:$0xff]
                  %340 = vst [vmem:[%s322 + $0x40] sm:$0xff] %v339
                  %v341 = vld [vmem:[%s321 + $0xd8] sm:$0xff]
                  %342 = vst [vmem:[%s322 + $0x48] sm:$0xff] %v341
                  %v343 = vld [vmem:[%s321 + $0xf0] sm:$0xff]
                  %344 = vst [vmem:[%s322 + $0x50] sm:$0xff] %v343
                  %v345 = vld [vmem:[%s321 + $0x108] sm:$0xff]
                  %346 = vst [vmem:[%s322 + $0x58] sm:$0xff] %v345
                  %v347 = vld [vmem:[%s321 + $0x120] sm:$0xff]
                  %348 = vst [vmem:[%s322 + $0x60] sm:$0xff] %v347
                  %v349 = vld [vmem:[%s321 + $0x138] sm:$0xff]
                  %350 = vst [vmem:[%s322 + $0x68] sm:$0xff] %v349
                  %v351 = vld [vmem:[%s321 + $0x150] sm:$0xff]
                  %352 = vst [vmem:[%s322 + $0x70] sm:$0xff] %v351
                  %v353 = vld [vmem:[%s321 + $0x168] sm:$0xff]
                  %354 = vst [vmem:[%s322 + $0x78] sm:$0xff] %v353
                $region86: #{block_forward.5} parent=80 // loop_footer
                  %s320 = sadd.s32 1, %s316
                $region87: #{block_forward.5} parent=80 // loop_footer_branch
                  %315 = sbr.rel target = $region83
                $region88: #{block_forward.5} parent=80 // loop_exit
                  _
              $region81: #{block_forward.5} parent=65 // pred_fallthru
                _
              // Predicated region
              $region89: #{block_forward.5} parent=65 // pred_check
                _
              $region90: #{block_forward.5} parent=65 // pred_check_branch
                %356 = sbr.rel target = $region92
              $region91: #{block_forward.5} parent=65 // pred_region
                _
              $region92: #{block_forward.5} parent=65 // pred_fallthru
                _
            $region66: #{block_forward.5} parent=61 // pred_fallthru
              _
            // Predicated region
            $region67: #{block_forward.5} parent=61 // pred_check
              _
            $region68: #{block_forward.5} parent=61 // pred_check_branch
              %270 = sbr.rel target = $region70
            $region69: #{block_forward.5} parent=61 // pred_region
              %s272 = ssub.s32 256, 1
              loop: start=0, step=1, limit=1
              $region71: #{block_forward.5} parent=69 // loop_pre_header
                _
              $region72: #{block_forward.5} parent=69 // loop_header
                %s274 = sphi 0, %s278
                %p275 = scmp.ge.s32.totalorder %s274, 1
                %s279 = sphi %s264, %s264
                %s280 = sphi %s260, %s260
              $region73: #{block_forward.5} parent=69 // loop_header_branch
                %277 = sbr.rel (%p275) target = $region77
              $region74: #{block_forward.5} parent=69 // loop_body
                %v281 = vld [vmem:[%s279] sm:%s272]
                %282 = vst [vmem:[%s280] sm:%s272] %v281
                %v283 = vld [vmem:[%s279 + $0x18] sm:%s272]
                %284 = vst [vmem:[%s280 + $0x8] sm:%s272] %v283
                %v285 = vld [vmem:[%s279 + $0x30] sm:%s272]
                %286 = vst [vmem:[%s280 + $0x10] sm:%s272] %v285
                %v287 = vld [vmem:[%s279 + $0x48] sm:%s272]
                %288 = vst [vmem:[%s280 + $0x18] sm:%s272] %v287
                %v289 = vld [vmem:[%s279 + $0x60] sm:%s272]
                %290 = vst [vmem:[%s280 + $0x20] sm:%s272] %v289
                %v291 = vld [vmem:[%s279 + $0x78] sm:%s272]
                %292 = vst [vmem:[%s280 + $0x28] sm:%s272] %v291
                %v293 = vld [vmem:[%s279 + $0x90] sm:%s272]
                %294 = vst [vmem:[%s280 + $0x30] sm:%s272] %v293
                %v295 = vld [vmem:[%s279 + $0xa8] sm:%s272]
                %296 = vst [vmem:[%s280 + $0x38] sm:%s272] %v295
                %v297 = vld [vmem:[%s279 + $0xc0] sm:%s272]
                %298 = vst [vmem:[%s280 + $0x40] sm:%s272] %v297
                %v299 = vld [vmem:[%s279 + $0xd8] sm:%s272]
                %300 = vst [vmem:[%s280 + $0x48] sm:%s272] %v299
                %v301 = vld [vmem:[%s279 + $0xf0] sm:%s272]
                %302 = vst [vmem:[%s280 + $0x50] sm:%s272] %v301
                %v303 = vld [vmem:[%s279 + $0x108] sm:%s272]
                %304 = vst [vmem:[%s280 + $0x58] sm:%s272] %v303
                %v305 = vld [vmem:[%s279 + $0x120] sm:%s272]
                %306 = vst [vmem:[%s280 + $0x60] sm:%s272] %v305
                %v307 = vld [vmem:[%s279 + $0x138] sm:%s272]
                %308 = vst [vmem:[%s280 + $0x68] sm:%s272] %v307
                %v309 = vld [vmem:[%s279 + $0x150] sm:%s272]
                %310 = vst [vmem:[%s280 + $0x70] sm:%s272] %v309
                %v311 = vld [vmem:[%s279 + $0x168] sm:%s272]
                %312 = vst [vmem:[%s280 + $0x78] sm:%s272] %v311
              $region75: #{block_forward.5} parent=69 // loop_footer
                %s278 = sadd.s32 1, %s274
              $region76: #{block_forward.5} parent=69 // loop_footer_branch
                %273 = sbr.rel target = $region72
              $region77: #{block_forward.5} parent=69 // loop_exit
                _
            $region70: #{block_forward.5} parent=61 // pred_fallthru
              _
          $region62: #{block_forward.5} parent=57 // pred_fallthru
            _
          %357 = vnop
        $region58: #{block_forward.5} parent=15 // pred_fallthru
          _
        // Predicated region
        $region93: #{block_forward.5} parent=15 // pred_check
          %p358 = pneg %p95
        $region94: #{block_forward.5} parent=15 // pred_check_branch
          %360 = sbr.rel (%p358) target = $region96
        $region95: #{block_forward.5} parent=15 // pred_region
          %s361 = sand.u32 %s85, 1
          %s362 = sand.u32 %s85, 1
          %s363 = smul.addr %s362, 128
          %s364 = scalar_lea.vmem [#allocation4], %s363
          %s365 = smul.addr %s16, 96
          %s366 = sadd.s32 4, %s365
          %s367 = smul.addr %s366, 4
          %s368 = scalar_lea.vmem %s2, %s367
          // Predicated region
          $region97: #{block_forward.5} parent=95 // pred_check
            _
          $region98: #{block_forward.5} parent=95 // pred_check_branch
            %370 = sbr.rel (0) target = $region100
          $region99: #{block_forward.5} parent=95 // pred_region
            // Predicated region
            $region101: #{block_forward.5} parent=99 // pred_check
              _
            $region102: #{block_forward.5} parent=99 // pred_check_branch
              %372 = sbr.rel (0) target = $region104
            $region103: #{block_forward.5} parent=99 // pred_region
              // Predicated region
              $region116: #{block_forward.5} parent=103 // pred_check
                _
              $region117: #{block_forward.5} parent=103 // pred_check_branch
                %418 = sbr.rel (0) target = $region119
              $region118: #{block_forward.5} parent=103 // pred_region
                loop: start=0, step=1, limit=1
                $region120: #{block_forward.5} parent=118 // loop_pre_header
                  _
                $region121: #{block_forward.5} parent=118 // loop_header
                  %s420 = sphi 0, %s424
                  %p421 = scmp.ge.s32.totalorder %s420, 1
                  %s425 = sphi %s368, %s368
                  %s426 = sphi %s364, %s364
                $region122: #{block_forward.5} parent=118 // loop_header_branch
                  %423 = sbr.rel (%p421) target = $region126
                $region123: #{block_forward.5} parent=118 // loop_body
                  %v427 = vld [vmem:[%s425] sm:$0xff]
                  %428 = vst [vmem:[%s426] sm:$0xff] %v427
                  %v429 = vld [vmem:[%s425 + $0x18] sm:$0xff]
                  %430 = vst [vmem:[%s426 + $0x8] sm:$0xff] %v429
                  %v431 = vld [vmem:[%s425 + $0x30] sm:$0xff]
                  %432 = vst [vmem:[%s426 + $0x10] sm:$0xff] %v431
                  %v433 = vld [vmem:[%s425 + $0x48] sm:$0xff]
                  %434 = vst [vmem:[%s426 + $0x18] sm:$0xff] %v433
                  %v435 = vld [vmem:[%s425 + $0x60] sm:$0xff]
                  %436 = vst [vmem:[%s426 + $0x20] sm:$0xff] %v435
                  %v437 = vld [vmem:[%s425 + $0x78] sm:$0xff]
                  %438 = vst [vmem:[%s426 + $0x28] sm:$0xff] %v437
                  %v439 = vld [vmem:[%s425 + $0x90] sm:$0xff]
                  %440 = vst [vmem:[%s426 + $0x30] sm:$0xff] %v439
                  %v441 = vld [vmem:[%s425 + $0xa8] sm:$0xff]
                  %442 = vst [vmem:[%s426 + $0x38] sm:$0xff] %v441
                  %v443 = vld [vmem:[%s425 + $0xc0] sm:$0xff]
                  %444 = vst [vmem:[%s426 + $0x40] sm:$0xff] %v443
                  %v445 = vld [vmem:[%s425 + $0xd8] sm:$0xff]
                  %446 = vst [vmem:[%s426 + $0x48] sm:$0xff] %v445
                  %v447 = vld [vmem:[%s425 + $0xf0] sm:$0xff]
                  %448 = vst [vmem:[%s426 + $0x50] sm:$0xff] %v447
                  %v449 = vld [vmem:[%s425 + $0x108] sm:$0xff]
                  %450 = vst [vmem:[%s426 + $0x58] sm:$0xff] %v449
                  %v451 = vld [vmem:[%s425 + $0x120] sm:$0xff]
                  %452 = vst [vmem:[%s426 + $0x60] sm:$0xff] %v451
                  %v453 = vld [vmem:[%s425 + $0x138] sm:$0xff]
                  %454 = vst [vmem:[%s426 + $0x68] sm:$0xff] %v453
                  %v455 = vld [vmem:[%s425 + $0x150] sm:$0xff]
                  %456 = vst [vmem:[%s426 + $0x70] sm:$0xff] %v455
                  %v457 = vld [vmem:[%s425 + $0x168] sm:$0xff]
                  %458 = vst [vmem:[%s426 + $0x78] sm:$0xff] %v457
                $region124: #{block_forward.5} parent=118 // loop_footer
                  %s424 = sadd.s32 1, %s420
                $region125: #{block_forward.5} parent=118 // loop_footer_branch
                  %419 = sbr.rel target = $region121
                $region126: #{block_forward.5} parent=118 // loop_exit
                  _
              $region119: #{block_forward.5} parent=103 // pred_fallthru
                _
              // Predicated region
              $region127: #{block_forward.5} parent=103 // pred_check
                _
              $region128: #{block_forward.5} parent=103 // pred_check_branch
                %460 = sbr.rel target = $region130
              $region129: #{block_forward.5} parent=103 // pred_region
                _
              $region130: #{block_forward.5} parent=103 // pred_fallthru
                _
            $region104: #{block_forward.5} parent=99 // pred_fallthru
              _
            // Predicated region
            $region105: #{block_forward.5} parent=99 // pred_check
              _
            $region106: #{block_forward.5} parent=99 // pred_check_branch
              %374 = sbr.rel target = $region108
            $region107: #{block_forward.5} parent=99 // pred_region
              %s376 = ssub.s32 256, 1
              loop: start=0, step=1, limit=1
              $region109: #{block_forward.5} parent=107 // loop_pre_header
                _
              $region110: #{block_forward.5} parent=107 // loop_header
                %s378 = sphi 0, %s382
                %p379 = scmp.ge.s32.totalorder %s378, 1
                %s383 = sphi %s368, %s368
                %s384 = sphi %s364, %s364
              $region111: #{block_forward.5} parent=107 // loop_header_branch
                %381 = sbr.rel (%p379) target = $region115
              $region112: #{block_forward.5} parent=107 // loop_body
                %v385 = vld [vmem:[%s383] sm:%s376]
                %386 = vst [vmem:[%s384] sm:%s376] %v385
                %v387 = vld [vmem:[%s383 + $0x18] sm:%s376]
                %388 = vst [vmem:[%s384 + $0x8] sm:%s376] %v387
                %v389 = vld [vmem:[%s383 + $0x30] sm:%s376]
                %390 = vst [vmem:[%s384 + $0x10] sm:%s376] %v389
                %v391 = vld [vmem:[%s383 + $0x48] sm:%s376]
                %392 = vst [vmem:[%s384 + $0x18] sm:%s376] %v391
                %v393 = vld [vmem:[%s383 + $0x60] sm:%s376]
                %394 = vst [vmem:[%s384 + $0x20] sm:%s376] %v393
                %v395 = vld [vmem:[%s383 + $0x78] sm:%s376]
                %396 = vst [vmem:[%s384 + $0x28] sm:%s376] %v395
                %v397 = vld [vmem:[%s383 + $0x90] sm:%s376]
                %398 = vst [vmem:[%s384 + $0x30] sm:%s376] %v397
                %v399 = vld [vmem:[%s383 + $0xa8] sm:%s376]
                %400 = vst [vmem:[%s384 + $0x38] sm:%s376] %v399
                %v401 = vld [vmem:[%s383 + $0xc0] sm:%s376]
                %402 = vst [vmem:[%s384 + $0x40] sm:%s376] %v401
                %v403 = vld [vmem:[%s383 + $0xd8] sm:%s376]
                %404 = vst [vmem:[%s384 + $0x48] sm:%s376] %v403
                %v405 = vld [vmem:[%s383 + $0xf0] sm:%s376]
                %406 = vst [vmem:[%s384 + $0x50] sm:%s376] %v405
                %v407 = vld [vmem:[%s383 + $0x108] sm:%s376]
                %408 = vst [vmem:[%s384 + $0x58] sm:%s376] %v407
                %v409 = vld [vmem:[%s383 + $0x120] sm:%s376]
                %410 = vst [vmem:[%s384 + $0x60] sm:%s376] %v409
                %v411 = vld [vmem:[%s383 + $0x138] sm:%s376]
                %412 = vst [vmem:[%s384 + $0x68] sm:%s376] %v411
                %v413 = vld [vmem:[%s383 + $0x150] sm:%s376]
                %414 = vst [vmem:[%s384 + $0x70] sm:%s376] %v413
                %v415 = vld [vmem:[%s383 + $0x168] sm:%s376]
                %416 = vst [vmem:[%s384 + $0x78] sm:%s376] %v415
              $region113: #{block_forward.5} parent=107 // loop_footer
                %s382 = sadd.s32 1, %s378
              $region114: #{block_forward.5} parent=107 // loop_footer_branch
                %377 = sbr.rel target = $region110
              $region115: #{block_forward.5} parent=107 // loop_exit
                _
            $region108: #{block_forward.5} parent=99 // pred_fallthru
              _
          $region100: #{block_forward.5} parent=95 // pred_fallthru
            _
          %461 = vnop
        $region96: #{block_forward.5} parent=15 // pred_fallthru
          _
      $region16: #{block_forward.5} parent=5 // pred_fallthru
        _
      %p462 = scmp.le.s32.totalorder 1, %s9
      %p463 = scmp.lt.s32.totalorder %s9, 3
      %p464 = pnand %p462, %p463
      %p465 = pneg %p464
      // Predicated region
      $region131: #{block_forward.5} parent=5 // pred_check
        _
      $region132: #{block_forward.5} parent=5 // pred_check_branch
        %467 = sbr.rel (%p464) target = $region134
      $region133: #{block_forward.5} parent=5 // pred_region
        %s468 = ssub.s32 %s9, 1
        %s469 = sand.u32 %s36, 1
        %s470 = sand.u32 %s36, 1
        %s471 = smul.addr %s470, 128
        %s472 = scalar_lea.vmem [#allocation2], %s471
        // Predicated region
        $region135: #{block_forward.5} parent=133 // pred_check
          %p473 = pneg %p49
        $region136: #{block_forward.5} parent=133 // pred_check_branch
          %475 = sbr.rel (%p473) target = $region138
        $region137: #{block_forward.5} parent=133 // pred_region
          _
        $region138: #{block_forward.5} parent=133 // pred_fallthru
          _
        %s476 = sand.u32 %s62, 1
        %s477 = sand.u32 %s62, 1
        %s478 = smul.addr %s477, 128
        %s479 = scalar_lea.vmem [#allocation3], %s478
        // Predicated region
        $region139: #{block_forward.5} parent=133 // pred_check
          %p480 = pneg %p75
        $region140: #{block_forward.5} parent=133 // pred_check_branch
          %482 = sbr.rel (%p480) target = $region142
        $region141: #{block_forward.5} parent=133 // pred_region
          _
        $region142: #{block_forward.5} parent=133 // pred_fallthru
          _
        %s483 = sand.u32 %s88, 1
        %s484 = sand.u32 %s88, 1
        %s485 = smul.addr %s484, 128
        %s486 = scalar_lea.vmem [#allocation4], %s485
        // Predicated region
        $region143: #{block_forward.5} parent=133 // pred_check
          %p487 = pneg %p101
        $region144: #{block_forward.5} parent=133 // pred_check_branch
          %489 = sbr.rel (%p487) target = $region146
        $region145: #{block_forward.5} parent=133 // pred_region
          _
        $region146: #{block_forward.5} parent=133 // pred_fallthru
          _
        %s490 = sand.u32 %s36, 1
        %s491 = sand.u32 %s36, 1
        %s492 = smul.addr %s491, 128
        %s493 = scalar_lea.vmem [#allocation2], %s492
        %p494 = pneg %p49
        %p495 = pneg %p46
        %s496 = sand.u32 %s62, 1
        %s497 = sand.u32 %s62, 1
        %s498 = smul.addr %s497, 128
        %s499 = scalar_lea.vmem [#allocation3], %s498
        %p500 = pneg %p75
        %p501 = pneg %p72
        %s502 = sand.u32 %s88, 1
        %s503 = sand.u32 %s88, 1
        %s504 = smul.addr %s503, 128
        %s505 = scalar_lea.vmem [#allocation4], %s504
        %p506 = pneg %p101
        %p507 = pneg %p98
        %p508 = pneg %p129
        %p509 = pneg %p126
        %s510 = smul.u32 16, %s19
        %p511 = scmp.lt.s32.totalorder %s18, 1
        %s512 = scalar_select %p511, %s18, 1
        %p513 = scmp.lt.s32.totalorder %s510, 15
        %s514 = scalar_select %p513, %s510, 15
        %s515 = smul.addr %s514, 2
        %s516 = smul.addr %s512, 32
        %s517 = sadd.s32 %s515, %s516
        %s518 = smul.addr %s517, 4
        %s519 = scalar_lea.vmem %s3, %s518
        %s520 = smul.u32 16, %s19
        %s521 = smul.u32 16, %s19
        %p522 = scmp.lt.s32.totalorder %s18, 1
        %s523 = scalar_select %p522, %s18, 1
        %p524 = scmp.lt.s32.totalorder %s521, 15
        %s525 = scalar_select %p524, %s521, 15
        %s526 = smul.addr %s525, 2
        %s527 = smul.addr %s523, 32
        %s528 = sadd.s32 %s526, %s527
        %s529 = smul.addr %s528, 4
        %s530 = scalar_lea.vmem %s3, %s529
        %s531 = smul.u32 16, %s19
        %v533 = vld [vmem:[%s472] sm:$0xff]
        %v534 = vld [vmem:[%s472 + $0x8] sm:$0xff]
        %v535 = vld [vmem:[%s472 + $0x10] sm:$0xff]
        %v536 = vld [vmem:[%s472 + $0x18] sm:$0xff]
        %v537 = vld [vmem:[%s472 + $0x20] sm:$0xff]
        %v538 = vld [vmem:[%s472 + $0x28] sm:$0xff]
        %v539 = vld [vmem:[%s472 + $0x30] sm:$0xff]
        %v540 = vld [vmem:[%s472 + $0x38] sm:$0xff]
        %v541 = vld [vmem:[%s472 + $0x40] sm:$0xff]
        %v542 = vld [vmem:[%s472 + $0x48] sm:$0xff]
        %v543 = vld [vmem:[%s472 + $0x50] sm:$0xff]
        %v544 = vld [vmem:[%s472 + $0x58] sm:$0xff]
        %v545 = vld [vmem:[%s472 + $0x60] sm:$0xff]
        %v546 = vld [vmem:[%s472 + $0x68] sm:$0xff]
        %v547 = vld [vmem:[%s472 + $0x70] sm:$0xff]
        %v548 = vld [vmem:[%s472 + $0x78] sm:$0xff]
        %v549 = vld [vmem:[%s479] sm:$0xff]
        %v550 = vld [vmem:[%s479 + $0x8] sm:$0xff]
        %v551 = vld [vmem:[%s479 + $0x10] sm:$0xff]
        %v552 = vld [vmem:[%s479 + $0x18] sm:$0xff]
        %v553 = vld [vmem:[%s479 + $0x20] sm:$0xff]
        %v554 = vld [vmem:[%s479 + $0x28] sm:$0xff]
        %v555 = vld [vmem:[%s479 + $0x30] sm:$0xff]
        %v556 = vld [vmem:[%s479 + $0x38] sm:$0xff]
        %v557 = vld [vmem:[%s479 + $0x40] sm:$0xff]
        %v558 = vld [vmem:[%s479 + $0x48] sm:$0xff]
        %v559 = vld [vmem:[%s479 + $0x50] sm:$0xff]
        %v560 = vld [vmem:[%s479 + $0x58] sm:$0xff]
        %v561 = vld [vmem:[%s479 + $0x60] sm:$0xff]
        %v562 = vld [vmem:[%s479 + $0x68] sm:$0xff]
        %v563 = vld [vmem:[%s479 + $0x70] sm:$0xff]
        %v564 = vld [vmem:[%s479 + $0x78] sm:$0xff]
        %v565 = vld [vmem:[%s486] sm:$0xff]
        %v566 = vld [vmem:[%s486 + $0x8] sm:$0xff]
        %v567 = vld [vmem:[%s486 + $0x10] sm:$0xff]
        %v568 = vld [vmem:[%s486 + $0x18] sm:$0xff]
        %v569 = vld [vmem:[%s486 + $0x20] sm:$0xff]
        %v570 = vld [vmem:[%s486 + $0x28] sm:$0xff]
        %v571 = vld [vmem:[%s486 + $0x30] sm:$0xff]
        %v572 = vld [vmem:[%s486 + $0x38] sm:$0xff]
        %v573 = vld [vmem:[%s486 + $0x40] sm:$0xff]
        %v574 = vld [vmem:[%s486 + $0x48] sm:$0xff]
        %v575 = vld [vmem:[%s486 + $0x50] sm:$0xff]
        %v576 = vld [vmem:[%s486 + $0x58] sm:$0xff]
        %v577 = vld [vmem:[%s486 + $0x60] sm:$0xff]
        %v578 = vld [vmem:[%s486 + $0x68] sm:$0xff]
        %v579 = vld [vmem:[%s486 + $0x70] sm:$0xff]
        %v580 = vld [vmem:[%s486 + $0x78] sm:$0xff]
        %v597 = vunpack.c.l.b16 %v533
        %v598 = vunpack.c.l.b16 %v534
        %v599 = vunpack.c.l.b16 %v535
        %v600 = vunpack.c.l.b16 %v536
        %v601 = vunpack.c.l.b16 %v537
        %v602 = vunpack.c.l.b16 %v538
        %v603 = vunpack.c.l.b16 %v539
        %v604 = vunpack.c.l.b16 %v540
        %v605 = vunpack.c.l.b16 %v541
        %v606 = vunpack.c.l.b16 %v542
        %v607 = vunpack.c.l.b16 %v543
        %v608 = vunpack.c.l.b16 %v544
        %v609 = vunpack.c.l.b16 %v545
        %v610 = vunpack.c.l.b16 %v546
        %v611 = vunpack.c.l.b16 %v547
        %v612 = vunpack.c.l.b16 %v548
        %v613 = vpack.c.b16 %v598, %v597
        %v614 = vpack.c.b16 %v600, %v599
        %v615 = vpack.c.b16 %v602, %v601
        %v616 = vpack.c.b16 %v604, %v603
        %v617 = vpack.c.b16 %v606, %v605
        %v618 = vpack.c.b16 %v608, %v607
        %v619 = vpack.c.b16 %v610, %v609
        %v620 = vpack.c.b16 %v612, %v611
        %v637 = vunpack.c.l.b16 %v549
        %v638 = vunpack.c.l.b16 %v550
        %v639 = vunpack.c.l.b16 %v551
        %v640 = vunpack.c.l.b16 %v552
        %v641 = vunpack.c.l.b16 %v553
        %v642 = vunpack.c.l.b16 %v554
        %v643 = vunpack.c.l.b16 %v555
        %v644 = vunpack.c.l.b16 %v556
        %v645 = vunpack.c.l.b16 %v557
        %v646 = vunpack.c.l.b16 %v558
        %v647 = vunpack.c.l.b16 %v559
        %v648 = vunpack.c.l.b16 %v560
        %v649 = vunpack.c.l.b16 %v561
        %v650 = vunpack.c.l.b16 %v562
        %v651 = vunpack.c.l.b16 %v563
        %v652 = vunpack.c.l.b16 %v564
        %v653 = vpack.c.b16 %v638, %v637
        %v654 = vpack.c.b16 %v640, %v639
        %v655 = vpack.c.b16 %v642, %v641
        %v656 = vpack.c.b16 %v644, %v643
        %v657 = vpack.c.b16 %v646, %v645
        %v658 = vpack.c.b16 %v648, %v647
        %v659 = vpack.c.b16 %v650, %v649
        %v660 = vpack.c.b16 %v652, %v651
        %vm661 = vcmask 523264
        %v663 = vsel %vm661, %v613, 0
        %v666 = vsel %vm661, %v614, 0
        %v669 = vsel %vm661, %v615, 0
        %v672 = vsel %vm661, %v616, 0
        %v675 = vsel %vm661, %v617, 0
        %v678 = vsel %vm661, %v618, 0
        %v681 = vsel %vm661, %v619, 0
        %v684 = vsel %vm661, %v620, 0
        %v687 = vsel %vm661, %v653, 0
        %v690 = vsel %vm661, %v654, 0
        %v693 = vsel %vm661, %v655, 0
        %v696 = vsel %vm661, %v656, 0
        %v699 = vsel %vm661, %v657, 0
        %v702 = vsel %vm661, %v658, 0
        %v705 = vsel %vm661, %v659, 0
        %v708 = vsel %vm661, %v660, 0
        %710 = vmatprep.subr.bf16.mxu0 0
        %711 = vmatpush1.bf16.xpose.msra.mxu0 %v708
        %712 = vmatprep.subr.bf16.mxu0 0
        %713 = vmatpush1.bf16.xpose.msra.mxu0 %v705
        %714 = vmatprep.subr.bf16.mxu0 0
        %715 = vmatpush1.bf16.xpose.msra.mxu0 %v702
        %716 = vmatprep.subr.bf16.mxu0 0
        %717 = vmatpush1.bf16.xpose.msra.mxu0 %v699
        %718 = vmatprep.subr.bf16.mxu0 0
        %719 = vmatpush1.bf16.xpose.msra.mxu0 %v696
        %720 = vmatprep.subr.bf16.mxu0 0
        %721 = vmatpush1.bf16.xpose.msra.mxu0 %v693
        %722 = vmatprep.subr.bf16.mxu0 0
        %723 = vmatpush1.bf16.xpose.msra.mxu0 %v690
        %724 = vmatprep.subr.bf16.mxu0 0
        %725 = vmatpush1.bf16.xpose.msra.mxu0 %v687
        %726 = vmatprep.subr.bf16.mxu0 0
        %727 = vmatpush2.bf16.xpose.msra.mxu0 0
        %728 = vmatprep.subr.bf16.mxu0 0
        %729 = vmatpush2.bf16.xpose.msra.mxu0 0
        %730 = vmatprep.subr.bf16.mxu0 0
        %731 = vmatpush2.bf16.xpose.msra.mxu0 0
        %732 = vmatprep.subr.bf16.mxu0 0
        %733 = vmatpush2.bf16.xpose.msra.mxu0 0
        %734 = vmatprep.subr.bf16.mxu0 0
        %735 = vmatpush2.bf16.xpose.msra.mxu0 0
        %736 = vmatprep.subr.bf16.mxu0 0
        %737 = vmatpush2.bf16.xpose.msra.mxu0 0
        %738 = vmatprep.subr.bf16.mxu0 0
        %739 = vmatpush2.bf16.xpose.msra.mxu0 0
        %740 = vmatprep.subr.bf16.mxu0 0
        %741 = vmatpush2.bf16.xpose.msra.mxu0 0
        %742 = vmatprep.mubr.bf16.mxu0 0
        %743 = vmatmul.mubr.bf16.gmra.mxu0 %v663
        %v744 = vpop.f32.mrf.mxu0
        %v745 = vadd.f32 0.0, %v744
        %v746 = vpop.f32.mrf.mxu0
        %v747 = vpop.f32.mrf.mxu0
        %v748 = vadd.f32 0.0, %v747
        %v749 = vpop.f32.mrf.mxu0
        %750 = vmatprep.mubr.bf16.mxu0 0
        %751 = vmatmul.mubr.bf16.gmra.mxu0 %v666
        %v752 = vpop.f32.mrf.mxu0
        %v753 = vadd.f32 0.0, %v752
        %v754 = vpop.f32.mrf.mxu0
        %v755 = vpop.f32.mrf.mxu0
        %v756 = vadd.f32 0.0, %v755
        %v757 = vpop.f32.mrf.mxu0
        %758 = vmatprep.mubr.bf16.mxu0 0
        %759 = vmatmul.mubr.bf16.gmra.mxu0 %v669
        %v760 = vpop.f32.mrf.mxu0
        %v761 = vadd.f32 0.0, %v760
        %v762 = vpop.f32.mrf.mxu0
        %v763 = vpop.f32.mrf.mxu0
        %v764 = vadd.f32 0.0, %v763
        %v765 = vpop.f32.mrf.mxu0
        %766 = vmatprep.mubr.bf16.mxu0 0
        %767 = vmatmul.mubr.bf16.gmra.mxu0 %v672
        %v768 = vpop.f32.mrf.mxu0
        %v769 = vadd.f32 0.0, %v768
        %v770 = vpop.f32.mrf.mxu0
        %v771 = vpop.f32.mrf.mxu0
        %v772 = vadd.f32 0.0, %v771
        %v773 = vpop.f32.mrf.mxu0
        %774 = vmatprep.mubr.bf16.mxu0 0
        %775 = vmatmul.mubr.bf16.gmra.mxu0 %v675
        %v776 = vpop.f32.mrf.mxu0
        %v777 = vadd.f32 0.0, %v776
        %v778 = vpop.f32.mrf.mxu0
        %v779 = vpop.f32.mrf.mxu0
        %v780 = vadd.f32 0.0, %v779
        %v781 = vpop.f32.mrf.mxu0
        %782 = vmatprep.mubr.bf16.mxu0 0
        %783 = vmatmul.mubr.bf16.gmra.mxu0 %v678
        %v784 = vpop.f32.mrf.mxu0
        %v785 = vadd.f32 0.0, %v784
        %v786 = vpop.f32.mrf.mxu0
        %v787 = vpop.f32.mrf.mxu0
        %v788 = vadd.f32 0.0, %v787
        %v789 = vpop.f32.mrf.mxu0
        %790 = vmatprep.mubr.bf16.mxu0 0
        %791 = vmatmul.mubr.bf16.gmra.mxu0 %v681
        %v792 = vpop.f32.mrf.mxu0
        %v793 = vadd.f32 0.0, %v792
        %v794 = vpop.f32.mrf.mxu0
        %v795 = vpop.f32.mrf.mxu0
        %v796 = vadd.f32 0.0, %v795
        %v797 = vpop.f32.mrf.mxu0
        %798 = vmatprep.mubr.bf16.mxu0 0
        %799 = vmatmul.mubr.bf16.gmra.mxu0 %v684
        %v800 = vpop.f32.mrf.mxu0
        %v801 = vadd.f32 0.0, %v800
        %v802 = vpop.f32.mrf.mxu0
        %v803 = vpop.f32.mrf.mxu0
        %v804 = vadd.f32 0.0, %v803
        %v805 = vpop.f32.mrf.mxu0
        %806 = vdwg.mxu0
        %v807 = vmul.f32 %v745, 0.125
        %v808 = vmul.f32 %v748, 0.125
        %v809 = vmul.f32 %v753, 0.125
        %v810 = vmul.f32 %v756, 0.125
        %v811 = vmul.f32 %v761, 0.125
        %v812 = vmul.f32 %v764, 0.125
        %v813 = vmul.f32 %v769, 0.125
        %v814 = vmul.f32 %v772, 0.125
        %v815 = vmul.f32 %v777, 0.125
        %v816 = vmul.f32 %v780, 0.125
        %v817 = vmul.f32 %v785, 0.125
        %v818 = vmul.f32 %v788, 0.125
        %v819 = vmul.f32 %v793, 0.125
        %v820 = vmul.f32 %v796, 0.125
        %v821 = vmul.f32 %v801, 0.125
        %v822 = vmul.f32 %v804, 0.125
        %823 = vmax.xlane.f32.xlu0 %v807
        %v824 = vpop.xlane.xlu0 %823
        %825 = vmax.xlane.f32.xlu0 %v808
        %v826 = vpop.xlane.xlu0 %825
        %827 = vmax.xlane.f32.xlu0 %v809
        %v828 = vpop.xlane.xlu0 %827
        %829 = vmax.xlane.f32.xlu0 %v810
        %v830 = vpop.xlane.xlu0 %829
        %831 = vmax.xlane.f32.xlu0 %v811
        %v832 = vpop.xlane.xlu0 %831
        %833 = vmax.xlane.f32.xlu0 %v812
        %v834 = vpop.xlane.xlu0 %833
        %835 = vmax.xlane.f32.xlu0 %v813
        %v836 = vpop.xlane.xlu0 %835
        %837 = vmax.xlane.f32.xlu0 %v814
        %v838 = vpop.xlane.xlu0 %837
        %839 = vmax.xlane.f32.xlu0 %v815
        %v840 = vpop.xlane.xlu0 %839
        %841 = vmax.xlane.f32.xlu0 %v816
        %v842 = vpop.xlane.xlu0 %841
        %843 = vmax.xlane.f32.xlu0 %v817
        %v844 = vpop.xlane.xlu0 %843
        %845 = vmax.xlane.f32.xlu0 %v818
        %v846 = vpop.xlane.xlu0 %845
        %847 = vmax.xlane.f32.xlu0 %v819
        %v848 = vpop.xlane.xlu0 %847
        %849 = vmax.xlane.f32.xlu0 %v820
        %v850 = vpop.xlane.xlu0 %849
        %851 = vmax.xlane.f32.xlu0 %v821
        %v852 = vpop.xlane.xlu0 %851
        %853 = vmax.xlane.f32.xlu0 %v822
        %v854 = vpop.xlane.xlu0 %853
        %v855 = vsub.f32 %v807, %v824
        %v856 = vsub.f32 %v808, %v826
        %v857 = vsub.f32 %v809, %v828
        %v858 = vsub.f32 %v810, %v830
        %v859 = vsub.f32 %v811, %v832
        %v860 = vsub.f32 %v812, %v834
        %v861 = vsub.f32 %v813, %v836
        %v862 = vsub.f32 %v814, %v838
        %v863 = vsub.f32 %v815, %v840
        %v864 = vsub.f32 %v816, %v842
        %v865 = vsub.f32 %v817, %v844
        %v866 = vsub.f32 %v818, %v846
        %v867 = vsub.f32 %v819, %v848
        %v868 = vsub.f32 %v820, %v850
        %v869 = vsub.f32 %v821, %v852
        %v870 = vsub.f32 %v822, %v854
        %v871 = vmul.f32 %v855, 1.442695
        %v872 = vpow.pop %v871
        %v873 = vmul.f32 %v856, 1.442695
        %v874 = vpow.pop %v873
        %v875 = vmul.f32 %v857, 1.442695
        %v876 = vpow.pop %v875
        %v877 = vmul.f32 %v858, 1.442695
        %v878 = vpow.pop %v877
        %v879 = vmul.f32 %v859, 1.442695
        %v880 = vpow.pop %v879
        %v881 = vmul.f32 %v860, 1.442695
        %v882 = vpow.pop %v881
        %v883 = vmul.f32 %v861, 1.442695
        %v884 = vpow.pop %v883
        %v885 = vmul.f32 %v862, 1.442695
        %v886 = vpow.pop %v885
        %v887 = vmul.f32 %v863, 1.442695
        %v888 = vpow.pop %v887
        %v889 = vmul.f32 %v864, 1.442695
        %v890 = vpow.pop %v889
        %v891 = vmul.f32 %v865, 1.442695
        %v892 = vpow.pop %v891
        %v893 = vmul.f32 %v866, 1.442695
        %v894 = vpow.pop %v893
        %v895 = vmul.f32 %v867, 1.442695
        %v896 = vpow.pop %v895
        %v897 = vmul.f32 %v868, 1.442695
        %v898 = vpow.pop %v897
        %v899 = vmul.f32 %v869, 1.442695
        %v900 = vpow.pop %v899
        %v901 = vmul.f32 %v870, 1.442695
        %v902 = vpow.pop %v901
        %903 = vadd.xlane.f32.xlu0 %v872
        %v904 = vpop.xlane.xlu0 %903
        %905 = vadd.xlane.f32.xlu0 %v874
        %v906 = vpop.xlane.xlu0 %905
        %907 = vadd.xlane.f32.xlu0 %v876
        %v908 = vpop.xlane.xlu0 %907
        %909 = vadd.xlane.f32.xlu0 %v878
        %v910 = vpop.xlane.xlu0 %909
        %911 = vadd.xlane.f32.xlu0 %v880
        %v912 = vpop.xlane.xlu0 %911
        %913 = vadd.xlane.f32.xlu0 %v882
        %v914 = vpop.xlane.xlu0 %913
        %915 = vadd.xlane.f32.xlu0 %v884
        %v916 = vpop.xlane.xlu0 %915
        %917 = vadd.xlane.f32.xlu0 %v886
        %v918 = vpop.xlane.xlu0 %917
        %919 = vadd.xlane.f32.xlu0 %v888
        %v920 = vpop.xlane.xlu0 %919
        %921 = vadd.xlane.f32.xlu0 %v890
        %v922 = vpop.xlane.xlu0 %921
        %923 = vadd.xlane.f32.xlu0 %v892
        %v924 = vpop.xlane.xlu0 %923
        %925 = vadd.xlane.f32.xlu0 %v894
        %v926 = vpop.xlane.xlu0 %925
        %927 = vadd.xlane.f32.xlu0 %v896
        %v928 = vpop.xlane.xlu0 %927
        %929 = vadd.xlane.f32.xlu0 %v898
        %v930 = vpop.xlane.xlu0 %929
        %931 = vadd.xlane.f32.xlu0 %v900
        %v932 = vpop.xlane.xlu0 %931
        %933 = vadd.xlane.f32.xlu0 %v902
        %v934 = vpop.xlane.xlu0 %933
        %v935 = vpack.c.bf16 %v874, %v872
        %v936 = vpack.c.bf16 %v878, %v876
        %v937 = vpack.c.bf16 %v882, %v880
        %v938 = vpack.c.bf16 %v886, %v884
        %v939 = vpack.c.bf16 %v890, %v888
        %v940 = vpack.c.bf16 %v894, %v892
        %v941 = vpack.c.bf16 %v898, %v896
        %v942 = vpack.c.bf16 %v902, %v900
        %v959 = vunpack.c.l.b16 %v565
        %v960 = vunpack.c.l.b16 %v566
        %v961 = vunpack.c.l.b16 %v567
        %v962 = vunpack.c.l.b16 %v568
        %v963 = vunpack.c.l.b16 %v569
        %v964 = vunpack.c.l.b16 %v570
        %v965 = vunpack.c.l.b16 %v571
        %v966 = vunpack.c.l.b16 %v572
        %v967 = vunpack.c.l.b16 %v573
        %v968 = vunpack.c.l.b16 %v574
        %v969 = vunpack.c.l.b16 %v575
        %v970 = vunpack.c.l.b16 %v576
        %v971 = vunpack.c.l.b16 %v577
        %v972 = vunpack.c.l.b16 %v578
        %v973 = vunpack.c.l.b16 %v579
        %v974 = vunpack.c.l.b16 %v580
        %v975 = vpack.c.b16 %v960, %v959
        %v976 = vpack.c.b16 %v962, %v961
        %v977 = vpack.c.b16 %v964, %v963
        %v978 = vpack.c.b16 %v966, %v965
        %v979 = vpack.c.b16 %v968, %v967
        %v980 = vpack.c.b16 %v970, %v969
        %v981 = vpack.c.b16 %v972, %v971
        %v982 = vpack.c.b16 %v974, %v973
        %991 = vmatprep.subr.bf16.mxu0 0
        %992 = vmatpush1.bf16.msra.mxu0 %v982
        %993 = vmatprep.subr.bf16.mxu0 0
        %994 = vmatpush1.bf16.msra.mxu0 %v981
        %995 = vmatprep.subr.bf16.mxu0 0
        %996 = vmatpush1.bf16.msra.mxu0 %v980
        %997 = vmatprep.subr.bf16.mxu0 0
        %998 = vmatpush1.bf16.msra.mxu0 %v979
        %999 = vmatprep.subr.bf16.mxu0 0
        %1000 = vmatpush1.bf16.msra.mxu0 %v978
        %1001 = vmatprep.subr.bf16.mxu0 0
        %1002 = vmatpush1.bf16.msra.mxu0 %v977
        %1003 = vmatprep.subr.bf16.mxu0 0
        %1004 = vmatpush1.bf16.msra.mxu0 %v976
        %1005 = vmatprep.subr.bf16.mxu0 0
        %1006 = vmatpush1.bf16.msra.mxu0 %v975
        %1007 = vmatprep.subr.bf16.mxu0 0
        %1008 = vmatpush2.bf16.msra.mxu0 0
        %1009 = vmatprep.subr.bf16.mxu0 0
        %1010 = vmatpush2.bf16.msra.mxu0 0
        %1011 = vmatprep.subr.bf16.mxu0 0
        %1012 = vmatpush2.bf16.msra.mxu0 0
        %1013 = vmatprep.subr.bf16.mxu0 0
        %1014 = vmatpush2.bf16.msra.mxu0 0
        %1015 = vmatprep.subr.bf16.mxu0 0
        %1016 = vmatpush2.bf16.msra.mxu0 0
        %1017 = vmatprep.subr.bf16.mxu0 0
        %1018 = vmatpush2.bf16.msra.mxu0 0
        %1019 = vmatprep.subr.bf16.mxu0 0
        %1020 = vmatpush2.bf16.msra.mxu0 0
        %1021 = vmatprep.subr.bf16.mxu0 0
        %1022 = vmatpush2.bf16.msra.mxu0 0
        %1023 = vmatprep.mubr.bf16.mxu0 0
        %1024 = vmatmul.mubr.bf16.gmra.mxu0 %v935
        %v1025 = vpop.f32.mrf.mxu0
        %v1026 = vadd.f32 0.0, %v1025
        %v1027 = vpop.f32.mrf.mxu0
        %v1028 = vpop.f32.mrf.mxu0
        %v1029 = vadd.f32 0.0, %v1028
        %v1030 = vpop.f32.mrf.mxu0
        %1031 = vmatprep.mubr.bf16.mxu0 0
        %1032 = vmatmul.mubr.bf16.gmra.mxu0 %v936
        %v1033 = vpop.f32.mrf.mxu0
        %v1034 = vadd.f32 0.0, %v1033
        %v1035 = vpop.f32.mrf.mxu0
        %v1036 = vpop.f32.mrf.mxu0
        %v1037 = vadd.f32 0.0, %v1036
        %v1038 = vpop.f32.mrf.mxu0
        %1039 = vmatprep.mubr.bf16.mxu0 0
        %1040 = vmatmul.mubr.bf16.gmra.mxu0 %v937
        %v1041 = vpop.f32.mrf.mxu0
        %v1042 = vadd.f32 0.0, %v1041
        %v1043 = vpop.f32.mrf.mxu0
        %v1044 = vpop.f32.mrf.mxu0
        %v1045 = vadd.f32 0.0, %v1044
        %v1046 = vpop.f32.mrf.mxu0
        %1047 = vmatprep.mubr.bf16.mxu0 0
        %1048 = vmatmul.mubr.bf16.gmra.mxu0 %v938
        %v1049 = vpop.f32.mrf.mxu0
        %v1050 = vadd.f32 0.0, %v1049
        %v1051 = vpop.f32.mrf.mxu0
        %v1052 = vpop.f32.mrf.mxu0
        %v1053 = vadd.f32 0.0, %v1052
        %v1054 = vpop.f32.mrf.mxu0
        %1055 = vmatprep.mubr.bf16.mxu0 0
        %1056 = vmatmul.mubr.bf16.gmra.mxu0 %v939
        %v1057 = vpop.f32.mrf.mxu0
        %v1058 = vadd.f32 0.0, %v1057
        %v1059 = vpop.f32.mrf.mxu0
        %v1060 = vpop.f32.mrf.mxu0
        %v1061 = vadd.f32 0.0, %v1060
        %v1062 = vpop.f32.mrf.mxu0
        %1063 = vmatprep.mubr.bf16.mxu0 0
        %1064 = vmatmul.mubr.bf16.gmra.mxu0 %v940
        %v1065 = vpop.f32.mrf.mxu0
        %v1066 = vadd.f32 0.0, %v1065
        %v1067 = vpop.f32.mrf.mxu0
        %v1068 = vpop.f32.mrf.mxu0
        %v1069 = vadd.f32 0.0, %v1068
        %v1070 = vpop.f32.mrf.mxu0
        %1071 = vmatprep.mubr.bf16.mxu0 0
        %1072 = vmatmul.mubr.bf16.gmra.mxu0 %v941
        %v1073 = vpop.f32.mrf.mxu0
        %v1074 = vadd.f32 0.0, %v1073
        %v1075 = vpop.f32.mrf.mxu0
        %v1076 = vpop.f32.mrf.mxu0
        %v1077 = vadd.f32 0.0, %v1076
        %v1078 = vpop.f32.mrf.mxu0
        %1079 = vmatprep.mubr.bf16.mxu0 0
        %1080 = vmatmul.mubr.bf16.gmra.mxu0 %v942
        %v1081 = vpop.f32.mrf.mxu0
        %v1082 = vadd.f32 0.0, %v1081
        %v1083 = vpop.f32.mrf.mxu0
        %v1084 = vpop.f32.mrf.mxu0
        %v1085 = vadd.f32 0.0, %v1084
        %v1086 = vpop.f32.mrf.mxu0
        %1087 = vdwg.mxu0
        %v1088 = vrcp.pop %v904
        %v1089 = vrcp.pop %v906
        %v1090 = vrcp.pop %v908
        %v1091 = vrcp.pop %v910
        %v1092 = vrcp.pop %v912
        %v1093 = vrcp.pop %v914
        %v1094 = vrcp.pop %v916
        %v1095 = vrcp.pop %v918
        %v1096 = vrcp.pop %v920
        %v1097 = vrcp.pop %v922
        %v1098 = vrcp.pop %v924
        %v1099 = vrcp.pop %v926
        %v1100 = vrcp.pop %v928
        %v1101 = vrcp.pop %v930
        %v1102 = vrcp.pop %v932
        %v1103 = vrcp.pop %v934
        %v1104 = vmul.f32 %v904, %v1088
        %v1105 = vmul.f32 %v906, %v1089
        %v1106 = vmul.f32 %v908, %v1090
        %v1107 = vmul.f32 %v910, %v1091
        %v1108 = vmul.f32 %v912, %v1092
        %v1109 = vmul.f32 %v914, %v1093
        %v1110 = vmul.f32 %v916, %v1094
        %v1111 = vmul.f32 %v918, %v1095
        %v1112 = vmul.f32 %v920, %v1096
        %v1113 = vmul.f32 %v922, %v1097
        %v1114 = vmul.f32 %v924, %v1098
        %v1115 = vmul.f32 %v926, %v1099
        %v1116 = vmul.f32 %v928, %v1100
        %v1117 = vmul.f32 %v930, %v1101
        %v1118 = vmul.f32 %v932, %v1102
        %v1119 = vmul.f32 %v934, %v1103
        %v1120 = vsub.f32 2.0, %v1104
        %v1121 = vsub.f32 2.0, %v1105
        %v1122 = vsub.f32 2.0, %v1106
        %v1123 = vsub.f32 2.0, %v1107
        %v1124 = vsub.f32 2.0, %v1108
        %v1125 = vsub.f32 2.0, %v1109
        %v1126 = vsub.f32 2.0, %v1110
        %v1127 = vsub.f32 2.0, %v1111
        %v1128 = vsub.f32 2.0, %v1112
        %v1129 = vsub.f32 2.0, %v1113
        %v1130 = vsub.f32 2.0, %v1114
        %v1131 = vsub.f32 2.0, %v1115
        %v1132 = vsub.f32 2.0, %v1116
        %v1133 = vsub.f32 2.0, %v1117
        %v1134 = vsub.f32 2.0, %v1118
        %v1135 = vsub.f32 2.0, %v1119
        %v1136 = vmul.f32 %v1088, %v1120
        %v1137 = vmul.f32 %v1089, %v1121
        %v1138 = vmul.f32 %v1090, %v1122
        %v1139 = vmul.f32 %v1091, %v1123
        %v1140 = vmul.f32 %v1092, %v1124
        %v1141 = vmul.f32 %v1093, %v1125
        %v1142 = vmul.f32 %v1094, %v1126
        %v1143 = vmul.f32 %v1095, %v1127
        %v1144 = vmul.f32 %v1096, %v1128
        %v1145 = vmul.f32 %v1097, %v1129
        %v1146 = vmul.f32 %v1098, %v1130
        %v1147 = vmul.f32 %v1099, %v1131
        %v1148 = vmul.f32 %v1100, %v1132
        %v1149 = vmul.f32 %v1101, %v1133
        %v1150 = vmul.f32 %v1102, %v1134
        %v1151 = vmul.f32 %v1103, %v1135
        %v1152 = vmul.f32 %v1026, %v1136
        %v1153 = vmul.f32 %v1029, %v1137
        %v1154 = vmul.f32 %v1034, %v1138
        %v1155 = vmul.f32 %v1037, %v1139
        %v1156 = vmul.f32 %v1042, %v1140
        %v1157 = vmul.f32 %v1045, %v1141
        %v1158 = vmul.f32 %v1050, %v1142
        %v1159 = vmul.f32 %v1053, %v1143
        %v1160 = vmul.f32 %v1058, %v1144
        %v1161 = vmul.f32 %v1061, %v1145
        %v1162 = vmul.f32 %v1066, %v1146
        %v1163 = vmul.f32 %v1069, %v1147
        %v1164 = vmul.f32 %v1074, %v1148
        %v1165 = vmul.f32 %v1077, %v1149
        %v1166 = vmul.f32 %v1082, %v1150
        %v1167 = vmul.f32 %v1085, %v1151
        %1168 = vrot.lane.b32.xlu0 %v613, 64
        %v1169 = vpop.permute.xlu0 %1168
        %1170 = vrot.lane.b32.xlu0 %v614, 64
        %v1171 = vpop.permute.xlu0 %1170
        %1172 = vrot.lane.b32.xlu0 %v615, 64
        %v1173 = vpop.permute.xlu0 %1172
        %1174 = vrot.lane.b32.xlu0 %v616, 64
        %v1175 = vpop.permute.xlu0 %1174
        %1176 = vrot.lane.b32.xlu0 %v617, 64
        %v1177 = vpop.permute.xlu0 %1176
        %1178 = vrot.lane.b32.xlu0 %v618, 64
        %v1179 = vpop.permute.xlu0 %1178
        %1180 = vrot.lane.b32.xlu0 %v619, 64
        %v1181 = vpop.permute.xlu0 %1180
        %1182 = vrot.lane.b32.xlu0 %v620, 64
        %v1183 = vpop.permute.xlu0 %1182
        %1184 = vrot.lane.b32.xlu0 %v653, 64
        %v1185 = vpop.permute.xlu0 %1184
        %1186 = vrot.lane.b32.xlu0 %v654, 64
        %v1187 = vpop.permute.xlu0 %1186
        %1188 = vrot.lane.b32.xlu0 %v655, 64
        %v1189 = vpop.permute.xlu0 %1188
        %1190 = vrot.lane.b32.xlu0 %v656, 64
        %v1191 = vpop.permute.xlu0 %1190
        %1192 = vrot.lane.b32.xlu0 %v657, 64
        %v1193 = vpop.permute.xlu0 %1192
        %1194 = vrot.lane.b32.xlu0 %v658, 64
        %v1195 = vpop.permute.xlu0 %1194
        %1196 = vrot.lane.b32.xlu0 %v659, 64
        %v1197 = vpop.permute.xlu0 %1196
        %1198 = vrot.lane.b32.xlu0 %v660, 64
        %v1199 = vpop.permute.xlu0 %1198
        %v1201 = vsel %vm661, %v1169, 0
        %v1204 = vsel %vm661, %v1171, 0
        %v1207 = vsel %vm661, %v1173, 0
        %v1210 = vsel %vm661, %v1175, 0
        %v1213 = vsel %vm661, %v1177, 0
        %v1216 = vsel %vm661, %v1179, 0
        %v1219 = vsel %vm661, %v1181, 0
        %v1222 = vsel %vm661, %v1183, 0
        %v1225 = vsel %vm661, %v1185, 0
        %v1228 = vsel %vm661, %v1187, 0
        %v1231 = vsel %vm661, %v1189, 0
        %v1234 = vsel %vm661, %v1191, 0
        %v1237 = vsel %vm661, %v1193, 0
        %v1240 = vsel %vm661, %v1195, 0
        %v1243 = vsel %vm661, %v1197, 0
        %v1246 = vsel %vm661, %v1199, 0
        %1248 = vmatprep.subr.bf16.mxu0 0
        %1249 = vmatpush1.bf16.xpose.msra.mxu0 %v1246
        %1250 = vmatprep.subr.bf16.mxu0 0
        %1251 = vmatpush1.bf16.xpose.msra.mxu0 %v1243
        %1252 = vmatprep.subr.bf16.mxu0 0
        %1253 = vmatpush1.bf16.xpose.msra.mxu0 %v1240
        %1254 = vmatprep.subr.bf16.mxu0 0
        %1255 = vmatpush1.bf16.xpose.msra.mxu0 %v1237
        %1256 = vmatprep.subr.bf16.mxu0 0
        %1257 = vmatpush1.bf16.xpose.msra.mxu0 %v1234
        %1258 = vmatprep.subr.bf16.mxu0 0
        %1259 = vmatpush1.bf16.xpose.msra.mxu0 %v1231
        %1260 = vmatprep.subr.bf16.mxu0 0
        %1261 = vmatpush1.bf16.xpose.msra.mxu0 %v1228
        %1262 = vmatprep.subr.bf16.mxu0 0
        %1263 = vmatpush1.bf16.xpose.msra.mxu0 %v1225
        %1264 = vmatprep.subr.bf16.mxu0 0
        %1265 = vmatpush2.bf16.xpose.msra.mxu0 0
        %1266 = vmatprep.subr.bf16.mxu0 0
        %1267 = vmatpush2.bf16.xpose.msra.mxu0 0
        %1268 = vmatprep.subr.bf16.mxu0 0
        %1269 = vmatpush2.bf16.xpose.msra.mxu0 0
        %1270 = vmatprep.subr.bf16.mxu0 0
        %1271 = vmatpush2.bf16.xpose.msra.mxu0 0
        %1272 = vmatprep.subr.bf16.mxu0 0
        %1273 = vmatpush2.bf16.xpose.msra.mxu0 0
        %1274 = vmatprep.subr.bf16.mxu0 0
        %1275 = vmatpush2.bf16.xpose.msra.mxu0 0
        %1276 = vmatprep.subr.bf16.mxu0 0
        %1277 = vmatpush2.bf16.xpose.msra.mxu0 0
        %1278 = vmatprep.subr.bf16.mxu0 0
        %1279 = vmatpush2.bf16.xpose.msra.mxu0 0
        %1280 = vmatprep.mubr.bf16.mxu0 0
        %1281 = vmatmul.mubr.bf16.gmra.mxu0 %v1201
        %v1282 = vpop.f32.mrf.mxu0
        %v1283 = vadd.f32 0.0, %v1282
        %v1284 = vpop.f32.mrf.mxu0
        %v1285 = vpop.f32.mrf.mxu0
        %v1286 = vadd.f32 0.0, %v1285
        %v1287 = vpop.f32.mrf.mxu0
        %1288 = vmatprep.mubr.bf16.mxu0 0
        %1289 = vmatmul.mubr.bf16.gmra.mxu0 %v1204
        %v1290 = vpop.f32.mrf.mxu0
        %v1291 = vadd.f32 0.0, %v1290
        %v1292 = vpop.f32.mrf.mxu0
        %v1293 = vpop.f32.mrf.mxu0
        %v1294 = vadd.f32 0.0, %v1293
        %v1295 = vpop.f32.mrf.mxu0
        %1296 = vmatprep.mubr.bf16.mxu0 0
        %1297 = vmatmul.mubr.bf16.gmra.mxu0 %v1207
        %v1298 = vpop.f32.mrf.mxu0
        %v1299 = vadd.f32 0.0, %v1298
        %v1300 = vpop.f32.mrf.mxu0
        %v1301 = vpop.f32.mrf.mxu0
        %v1302 = vadd.f32 0.0, %v1301
        %v1303 = vpop.f32.mrf.mxu0
        %1304 = vmatprep.mubr.bf16.mxu0 0
        %1305 = vmatmul.mubr.bf16.gmra.mxu0 %v1210
        %v1306 = vpop.f32.mrf.mxu0
        %v1307 = vadd.f32 0.0, %v1306
        %v1308 = vpop.f32.mrf.mxu0
        %v1309 = vpop.f32.mrf.mxu0
        %v1310 = vadd.f32 0.0, %v1309
        %v1311 = vpop.f32.mrf.mxu0
        %1312 = vmatprep.mubr.bf16.mxu0 0
        %1313 = vmatmul.mubr.bf16.gmra.mxu0 %v1213
        %v1314 = vpop.f32.mrf.mxu0
        %v1315 = vadd.f32 0.0, %v1314
        %v1316 = vpop.f32.mrf.mxu0
        %v1317 = vpop.f32.mrf.mxu0
        %v1318 = vadd.f32 0.0, %v1317
        %v1319 = vpop.f32.mrf.mxu0
        %1320 = vmatprep.mubr.bf16.mxu0 0
        %1321 = vmatmul.mubr.bf16.gmra.mxu0 %v1216
        %v1322 = vpop.f32.mrf.mxu0
        %v1323 = vadd.f32 0.0, %v1322
        %v1324 = vpop.f32.mrf.mxu0
        %v1325 = vpop.f32.mrf.mxu0
        %v1326 = vadd.f32 0.0, %v1325
        %v1327 = vpop.f32.mrf.mxu0
        %1328 = vmatprep.mubr.bf16.mxu0 0
        %1329 = vmatmul.mubr.bf16.gmra.mxu0 %v1219
        %v1330 = vpop.f32.mrf.mxu0
        %v1331 = vadd.f32 0.0, %v1330
        %v1332 = vpop.f32.mrf.mxu0
        %v1333 = vpop.f32.mrf.mxu0
        %v1334 = vadd.f32 0.0, %v1333
        %v1335 = vpop.f32.mrf.mxu0
        %1336 = vmatprep.mubr.bf16.mxu0 0
        %1337 = vmatmul.mubr.bf16.gmra.mxu0 %v1222
        %v1338 = vpop.f32.mrf.mxu0
        %v1339 = vadd.f32 0.0, %v1338
        %v1340 = vpop.f32.mrf.mxu0
        %v1341 = vpop.f32.mrf.mxu0
        %v1342 = vadd.f32 0.0, %v1341
        %v1343 = vpop.f32.mrf.mxu0
        %1344 = vdwg.mxu0
        %v1345 = vmul.f32 %v1283, 0.125
        %v1346 = vmul.f32 %v1286, 0.125
        %v1347 = vmul.f32 %v1291, 0.125
        %v1348 = vmul.f32 %v1294, 0.125
        %v1349 = vmul.f32 %v1299, 0.125
        %v1350 = vmul.f32 %v1302, 0.125
        %v1351 = vmul.f32 %v1307, 0.125
        %v1352 = vmul.f32 %v1310, 0.125
        %v1353 = vmul.f32 %v1315, 0.125
        %v1354 = vmul.f32 %v1318, 0.125
        %v1355 = vmul.f32 %v1323, 0.125
        %v1356 = vmul.f32 %v1326, 0.125
        %v1357 = vmul.f32 %v1331, 0.125
        %v1358 = vmul.f32 %v1334, 0.125
        %v1359 = vmul.f32 %v1339, 0.125
        %v1360 = vmul.f32 %v1342, 0.125
        %1361 = vmax.xlane.f32.xlu0 %v1345
        %v1362 = vpop.xlane.xlu0 %1361
        %1363 = vmax.xlane.f32.xlu0 %v1346
        %v1364 = vpop.xlane.xlu0 %1363
        %1365 = vmax.xlane.f32.xlu0 %v1347
        %v1366 = vpop.xlane.xlu0 %1365
        %1367 = vmax.xlane.f32.xlu0 %v1348
        %v1368 = vpop.xlane.xlu0 %1367
        %1369 = vmax.xlane.f32.xlu0 %v1349
        %v1370 = vpop.xlane.xlu0 %1369
        %1371 = vmax.xlane.f32.xlu0 %v1350
        %v1372 = vpop.xlane.xlu0 %1371
        %1373 = vmax.xlane.f32.xlu0 %v1351
        %v1374 = vpop.xlane.xlu0 %1373
        %1375 = vmax.xlane.f32.xlu0 %v1352
        %v1376 = vpop.xlane.xlu0 %1375
        %1377 = vmax.xlane.f32.xlu0 %v1353
        %v1378 = vpop.xlane.xlu0 %1377
        %1379 = vmax.xlane.f32.xlu0 %v1354
        %v1380 = vpop.xlane.xlu0 %1379
        %1381 = vmax.xlane.f32.xlu0 %v1355
        %v1382 = vpop.xlane.xlu0 %1381
        %1383 = vmax.xlane.f32.xlu0 %v1356
        %v1384 = vpop.xlane.xlu0 %1383
        %1385 = vmax.xlane.f32.xlu0 %v1357
        %v1386 = vpop.xlane.xlu0 %1385
        %1387 = vmax.xlane.f32.xlu0 %v1358
        %v1388 = vpop.xlane.xlu0 %1387
        %1389 = vmax.xlane.f32.xlu0 %v1359
        %v1390 = vpop.xlane.xlu0 %1389
        %1391 = vmax.xlane.f32.xlu0 %v1360
        %v1392 = vpop.xlane.xlu0 %1391
        %v1393 = vsub.f32 %v1345, %v1362
        %v1394 = vsub.f32 %v1346, %v1364
        %v1395 = vsub.f32 %v1347, %v1366
        %v1396 = vsub.f32 %v1348, %v1368
        %v1397 = vsub.f32 %v1349, %v1370
        %v1398 = vsub.f32 %v1350, %v1372
        %v1399 = vsub.f32 %v1351, %v1374
        %v1400 = vsub.f32 %v1352, %v1376
        %v1401 = vsub.f32 %v1353, %v1378
        %v1402 = vsub.f32 %v1354, %v1380
        %v1403 = vsub.f32 %v1355, %v1382
        %v1404 = vsub.f32 %v1356, %v1384
        %v1405 = vsub.f32 %v1357, %v1386
        %v1406 = vsub.f32 %v1358, %v1388
        %v1407 = vsub.f32 %v1359, %v1390
        %v1408 = vsub.f32 %v1360, %v1392
        %v1409 = vmul.f32 %v1393, 1.442695
        %v1410 = vpow.pop %v1409
        %v1411 = vmul.f32 %v1394, 1.442695
        %v1412 = vpow.pop %v1411
        %v1413 = vmul.f32 %v1395, 1.442695
        %v1414 = vpow.pop %v1413
        %v1415 = vmul.f32 %v1396, 1.442695
        %v1416 = vpow.pop %v1415
        %v1417 = vmul.f32 %v1397, 1.442695
        %v1418 = vpow.pop %v1417
        %v1419 = vmul.f32 %v1398, 1.442695
        %v1420 = vpow.pop %v1419
        %v1421 = vmul.f32 %v1399, 1.442695
        %v1422 = vpow.pop %v1421
        %v1423 = vmul.f32 %v1400, 1.442695
        %v1424 = vpow.pop %v1423
        %v1425 = vmul.f32 %v1401, 1.442695
        %v1426 = vpow.pop %v1425
        %v1427 = vmul.f32 %v1402, 1.442695
        %v1428 = vpow.pop %v1427
        %v1429 = vmul.f32 %v1403, 1.442695
        %v1430 = vpow.pop %v1429
        %v1431 = vmul.f32 %v1404, 1.442695
        %v1432 = vpow.pop %v1431
        %v1433 = vmul.f32 %v1405, 1.442695
        %v1434 = vpow.pop %v1433
        %v1435 = vmul.f32 %v1406, 1.442695
        %v1436 = vpow.pop %v1435
        %v1437 = vmul.f32 %v1407, 1.442695
        %v1438 = vpow.pop %v1437
        %v1439 = vmul.f32 %v1408, 1.442695
        %v1440 = vpow.pop %v1439
        %1441 = vadd.xlane.f32.xlu0 %v1410
        %v1442 = vpop.xlane.xlu0 %1441
        %1443 = vadd.xlane.f32.xlu0 %v1412
        %v1444 = vpop.xlane.xlu0 %1443
        %1445 = vadd.xlane.f32.xlu0 %v1414
        %v1446 = vpop.xlane.xlu0 %1445
        %1447 = vadd.xlane.f32.xlu0 %v1416
        %v1448 = vpop.xlane.xlu0 %1447
        %1449 = vadd.xlane.f32.xlu0 %v1418
        %v1450 = vpop.xlane.xlu0 %1449
        %1451 = vadd.xlane.f32.xlu0 %v1420
        %v1452 = vpop.xlane.xlu0 %1451
        %1453 = vadd.xlane.f32.xlu0 %v1422
        %v1454 = vpop.xlane.xlu0 %1453
        %1455 = vadd.xlane.f32.xlu0 %v1424
        %v1456 = vpop.xlane.xlu0 %1455
        %1457 = vadd.xlane.f32.xlu0 %v1426
        %v1458 = vpop.xlane.xlu0 %1457
        %1459 = vadd.xlane.f32.xlu0 %v1428
        %v1460 = vpop.xlane.xlu0 %1459
        %1461 = vadd.xlane.f32.xlu0 %v1430
        %v1462 = vpop.xlane.xlu0 %1461
        %1463 = vadd.xlane.f32.xlu0 %v1432
        %v1464 = vpop.xlane.xlu0 %1463
        %1465 = vadd.xlane.f32.xlu0 %v1434
        %v1466 = vpop.xlane.xlu0 %1465
        %1467 = vadd.xlane.f32.xlu0 %v1436
        %v1468 = vpop.xlane.xlu0 %1467
        %1469 = vadd.xlane.f32.xlu0 %v1438
        %v1470 = vpop.xlane.xlu0 %1469
        %1471 = vadd.xlane.f32.xlu0 %v1440
        %v1472 = vpop.xlane.xlu0 %1471
        %v1473 = vpack.c.bf16 %v1412, %v1410
        %v1474 = vpack.c.bf16 %v1416, %v1414
        %v1475 = vpack.c.bf16 %v1420, %v1418
        %v1476 = vpack.c.bf16 %v1424, %v1422
        %v1477 = vpack.c.bf16 %v1428, %v1426
        %v1478 = vpack.c.bf16 %v1432, %v1430
        %v1479 = vpack.c.bf16 %v1436, %v1434
        %v1480 = vpack.c.bf16 %v1440, %v1438
        %1481 = vrot.lane.b32.xlu0 %v975, 64
        %v1482 = vpop.permute.xlu0 %1481
        %1483 = vrot.lane.b32.xlu0 %v976, 64
        %v1484 = vpop.permute.xlu0 %1483
        %1485 = vrot.lane.b32.xlu0 %v977, 64
        %v1486 = vpop.permute.xlu0 %1485
        %1487 = vrot.lane.b32.xlu0 %v978, 64
        %v1488 = vpop.permute.xlu0 %1487
        %1489 = vrot.lane.b32.xlu0 %v979, 64
        %v1490 = vpop.permute.xlu0 %1489
        %1491 = vrot.lane.b32.xlu0 %v980, 64
        %v1492 = vpop.permute.xlu0 %1491
        %1493 = vrot.lane.b32.xlu0 %v981, 64
        %v1494 = vpop.permute.xlu0 %1493
        %1495 = vrot.lane.b32.xlu0 %v982, 64
        %v1496 = vpop.permute.xlu0 %1495
        %1505 = vmatprep.subr.bf16.mxu0 0
        %1506 = vmatpush1.bf16.msra.mxu0 %v1496
        %1507 = vmatprep.subr.bf16.mxu0 0
        %1508 = vmatpush1.bf16.msra.mxu0 %v1494
        %1509 = vmatprep.subr.bf16.mxu0 0
        %1510 = vmatpush1.bf16.msra.mxu0 %v1492
        %1511 = vmatprep.subr.bf16.mxu0 0
        %1512 = vmatpush1.bf16.msra.mxu0 %v1490
        %1513 = vmatprep.subr.bf16.mxu0 0
        %1514 = vmatpush1.bf16.msra.mxu0 %v1488
        %1515 = vmatprep.subr.bf16.mxu0 0
        %1516 = vmatpush1.bf16.msra.mxu0 %v1486
        %1517 = vmatprep.subr.bf16.mxu0 0
        %1518 = vmatpush1.bf16.msra.mxu0 %v1484
        %1519 = vmatprep.subr.bf16.mxu0 0
        %1520 = vmatpush1.bf16.msra.mxu0 %v1482
        %1521 = vmatprep.subr.bf16.mxu0 0
        %1522 = vmatpush2.bf16.msra.mxu0 0
        %1523 = vmatprep.subr.bf16.mxu0 0
        %1524 = vmatpush2.bf16.msra.mxu0 0
        %1525 = vmatprep.subr.bf16.mxu0 0
        %1526 = vmatpush2.bf16.msra.mxu0 0
        %1527 = vmatprep.subr.bf16.mxu0 0
        %1528 = vmatpush2.bf16.msra.mxu0 0
        %1529 = vmatprep.subr.bf16.mxu0 0
        %1530 = vmatpush2.bf16.msra.mxu0 0
        %1531 = vmatprep.subr.bf16.mxu0 0
        %1532 = vmatpush2.bf16.msra.mxu0 0
        %1533 = vmatprep.subr.bf16.mxu0 0
        %1534 = vmatpush2.bf16.msra.mxu0 0
        %1535 = vmatprep.subr.bf16.mxu0 0
        %1536 = vmatpush2.bf16.msra.mxu0 0
        %1537 = vmatprep.mubr.bf16.mxu0 0
        %1538 = vmatmul.mubr.bf16.gmra.mxu0 %v1473
        %v1539 = vpop.f32.mrf.mxu0
        %v1540 = vadd.f32 0.0, %v1539
        %v1541 = vpop.f32.mrf.mxu0
        %v1542 = vpop.f32.mrf.mxu0
        %v1543 = vadd.f32 0.0, %v1542
        %v1544 = vpop.f32.mrf.mxu0
        %1545 = vmatprep.mubr.bf16.mxu0 0
        %1546 = vmatmul.mubr.bf16.gmra.mxu0 %v1474
        %v1547 = vpop.f32.mrf.mxu0
        %v1548 = vadd.f32 0.0, %v1547
        %v1549 = vpop.f32.mrf.mxu0
        %v1550 = vpop.f32.mrf.mxu0
        %v1551 = vadd.f32 0.0, %v1550
        %v1552 = vpop.f32.mrf.mxu0
        %1553 = vmatprep.mubr.bf16.mxu0 0
        %1554 = vmatmul.mubr.bf16.gmra.mxu0 %v1475
        %v1555 = vpop.f32.mrf.mxu0
        %v1556 = vadd.f32 0.0, %v1555
        %v1557 = vpop.f32.mrf.mxu0
        %v1558 = vpop.f32.mrf.mxu0
        %v1559 = vadd.f32 0.0, %v1558
        %v1560 = vpop.f32.mrf.mxu0
        %1561 = vmatprep.mubr.bf16.mxu0 0
        %1562 = vmatmul.mubr.bf16.gmra.mxu0 %v1476
        %v1563 = vpop.f32.mrf.mxu0
        %v1564 = vadd.f32 0.0, %v1563
        %v1565 = vpop.f32.mrf.mxu0
        %v1566 = vpop.f32.mrf.mxu0
        %v1567 = vadd.f32 0.0, %v1566
        %v1568 = vpop.f32.mrf.mxu0
        %1569 = vmatprep.mubr.bf16.mxu0 0
        %1570 = vmatmul.mubr.bf16.gmra.mxu0 %v1477
        %v1571 = vpop.f32.mrf.mxu0
        %v1572 = vadd.f32 0.0, %v1571
        %v1573 = vpop.f32.mrf.mxu0
        %v1574 = vpop.f32.mrf.mxu0
        %v1575 = vadd.f32 0.0, %v1574
        %v1576 = vpop.f32.mrf.mxu0
        %1577 = vmatprep.mubr.bf16.mxu0 0
        %1578 = vmatmul.mubr.bf16.gmra.mxu0 %v1478
        %v1579 = vpop.f32.mrf.mxu0
        %v1580 = vadd.f32 0.0, %v1579
        %v1581 = vpop.f32.mrf.mxu0
        %v1582 = vpop.f32.mrf.mxu0
        %v1583 = vadd.f32 0.0, %v1582
        %v1584 = vpop.f32.mrf.mxu0
        %1585 = vmatprep.mubr.bf16.mxu0 0
        %1586 = vmatmul.mubr.bf16.gmra.mxu0 %v1479
        %v1587 = vpop.f32.mrf.mxu0
        %v1588 = vadd.f32 0.0, %v1587
        %v1589 = vpop.f32.mrf.mxu0
        %v1590 = vpop.f32.mrf.mxu0
        %v1591 = vadd.f32 0.0, %v1590
        %v1592 = vpop.f32.mrf.mxu0
        %1593 = vmatprep.mubr.bf16.mxu0 0
        %1594 = vmatmul.mubr.bf16.gmra.mxu0 %v1480
        %v1595 = vpop.f32.mrf.mxu0
        %v1596 = vadd.f32 0.0, %v1595
        %v1597 = vpop.f32.mrf.mxu0
        %v1598 = vpop.f32.mrf.mxu0
        %v1599 = vadd.f32 0.0, %v1598
        %v1600 = vpop.f32.mrf.mxu0
        %1601 = vdwg.mxu0
        %v1602 = vrcp.pop %v1442
        %v1603 = vrcp.pop %v1444
        %v1604 = vrcp.pop %v1446
        %v1605 = vrcp.pop %v1448
        %v1606 = vrcp.pop %v1450
        %v1607 = vrcp.pop %v1452
        %v1608 = vrcp.pop %v1454
        %v1609 = vrcp.pop %v1456
        %v1610 = vrcp.pop %v1458
        %v1611 = vrcp.pop %v1460
        %v1612 = vrcp.pop %v1462
        %v1613 = vrcp.pop %v1464
        %v1614 = vrcp.pop %v1466
        %v1615 = vrcp.pop %v1468
        %v1616 = vrcp.pop %v1470
        %v1617 = vrcp.pop %v1472
        %v1618 = vmul.f32 %v1442, %v1602
        %v1619 = vmul.f32 %v1444, %v1603
        %v1620 = vmul.f32 %v1446, %v1604
        %v1621 = vmul.f32 %v1448, %v1605
        %v1622 = vmul.f32 %v1450, %v1606
        %v1623 = vmul.f32 %v1452, %v1607
        %v1624 = vmul.f32 %v1454, %v1608
        %v1625 = vmul.f32 %v1456, %v1609
        %v1626 = vmul.f32 %v1458, %v1610
        %v1627 = vmul.f32 %v1460, %v1611
        %v1628 = vmul.f32 %v1462, %v1612
        %v1629 = vmul.f32 %v1464, %v1613
        %v1630 = vmul.f32 %v1466, %v1614
        %v1631 = vmul.f32 %v1468, %v1615
        %v1632 = vmul.f32 %v1470, %v1616
        %v1633 = vmul.f32 %v1472, %v1617
        %v1634 = vsub.f32 2.0, %v1618
        %v1635 = vsub.f32 2.0, %v1619
        %v1636 = vsub.f32 2.0, %v1620
        %v1637 = vsub.f32 2.0, %v1621
        %v1638 = vsub.f32 2.0, %v1622
        %v1639 = vsub.f32 2.0, %v1623
        %v1640 = vsub.f32 2.0, %v1624
        %v1641 = vsub.f32 2.0, %v1625
        %v1642 = vsub.f32 2.0, %v1626
        %v1643 = vsub.f32 2.0, %v1627
        %v1644 = vsub.f32 2.0, %v1628
        %v1645 = vsub.f32 2.0, %v1629
        %v1646 = vsub.f32 2.0, %v1630
        %v1647 = vsub.f32 2.0, %v1631
        %v1648 = vsub.f32 2.0, %v1632
        %v1649 = vsub.f32 2.0, %v1633
        %v1650 = vmul.f32 %v1602, %v1634
        %v1651 = vmul.f32 %v1603, %v1635
        %v1652 = vmul.f32 %v1604, %v1636
        %v1653 = vmul.f32 %v1605, %v1637
        %v1654 = vmul.f32 %v1606, %v1638
        %v1655 = vmul.f32 %v1607, %v1639
        %v1656 = vmul.f32 %v1608, %v1640
        %v1657 = vmul.f32 %v1609, %v1641
        %v1658 = vmul.f32 %v1610, %v1642
        %v1659 = vmul.f32 %v1611, %v1643
        %v1660 = vmul.f32 %v1612, %v1644
        %v1661 = vmul.f32 %v1613, %v1645
        %v1662 = vmul.f32 %v1614, %v1646
        %v1663 = vmul.f32 %v1615, %v1647
        %v1664 = vmul.f32 %v1616, %v1648
        %v1665 = vmul.f32 %v1617, %v1649
        %v1666 = vmul.f32 %v1540, %v1650
        %v1667 = vmul.f32 %v1543, %v1651
        %v1668 = vmul.f32 %v1548, %v1652
        %v1669 = vmul.f32 %v1551, %v1653
        %v1670 = vmul.f32 %v1556, %v1654
        %v1671 = vmul.f32 %v1559, %v1655
        %v1672 = vmul.f32 %v1564, %v1656
        %v1673 = vmul.f32 %v1567, %v1657
        %v1674 = vmul.f32 %v1572, %v1658
        %v1675 = vmul.f32 %v1575, %v1659
        %v1676 = vmul.f32 %v1580, %v1660
        %v1677 = vmul.f32 %v1583, %v1661
        %v1678 = vmul.f32 %v1588, %v1662
        %v1679 = vmul.f32 %v1591, %v1663
        %v1680 = vmul.f32 %v1596, %v1664
        %v1681 = vmul.f32 %v1599, %v1665
        %v1682 = vunpack.c.h.b16 %v533
        %v1683 = vunpack.c.h.b16 %v534
        %v1684 = vunpack.c.h.b16 %v535
        %v1685 = vunpack.c.h.b16 %v536
        %v1686 = vunpack.c.h.b16 %v537
        %v1687 = vunpack.c.h.b16 %v538
        %v1688 = vunpack.c.h.b16 %v539
        %v1689 = vunpack.c.h.b16 %v540
        %v1690 = vunpack.c.h.b16 %v541
        %v1691 = vunpack.c.h.b16 %v542
        %v1692 = vunpack.c.h.b16 %v543
        %v1693 = vunpack.c.h.b16 %v544
        %v1694 = vunpack.c.h.b16 %v545
        %v1695 = vunpack.c.h.b16 %v546
        %v1696 = vunpack.c.h.b16 %v547
        %v1697 = vunpack.c.h.b16 %v548
        %v1698 = vpack.c.b16 %v1683, %v1682
        %v1699 = vpack.c.b16 %v1685, %v1684
        %v1700 = vpack.c.b16 %v1687, %v1686
        %v1701 = vpack.c.b16 %v1689, %v1688
        %v1702 = vpack.c.b16 %v1691, %v1690
        %v1703 = vpack.c.b16 %v1693, %v1692
        %v1704 = vpack.c.b16 %v1695, %v1694
        %v1705 = vpack.c.b16 %v1697, %v1696
        %v1706 = vunpack.c.h.b16 %v549
        %v1707 = vunpack.c.h.b16 %v550
        %v1708 = vunpack.c.h.b16 %v551
        %v1709 = vunpack.c.h.b16 %v552
        %v1710 = vunpack.c.h.b16 %v553
        %v1711 = vunpack.c.h.b16 %v554
        %v1712 = vunpack.c.h.b16 %v555
        %v1713 = vunpack.c.h.b16 %v556
        %v1714 = vunpack.c.h.b16 %v557
        %v1715 = vunpack.c.h.b16 %v558
        %v1716 = vunpack.c.h.b16 %v559
        %v1717 = vunpack.c.h.b16 %v560
        %v1718 = vunpack.c.h.b16 %v561
        %v1719 = vunpack.c.h.b16 %v562
        %v1720 = vunpack.c.h.b16 %v563
        %v1721 = vunpack.c.h.b16 %v564
        %v1722 = vpack.c.b16 %v1707, %v1706
        %v1723 = vpack.c.b16 %v1709, %v1708
        %v1724 = vpack.c.b16 %v1711, %v1710
        %v1725 = vpack.c.b16 %v1713, %v1712
        %v1726 = vpack.c.b16 %v1715, %v1714
        %v1727 = vpack.c.b16 %v1717, %v1716
        %v1728 = vpack.c.b16 %v1719, %v1718
        %v1729 = vpack.c.b16 %v1721, %v1720
        %v1731 = vsel %vm661, %v1698, 0
        %v1734 = vsel %vm661, %v1699, 0
        %v1737 = vsel %vm661, %v1700, 0
        %v1740 = vsel %vm661, %v1701, 0
        %v1743 = vsel %vm661, %v1702, 0
        %v1746 = vsel %vm661, %v1703, 0
        %v1749 = vsel %vm661, %v1704, 0
        %v1752 = vsel %vm661, %v1705, 0
        %v1755 = vsel %vm661, %v1722, 0
        %v1758 = vsel %vm661, %v1723, 0
        %v1761 = vsel %vm661, %v1724, 0
        %v1764 = vsel %vm661, %v1725, 0
        %v1767 = vsel %vm661, %v1726, 0
        %v1770 = vsel %vm661, %v1727, 0
        %v1773 = vsel %vm661, %v1728, 0
        %v1776 = vsel %vm661, %v1729, 0
        %1778 = vmatprep.subr.bf16.mxu0 0
        %1779 = vmatpush1.bf16.xpose.msra.mxu0 %v1776
        %1780 = vmatprep.subr.bf16.mxu0 0
        %1781 = vmatpush1.bf16.xpose.msra.mxu0 %v1773
        %1782 = vmatprep.subr.bf16.mxu0 0
        %1783 = vmatpush1.bf16.xpose.msra.mxu0 %v1770
        %1784 = vmatprep.subr.bf16.mxu0 0
        %1785 = vmatpush1.bf16.xpose.msra.mxu0 %v1767
        %1786 = vmatprep.subr.bf16.mxu0 0
        %1787 = vmatpush1.bf16.xpose.msra.mxu0 %v1764
        %1788 = vmatprep.subr.bf16.mxu0 0
        %1789 = vmatpush1.bf16.xpose.msra.mxu0 %v1761
        %1790 = vmatprep.subr.bf16.mxu0 0
        %1791 = vmatpush1.bf16.xpose.msra.mxu0 %v1758
        %1792 = vmatprep.subr.bf16.mxu0 0
        %1793 = vmatpush1.bf16.xpose.msra.mxu0 %v1755
        %1794 = vmatprep.subr.bf16.mxu0 0
        %1795 = vmatpush2.bf16.xpose.msra.mxu0 0
        %1796 = vmatprep.subr.bf16.mxu0 0
        %1797 = vmatpush2.bf16.xpose.msra.mxu0 0
        %1798 = vmatprep.subr.bf16.mxu0 0
        %1799 = vmatpush2.bf16.xpose.msra.mxu0 0
        %1800 = vmatprep.subr.bf16.mxu0 0
        %1801 = vmatpush2.bf16.xpose.msra.mxu0 0
        %1802 = vmatprep.subr.bf16.mxu0 0
        %1803 = vmatpush2.bf16.xpose.msra.mxu0 0
        %1804 = vmatprep.subr.bf16.mxu0 0
        %1805 = vmatpush2.bf16.xpose.msra.mxu0 0
        %1806 = vmatprep.subr.bf16.mxu0 0
        %1807 = vmatpush2.bf16.xpose.msra.mxu0 0
        %1808 = vmatprep.subr.bf16.mxu0 0
        %1809 = vmatpush2.bf16.xpose.msra.mxu0 0
        %1810 = vmatprep.mubr.bf16.mxu0 0
        %1811 = vmatmul.mubr.bf16.gmra.mxu0 %v1731
        %v1812 = vpop.f32.mrf.mxu0
        %v1813 = vadd.f32 0.0, %v1812
        %v1814 = vpop.f32.mrf.mxu0
        %v1815 = vpop.f32.mrf.mxu0
        %v1816 = vadd.f32 0.0, %v1815
        %v1817 = vpop.f32.mrf.mxu0
        %1818 = vmatprep.mubr.bf16.mxu0 0
        %1819 = vmatmul.mubr.bf16.gmra.mxu0 %v1734
        %v1820 = vpop.f32.mrf.mxu0
        %v1821 = vadd.f32 0.0, %v1820
        %v1822 = vpop.f32.mrf.mxu0
        %v1823 = vpop.f32.mrf.mxu0
        %v1824 = vadd.f32 0.0, %v1823
        %v1825 = vpop.f32.mrf.mxu0
        %1826 = vmatprep.mubr.bf16.mxu0 0
        %1827 = vmatmul.mubr.bf16.gmra.mxu0 %v1737
        %v1828 = vpop.f32.mrf.mxu0
        %v1829 = vadd.f32 0.0, %v1828
        %v1830 = vpop.f32.mrf.mxu0
        %v1831 = vpop.f32.mrf.mxu0
        %v1832 = vadd.f32 0.0, %v1831
        %v1833 = vpop.f32.mrf.mxu0
        %1834 = vmatprep.mubr.bf16.mxu0 0
        %1835 = vmatmul.mubr.bf16.gmra.mxu0 %v1740
        %v1836 = vpop.f32.mrf.mxu0
        %v1837 = vadd.f32 0.0, %v1836
        %v1838 = vpop.f32.mrf.mxu0
        %v1839 = vpop.f32.mrf.mxu0
        %v1840 = vadd.f32 0.0, %v1839
        %v1841 = vpop.f32.mrf.mxu0
        %1842 = vmatprep.mubr.bf16.mxu0 0
        %1843 = vmatmul.mubr.bf16.gmra.mxu0 %v1743
        %v1844 = vpop.f32.mrf.mxu0
        %v1845 = vadd.f32 0.0, %v1844
        %v1846 = vpop.f32.mrf.mxu0
        %v1847 = vpop.f32.mrf.mxu0
        %v1848 = vadd.f32 0.0, %v1847
        %v1849 = vpop.f32.mrf.mxu0
        %1850 = vmatprep.mubr.bf16.mxu0 0
        %1851 = vmatmul.mubr.bf16.gmra.mxu0 %v1746
        %v1852 = vpop.f32.mrf.mxu0
        %v1853 = vadd.f32 0.0, %v1852
        %v1854 = vpop.f32.mrf.mxu0
        %v1855 = vpop.f32.mrf.mxu0
        %v1856 = vadd.f32 0.0, %v1855
        %v1857 = vpop.f32.mrf.mxu0
        %1858 = vmatprep.mubr.bf16.mxu0 0
        %1859 = vmatmul.mubr.bf16.gmra.mxu0 %v1749
        %v1860 = vpop.f32.mrf.mxu0
        %v1861 = vadd.f32 0.0, %v1860
        %v1862 = vpop.f32.mrf.mxu0
        %v1863 = vpop.f32.mrf.mxu0
        %v1864 = vadd.f32 0.0, %v1863
        %v1865 = vpop.f32.mrf.mxu0
        %1866 = vmatprep.mubr.bf16.mxu0 0
        %1867 = vmatmul.mubr.bf16.gmra.mxu0 %v1752
        %v1868 = vpop.f32.mrf.mxu0
        %v1869 = vadd.f32 0.0, %v1868
        %v1870 = vpop.f32.mrf.mxu0
        %v1871 = vpop.f32.mrf.mxu0
        %v1872 = vadd.f32 0.0, %v1871
        %v1873 = vpop.f32.mrf.mxu0
        %1874 = vdwg.mxu0
        %v1875 = vmul.f32 %v1813, 0.125
        %v1876 = vmul.f32 %v1816, 0.125
        %v1877 = vmul.f32 %v1821, 0.125
        %v1878 = vmul.f32 %v1824, 0.125
        %v1879 = vmul.f32 %v1829, 0.125
        %v1880 = vmul.f32 %v1832, 0.125
        %v1881 = vmul.f32 %v1837, 0.125
        %v1882 = vmul.f32 %v1840, 0.125
        %v1883 = vmul.f32 %v1845, 0.125
        %v1884 = vmul.f32 %v1848, 0.125
        %v1885 = vmul.f32 %v1853, 0.125
        %v1886 = vmul.f32 %v1856, 0.125
        %v1887 = vmul.f32 %v1861, 0.125
        %v1888 = vmul.f32 %v1864, 0.125
        %v1889 = vmul.f32 %v1869, 0.125
        %v1890 = vmul.f32 %v1872, 0.125
        %1891 = vmax.xlane.f32.xlu0 %v1875
        %v1892 = vpop.xlane.xlu0 %1891
        %1893 = vmax.xlane.f32.xlu0 %v1876
        %v1894 = vpop.xlane.xlu0 %1893
        %1895 = vmax.xlane.f32.xlu0 %v1877
        %v1896 = vpop.xlane.xlu0 %1895
        %1897 = vmax.xlane.f32.xlu0 %v1878
        %v1898 = vpop.xlane.xlu0 %1897
        %1899 = vmax.xlane.f32.xlu0 %v1879
        %v1900 = vpop.xlane.xlu0 %1899
        %1901 = vmax.xlane.f32.xlu0 %v1880
        %v1902 = vpop.xlane.xlu0 %1901
        %1903 = vmax.xlane.f32.xlu0 %v1881
        %v1904 = vpop.xlane.xlu0 %1903
        %1905 = vmax.xlane.f32.xlu0 %v1882
        %v1906 = vpop.xlane.xlu0 %1905
        %1907 = vmax.xlane.f32.xlu0 %v1883
        %v1908 = vpop.xlane.xlu0 %1907
        %1909 = vmax.xlane.f32.xlu0 %v1884
        %v1910 = vpop.xlane.xlu0 %1909
        %1911 = vmax.xlane.f32.xlu0 %v1885
        %v1912 = vpop.xlane.xlu0 %1911
        %1913 = vmax.xlane.f32.xlu0 %v1886
        %v1914 = vpop.xlane.xlu0 %1913
        %1915 = vmax.xlane.f32.xlu0 %v1887
        %v1916 = vpop.xlane.xlu0 %1915
        %1917 = vmax.xlane.f32.xlu0 %v1888
        %v1918 = vpop.xlane.xlu0 %1917
        %1919 = vmax.xlane.f32.xlu0 %v1889
        %v1920 = vpop.xlane.xlu0 %1919
        %1921 = vmax.xlane.f32.xlu0 %v1890
        %v1922 = vpop.xlane.xlu0 %1921
        %v1923 = vsub.f32 %v1875, %v1892
        %v1924 = vsub.f32 %v1876, %v1894
        %v1925 = vsub.f32 %v1877, %v1896
        %v1926 = vsub.f32 %v1878, %v1898
        %v1927 = vsub.f32 %v1879, %v1900
        %v1928 = vsub.f32 %v1880, %v1902
        %v1929 = vsub.f32 %v1881, %v1904
        %v1930 = vsub.f32 %v1882, %v1906
        %v1931 = vsub.f32 %v1883, %v1908
        %v1932 = vsub.f32 %v1884, %v1910
        %v1933 = vsub.f32 %v1885, %v1912
        %v1934 = vsub.f32 %v1886, %v1914
        %v1935 = vsub.f32 %v1887, %v1916
        %v1936 = vsub.f32 %v1888, %v1918
        %v1937 = vsub.f32 %v1889, %v1920
        %v1938 = vsub.f32 %v1890, %v1922
        %v1939 = vmul.f32 %v1923, 1.442695
        %v1940 = vpow.pop %v1939
        %v1941 = vmul.f32 %v1924, 1.442695
        %v1942 = vpow.pop %v1941
        %v1943 = vmul.f32 %v1925, 1.442695
        %v1944 = vpow.pop %v1943
        %v1945 = vmul.f32 %v1926, 1.442695
        %v1946 = vpow.pop %v1945
        %v1947 = vmul.f32 %v1927, 1.442695
        %v1948 = vpow.pop %v1947
        %v1949 = vmul.f32 %v1928, 1.442695
        %v1950 = vpow.pop %v1949
        %v1951 = vmul.f32 %v1929, 1.442695
        %v1952 = vpow.pop %v1951
        %v1953 = vmul.f32 %v1930, 1.442695
        %v1954 = vpow.pop %v1953
        %v1955 = vmul.f32 %v1931, 1.442695
        %v1956 = vpow.pop %v1955
        %v1957 = vmul.f32 %v1932, 1.442695
        %v1958 = vpow.pop %v1957
        %v1959 = vmul.f32 %v1933, 1.442695
        %v1960 = vpow.pop %v1959
        %v1961 = vmul.f32 %v1934, 1.442695
        %v1962 = vpow.pop %v1961
        %v1963 = vmul.f32 %v1935, 1.442695
        %v1964 = vpow.pop %v1963
        %v1965 = vmul.f32 %v1936, 1.442695
        %v1966 = vpow.pop %v1965
        %v1967 = vmul.f32 %v1937, 1.442695
        %v1968 = vpow.pop %v1967
        %v1969 = vmul.f32 %v1938, 1.442695
        %v1970 = vpow.pop %v1969
        %1971 = vadd.xlane.f32.xlu0 %v1940
        %v1972 = vpop.xlane.xlu0 %1971
        %1973 = vadd.xlane.f32.xlu0 %v1942
        %v1974 = vpop.xlane.xlu0 %1973
        %1975 = vadd.xlane.f32.xlu0 %v1944
        %v1976 = vpop.xlane.xlu0 %1975
        %1977 = vadd.xlane.f32.xlu0 %v1946
        %v1978 = vpop.xlane.xlu0 %1977
        %1979 = vadd.xlane.f32.xlu0 %v1948
        %v1980 = vpop.xlane.xlu0 %1979
        %1981 = vadd.xlane.f32.xlu0 %v1950
        %v1982 = vpop.xlane.xlu0 %1981
        %1983 = vadd.xlane.f32.xlu0 %v1952
        %v1984 = vpop.xlane.xlu0 %1983
        %1985 = vadd.xlane.f32.xlu0 %v1954
        %v1986 = vpop.xlane.xlu0 %1985
        %1987 = vadd.xlane.f32.xlu0 %v1956
        %v1988 = vpop.xlane.xlu0 %1987
        %1989 = vadd.xlane.f32.xlu0 %v1958
        %v1990 = vpop.xlane.xlu0 %1989
        %1991 = vadd.xlane.f32.xlu0 %v1960
        %v1992 = vpop.xlane.xlu0 %1991
        %1993 = vadd.xlane.f32.xlu0 %v1962
        %v1994 = vpop.xlane.xlu0 %1993
        %1995 = vadd.xlane.f32.xlu0 %v1964
        %v1996 = vpop.xlane.xlu0 %1995
        %1997 = vadd.xlane.f32.xlu0 %v1966
        %v1998 = vpop.xlane.xlu0 %1997
        %1999 = vadd.xlane.f32.xlu0 %v1968
        %v2000 = vpop.xlane.xlu0 %1999
        %2001 = vadd.xlane.f32.xlu0 %v1970
        %v2002 = vpop.xlane.xlu0 %2001
        %v2003 = vpack.c.bf16 %v1942, %v1940
        %v2004 = vpack.c.bf16 %v1946, %v1944
        %v2005 = vpack.c.bf16 %v1950, %v1948
        %v2006 = vpack.c.bf16 %v1954, %v1952
        %v2007 = vpack.c.bf16 %v1958, %v1956
        %v2008 = vpack.c.bf16 %v1962, %v1960
        %v2009 = vpack.c.bf16 %v1966, %v1964
        %v2010 = vpack.c.bf16 %v1970, %v1968
        %v2011 = vunpack.c.h.b16 %v565
        %v2012 = vunpack.c.h.b16 %v566
        %v2013 = vunpack.c.h.b16 %v567
        %v2014 = vunpack.c.h.b16 %v568
        %v2015 = vunpack.c.h.b16 %v569
        %v2016 = vunpack.c.h.b16 %v570
        %v2017 = vunpack.c.h.b16 %v571
        %v2018 = vunpack.c.h.b16 %v572
        %v2019 = vunpack.c.h.b16 %v573
        %v2020 = vunpack.c.h.b16 %v574
        %v2021 = vunpack.c.h.b16 %v575
        %v2022 = vunpack.c.h.b16 %v576
        %v2023 = vunpack.c.h.b16 %v577
        %v2024 = vunpack.c.h.b16 %v578
        %v2025 = vunpack.c.h.b16 %v579
        %v2026 = vunpack.c.h.b16 %v580
        %v2027 = vpack.c.b16 %v2012, %v2011
        %v2028 = vpack.c.b16 %v2014, %v2013
        %v2029 = vpack.c.b16 %v2016, %v2015
        %v2030 = vpack.c.b16 %v2018, %v2017
        %v2031 = vpack.c.b16 %v2020, %v2019
        %v2032 = vpack.c.b16 %v2022, %v2021
        %v2033 = vpack.c.b16 %v2024, %v2023
        %v2034 = vpack.c.b16 %v2026, %v2025
        %2043 = vmatprep.subr.bf16.mxu0 0
        %2044 = vmatpush1.bf16.msra.mxu0 %v2034
        %2045 = vmatprep.subr.bf16.mxu0 0
        %2046 = vmatpush1.bf16.msra.mxu0 %v2033
        %2047 = vmatprep.subr.bf16.mxu0 0
        %2048 = vmatpush1.bf16.msra.mxu0 %v2032
        %2049 = vmatprep.subr.bf16.mxu0 0
        %2050 = vmatpush1.bf16.msra.mxu0 %v2031
        %2051 = vmatprep.subr.bf16.mxu0 0
        %2052 = vmatpush1.bf16.msra.mxu0 %v2030
        %2053 = vmatprep.subr.bf16.mxu0 0
        %2054 = vmatpush1.bf16.msra.mxu0 %v2029
        %2055 = vmatprep.subr.bf16.mxu0 0
        %2056 = vmatpush1.bf16.msra.mxu0 %v2028
        %2057 = vmatprep.subr.bf16.mxu0 0
        %2058 = vmatpush1.bf16.msra.mxu0 %v2027
        %2059 = vmatprep.subr.bf16.mxu0 0
        %2060 = vmatpush2.bf16.msra.mxu0 0
        %2061 = vmatprep.subr.bf16.mxu0 0
        %2062 = vmatpush2.bf16.msra.mxu0 0
        %2063 = vmatprep.subr.bf16.mxu0 0
        %2064 = vmatpush2.bf16.msra.mxu0 0
        %2065 = vmatprep.subr.bf16.mxu0 0
        %2066 = vmatpush2.bf16.msra.mxu0 0
        %2067 = vmatprep.subr.bf16.mxu0 0
        %2068 = vmatpush2.bf16.msra.mxu0 0
        %2069 = vmatprep.subr.bf16.mxu0 0
        %2070 = vmatpush2.bf16.msra.mxu0 0
        %2071 = vmatprep.subr.bf16.mxu0 0
        %2072 = vmatpush2.bf16.msra.mxu0 0
        %2073 = vmatprep.subr.bf16.mxu0 0
        %2074 = vmatpush2.bf16.msra.mxu0 0
        %2075 = vmatprep.mubr.bf16.mxu0 0
        %2076 = vmatmul.mubr.bf16.gmra.mxu0 %v2003
        %v2077 = vpop.f32.mrf.mxu0
        %v2078 = vadd.f32 0.0, %v2077
        %v2079 = vpop.f32.mrf.mxu0
        %v2080 = vpop.f32.mrf.mxu0
        %v2081 = vadd.f32 0.0, %v2080
        %v2082 = vpop.f32.mrf.mxu0
        %2083 = vmatprep.mubr.bf16.mxu0 0
        %2084 = vmatmul.mubr.bf16.gmra.mxu0 %v2004
        %v2085 = vpop.f32.mrf.mxu0
        %v2086 = vadd.f32 0.0, %v2085
        %v2087 = vpop.f32.mrf.mxu0
        %v2088 = vpop.f32.mrf.mxu0
        %v2089 = vadd.f32 0.0, %v2088
        %v2090 = vpop.f32.mrf.mxu0
        %2091 = vmatprep.mubr.bf16.mxu0 0
        %2092 = vmatmul.mubr.bf16.gmra.mxu0 %v2005
        %v2093 = vpop.f32.mrf.mxu0
        %v2094 = vadd.f32 0.0, %v2093
        %v2095 = vpop.f32.mrf.mxu0
        %v2096 = vpop.f32.mrf.mxu0
        %v2097 = vadd.f32 0.0, %v2096
        %v2098 = vpop.f32.mrf.mxu0
        %2099 = vmatprep.mubr.bf16.mxu0 0
        %2100 = vmatmul.mubr.bf16.gmra.mxu0 %v2006
        %v2101 = vpop.f32.mrf.mxu0
        %v2102 = vadd.f32 0.0, %v2101
        %v2103 = vpop.f32.mrf.mxu0
        %v2104 = vpop.f32.mrf.mxu0
        %v2105 = vadd.f32 0.0, %v2104
        %v2106 = vpop.f32.mrf.mxu0
        %2107 = vmatprep.mubr.bf16.mxu0 0
        %2108 = vmatmul.mubr.bf16.gmra.mxu0 %v2007
        %v2109 = vpop.f32.mrf.mxu0
        %v2110 = vadd.f32 0.0, %v2109
        %v2111 = vpop.f32.mrf.mxu0
        %v2112 = vpop.f32.mrf.mxu0
        %v2113 = vadd.f32 0.0, %v2112
        %v2114 = vpop.f32.mrf.mxu0
        %2115 = vmatprep.mubr.bf16.mxu0 0
        %2116 = vmatmul.mubr.bf16.gmra.mxu0 %v2008
        %v2117 = vpop.f32.mrf.mxu0
        %v2118 = vadd.f32 0.0, %v2117
        %v2119 = vpop.f32.mrf.mxu0
        %v2120 = vpop.f32.mrf.mxu0
        %v2121 = vadd.f32 0.0, %v2120
        %v2122 = vpop.f32.mrf.mxu0
        %2123 = vmatprep.mubr.bf16.mxu0 0
        %2124 = vmatmul.mubr.bf16.gmra.mxu0 %v2009
        %v2125 = vpop.f32.mrf.mxu0
        %v2126 = vadd.f32 0.0, %v2125
        %v2127 = vpop.f32.mrf.mxu0
        %v2128 = vpop.f32.mrf.mxu0
        %v2129 = vadd.f32 0.0, %v2128
        %v2130 = vpop.f32.mrf.mxu0
        %2131 = vmatprep.mubr.bf16.mxu0 0
        %2132 = vmatmul.mubr.bf16.gmra.mxu0 %v2010
        %v2133 = vpop.f32.mrf.mxu0
        %v2134 = vadd.f32 0.0, %v2133
        %v2135 = vpop.f32.mrf.mxu0
        %v2136 = vpop.f32.mrf.mxu0
        %v2137 = vadd.f32 0.0, %v2136
        %v2138 = vpop.f32.mrf.mxu0
        %2139 = vdwg.mxu0
        %v2140 = vrcp.pop %v1972
        %v2141 = vrcp.pop %v1974
        %v2142 = vrcp.pop %v1976
        %v2143 = vrcp.pop %v1978
        %v2144 = vrcp.pop %v1980
        %v2145 = vrcp.pop %v1982
        %v2146 = vrcp.pop %v1984
        %v2147 = vrcp.pop %v1986
        %v2148 = vrcp.pop %v1988
        %v2149 = vrcp.pop %v1990
        %v2150 = vrcp.pop %v1992
        %v2151 = vrcp.pop %v1994
        %v2152 = vrcp.pop %v1996
        %v2153 = vrcp.pop %v1998
        %v2154 = vrcp.pop %v2000
        %v2155 = vrcp.pop %v2002
        %v2156 = vmul.f32 %v1972, %v2140
        %v2157 = vmul.f32 %v1974, %v2141
        %v2158 = vmul.f32 %v1976, %v2142
        %v2159 = vmul.f32 %v1978, %v2143
        %v2160 = vmul.f32 %v1980, %v2144
        %v2161 = vmul.f32 %v1982, %v2145
        %v2162 = vmul.f32 %v1984, %v2146
        %v2163 = vmul.f32 %v1986, %v2147
        %v2164 = vmul.f32 %v1988, %v2148
        %v2165 = vmul.f32 %v1990, %v2149
        %v2166 = vmul.f32 %v1992, %v2150
        %v2167 = vmul.f32 %v1994, %v2151
        %v2168 = vmul.f32 %v1996, %v2152
        %v2169 = vmul.f32 %v1998, %v2153
        %v2170 = vmul.f32 %v2000, %v2154
        %v2171 = vmul.f32 %v2002, %v2155
        %v2172 = vsub.f32 2.0, %v2156
        %v2173 = vsub.f32 2.0, %v2157
        %v2174 = vsub.f32 2.0, %v2158
        %v2175 = vsub.f32 2.0, %v2159
        %v2176 = vsub.f32 2.0, %v2160
        %v2177 = vsub.f32 2.0, %v2161
        %v2178 = vsub.f32 2.0, %v2162
        %v2179 = vsub.f32 2.0, %v2163
        %v2180 = vsub.f32 2.0, %v2164
        %v2181 = vsub.f32 2.0, %v2165
        %v2182 = vsub.f32 2.0, %v2166
        %v2183 = vsub.f32 2.0, %v2167
        %v2184 = vsub.f32 2.0, %v2168
        %v2185 = vsub.f32 2.0, %v2169
        %v2186 = vsub.f32 2.0, %v2170
        %v2187 = vsub.f32 2.0, %v2171
        %v2188 = vmul.f32 %v2140, %v2172
        %v2189 = vmul.f32 %v2141, %v2173
        %v2190 = vmul.f32 %v2142, %v2174
        %v2191 = vmul.f32 %v2143, %v2175
        %v2192 = vmul.f32 %v2144, %v2176
        %v2193 = vmul.f32 %v2145, %v2177
        %v2194 = vmul.f32 %v2146, %v2178
        %v2195 = vmul.f32 %v2147, %v2179
        %v2196 = vmul.f32 %v2148, %v2180
        %v2197 = vmul.f32 %v2149, %v2181
        %v2198 = vmul.f32 %v2150, %v2182
        %v2199 = vmul.f32 %v2151, %v2183
        %v2200 = vmul.f32 %v2152, %v2184
        %v2201 = vmul.f32 %v2153, %v2185
        %v2202 = vmul.f32 %v2154, %v2186
        %v2203 = vmul.f32 %v2155, %v2187
        %v2204 = vmul.f32 %v2078, %v2188
        %v2205 = vmul.f32 %v2081, %v2189
        %v2206 = vmul.f32 %v2086, %v2190
        %v2207 = vmul.f32 %v2089, %v2191
        %v2208 = vmul.f32 %v2094, %v2192
        %v2209 = vmul.f32 %v2097, %v2193
        %v2210 = vmul.f32 %v2102, %v2194
        %v2211 = vmul.f32 %v2105, %v2195
        %v2212 = vmul.f32 %v2110, %v2196
        %v2213 = vmul.f32 %v2113, %v2197
        %v2214 = vmul.f32 %v2118, %v2198
        %v2215 = vmul.f32 %v2121, %v2199
        %v2216 = vmul.f32 %v2126, %v2200
        %v2217 = vmul.f32 %v2129, %v2201
        %v2218 = vmul.f32 %v2134, %v2202
        %v2219 = vmul.f32 %v2137, %v2203
        %2220 = vrot.lane.b32.xlu0 %v1698, 64
        %v2221 = vpop.permute.xlu0 %2220
        %2222 = vrot.lane.b32.xlu0 %v1699, 64
        %v2223 = vpop.permute.xlu0 %2222
        %2224 = vrot.lane.b32.xlu0 %v1700, 64
        %v2225 = vpop.permute.xlu0 %2224
        %2226 = vrot.lane.b32.xlu0 %v1701, 64
        %v2227 = vpop.permute.xlu0 %2226
        %2228 = vrot.lane.b32.xlu0 %v1702, 64
        %v2229 = vpop.permute.xlu0 %2228
        %2230 = vrot.lane.b32.xlu0 %v1703, 64
        %v2231 = vpop.permute.xlu0 %2230
        %2232 = vrot.lane.b32.xlu0 %v1704, 64
        %v2233 = vpop.permute.xlu0 %2232
        %2234 = vrot.lane.b32.xlu0 %v1705, 64
        %v2235 = vpop.permute.xlu0 %2234
        %2236 = vrot.lane.b32.xlu0 %v1722, 64
        %v2237 = vpop.permute.xlu0 %2236
        %2238 = vrot.lane.b32.xlu0 %v1723, 64
        %v2239 = vpop.permute.xlu0 %2238
        %2240 = vrot.lane.b32.xlu0 %v1724, 64
        %v2241 = vpop.permute.xlu0 %2240
        %2242 = vrot.lane.b32.xlu0 %v1725, 64
        %v2243 = vpop.permute.xlu0 %2242
        %2244 = vrot.lane.b32.xlu0 %v1726, 64
        %v2245 = vpop.permute.xlu0 %2244
        %2246 = vrot.lane.b32.xlu0 %v1727, 64
        %v2247 = vpop.permute.xlu0 %2246
        %2248 = vrot.lane.b32.xlu0 %v1728, 64
        %v2249 = vpop.permute.xlu0 %2248
        %2250 = vrot.lane.b32.xlu0 %v1729, 64
        %v2251 = vpop.permute.xlu0 %2250
        %v2253 = vsel %vm661, %v2221, 0
        %v2256 = vsel %vm661, %v2223, 0
        %v2259 = vsel %vm661, %v2225, 0
        %v2262 = vsel %vm661, %v2227, 0
        %v2265 = vsel %vm661, %v2229, 0
        %v2268 = vsel %vm661, %v2231, 0
        %v2271 = vsel %vm661, %v2233, 0
        %v2274 = vsel %vm661, %v2235, 0
        %v2277 = vsel %vm661, %v2237, 0
        %v2280 = vsel %vm661, %v2239, 0
        %v2283 = vsel %vm661, %v2241, 0
        %v2286 = vsel %vm661, %v2243, 0
        %v2289 = vsel %vm661, %v2245, 0
        %v2292 = vsel %vm661, %v2247, 0
        %v2295 = vsel %vm661, %v2249, 0
        %v2298 = vsel %vm661, %v2251, 0
        %2300 = vmatprep.subr.bf16.mxu0 0
        %2301 = vmatpush1.bf16.xpose.msra.mxu0 %v2298
        %2302 = vmatprep.subr.bf16.mxu0 0
        %2303 = vmatpush1.bf16.xpose.msra.mxu0 %v2295
        %2304 = vmatprep.subr.bf16.mxu0 0
        %2305 = vmatpush1.bf16.xpose.msra.mxu0 %v2292
        %2306 = vmatprep.subr.bf16.mxu0 0
        %2307 = vmatpush1.bf16.xpose.msra.mxu0 %v2289
        %2308 = vmatprep.subr.bf16.mxu0 0
        %2309 = vmatpush1.bf16.xpose.msra.mxu0 %v2286
        %2310 = vmatprep.subr.bf16.mxu0 0
        %2311 = vmatpush1.bf16.xpose.msra.mxu0 %v2283
        %2312 = vmatprep.subr.bf16.mxu0 0
        %2313 = vmatpush1.bf16.xpose.msra.mxu0 %v2280
        %2314 = vmatprep.subr.bf16.mxu0 0
        %2315 = vmatpush1.bf16.xpose.msra.mxu0 %v2277
        %2316 = vmatprep.subr.bf16.mxu0 0
        %2317 = vmatpush2.bf16.xpose.msra.mxu0 0
        %2318 = vmatprep.subr.bf16.mxu0 0
        %2319 = vmatpush2.bf16.xpose.msra.mxu0 0
        %2320 = vmatprep.subr.bf16.mxu0 0
        %2321 = vmatpush2.bf16.xpose.msra.mxu0 0
        %2322 = vmatprep.subr.bf16.mxu0 0
        %2323 = vmatpush2.bf16.xpose.msra.mxu0 0
        %2324 = vmatprep.subr.bf16.mxu0 0
        %2325 = vmatpush2.bf16.xpose.msra.mxu0 0
        %2326 = vmatprep.subr.bf16.mxu0 0
        %2327 = vmatpush2.bf16.xpose.msra.mxu0 0
        %2328 = vmatprep.subr.bf16.mxu0 0
        %2329 = vmatpush2.bf16.xpose.msra.mxu0 0
        %2330 = vmatprep.subr.bf16.mxu0 0
        %2331 = vmatpush2.bf16.xpose.msra.mxu0 0
        %2332 = vmatprep.mubr.bf16.mxu0 0
        %2333 = vmatmul.mubr.bf16.gmra.mxu0 %v2253
        %v2334 = vpop.f32.mrf.mxu0
        %v2335 = vadd.f32 0.0, %v2334
        %v2336 = vpop.f32.mrf.mxu0
        %v2337 = vpop.f32.mrf.mxu0
        %v2338 = vadd.f32 0.0, %v2337
        %v2339 = vpop.f32.mrf.mxu0
        %2340 = vmatprep.mubr.bf16.mxu0 0
        %2341 = vmatmul.mubr.bf16.gmra.mxu0 %v2256
        %v2342 = vpop.f32.mrf.mxu0
        %v2343 = vadd.f32 0.0, %v2342
        %v2344 = vpop.f32.mrf.mxu0
        %v2345 = vpop.f32.mrf.mxu0
        %v2346 = vadd.f32 0.0, %v2345
        %v2347 = vpop.f32.mrf.mxu0
        %2348 = vmatprep.mubr.bf16.mxu0 0
        %2349 = vmatmul.mubr.bf16.gmra.mxu0 %v2259
        %v2350 = vpop.f32.mrf.mxu0
        %v2351 = vadd.f32 0.0, %v2350
        %v2352 = vpop.f32.mrf.mxu0
        %v2353 = vpop.f32.mrf.mxu0
        %v2354 = vadd.f32 0.0, %v2353
        %v2355 = vpop.f32.mrf.mxu0
        %2356 = vmatprep.mubr.bf16.mxu0 0
        %2357 = vmatmul.mubr.bf16.gmra.mxu0 %v2262
        %v2358 = vpop.f32.mrf.mxu0
        %v2359 = vadd.f32 0.0, %v2358
        %v2360 = vpop.f32.mrf.mxu0
        %v2361 = vpop.f32.mrf.mxu0
        %v2362 = vadd.f32 0.0, %v2361
        %v2363 = vpop.f32.mrf.mxu0
        %2364 = vmatprep.mubr.bf16.mxu0 0
        %2365 = vmatmul.mubr.bf16.gmra.mxu0 %v2265
        %v2366 = vpop.f32.mrf.mxu0
        %v2367 = vadd.f32 0.0, %v2366
        %v2368 = vpop.f32.mrf.mxu0
        %v2369 = vpop.f32.mrf.mxu0
        %v2370 = vadd.f32 0.0, %v2369
        %v2371 = vpop.f32.mrf.mxu0
        %2372 = vmatprep.mubr.bf16.mxu0 0
        %2373 = vmatmul.mubr.bf16.gmra.mxu0 %v2268
        %v2374 = vpop.f32.mrf.mxu0
        %v2375 = vadd.f32 0.0, %v2374
        %v2376 = vpop.f32.mrf.mxu0
        %v2377 = vpop.f32.mrf.mxu0
        %v2378 = vadd.f32 0.0, %v2377
        %v2379 = vpop.f32.mrf.mxu0
        %2380 = vmatprep.mubr.bf16.mxu0 0
        %2381 = vmatmul.mubr.bf16.gmra.mxu0 %v2271
        %v2382 = vpop.f32.mrf.mxu0
        %v2383 = vadd.f32 0.0, %v2382
        %v2384 = vpop.f32.mrf.mxu0
        %v2385 = vpop.f32.mrf.mxu0
        %v2386 = vadd.f32 0.0, %v2385
        %v2387 = vpop.f32.mrf.mxu0
        %2388 = vmatprep.mubr.bf16.mxu0 0
        %2389 = vmatmul.mubr.bf16.gmra.mxu0 %v2274
        %v2390 = vpop.f32.mrf.mxu0
        %v2391 = vadd.f32 0.0, %v2390
        %v2392 = vpop.f32.mrf.mxu0
        %v2393 = vpop.f32.mrf.mxu0
        %v2394 = vadd.f32 0.0, %v2393
        %v2395 = vpop.f32.mrf.mxu0
        %2396 = vdwg.mxu0
        %v2397 = vmul.f32 %v2335, 0.125
        %v2398 = vmul.f32 %v2338, 0.125
        %v2399 = vmul.f32 %v2343, 0.125
        %v2400 = vmul.f32 %v2346, 0.125
        %v2401 = vmul.f32 %v2351, 0.125
        %v2402 = vmul.f32 %v2354, 0.125
        %v2403 = vmul.f32 %v2359, 0.125
        %v2404 = vmul.f32 %v2362, 0.125
        %v2405 = vmul.f32 %v2367, 0.125
        %v2406 = vmul.f32 %v2370, 0.125
        %v2407 = vmul.f32 %v2375, 0.125
        %v2408 = vmul.f32 %v2378, 0.125
        %v2409 = vmul.f32 %v2383, 0.125
        %v2410 = vmul.f32 %v2386, 0.125
        %v2411 = vmul.f32 %v2391, 0.125
        %v2412 = vmul.f32 %v2394, 0.125
        %2413 = vmax.xlane.f32.xlu0 %v2397
        %v2414 = vpop.xlane.xlu0 %2413
        %2415 = vmax.xlane.f32.xlu0 %v2398
        %v2416 = vpop.xlane.xlu0 %2415
        %2417 = vmax.xlane.f32.xlu0 %v2399
        %v2418 = vpop.xlane.xlu0 %2417
        %2419 = vmax.xlane.f32.xlu0 %v2400
        %v2420 = vpop.xlane.xlu0 %2419
        %2421 = vmax.xlane.f32.xlu0 %v2401
        %v2422 = vpop.xlane.xlu0 %2421
        %2423 = vmax.xlane.f32.xlu0 %v2402
        %v2424 = vpop.xlane.xlu0 %2423
        %2425 = vmax.xlane.f32.xlu0 %v2403
        %v2426 = vpop.xlane.xlu0 %2425
        %2427 = vmax.xlane.f32.xlu0 %v2404
        %v2428 = vpop.xlane.xlu0 %2427
        %2429 = vmax.xlane.f32.xlu0 %v2405
        %v2430 = vpop.xlane.xlu0 %2429
        %2431 = vmax.xlane.f32.xlu0 %v2406
        %v2432 = vpop.xlane.xlu0 %2431
        %2433 = vmax.xlane.f32.xlu0 %v2407
        %v2434 = vpop.xlane.xlu0 %2433
        %2435 = vmax.xlane.f32.xlu0 %v2408
        %v2436 = vpop.xlane.xlu0 %2435
        %2437 = vmax.xlane.f32.xlu0 %v2409
        %v2438 = vpop.xlane.xlu0 %2437
        %2439 = vmax.xlane.f32.xlu0 %v2410
        %v2440 = vpop.xlane.xlu0 %2439
        %2441 = vmax.xlane.f32.xlu0 %v2411
        %v2442 = vpop.xlane.xlu0 %2441
        %2443 = vmax.xlane.f32.xlu0 %v2412
        %v2444 = vpop.xlane.xlu0 %2443
        %v2445 = vsub.f32 %v2397, %v2414
        %v2446 = vsub.f32 %v2398, %v2416
        %v2447 = vsub.f32 %v2399, %v2418
        %v2448 = vsub.f32 %v2400, %v2420
        %v2449 = vsub.f32 %v2401, %v2422
        %v2450 = vsub.f32 %v2402, %v2424
        %v2451 = vsub.f32 %v2403, %v2426
        %v2452 = vsub.f32 %v2404, %v2428
        %v2453 = vsub.f32 %v2405, %v2430
        %v2454 = vsub.f32 %v2406, %v2432
        %v2455 = vsub.f32 %v2407, %v2434
        %v2456 = vsub.f32 %v2408, %v2436
        %v2457 = vsub.f32 %v2409, %v2438
        %v2458 = vsub.f32 %v2410, %v2440
        %v2459 = vsub.f32 %v2411, %v2442
        %v2460 = vsub.f32 %v2412, %v2444
        %v2461 = vmul.f32 %v2445, 1.442695
        %v2462 = vpow.pop %v2461
        %v2463 = vmul.f32 %v2446, 1.442695
        %v2464 = vpow.pop %v2463
        %v2465 = vmul.f32 %v2447, 1.442695
        %v2466 = vpow.pop %v2465
        %v2467 = vmul.f32 %v2448, 1.442695
        %v2468 = vpow.pop %v2467
        %v2469 = vmul.f32 %v2449, 1.442695
        %v2470 = vpow.pop %v2469
        %v2471 = vmul.f32 %v2450, 1.442695
        %v2472 = vpow.pop %v2471
        %v2473 = vmul.f32 %v2451, 1.442695
        %v2474 = vpow.pop %v2473
        %v2475 = vmul.f32 %v2452, 1.442695
        %v2476 = vpow.pop %v2475
        %v2477 = vmul.f32 %v2453, 1.442695
        %v2478 = vpow.pop %v2477
        %v2479 = vmul.f32 %v2454, 1.442695
        %v2480 = vpow.pop %v2479
        %v2481 = vmul.f32 %v2455, 1.442695
        %v2482 = vpow.pop %v2481
        %v2483 = vmul.f32 %v2456, 1.442695
        %v2484 = vpow.pop %v2483
        %v2485 = vmul.f32 %v2457, 1.442695
        %v2486 = vpow.pop %v2485
        %v2487 = vmul.f32 %v2458, 1.442695
        %v2488 = vpow.pop %v2487
        %v2489 = vmul.f32 %v2459, 1.442695
        %v2490 = vpow.pop %v2489
        %v2491 = vmul.f32 %v2460, 1.442695
        %v2492 = vpow.pop %v2491
        %2493 = vadd.xlane.f32.xlu0 %v2462
        %v2494 = vpop.xlane.xlu0 %2493
        %2495 = vadd.xlane.f32.xlu0 %v2464
        %v2496 = vpop.xlane.xlu0 %2495
        %2497 = vadd.xlane.f32.xlu0 %v2466
        %v2498 = vpop.xlane.xlu0 %2497
        %2499 = vadd.xlane.f32.xlu0 %v2468
        %v2500 = vpop.xlane.xlu0 %2499
        %2501 = vadd.xlane.f32.xlu0 %v2470
        %v2502 = vpop.xlane.xlu0 %2501
        %2503 = vadd.xlane.f32.xlu0 %v2472
        %v2504 = vpop.xlane.xlu0 %2503
        %2505 = vadd.xlane.f32.xlu0 %v2474
        %v2506 = vpop.xlane.xlu0 %2505
        %2507 = vadd.xlane.f32.xlu0 %v2476
        %v2508 = vpop.xlane.xlu0 %2507
        %2509 = vadd.xlane.f32.xlu0 %v2478
        %v2510 = vpop.xlane.xlu0 %2509
        %2511 = vadd.xlane.f32.xlu0 %v2480
        %v2512 = vpop.xlane.xlu0 %2511
        %2513 = vadd.xlane.f32.xlu0 %v2482
        %v2514 = vpop.xlane.xlu0 %2513
        %2515 = vadd.xlane.f32.xlu0 %v2484
        %v2516 = vpop.xlane.xlu0 %2515
        %2517 = vadd.xlane.f32.xlu0 %v2486
        %v2518 = vpop.xlane.xlu0 %2517
        %2519 = vadd.xlane.f32.xlu0 %v2488
        %v2520 = vpop.xlane.xlu0 %2519
        %2521 = vadd.xlane.f32.xlu0 %v2490
        %v2522 = vpop.xlane.xlu0 %2521
        %2523 = vadd.xlane.f32.xlu0 %v2492
        %v2524 = vpop.xlane.xlu0 %2523
        %v2525 = vpack.c.bf16 %v2464, %v2462
        %v2526 = vpack.c.bf16 %v2468, %v2466
        %v2527 = vpack.c.bf16 %v2472, %v2470
        %v2528 = vpack.c.bf16 %v2476, %v2474
        %v2529 = vpack.c.bf16 %v2480, %v2478
        %v2530 = vpack.c.bf16 %v2484, %v2482
        %v2531 = vpack.c.bf16 %v2488, %v2486
        %v2532 = vpack.c.bf16 %v2492, %v2490
        %2533 = vrot.lane.b32.xlu0 %v2027, 64
        %v2534 = vpop.permute.xlu0 %2533
        %2535 = vrot.lane.b32.xlu0 %v2028, 64
        %v2536 = vpop.permute.xlu0 %2535
        %2537 = vrot.lane.b32.xlu0 %v2029, 64
        %v2538 = vpop.permute.xlu0 %2537
        %2539 = vrot.lane.b32.xlu0 %v2030, 64
        %v2540 = vpop.permute.xlu0 %2539
        %2541 = vrot.lane.b32.xlu0 %v2031, 64
        %v2542 = vpop.permute.xlu0 %2541
        %2543 = vrot.lane.b32.xlu0 %v2032, 64
        %v2544 = vpop.permute.xlu0 %2543
        %2545 = vrot.lane.b32.xlu0 %v2033, 64
        %v2546 = vpop.permute.xlu0 %2545
        %2547 = vrot.lane.b32.xlu0 %v2034, 64
        %v2548 = vpop.permute.xlu0 %2547
        %2557 = vmatprep.subr.bf16.mxu0 0
        %2558 = vmatpush1.bf16.msra.mxu0 %v2548
        %2559 = vmatprep.subr.bf16.mxu0 0
        %2560 = vmatpush1.bf16.msra.mxu0 %v2546
        %2561 = vmatprep.subr.bf16.mxu0 0
        %2562 = vmatpush1.bf16.msra.mxu0 %v2544
        %2563 = vmatprep.subr.bf16.mxu0 0
        %2564 = vmatpush1.bf16.msra.mxu0 %v2542
        %2565 = vmatprep.subr.bf16.mxu0 0
        %2566 = vmatpush1.bf16.msra.mxu0 %v2540
        %2567 = vmatprep.subr.bf16.mxu0 0
        %2568 = vmatpush1.bf16.msra.mxu0 %v2538
        %2569 = vmatprep.subr.bf16.mxu0 0
        %2570 = vmatpush1.bf16.msra.mxu0 %v2536
        %2571 = vmatprep.subr.bf16.mxu0 0
        %2572 = vmatpush1.bf16.msra.mxu0 %v2534
        %2573 = vmatprep.subr.bf16.mxu0 0
        %2574 = vmatpush2.bf16.msra.mxu0 0
        %2575 = vmatprep.subr.bf16.mxu0 0
        %2576 = vmatpush2.bf16.msra.mxu0 0
        %2577 = vmatprep.subr.bf16.mxu0 0
        %2578 = vmatpush2.bf16.msra.mxu0 0
        %2579 = vmatprep.subr.bf16.mxu0 0
        %2580 = vmatpush2.bf16.msra.mxu0 0
        %2581 = vmatprep.subr.bf16.mxu0 0
        %2582 = vmatpush2.bf16.msra.mxu0 0
        %2583 = vmatprep.subr.bf16.mxu0 0
        %2584 = vmatpush2.bf16.msra.mxu0 0
        %2585 = vmatprep.subr.bf16.mxu0 0
        %2586 = vmatpush2.bf16.msra.mxu0 0
        %2587 = vmatprep.subr.bf16.mxu0 0
        %2588 = vmatpush2.bf16.msra.mxu0 0
        %2589 = vmatprep.mubr.bf16.mxu0 0
        %2590 = vmatmul.mubr.bf16.gmra.mxu0 %v2525
        %v2591 = vpop.f32.mrf.mxu0
        %v2592 = vadd.f32 0.0, %v2591
        %v2593 = vpop.f32.mrf.mxu0
        %v2594 = vpop.f32.mrf.mxu0
        %v2595 = vadd.f32 0.0, %v2594
        %v2596 = vpop.f32.mrf.mxu0
        %2597 = vmatprep.mubr.bf16.mxu0 0
        %2598 = vmatmul.mubr.bf16.gmra.mxu0 %v2526
        %v2599 = vpop.f32.mrf.mxu0
        %v2600 = vadd.f32 0.0, %v2599
        %v2601 = vpop.f32.mrf.mxu0
        %v2602 = vpop.f32.mrf.mxu0
        %v2603 = vadd.f32 0.0, %v2602
        %v2604 = vpop.f32.mrf.mxu0
        %2605 = vmatprep.mubr.bf16.mxu0 0
        %2606 = vmatmul.mubr.bf16.gmra.mxu0 %v2527
        %v2607 = vpop.f32.mrf.mxu0
        %v2608 = vadd.f32 0.0, %v2607
        %v2609 = vpop.f32.mrf.mxu0
        %v2610 = vpop.f32.mrf.mxu0
        %v2611 = vadd.f32 0.0, %v2610
        %v2612 = vpop.f32.mrf.mxu0
        %2613 = vmatprep.mubr.bf16.mxu0 0
        %2614 = vmatmul.mubr.bf16.gmra.mxu0 %v2528
        %v2615 = vpop.f32.mrf.mxu0
        %v2616 = vadd.f32 0.0, %v2615
        %v2617 = vpop.f32.mrf.mxu0
        %v2618 = vpop.f32.mrf.mxu0
        %v2619 = vadd.f32 0.0, %v2618
        %v2620 = vpop.f32.mrf.mxu0
        %2621 = vmatprep.mubr.bf16.mxu0 0
        %2622 = vmatmul.mubr.bf16.gmra.mxu0 %v2529
        %v2623 = vpop.f32.mrf.mxu0
        %v2624 = vadd.f32 0.0, %v2623
        %v2625 = vpop.f32.mrf.mxu0
        %v2626 = vpop.f32.mrf.mxu0
        %v2627 = vadd.f32 0.0, %v2626
        %v2628 = vpop.f32.mrf.mxu0
        %2629 = vmatprep.mubr.bf16.mxu0 0
        %2630 = vmatmul.mubr.bf16.gmra.mxu0 %v2530
        %v2631 = vpop.f32.mrf.mxu0
        %v2632 = vadd.f32 0.0, %v2631
        %v2633 = vpop.f32.mrf.mxu0
        %v2634 = vpop.f32.mrf.mxu0
        %v2635 = vadd.f32 0.0, %v2634
        %v2636 = vpop.f32.mrf.mxu0
        %2637 = vmatprep.mubr.bf16.mxu0 0
        %2638 = vmatmul.mubr.bf16.gmra.mxu0 %v2531
        %v2639 = vpop.f32.mrf.mxu0
        %v2640 = vadd.f32 0.0, %v2639
        %v2641 = vpop.f32.mrf.mxu0
        %v2642 = vpop.f32.mrf.mxu0
        %v2643 = vadd.f32 0.0, %v2642
        %v2644 = vpop.f32.mrf.mxu0
        %2645 = vmatprep.mubr.bf16.mxu0 0
        %2646 = vmatmul.mubr.bf16.gmra.mxu0 %v2532
        %v2647 = vpop.f32.mrf.mxu0
        %v2648 = vadd.f32 0.0, %v2647
        %v2649 = vpop.f32.mrf.mxu0
        %v2650 = vpop.f32.mrf.mxu0
        %v2651 = vadd.f32 0.0, %v2650
        %v2652 = vpop.f32.mrf.mxu0
        %2653 = vdwg.mxu0
        %v2654 = vrcp.pop %v2494
        %v2655 = vrcp.pop %v2496
        %v2656 = vrcp.pop %v2498
        %v2657 = vrcp.pop %v2500
        %v2658 = vrcp.pop %v2502
        %v2659 = vrcp.pop %v2504
        %v2660 = vrcp.pop %v2506
        %v2661 = vrcp.pop %v2508
        %v2662 = vrcp.pop %v2510
        %v2663 = vrcp.pop %v2512
        %v2664 = vrcp.pop %v2514
        %v2665 = vrcp.pop %v2516
        %v2666 = vrcp.pop %v2518
        %v2667 = vrcp.pop %v2520
        %v2668 = vrcp.pop %v2522
        %v2669 = vrcp.pop %v2524
        %v2670 = vmul.f32 %v2494, %v2654
        %v2671 = vmul.f32 %v2496, %v2655
        %v2672 = vmul.f32 %v2498, %v2656
        %v2673 = vmul.f32 %v2500, %v2657
        %v2674 = vmul.f32 %v2502, %v2658
        %v2675 = vmul.f32 %v2504, %v2659
        %v2676 = vmul.f32 %v2506, %v2660
        %v2677 = vmul.f32 %v2508, %v2661
        %v2678 = vmul.f32 %v2510, %v2662
        %v2679 = vmul.f32 %v2512, %v2663
        %v2680 = vmul.f32 %v2514, %v2664
        %v2681 = vmul.f32 %v2516, %v2665
        %v2682 = vmul.f32 %v2518, %v2666
        %v2683 = vmul.f32 %v2520, %v2667
        %v2684 = vmul.f32 %v2522, %v2668
        %v2685 = vmul.f32 %v2524, %v2669
        %v2686 = vsub.f32 2.0, %v2670
        %v2687 = vsub.f32 2.0, %v2671
        %v2688 = vsub.f32 2.0, %v2672
        %v2689 = vsub.f32 2.0, %v2673
        %v2690 = vsub.f32 2.0, %v2674
        %v2691 = vsub.f32 2.0, %v2675
        %v2692 = vsub.f32 2.0, %v2676
        %v2693 = vsub.f32 2.0, %v2677
        %v2694 = vsub.f32 2.0, %v2678
        %v2695 = vsub.f32 2.0, %v2679
        %v2696 = vsub.f32 2.0, %v2680
        %v2697 = vsub.f32 2.0, %v2681
        %v2698 = vsub.f32 2.0, %v2682
        %v2699 = vsub.f32 2.0, %v2683
        %v2700 = vsub.f32 2.0, %v2684
        %v2701 = vsub.f32 2.0, %v2685
        %v2702 = vmul.f32 %v2654, %v2686
        %v2703 = vmul.f32 %v2655, %v2687
        %v2704 = vmul.f32 %v2656, %v2688
        %v2705 = vmul.f32 %v2657, %v2689
        %v2706 = vmul.f32 %v2658, %v2690
        %v2707 = vmul.f32 %v2659, %v2691
        %v2708 = vmul.f32 %v2660, %v2692
        %v2709 = vmul.f32 %v2661, %v2693
        %v2710 = vmul.f32 %v2662, %v2694
        %v2711 = vmul.f32 %v2663, %v2695
        %v2712 = vmul.f32 %v2664, %v2696
        %v2713 = vmul.f32 %v2665, %v2697
        %v2714 = vmul.f32 %v2666, %v2698
        %v2715 = vmul.f32 %v2667, %v2699
        %v2716 = vmul.f32 %v2668, %v2700
        %v2717 = vmul.f32 %v2669, %v2701
        %v2718 = vmul.f32 %v2592, %v2702
        %v2719 = vmul.f32 %v2595, %v2703
        %v2720 = vmul.f32 %v2600, %v2704
        %v2721 = vmul.f32 %v2603, %v2705
        %v2722 = vmul.f32 %v2608, %v2706
        %v2723 = vmul.f32 %v2611, %v2707
        %v2724 = vmul.f32 %v2616, %v2708
        %v2725 = vmul.f32 %v2619, %v2709
        %v2726 = vmul.f32 %v2624, %v2710
        %v2727 = vmul.f32 %v2627, %v2711
        %v2728 = vmul.f32 %v2632, %v2712
        %v2729 = vmul.f32 %v2635, %v2713
        %v2730 = vmul.f32 %v2640, %v2714
        %v2731 = vmul.f32 %v2643, %v2715
        %v2732 = vmul.f32 %v2648, %v2716
        %v2733 = vmul.f32 %v2651, %v2717
        %2750 = vrot.lane.b32.xlu0 %v1666, 64
        %v2751 = vpop.permute.xlu0 %2750
        %2752 = vrot.lane.b32.xlu0 %v1667, 64
        %v2753 = vpop.permute.xlu0 %2752
        %2754 = vrot.lane.b32.xlu0 %v1668, 64
        %v2755 = vpop.permute.xlu0 %2754
        %2756 = vrot.lane.b32.xlu0 %v1669, 64
        %v2757 = vpop.permute.xlu0 %2756
        %2758 = vrot.lane.b32.xlu0 %v1670, 64
        %v2759 = vpop.permute.xlu0 %2758
        %2760 = vrot.lane.b32.xlu0 %v1671, 64
        %v2761 = vpop.permute.xlu0 %2760
        %2762 = vrot.lane.b32.xlu0 %v1672, 64
        %v2763 = vpop.permute.xlu0 %2762
        %2764 = vrot.lane.b32.xlu0 %v1673, 64
        %v2765 = vpop.permute.xlu0 %2764
        %2766 = vrot.lane.b32.xlu0 %v1674, 64
        %v2767 = vpop.permute.xlu0 %2766
        %2768 = vrot.lane.b32.xlu0 %v1675, 64
        %v2769 = vpop.permute.xlu0 %2768
        %2770 = vrot.lane.b32.xlu0 %v1676, 64
        %v2771 = vpop.permute.xlu0 %2770
        %2772 = vrot.lane.b32.xlu0 %v1677, 64
        %v2773 = vpop.permute.xlu0 %2772
        %2774 = vrot.lane.b32.xlu0 %v1678, 64
        %v2775 = vpop.permute.xlu0 %2774
        %2776 = vrot.lane.b32.xlu0 %v1679, 64
        %v2777 = vpop.permute.xlu0 %2776
        %2778 = vrot.lane.b32.xlu0 %v1680, 64
        %v2779 = vpop.permute.xlu0 %2778
        %2780 = vrot.lane.b32.xlu0 %v1681, 64
        %v2781 = vpop.permute.xlu0 %2780
        %2814 = vrot.lane.b32.xlu0 %v2718, 64
        %v2815 = vpop.permute.xlu0 %2814
        %2816 = vrot.lane.b32.xlu0 %v2719, 64
        %v2817 = vpop.permute.xlu0 %2816
        %2818 = vrot.lane.b32.xlu0 %v2720, 64
        %v2819 = vpop.permute.xlu0 %2818
        %2820 = vrot.lane.b32.xlu0 %v2721, 64
        %v2821 = vpop.permute.xlu0 %2820
        %2822 = vrot.lane.b32.xlu0 %v2722, 64
        %v2823 = vpop.permute.xlu0 %2822
        %2824 = vrot.lane.b32.xlu0 %v2723, 64
        %v2825 = vpop.permute.xlu0 %2824
        %2826 = vrot.lane.b32.xlu0 %v2724, 64
        %v2827 = vpop.permute.xlu0 %2826
        %2828 = vrot.lane.b32.xlu0 %v2725, 64
        %v2829 = vpop.permute.xlu0 %2828
        %2830 = vrot.lane.b32.xlu0 %v2726, 64
        %v2831 = vpop.permute.xlu0 %2830
        %2832 = vrot.lane.b32.xlu0 %v2727, 64
        %v2833 = vpop.permute.xlu0 %2832
        %2834 = vrot.lane.b32.xlu0 %v2728, 64
        %v2835 = vpop.permute.xlu0 %2834
        %2836 = vrot.lane.b32.xlu0 %v2729, 64
        %v2837 = vpop.permute.xlu0 %2836
        %2838 = vrot.lane.b32.xlu0 %v2730, 64
        %v2839 = vpop.permute.xlu0 %2838
        %2840 = vrot.lane.b32.xlu0 %v2731, 64
        %v2841 = vpop.permute.xlu0 %2840
        %2842 = vrot.lane.b32.xlu0 %v2732, 64
        %v2843 = vpop.permute.xlu0 %2842
        %2844 = vrot.lane.b32.xlu0 %v2733, 64
        %v2845 = vpop.permute.xlu0 %2844
        %v2862 = vsel %vm661, %v1152, %v2751
        %v2863 = vsel %vm661, %v1153, %v2753
        %v2864 = vsel %vm661, %v1154, %v2755
        %v2865 = vsel %vm661, %v1155, %v2757
        %v2866 = vsel %vm661, %v1156, %v2759
        %v2867 = vsel %vm661, %v1157, %v2761
        %v2868 = vsel %vm661, %v1158, %v2763
        %v2869 = vsel %vm661, %v1159, %v2765
        %v2870 = vsel %vm661, %v1160, %v2767
        %v2871 = vsel %vm661, %v1161, %v2769
        %v2872 = vsel %vm661, %v1162, %v2771
        %v2873 = vsel %vm661, %v1163, %v2773
        %v2874 = vsel %vm661, %v1164, %v2775
        %v2875 = vsel %vm661, %v1165, %v2777
        %v2876 = vsel %vm661, %v1166, %v2779
        %v2877 = vsel %vm661, %v1167, %v2781
        %v2878 = vsel %vm661, %v2204, %v2815
        %v2879 = vsel %vm661, %v2205, %v2817
        %v2880 = vsel %vm661, %v2206, %v2819
        %v2881 = vsel %vm661, %v2207, %v2821
        %v2882 = vsel %vm661, %v2208, %v2823
        %v2883 = vsel %vm661, %v2209, %v2825
        %v2884 = vsel %vm661, %v2210, %v2827
        %v2885 = vsel %vm661, %v2211, %v2829
        %v2886 = vsel %vm661, %v2212, %v2831
        %v2887 = vsel %vm661, %v2213, %v2833
        %v2888 = vsel %vm661, %v2214, %v2835
        %v2889 = vsel %vm661, %v2215, %v2837
        %v2890 = vsel %vm661, %v2216, %v2839
        %v2891 = vsel %vm661, %v2217, %v2841
        %v2892 = vsel %vm661, %v2218, %v2843
        %v2893 = vsel %vm661, %v2219, %v2845
        %v2894 = vpack.c.bf16 %v2863, %v2862
        %v2895 = vpack.c.bf16 %v2879, %v2878
        %v2896 = vpack.c.bf16 %v2865, %v2864
        %v2897 = vpack.c.bf16 %v2881, %v2880
        %v2898 = vpack.c.bf16 %v2867, %v2866
        %v2899 = vpack.c.bf16 %v2883, %v2882
        %v2900 = vpack.c.bf16 %v2869, %v2868
        %v2901 = vpack.c.bf16 %v2885, %v2884
        %v2902 = vpack.c.bf16 %v2871, %v2870
        %v2903 = vpack.c.bf16 %v2887, %v2886
        %v2904 = vpack.c.bf16 %v2873, %v2872
        %v2905 = vpack.c.bf16 %v2889, %v2888
        %v2906 = vpack.c.bf16 %v2875, %v2874
        %v2907 = vpack.c.bf16 %v2891, %v2890
        %v2908 = vpack.c.bf16 %v2877, %v2876
        %v2909 = vpack.c.bf16 %v2893, %v2892
        %v2926 = vunpack.c.l.b16 %v2894
        %v2927 = vunpack.c.l.b16 %v2895
        %v2928 = vunpack.c.h.b16 %v2894
        %v2929 = vunpack.c.h.b16 %v2895
        %v2930 = vunpack.c.l.b16 %v2896
        %v2931 = vunpack.c.l.b16 %v2897
        %v2932 = vunpack.c.h.b16 %v2896
        %v2933 = vunpack.c.h.b16 %v2897
        %v2934 = vunpack.c.l.b16 %v2898
        %v2935 = vunpack.c.l.b16 %v2899
        %v2936 = vunpack.c.h.b16 %v2898
        %v2937 = vunpack.c.h.b16 %v2899
        %v2938 = vunpack.c.l.b16 %v2900
        %v2939 = vunpack.c.l.b16 %v2901
        %v2940 = vunpack.c.h.b16 %v2900
        %v2941 = vunpack.c.h.b16 %v2901
        %v2942 = vunpack.c.l.b16 %v2902
        %v2943 = vunpack.c.l.b16 %v2903
        %v2944 = vunpack.c.h.b16 %v2902
        %v2945 = vunpack.c.h.b16 %v2903
        %v2946 = vunpack.c.l.b16 %v2904
        %v2947 = vunpack.c.l.b16 %v2905
        %v2948 = vunpack.c.h.b16 %v2904
        %v2949 = vunpack.c.h.b16 %v2905
        %v2950 = vunpack.c.l.b16 %v2906
        %v2951 = vunpack.c.l.b16 %v2907
        %v2952 = vunpack.c.h.b16 %v2906
        %v2953 = vunpack.c.h.b16 %v2907
        %v2954 = vunpack.c.l.b16 %v2908
        %v2955 = vunpack.c.l.b16 %v2909
        %v2956 = vunpack.c.h.b16 %v2908
        %v2957 = vunpack.c.h.b16 %v2909
        %v2958 = vpack.c.b16 %v2927, %v2926
        %v2959 = vpack.c.b16 %v2929, %v2928
        %v2960 = vpack.c.b16 %v2931, %v2930
        %v2961 = vpack.c.b16 %v2933, %v2932
        %v2962 = vpack.c.b16 %v2935, %v2934
        %v2963 = vpack.c.b16 %v2937, %v2936
        %v2964 = vpack.c.b16 %v2939, %v2938
        %v2965 = vpack.c.b16 %v2941, %v2940
        %v2966 = vpack.c.b16 %v2943, %v2942
        %v2967 = vpack.c.b16 %v2945, %v2944
        %v2968 = vpack.c.b16 %v2947, %v2946
        %v2969 = vpack.c.b16 %v2949, %v2948
        %v2970 = vpack.c.b16 %v2951, %v2950
        %v2971 = vpack.c.b16 %v2953, %v2952
        %v2972 = vpack.c.b16 %v2955, %v2954
        %v2973 = vpack.c.b16 %v2957, %v2956
        %2990 = vst [vmem:[%s530] sm:$0xff] %v2958
        %2991 = vst [vmem:[%s530 + $0x8] sm:$0xff] %v2959
        %2992 = vst [vmem:[%s530 + $0x10] sm:$0xff] %v2960
        %2993 = vst [vmem:[%s530 + $0x18] sm:$0xff] %v2961
        %2994 = vst [vmem:[%s530 + $0x20] sm:$0xff] %v2962
        %2995 = vst [vmem:[%s530 + $0x28] sm:$0xff] %v2963
        %2996 = vst [vmem:[%s530 + $0x30] sm:$0xff] %v2964
        %2997 = vst [vmem:[%s530 + $0x38] sm:$0xff] %v2965
        %2998 = vst [vmem:[%s530 + $0x40] sm:$0xff] %v2966
        %2999 = vst [vmem:[%s530 + $0x48] sm:$0xff] %v2967
        %3000 = vst [vmem:[%s530 + $0x50] sm:$0xff] %v2968
        %3001 = vst [vmem:[%s530 + $0x58] sm:$0xff] %v2969
        %3002 = vst [vmem:[%s530 + $0x60] sm:$0xff] %v2970
        %3003 = vst [vmem:[%s530 + $0x68] sm:$0xff] %v2971
        %3004 = vst [vmem:[%s530 + $0x70] sm:$0xff] %v2972
        %3005 = vst [vmem:[%s530 + $0x78] sm:$0xff] %v2973
        %s3006 = smul.u32 16, %s19
        %p3007 = scmp.lt.s32.totalorder %s18, 1
        %s3008 = scalar_select %p3007, %s18, 1
        %p3009 = scmp.lt.s32.totalorder %s3006, 15
        %s3010 = scalar_select %p3009, %s3006, 15
        %s3011 = smul.addr %s3010, 2
        %s3012 = smul.addr %s3008, 32
        %s3013 = sadd.s32 %s3011, %s3012
        %s3014 = smul.addr %s3013, 4
        %s3015 = scalar_lea.vmem %s3, %s3014
        // Predicated region
        $region147: #{block_forward.5} parent=133 // pred_check
          %p3016 = pneg %p126
        $region148: #{block_forward.5} parent=133 // pred_check_branch
          %3018 = sbr.rel (%p3016) target = $region150
        $region149: #{block_forward.5} parent=133 // pred_region
          %s3019 = smul.u32 16, %s19
        $region150: #{block_forward.5} parent=133 // pred_fallthru
          _
      $region134: #{block_forward.5} parent=5 // pred_fallthru
        _
      %p3020 = scmp.le.s32.totalorder 2, %s9
      // Predicated region
      $region151: #{block_forward.5} parent=5 // pred_check
        %p3021 = pneg %p3020
      $region152: #{block_forward.5} parent=5 // pred_check_branch
        %3023 = sbr.rel (%p3021) target = $region154
      $region153: #{block_forward.5} parent=5 // pred_region
        %s3024 = ssub.s32 %s9, 2
        // Predicated region
        $region155: #{block_forward.5} parent=153 // pred_check
          %p3025 = pneg %p132
        $region156: #{block_forward.5} parent=153 // pred_check_branch
          %3027 = sbr.rel (%p3025) target = $region158
        $region157: #{block_forward.5} parent=153 // pred_region
          %s3028 = smul.u32 16, %s21
          %p3029 = scmp.lt.s32.totalorder %s20, 1
          %s3030 = scalar_select %p3029, %s20, 1
          %p3031 = scmp.lt.s32.totalorder %s3028, 15
          %s3032 = scalar_select %p3031, %s3028, 15
          %s3033 = smul.addr %s3032, 2
          %s3034 = smul.addr %s3030, 32
          %s3035 = sadd.s32 %s3033, %s3034
          %s3036 = smul.addr %s3035, 4
          %s3037 = scalar_lea.vmem %s3, %s3036
        $region158: #{block_forward.5} parent=153 // pred_fallthru
          _
      $region154: #{block_forward.5} parent=5 // pred_fallthru
        _
    $region6: #{block_forward.5} parent=1 // loop_footer
      %s13 = sadd.s32 1, %s9
    $region7: #{block_forward.5} parent=1 // loop_footer_branch
      %8 = sbr.rel target = $region3
    $region8: #{block_forward.5} parent=1 // loop_exit
      _

// kernel: block_forward.7
$region0: #{block_forward.7}
  #allocation0 [shape = 'u32[]', space=smem, size = 0x4, offset = 0x4, fixed_abs, tag = 'smem constant byte address 0x4 - core index']
  #allocation1 [shape = 'u32[144,128]{1,0:T(1,128)}', space=vmem, size = 0x12000, scoped, tag = 'internal scratch']
  %s0 = inlined_call_operand.vmem [shape: bf16[256,512], index: 0, kind: input, shape index: {}]
  %s1 = inlined_call_operand.vmem [shape: bf16[512,256], index: 1, kind: input, shape index: {}]
  %s2 = inlined_call_operand.vmem [shape: f32[1,256], index: 2, kind: input, shape index: {}]
  %s3 = inlined_call_operand.vmem [shape: f32[256,256], index: 3, kind: input, shape index: {}]
  %s4 = inlined_call_operand.hbm [shape: f32[256,256], index: 4, kind: output, shape index: {}]
  %s5 = sld [smem:[#allocation0]]
  $region49: #{block_forward.7} parent=0
    _
  %s7 = ssub.s32 1, %s5
  %s8 = scalar_select 0, %s7, %s5
  $region1: #{block_forward.7} parent=0
    #allocation2 [shape = 'u8[262144]{0}', space=vmem, size = 0x40000, scoped, tag = 'output window, operand 0']
    #allocation3 [shape = 's32[2]{0}', space=sflag, size = 0x8, scoped, tag = 'scoped memory for block_forward.7']
    %9 = vsyncpa [#allocation3], 0
    %s10 = scalar_lea.sflag [#allocation3], 1
    %11 = vsyncpa %s10, 0
    loop: start=0, step=1, limit=4
    $region2: #{block_forward.7} parent=1 // loop_pre_header
      _
    $region3: #{block_forward.7} parent=1 // loop_header
      %s13 = sphi 0, %s17
      %p14 = scmp.ge.s32.totalorder %s13, 4
      %s23 = sphi 0, %s25
      %s26 = sphi 0, %s23
      %s27 = sphi 0, %s26
      %s43 = sphi 0, %s27
      %s47 = sphi 0, %s47
      %s49 = sphi 0, %s47
      %s50 = sphi 0, %s49
      %s64 = sphi 0, %s50
      %s68 = sphi 0, %s68
      %s70 = sphi 0, %s68
      %s71 = sphi 0, %s70
      %s85 = sphi 0, %s71
      %s91 = sphi 0, %s93
      %s94 = sphi 0, %s91
      %s95 = sphi 0, %s94
      %s111 = sphi 0, %s95
      %s117 = sphi 0, %s119
      %s120 = sphi 0, %s117
      %s121 = sphi 0, %s120
      %s137 = sphi 0, %s121
    $region4: #{block_forward.7} parent=1 // loop_header_branch
      %16 = sbr.rel (%p14) target = $region8
    $region5: #{block_forward.7} parent=1 // loop_body
      %s18 = ssub.s32 %s13, 1
      %s19 = ssub.s32 %s13, 2
      %s20 = sadd.s32 %s13, 1
      %s21 = ssub.s32 %s13, %s20
      %p22 = scmp.eq.s32.totalorder %s21, 0
      %s24 = sadd.s32 %s23, 1
      %s25 = scalar_select %p22, %s23, %s24
      %p28 = pneg %p22
      %p29 = scmp.eq.s32.totalorder %s13, 1
      %p30 = por %p28, %p29
      %p31 = scmp.ne.s32.totalorder %s23, %s26
      %p32 = scmp.eq.s32.totalorder %s13, 0
      %p33 = por %p31, %p32
      %p34 = scmp.ne.s32.totalorder %s23, %s26
      %p35 = scmp.eq.s32.totalorder %s18, 1
      %p36 = por %p34, %p35
      %p37 = scmp.ne.s32.totalorder %s26, %s27
      %p38 = scmp.eq.s32.totalorder %s18, 0
      %p39 = por %p37, %p38
      %p40 = scmp.ne.s32.totalorder %s26, %s27
      %p41 = scmp.eq.s32.totalorder %s19, 1
      %p42 = por %p40, %p41
      %p44 = scmp.ne.s32.totalorder %s27, %s43
      %p45 = scmp.eq.s32.totalorder %s19, 0
      %p46 = por %p44, %p45
      %s48 = sadd.s32 %s47, 1
      %p51 = scmp.eq.s32.totalorder %s13, 1
      %p52 = scmp.ne.s32.totalorder %s47, %s49
      %p53 = scmp.eq.s32.totalorder %s13, 0
      %p54 = por %p52, %p53
      %p55 = scmp.ne.s32.totalorder %s47, %s49
      %p56 = scmp.eq.s32.totalorder %s18, 1
      %p57 = por %p55, %p56
      %p58 = scmp.ne.s32.totalorder %s49, %s50
      %p59 = scmp.eq.s32.totalorder %s18, 0
      %p60 = por %p58, %p59
      %p61 = scmp.ne.s32.totalorder %s49, %s50
      %p62 = scmp.eq.s32.totalorder %s19, 1
      %p63 = por %p61, %p62
      %p65 = scmp.ne.s32.totalorder %s50, %s64
      %p66 = scmp.eq.s32.totalorder %s19, 0
      %p67 = por %p65, %p66
      %s69 = sadd.s32 %s68, 1
      %p72 = scmp.eq.s32.totalorder %s13, 1
      %p73 = scmp.ne.s32.totalorder %s68, %s70
      %p74 = scmp.eq.s32.totalorder %s13, 0
      %p75 = por %p73, %p74
      %p76 = scmp.ne.s32.totalorder %s68, %s70
      %p77 = scmp.eq.s32.totalorder %s18, 1
      %p78 = por %p76, %p77
      %p79 = scmp.ne.s32.totalorder %s70, %s71
      %p80 = scmp.eq.s32.totalorder %s18, 0
      %p81 = por %p79, %p80
      %p82 = scmp.ne.s32.totalorder %s70, %s71
      %p83 = scmp.eq.s32.totalorder %s19, 1
      %p84 = por %p82, %p83
      %p86 = scmp.ne.s32.totalorder %s71, %s85
      %p87 = scmp.eq.s32.totalorder %s19, 0
      %p88 = por %p86, %p87
      %s89 = ssub.s32 %s13, %s20
      %p90 = scmp.eq.s32.totalorder %s89, 0
      %s92 = sadd.s32 %s91, 1
      %s93 = scalar_select %p90, %s91, %s92
      %p96 = pneg %p90
      %p97 = scmp.eq.s32.totalorder %s13, 1
      %p98 = por %p96, %p97
      %p99 = scmp.ne.s32.totalorder %s91, %s94
      %p100 = scmp.eq.s32.totalorder %s13, 0
      %p101 = por %p99, %p100
      %p102 = scmp.ne.s32.totalorder %s91, %s94
      %p103 = scmp.eq.s32.totalorder %s18, 1
      %p104 = por %p102, %p103
      %p105 = scmp.ne.s32.totalorder %s94, %s95
      %p106 = scmp.eq.s32.totalorder %s18, 0
      %p107 = por %p105, %p106
      %p108 = scmp.ne.s32.totalorder %s94, %s95
      %p109 = scmp.eq.s32.totalorder %s19, 1
      %p110 = por %p108, %p109
      %p112 = scmp.ne.s32.totalorder %s95, %s111
      %p113 = scmp.eq.s32.totalorder %s19, 0
      %p114 = por %p112, %p113
      %s115 = ssub.s32 %s13, %s20
      %p116 = scmp.eq.s32.totalorder %s115, 0
      %s118 = sadd.s32 %s117, 1
      %s119 = scalar_select %p116, %s117, %s118
      %p122 = pneg %p116
      %p123 = scmp.eq.s32.totalorder %s13, 1
      %p124 = por %p122, %p123
      %p125 = scmp.ne.s32.totalorder %s117, %s120
      %p126 = scmp.eq.s32.totalorder %s13, 0
      %p127 = por %p125, %p126
      %p128 = scmp.ne.s32.totalorder %s117, %s120
      %p129 = scmp.eq.s32.totalorder %s18, 1
      %p130 = por %p128, %p129
      %p131 = scmp.ne.s32.totalorder %s120, %s121
      %p132 = scmp.eq.s32.totalorder %s18, 0
      %p133 = por %p131, %p132
      %p134 = scmp.ne.s32.totalorder %s120, %s121
      %p135 = scmp.eq.s32.totalorder %s19, 1
      %p136 = por %p134, %p135
      %p138 = scmp.ne.s32.totalorder %s121, %s137
      %p139 = scmp.eq.s32.totalorder %s19, 0
      %p140 = por %p138, %p139
      %p141 = scmp.le.s32.totalorder 1, %s13
      %p142 = scmp.lt.s32.totalorder %s13, 3
      %p143 = pnand %p141, %p142
      %p144 = pneg %p143
      // Predicated region
      $region9: #{block_forward.7} parent=5 // pred_check
        _
      $region10: #{block_forward.7} parent=5 // pred_check_branch
        %146 = sbr.rel (%p143) target = $region12
      $region11: #{block_forward.7} parent=5 // pred_region
        %s147 = ssub.s32 %s13, 1
        // Predicated region
        $region13: #{block_forward.7} parent=11 // pred_check
          %p148 = pneg %p60
        $region14: #{block_forward.7} parent=11 // pred_check_branch
          %150 = sbr.rel (%p148) target = $region16
        $region15: #{block_forward.7} parent=11 // pred_region
          _
        $region16: #{block_forward.7} parent=11 // pred_fallthru
          _
        // Predicated region
        $region17: #{block_forward.7} parent=11 // pred_check
          %p151 = pneg %p81
        $region18: #{block_forward.7} parent=11 // pred_check_branch
          %153 = sbr.rel (%p151) target = $region20
        $region19: #{block_forward.7} parent=11 // pred_region
          _
        $region20: #{block_forward.7} parent=11 // pred_fallthru
          _
      $region12: #{block_forward.7} parent=5 // pred_fallthru
        _
      %p154 = scmp.lt.s32.totalorder %s13, 2
      // Predicated region
      $region21: #{block_forward.7} parent=5 // pred_check
        %p155 = pneg %p154
      $region22: #{block_forward.7} parent=5 // pred_check_branch
        %157 = sbr.rel (%p155) target = $region24
      $region23: #{block_forward.7} parent=5 // pred_region
        // Predicated region
        $region25: #{block_forward.7} parent=23 // pred_check
          %p158 = pneg %p33
        $region26: #{block_forward.7} parent=23 // pred_check_branch
          %160 = sbr.rel (%p158) target = $region28
        $region27: #{block_forward.7} parent=23 // pred_region
          %s161 = smul.u32 16, %s13
          %p162 = scmp.lt.s32.totalorder %s161, 31
          %s163 = scalar_select %p162, %s161, 31
          %s164 = smul.addr %s163, 4
          %s165 = smul.addr %s164, 4
          %s166 = scalar_lea.vmem %s0, %s165
          %s167 = smul.u32 16, %s13
        $region28: #{block_forward.7} parent=23 // pred_fallthru
          _
        // Predicated region
        $region29: #{block_forward.7} parent=23 // pred_check
          %p168 = pneg %p101
        $region30: #{block_forward.7} parent=23 // pred_check_branch
          %170 = sbr.rel (%p168) target = $region32
        $region31: #{block_forward.7} parent=23 // pred_region
          %s171 = smul.u32 16, %s13
          %p172 = scmp.lt.s32.totalorder %s171, 31
          %s173 = scalar_select %p172, %s171, 31
          %s174 = smul.addr %s173, 2
          %s175 = smul.addr %s174, 8
          %s176 = scalar_lea.vmem %s3, %s175
          %s177 = smul.u32 16, %s13
        $region32: #{block_forward.7} parent=23 // pred_fallthru
          _
      $region24: #{block_forward.7} parent=5 // pred_fallthru
        _
      %p178 = scmp.le.s32.totalorder 1, %s13
      %p179 = scmp.lt.s32.totalorder %s13, 3
      %p180 = pnand %p178, %p179
      %p181 = pneg %p180
      // Predicated region
      $region33: #{block_forward.7} parent=5 // pred_check
        _
      $region34: #{block_forward.7} parent=5 // pred_check_branch
        %183 = sbr.rel (%p180) target = $region36
      $region35: #{block_forward.7} parent=5 // pred_region
        %s184 = ssub.s32 %s13, 1
        %s185 = smul.u32 16, %s18
        %p186 = scmp.lt.s32.totalorder %s185, 31
        %s187 = scalar_select %p186, %s185, 31
        %s188 = smul.addr %s187, 4
        %s189 = smul.addr %s188, 4
        %s190 = scalar_lea.vmem %s0, %s189
        %p191 = pneg %p39
        %p192 = pneg %p36
        %p193 = pneg %p60
        %p194 = pneg %p57
        %p195 = pneg %p81
        %p196 = pneg %p78
        %s197 = smul.u32 16, %s18
        %p198 = scmp.lt.s32.totalorder %s197, 31
        %s199 = scalar_select %p198, %s197, 31
        %s200 = smul.addr %s199, 2
        %s201 = smul.addr %s200, 8
        %s202 = scalar_lea.vmem %s3, %s201
        %p203 = pneg %p107
        %p204 = pneg %p104
        %p205 = pneg %p133
        %p206 = pneg %p130
        %s207 = sand.u32 %s120, 1
        %s208 = scalar_lea.sflag [#allocation3], %s207
        %s209 = sand.u32 %s120, 1
        %s210 = smul.addr %s209, 256
        %s211 = scalar_lea.vmem [#allocation2], %s210
        %s212 = smul.u32 16, %s18
        %p213 = scmp.lt.s32.totalorder %s212, 31
        %s214 = scalar_select %p213, %s212, 31
        %s215 = smul.addr %s214, 4
        %s216 = smul.addr %s215, 4
        %s217 = scalar_lea.vmem %s0, %s216
        %s218 = smul.u32 16, %s18
        %s219 = smul.u32 16, %s18
        %p220 = scmp.lt.s32.totalorder %s219, 31
        %s221 = scalar_select %p220, %s219, 31
        %s222 = smul.addr %s221, 2
        %s223 = smul.addr %s222, 8
        %s224 = scalar_lea.vmem %s3, %s223
        %s225 = smul.u32 16, %s18
        %s226 = smul.u32 16, %s18
        %v227 = vld [vmem:[%s217] sm:$0xff]
        %v228 = vld [vmem:[%s217 + $0x8] sm:$0xff]
        %v229 = vld [vmem:[%s217 + $0x10] sm:$0xff]
        %v230 = vld [vmem:[%s217 + $0x18] sm:$0xff]
        %v231 = vld [vmem:[%s217 + $0x20] sm:$0xff]
        %v232 = vld [vmem:[%s217 + $0x28] sm:$0xff]
        %v233 = vld [vmem:[%s217 + $0x30] sm:$0xff]
        %v234 = vld [vmem:[%s217 + $0x38] sm:$0xff]
        %v235 = vld [vmem:[%s217 + $0x40] sm:$0xff]
        %v236 = vld [vmem:[%s217 + $0x48] sm:$0xff]
        %v237 = vld [vmem:[%s217 + $0x50] sm:$0xff]
        %v238 = vld [vmem:[%s217 + $0x58] sm:$0xff]
        %v239 = vld [vmem:[%s217 + $0x60] sm:$0xff]
        %v240 = vld [vmem:[%s217 + $0x68] sm:$0xff]
        %v241 = vld [vmem:[%s217 + $0x70] sm:$0xff]
        %v242 = vld [vmem:[%s217 + $0x78] sm:$0xff]
        %v243 = vld [vmem:[%s217 + $0x80] sm:$0xff]
        %v244 = vld [vmem:[%s217 + $0x88] sm:$0xff]
        %v245 = vld [vmem:[%s217 + $0x90] sm:$0xff]
        %v246 = vld [vmem:[%s217 + $0x98] sm:$0xff]
        %v247 = vld [vmem:[%s217 + $0xa0] sm:$0xff]
        %v248 = vld [vmem:[%s217 + $0xa8] sm:$0xff]
        %v249 = vld [vmem:[%s217 + $0xb0] sm:$0xff]
        %v250 = vld [vmem:[%s217 + $0xb8] sm:$0xff]
        %v251 = vld [vmem:[%s217 + $0xc0] sm:$0xff]
        %v252 = vld [vmem:[%s217 + $0xc8] sm:$0xff]
        %v253 = vld [vmem:[%s217 + $0xd0] sm:$0xff]
        %v254 = vld [vmem:[%s217 + $0xd8] sm:$0xff]
        %v255 = vld [vmem:[%s217 + $0xe0] sm:$0xff]
        %v256 = vld [vmem:[%s217 + $0xe8] sm:$0xff]
        %v257 = vld [vmem:[%s217 + $0xf0] sm:$0xff]
        %v258 = vld [vmem:[%s217 + $0xf8] sm:$0xff]
        %v259 = vld [vmem:[%s1] sm:$0xff]
        %v260 = vld [vmem:[%s1 + $0x8] sm:$0xff]
        %v261 = vld [vmem:[%s1 + $0x10] sm:$0xff]
        %v262 = vld [vmem:[%s1 + $0x18] sm:$0xff]
        %v263 = vld [vmem:[%s1 + $0x20] sm:$0xff]
        %v264 = vld [vmem:[%s1 + $0x28] sm:$0xff]
        %v265 = vld [vmem:[%s1 + $0x30] sm:$0xff]
        %v266 = vld [vmem:[%s1 + $0x38] sm:$0xff]
        %v267 = vld [vmem:[%s1 + $0x40] sm:$0xff]
        %v268 = vld [vmem:[%s1 + $0x48] sm:$0xff]
        %v269 = vld [vmem:[%s1 + $0x50] sm:$0xff]
        %v270 = vld [vmem:[%s1 + $0x58] sm:$0xff]
        %v271 = vld [vmem:[%s1 + $0x60] sm:$0xff]
        %v272 = vld [vmem:[%s1 + $0x68] sm:$0xff]
        %v273 = vld [vmem:[%s1 + $0x70] sm:$0xff]
        %v274 = vld [vmem:[%s1 + $0x78] sm:$0xff]
        %v275 = vld [vmem:[%s1 + $0x80] sm:$0xff]
        %v276 = vld [vmem:[%s1 + $0x88] sm:$0xff]
        %v277 = vld [vmem:[%s1 + $0x90] sm:$0xff]
        %v278 = vld [vmem:[%s1 + $0x98] sm:$0xff]
        %v279 = vld [vmem:[%s1 + $0xa0] sm:$0xff]
        %v280 = vld [vmem:[%s1 + $0xa8] sm:$0xff]
        %v281 = vld [vmem:[%s1 + $0xb0] sm:$0xff]
        %v282 = vld [vmem:[%s1 + $0xb8] sm:$0xff]
        %v283 = vld [vmem:[%s1 + $0xc0] sm:$0xff]
        %v284 = vld [vmem:[%s1 + $0xc8] sm:$0xff]
        %v285 = vld [vmem:[%s1 + $0xd0] sm:$0xff]
        %v286 = vld [vmem:[%s1 + $0xd8] sm:$0xff]
        %v287 = vld [vmem:[%s1 + $0xe0] sm:$0xff]
        %v288 = vld [vmem:[%s1 + $0xe8] sm:$0xff]
        %v289 = vld [vmem:[%s1 + $0xf0] sm:$0xff]
        %v290 = vld [vmem:[%s1 + $0xf8] sm:$0xff]
        %v291 = vld [vmem:[%s1 + $0x100] sm:$0xff]
        %v292 = vld [vmem:[%s1 + $0x108] sm:$0xff]
        %v293 = vld [vmem:[%s1 + $0x110] sm:$0xff]
        %v294 = vld [vmem:[%s1 + $0x118] sm:$0xff]
        %v295 = vld [vmem:[%s1 + $0x120] sm:$0xff]
        %v296 = vld [vmem:[%s1 + $0x128] sm:$0xff]
        %v297 = vld [vmem:[%s1 + $0x130] sm:$0xff]
        %v298 = vld [vmem:[%s1 + $0x138] sm:$0xff]
        %v299 = vld [vmem:[%s1 + $0x140] sm:$0xff]
        %v300 = vld [vmem:[%s1 + $0x148] sm:$0xff]
        %v301 = vld [vmem:[%s1 + $0x150] sm:$0xff]
        %v302 = vld [vmem:[%s1 + $0x158] sm:$0xff]
        %v303 = vld [vmem:[%s1 + $0x160] sm:$0xff]
        %v304 = vld [vmem:[%s1 + $0x168] sm:$0xff]
        %v305 = vld [vmem:[%s1 + $0x170] sm:$0xff]
        %v306 = vld [vmem:[%s1 + $0x178] sm:$0xff]
        %v307 = vld [vmem:[%s1 + $0x180] sm:$0xff]
        %v308 = vld [vmem:[%s1 + $0x188] sm:$0xff]
        %v309 = vld [vmem:[%s1 + $0x190] sm:$0xff]
        %v310 = vld [vmem:[%s1 + $0x198] sm:$0xff]
        %v311 = vld [vmem:[%s1 + $0x1a0] sm:$0xff]
        %v312 = vld [vmem:[%s1 + $0x1a8] sm:$0xff]
        %v313 = vld [vmem:[%s1 + $0x1b0] sm:$0xff]
        %v314 = vld [vmem:[%s1 + $0x1b8] sm:$0xff]
        %v315 = vld [vmem:[%s1 + $0x1c0] sm:$0xff]
        %v316 = vld [vmem:[%s1 + $0x1c8] sm:$0xff]
        %v317 = vld [vmem:[%s1 + $0x1d0] sm:$0xff]
        %v318 = vld [vmem:[%s1 + $0x1d8] sm:$0xff]
        %v319 = vld [vmem:[%s1 + $0x1e0] sm:$0xff]
        %v320 = vld [vmem:[%s1 + $0x1e8] sm:$0xff]
        %v321 = vld [vmem:[%s1 + $0x1f0] sm:$0xff]
        %v322 = vld [vmem:[%s1 + $0x1f8] sm:$0xff]
        %v323 = vld [vmem:[%s2] sm:$0x3]
        %v325 = vlaneseq
        %v326 = vshrl.u32 %v325, 7
        %v327 = vsub.s32 0, %v326
        %v328 = vrot.slane %v323, %v327
        %v329 = vlaneseq
        %v330 = vshrl.u32 %v329, 7
        %v331 = vsub.s32 1, %v330
        %v332 = vrot.slane %v323, %v331
        %v367 = vunpack.c.l.b16 %v227
        %v368 = vunpack.c.h.b16 %v227
        %v369 = vunpack.c.l.b16 %v228
        %v370 = vunpack.c.h.b16 %v228
        %v371 = vunpack.c.l.b16 %v229
        %v372 = vunpack.c.h.b16 %v229
        %v373 = vunpack.c.l.b16 %v230
        %v374 = vunpack.c.h.b16 %v230
        %v375 = vunpack.c.l.b16 %v231
        %v376 = vunpack.c.h.b16 %v231
        %v377 = vunpack.c.l.b16 %v232
        %v378 = vunpack.c.h.b16 %v232
        %v379 = vunpack.c.l.b16 %v233
        %v380 = vunpack.c.h.b16 %v233
        %v381 = vunpack.c.l.b16 %v234
        %v382 = vunpack.c.h.b16 %v234
        %v383 = vunpack.c.l.b16 %v235
        %v384 = vunpack.c.h.b16 %v235
        %v385 = vunpack.c.l.b16 %v236
        %v386 = vunpack.c.h.b16 %v236
        %v387 = vunpack.c.l.b16 %v237
        %v388 = vunpack.c.h.b16 %v237
        %v389 = vunpack.c.l.b16 %v238
        %v390 = vunpack.c.h.b16 %v238
        %v391 = vunpack.c.l.b16 %v239
        %v392 = vunpack.c.h.b16 %v239
        %v393 = vunpack.c.l.b16 %v240
        %v394 = vunpack.c.h.b16 %v240
        %v395 = vunpack.c.l.b16 %v241
        %v396 = vunpack.c.h.b16 %v241
        %v397 = vunpack.c.l.b16 %v242
        %v398 = vunpack.c.h.b16 %v242
        %v399 = vunpack.c.l.b16 %v243
        %v400 = vunpack.c.h.b16 %v243
        %v401 = vunpack.c.l.b16 %v244
        %v402 = vunpack.c.h.b16 %v244
        %v403 = vunpack.c.l.b16 %v245
        %v404 = vunpack.c.h.b16 %v245
        %v405 = vunpack.c.l.b16 %v246
        %v406 = vunpack.c.h.b16 %v246
        %v407 = vunpack.c.l.b16 %v247
        %v408 = vunpack.c.h.b16 %v247
        %v409 = vunpack.c.l.b16 %v248
        %v410 = vunpack.c.h.b16 %v248
        %v411 = vunpack.c.l.b16 %v249
        %v412 = vunpack.c.h.b16 %v249
        %v413 = vunpack.c.l.b16 %v250
        %v414 = vunpack.c.h.b16 %v250
        %v415 = vunpack.c.l.b16 %v251
        %v416 = vunpack.c.h.b16 %v251
        %v417 = vunpack.c.l.b16 %v252
        %v418 = vunpack.c.h.b16 %v252
        %v419 = vunpack.c.l.b16 %v253
        %v420 = vunpack.c.h.b16 %v253
        %v421 = vunpack.c.l.b16 %v254
        %v422 = vunpack.c.h.b16 %v254
        %v423 = vunpack.c.l.b16 %v255
        %v424 = vunpack.c.h.b16 %v255
        %v425 = vunpack.c.l.b16 %v256
        %v426 = vunpack.c.h.b16 %v256
        %v427 = vunpack.c.l.b16 %v257
        %v428 = vunpack.c.h.b16 %v257
        %v429 = vunpack.c.l.b16 %v258
        %v430 = vunpack.c.h.b16 %v258
        %v431 = vpack.c.b16 %v371, %v367
        %v432 = vpack.c.b16 %v372, %v368
        %v433 = vpack.c.b16 %v373, %v369
        %v434 = vpack.c.b16 %v374, %v370
        %v435 = vpack.c.b16 %v379, %v375
        %v436 = vpack.c.b16 %v380, %v376
        %v437 = vpack.c.b16 %v381, %v377
        %v438 = vpack.c.b16 %v382, %v378
        %v439 = vpack.c.b16 %v387, %v383
        %v440 = vpack.c.b16 %v388, %v384
        %v441 = vpack.c.b16 %v389, %v385
        %v442 = vpack.c.b16 %v390, %v386
        %v443 = vpack.c.b16 %v395, %v391
        %v444 = vpack.c.b16 %v396, %v392
        %v445 = vpack.c.b16 %v397, %v393
        %v446 = vpack.c.b16 %v398, %v394
        %v447 = vpack.c.b16 %v403, %v399
        %v448 = vpack.c.b16 %v404, %v400
        %v449 = vpack.c.b16 %v405, %v401
        %v450 = vpack.c.b16 %v406, %v402
        %v451 = vpack.c.b16 %v411, %v407
        %v452 = vpack.c.b16 %v412, %v408
        %v453 = vpack.c.b16 %v413, %v409
        %v454 = vpack.c.b16 %v414, %v410
        %v455 = vpack.c.b16 %v419, %v415
        %v456 = vpack.c.b16 %v420, %v416
        %v457 = vpack.c.b16 %v421, %v417
        %v458 = vpack.c.b16 %v422, %v418
        %v459 = vpack.c.b16 %v427, %v423
        %v460 = vpack.c.b16 %v428, %v424
        %v461 = vpack.c.b16 %v429, %v425
        %v462 = vpack.c.b16 %v430, %v426
        %v559 = vunpack.c.l.b16 %v259
        %v560 = vunpack.c.h.b16 %v259
        %v561 = vunpack.c.l.b16 %v260
        %v562 = vunpack.c.h.b16 %v260
        %v563 = vunpack.c.l.b16 %v261
        %v564 = vunpack.c.h.b16 %v261
        %v565 = vunpack.c.l.b16 %v262
        %v566 = vunpack.c.h.b16 %v262
        %v567 = vunpack.c.l.b16 %v263
        %v568 = vunpack.c.h.b16 %v263
        %v569 = vunpack.c.l.b16 %v264
        %v570 = vunpack.c.h.b16 %v264
        %v571 = vunpack.c.l.b16 %v265
        %v572 = vunpack.c.h.b16 %v265
        %v573 = vunpack.c.l.b16 %v266
        %v574 = vunpack.c.h.b16 %v266
        %v575 = vunpack.c.l.b16 %v267
        %v576 = vunpack.c.h.b16 %v267
        %v577 = vunpack.c.l.b16 %v268
        %v578 = vunpack.c.h.b16 %v268
        %v579 = vunpack.c.l.b16 %v269
        %v580 = vunpack.c.h.b16 %v269
        %v581 = vunpack.c.l.b16 %v270
        %v582 = vunpack.c.h.b16 %v270
        %v583 = vunpack.c.l.b16 %v271
        %v584 = vunpack.c.h.b16 %v271
        %v585 = vunpack.c.l.b16 %v272
        %v586 = vunpack.c.h.b16 %v272
        %v587 = vunpack.c.l.b16 %v273
        %v588 = vunpack.c.h.b16 %v273
        %v589 = vunpack.c.l.b16 %v274
        %v590 = vunpack.c.h.b16 %v274
        %v591 = vunpack.c.l.b16 %v275
        %v592 = vunpack.c.h.b16 %v275
        %v593 = vunpack.c.l.b16 %v276
        %v594 = vunpack.c.h.b16 %v276
        %v595 = vunpack.c.l.b16 %v277
        %v596 = vunpack.c.h.b16 %v277
        %v597 = vunpack.c.l.b16 %v278
        %v598 = vunpack.c.h.b16 %v278
        %v599 = vunpack.c.l.b16 %v279
        %v600 = vunpack.c.h.b16 %v279
        %v601 = vunpack.c.l.b16 %v280
        %v602 = vunpack.c.h.b16 %v280
        %v603 = vunpack.c.l.b16 %v281
        %v604 = vunpack.c.h.b16 %v281
        %v605 = vunpack.c.l.b16 %v282
        %v606 = vunpack.c.h.b16 %v282
        %v607 = vunpack.c.l.b16 %v283
        %v608 = vunpack.c.h.b16 %v283
        %v609 = vunpack.c.l.b16 %v284
        %v610 = vunpack.c.h.b16 %v284
        %v611 = vunpack.c.l.b16 %v285
        %v612 = vunpack.c.h.b16 %v285
        %v613 = vunpack.c.l.b16 %v286
        %v614 = vunpack.c.h.b16 %v286
        %v615 = vunpack.c.l.b16 %v287
        %v616 = vunpack.c.h.b16 %v287
        %v617 = vunpack.c.l.b16 %v288
        %v618 = vunpack.c.h.b16 %v288
        %v619 = vunpack.c.l.b16 %v289
        %v620 = vunpack.c.h.b16 %v289
        %v621 = vunpack.c.l.b16 %v290
        %v622 = vunpack.c.h.b16 %v290
        %v623 = vunpack.c.l.b16 %v291
        %v624 = vunpack.c.h.b16 %v291
        %v625 = vunpack.c.l.b16 %v292
        %v626 = vunpack.c.h.b16 %v292
        %v627 = vunpack.c.l.b16 %v293
        %v628 = vunpack.c.h.b16 %v293
        %v629 = vunpack.c.l.b16 %v294
        %v630 = vunpack.c.h.b16 %v294
        %v631 = vunpack.c.l.b16 %v295
        %v632 = vunpack.c.h.b16 %v295
        %v633 = vunpack.c.l.b16 %v296
        %v634 = vunpack.c.h.b16 %v296
        %v635 = vunpack.c.l.b16 %v297
        %v636 = vunpack.c.h.b16 %v297
        %v637 = vunpack.c.l.b16 %v298
        %v638 = vunpack.c.h.b16 %v298
        %v639 = vunpack.c.l.b16 %v299
        %v640 = vunpack.c.h.b16 %v299
        %v641 = vunpack.c.l.b16 %v300
        %v642 = vunpack.c.h.b16 %v300
        %v643 = vunpack.c.l.b16 %v301
        %v644 = vunpack.c.h.b16 %v301
        %v645 = vunpack.c.l.b16 %v302
        %v646 = vunpack.c.h.b16 %v302
        %v647 = vunpack.c.l.b16 %v303
        %v648 = vunpack.c.h.b16 %v303
        %v649 = vunpack.c.l.b16 %v304
        %v650 = vunpack.c.h.b16 %v304
        %v651 = vunpack.c.l.b16 %v305
        %v652 = vunpack.c.h.b16 %v305
        %v653 = vunpack.c.l.b16 %v306
        %v654 = vunpack.c.h.b16 %v306
        %v655 = vunpack.c.l.b16 %v307
        %v656 = vunpack.c.h.b16 %v307
        %v657 = vunpack.c.l.b16 %v308
        %v658 = vunpack.c.h.b16 %v308
        %v659 = vunpack.c.l.b16 %v309
        %v660 = vunpack.c.h.b16 %v309
        %v661 = vunpack.c.l.b16 %v310
        %v662 = vunpack.c.h.b16 %v310
        %v663 = vunpack.c.l.b16 %v311
        %v664 = vunpack.c.h.b16 %v311
        %v665 = vunpack.c.l.b16 %v312
        %v666 = vunpack.c.h.b16 %v312
        %v667 = vunpack.c.l.b16 %v313
        %v668 = vunpack.c.h.b16 %v313
        %v669 = vunpack.c.l.b16 %v314
        %v670 = vunpack.c.h.b16 %v314
        %v671 = vunpack.c.l.b16 %v315
        %v672 = vunpack.c.h.b16 %v315
        %v673 = vunpack.c.l.b16 %v316
        %v674 = vunpack.c.h.b16 %v316
        %v675 = vunpack.c.l.b16 %v317
        %v676 = vunpack.c.h.b16 %v317
        %v677 = vunpack.c.l.b16 %v318
        %v678 = vunpack.c.h.b16 %v318
        %v679 = vunpack.c.l.b16 %v319
        %v680 = vunpack.c.h.b16 %v319
        %v681 = vunpack.c.l.b16 %v320
        %v682 = vunpack.c.h.b16 %v320
        %v683 = vunpack.c.l.b16 %v321
        %v684 = vunpack.c.h.b16 %v321
        %v685 = vunpack.c.l.b16 %v322
        %v686 = vunpack.c.h.b16 %v322
        %v687 = vpack.c.b16 %v561, %v559
        %v688 = vpack.c.b16 %v562, %v560
        %v689 = vpack.c.b16 %v565, %v563
        %v690 = vpack.c.b16 %v566, %v564
        %v691 = vpack.c.b16 %v569, %v567
        %v692 = vpack.c.b16 %v570, %v568
        %v693 = vpack.c.b16 %v573, %v571
        %v694 = vpack.c.b16 %v574, %v572
        %v695 = vpack.c.b16 %v577, %v575
        %v696 = vpack.c.b16 %v578, %v576
        %v697 = vpack.c.b16 %v581, %v579
        %v698 = vpack.c.b16 %v582, %v580
        %v699 = vpack.c.b16 %v585, %v583
        %v700 = vpack.c.b16 %v586, %v584
        %v701 = vpack.c.b16 %v589, %v587
        %v702 = vpack.c.b16 %v590, %v588
        %v703 = vpack.c.b16 %v593, %v591
        %v704 = vpack.c.b16 %v594, %v592
        %v705 = vpack.c.b16 %v597, %v595
        %v706 = vpack.c.b16 %v598, %v596
        %v707 = vpack.c.b16 %v601, %v599
        %v708 = vpack.c.b16 %v602, %v600
        %v709 = vpack.c.b16 %v605, %v603
        %v710 = vpack.c.b16 %v606, %v604
        %v711 = vpack.c.b16 %v609, %v607
        %v712 = vpack.c.b16 %v610, %v608
        %v713 = vpack.c.b16 %v613, %v611
        %v714 = vpack.c.b16 %v614, %v612
        %v715 = vpack.c.b16 %v617, %v615
        %v716 = vpack.c.b16 %v618, %v616
        %v717 = vpack.c.b16 %v621, %v619
        %v718 = vpack.c.b16 %v622, %v620
        %v719 = vpack.c.b16 %v625, %v623
        %v720 = vpack.c.b16 %v626, %v624
        %v721 = vpack.c.b16 %v629, %v627
        %v722 = vpack.c.b16 %v630, %v628
        %v723 = vpack.c.b16 %v633, %v631
        %v724 = vpack.c.b16 %v634, %v632
        %v725 = vpack.c.b16 %v637, %v635
        %v726 = vpack.c.b16 %v638, %v636
        %v727 = vpack.c.b16 %v641, %v639
        %v728 = vpack.c.b16 %v642, %v640
        %v729 = vpack.c.b16 %v645, %v643
        %v730 = vpack.c.b16 %v646, %v644
        %v731 = vpack.c.b16 %v649, %v647
        %v732 = vpack.c.b16 %v650, %v648
        %v733 = vpack.c.b16 %v653, %v651
        %v734 = vpack.c.b16 %v654, %v652
        %v735 = vpack.c.b16 %v657, %v655
        %v736 = vpack.c.b16 %v658, %v656
        %v737 = vpack.c.b16 %v661, %v659
        %v738 = vpack.c.b16 %v662, %v660
        %v739 = vpack.c.b16 %v665, %v663
        %v740 = vpack.c.b16 %v666, %v664
        %v741 = vpack.c.b16 %v669, %v667
        %v742 = vpack.c.b16 %v670, %v668
        %v743 = vpack.c.b16 %v673, %v671
        %v744 = vpack.c.b16 %v674, %v672
        %v745 = vpack.c.b16 %v677, %v675
        %v746 = vpack.c.b16 %v678, %v676
        %v747 = vpack.c.b16 %v681, %v679
        %v748 = vpack.c.b16 %v682, %v680
        %v749 = vpack.c.b16 %v685, %v683
        %v750 = vpack.c.b16 %v686, %v684
        %815 = vmatprep.subr.bf16.mxu0 %v702
        %816 = vmatpush1.bf16.msra.mxu0 %v701
        %817 = vmatprep.subr.bf16.mxu0 %v700
        %818 = vmatpush1.bf16.msra.mxu0 %v699
        %819 = vmatprep.subr.bf16.mxu0 %v698
        %820 = vmatpush1.bf16.msra.mxu0 %v697
        %821 = vmatprep.subr.bf16.mxu0 %v696
        %822 = vmatpush1.bf16.msra.mxu0 %v695
        %823 = vmatprep.subr.bf16.mxu0 %v694
        %824 = vmatpush1.bf16.msra.mxu0 %v693
        %825 = vmatprep.subr.bf16.mxu0 %v692
        %826 = vmatpush1.bf16.msra.mxu0 %v691
        %827 = vmatprep.subr.bf16.mxu0 %v690
        %828 = vmatpush1.bf16.msra.mxu0 %v689
        %829 = vmatprep.subr.bf16.mxu0 %v688
        %830 = vmatpush1.bf16.msra.mxu0 %v687
        %831 = vmatprep.subr.bf16.mxu0 %v718
        %832 = vmatpush2.bf16.msra.mxu0 %v717
        %833 = vmatprep.subr.bf16.mxu0 %v716
        %834 = vmatpush2.bf16.msra.mxu0 %v715
        %835 = vmatprep.subr.bf16.mxu0 %v714
        %836 = vmatpush2.bf16.msra.mxu0 %v713
        %837 = vmatprep.subr.bf16.mxu0 %v712
        %838 = vmatpush2.bf16.msra.mxu0 %v711
        %839 = vmatprep.subr.bf16.mxu0 %v710
        %840 = vmatpush2.bf16.msra.mxu0 %v709
        %841 = vmatprep.subr.bf16.mxu0 %v708
        %842 = vmatpush2.bf16.msra.mxu0 %v707
        %843 = vmatprep.subr.bf16.mxu0 %v706
        %844 = vmatpush2.bf16.msra.mxu0 %v705
        %845 = vmatprep.subr.bf16.mxu0 %v704
        %846 = vmatpush2.bf16.msra.mxu0 %v703
        %847 = vmatprep.mubr.bf16.mxu0 %v432
        %848 = vmatmul.mubr.bf16.gmra.mxu0 %v431
        %v849 = vpop.f32.mrf.mxu0
        %v850 = vadd.f32 %v328, %v849
        %v851 = vpop.f32.mrf.mxu0
        %v852 = vadd.f32 %v332, %v851
        %v853 = vpop.f32.mrf.mxu0
        %v854 = vadd.f32 %v328, %v853
        %v855 = vpop.f32.mrf.mxu0
        %v856 = vadd.f32 %v332, %v855
        %857 = vmatprep.mubr.bf16.mxu0 %v436
        %858 = vmatmul.mubr.bf16.gmra.mxu0 %v435
        %v859 = vpop.f32.mrf.mxu0
        %v860 = vadd.f32 %v328, %v859
        %v861 = vpop.f32.mrf.mxu0
        %v862 = vadd.f32 %v332, %v861
        %v863 = vpop.f32.mrf.mxu0
        %v864 = vadd.f32 %v328, %v863
        %v865 = vpop.f32.mrf.mxu0
        %v866 = vadd.f32 %v332, %v865
        %867 = vmatprep.mubr.bf16.mxu0 %v440
        %868 = vmatmul.mubr.bf16.gmra.mxu0 %v439
        %v869 = vpop.f32.mrf.mxu0
        %v870 = vadd.f32 %v328, %v869
        %v871 = vpop.f32.mrf.mxu0
        %v872 = vadd.f32 %v332, %v871
        %v873 = vpop.f32.mrf.mxu0
        %v874 = vadd.f32 %v328, %v873
        %v875 = vpop.f32.mrf.mxu0
        %v876 = vadd.f32 %v332, %v875
        %877 = vmatprep.mubr.bf16.mxu0 %v444
        %878 = vmatmul.mubr.bf16.gmra.mxu0 %v443
        %v879 = vpop.f32.mrf.mxu0
        %v880 = vadd.f32 %v328, %v879
        %v881 = vpop.f32.mrf.mxu0
        %v882 = vadd.f32 %v332, %v881
        %v883 = vpop.f32.mrf.mxu0
        %v884 = vadd.f32 %v328, %v883
        %v885 = vpop.f32.mrf.mxu0
        %v886 = vadd.f32 %v332, %v885
        %887 = vmatprep.mubr.bf16.mxu0 %v448
        %888 = vmatmul.mubr.bf16.gmra.mxu0 %v447
        %v889 = vpop.f32.mrf.mxu0
        %v890 = vadd.f32 %v328, %v889
        %v891 = vpop.f32.mrf.mxu0
        %v892 = vadd.f32 %v332, %v891
        %v893 = vpop.f32.mrf.mxu0
        %v894 = vadd.f32 %v328, %v893
        %v895 = vpop.f32.mrf.mxu0
        %v896 = vadd.f32 %v332, %v895
        %897 = vmatprep.mubr.bf16.mxu0 %v452
        %898 = vmatmul.mubr.bf16.gmra.mxu0 %v451
        %v899 = vpop.f32.mrf.mxu0
        %v900 = vadd.f32 %v328, %v899
        %v901 = vpop.f32.mrf.mxu0
        %v902 = vadd.f32 %v332, %v901
        %v903 = vpop.f32.mrf.mxu0
        %v904 = vadd.f32 %v328, %v903
        %v905 = vpop.f32.mrf.mxu0
        %v906 = vadd.f32 %v332, %v905
        %907 = vmatprep.mubr.bf16.mxu0 %v456
        %908 = vmatmul.mubr.bf16.gmra.mxu0 %v455
        %v909 = vpop.f32.mrf.mxu0
        %v910 = vadd.f32 %v328, %v909
        %v911 = vpop.f32.mrf.mxu0
        %v912 = vadd.f32 %v332, %v911
        %v913 = vpop.f32.mrf.mxu0
        %v914 = vadd.f32 %v328, %v913
        %v915 = vpop.f32.mrf.mxu0
        %v916 = vadd.f32 %v332, %v915
        %917 = vmatprep.mubr.bf16.mxu0 %v460
        %918 = vmatmul.mubr.bf16.gmra.mxu0 %v459
        %v919 = vpop.f32.mrf.mxu0
        %v920 = vadd.f32 %v328, %v919
        %v921 = vpop.f32.mrf.mxu0
        %v922 = vadd.f32 %v332, %v921
        %v923 = vpop.f32.mrf.mxu0
        %v924 = vadd.f32 %v328, %v923
        %v925 = vpop.f32.mrf.mxu0
        %v926 = vadd.f32 %v332, %v925
        %927 = vdwg.mxu0
        %928 = vmatprep.subr.bf16.mxu0 %v734
        %929 = vmatpush1.bf16.msra.mxu0 %v733
        %930 = vmatprep.subr.bf16.mxu0 %v732
        %931 = vmatpush1.bf16.msra.mxu0 %v731
        %932 = vmatprep.subr.bf16.mxu0 %v730
        %933 = vmatpush1.bf16.msra.mxu0 %v729
        %934 = vmatprep.subr.bf16.mxu0 %v728
        %935 = vmatpush1.bf16.msra.mxu0 %v727
        %936 = vmatprep.subr.bf16.mxu0 %v726
        %937 = vmatpush1.bf16.msra.mxu0 %v725
        %938 = vmatprep.subr.bf16.mxu0 %v724
        %939 = vmatpush1.bf16.msra.mxu0 %v723
        %940 = vmatprep.subr.bf16.mxu0 %v722
        %941 = vmatpush1.bf16.msra.mxu0 %v721
        %942 = vmatprep.subr.bf16.mxu0 %v720
        %943 = vmatpush1.bf16.msra.mxu0 %v719
        %944 = vmatprep.subr.bf16.mxu0 %v750
        %945 = vmatpush2.bf16.msra.mxu0 %v749
        %946 = vmatprep.subr.bf16.mxu0 %v748
        %947 = vmatpush2.bf16.msra.mxu0 %v747
        %948 = vmatprep.subr.bf16.mxu0 %v746
        %949 = vmatpush2.bf16.msra.mxu0 %v745
        %950 = vmatprep.subr.bf16.mxu0 %v744
        %951 = vmatpush2.bf16.msra.mxu0 %v743
        %952 = vmatprep.subr.bf16.mxu0 %v742
        %953 = vmatpush2.bf16.msra.mxu0 %v741
        %954 = vmatprep.subr.bf16.mxu0 %v740
        %955 = vmatpush2.bf16.msra.mxu0 %v739
        %956 = vmatprep.subr.bf16.mxu0 %v738
        %957 = vmatpush2.bf16.msra.mxu0 %v737
        %958 = vmatprep.subr.bf16.mxu0 %v736
        %959 = vmatpush2.bf16.msra.mxu0 %v735
        %960 = vmatprep.mubr.bf16.mxu0 %v434
        %961 = vmatmul.mubr.bf16.gmra.mxu0 %v433
        %v962 = vpop.f32.mrf.mxu0
        %v963 = vadd.f32 %v850, %v962
        %v964 = vpop.f32.mrf.mxu0
        %v965 = vadd.f32 %v852, %v964
        %v966 = vpop.f32.mrf.mxu0
        %v967 = vadd.f32 %v854, %v966
        %v968 = vpop.f32.mrf.mxu0
        %v969 = vadd.f32 %v856, %v968
        %970 = vmatprep.mubr.bf16.mxu0 %v438
        %971 = vmatmul.mubr.bf16.gmra.mxu0 %v437
        %v972 = vpop.f32.mrf.mxu0
        %v973 = vadd.f32 %v860, %v972
        %v974 = vpop.f32.mrf.mxu0
        %v975 = vadd.f32 %v862, %v974
        %v976 = vpop.f32.mrf.mxu0
        %v977 = vadd.f32 %v864, %v976
        %v978 = vpop.f32.mrf.mxu0
        %v979 = vadd.f32 %v866, %v978
        %980 = vmatprep.mubr.bf16.mxu0 %v442
        %981 = vmatmul.mubr.bf16.gmra.mxu0 %v441
        %v982 = vpop.f32.mrf.mxu0
        %v983 = vadd.f32 %v870, %v982
        %v984 = vpop.f32.mrf.mxu0
        %v985 = vadd.f32 %v872, %v984
        %v986 = vpop.f32.mrf.mxu0
        %v987 = vadd.f32 %v874, %v986
        %v988 = vpop.f32.mrf.mxu0
        %v989 = vadd.f32 %v876, %v988
        %990 = vmatprep.mubr.bf16.mxu0 %v446
        %991 = vmatmul.mubr.bf16.gmra.mxu0 %v445
        %v992 = vpop.f32.mrf.mxu0
        %v993 = vadd.f32 %v880, %v992
        %v994 = vpop.f32.mrf.mxu0
        %v995 = vadd.f32 %v882, %v994
        %v996 = vpop.f32.mrf.mxu0
        %v997 = vadd.f32 %v884, %v996
        %v998 = vpop.f32.mrf.mxu0
        %v999 = vadd.f32 %v886, %v998
        %1000 = vmatprep.mubr.bf16.mxu0 %v450
        %1001 = vmatmul.mubr.bf16.gmra.mxu0 %v449
        %v1002 = vpop.f32.mrf.mxu0
        %v1003 = vadd.f32 %v890, %v1002
        %v1004 = vpop.f32.mrf.mxu0
        %v1005 = vadd.f32 %v892, %v1004
        %v1006 = vpop.f32.mrf.mxu0
        %v1007 = vadd.f32 %v894, %v1006
        %v1008 = vpop.f32.mrf.mxu0
        %v1009 = vadd.f32 %v896, %v1008
        %1010 = vmatprep.mubr.bf16.mxu0 %v454
        %1011 = vmatmul.mubr.bf16.gmra.mxu0 %v453
        %v1012 = vpop.f32.mrf.mxu0
        %v1013 = vadd.f32 %v900, %v1012
        %v1014 = vpop.f32.mrf.mxu0
        %v1015 = vadd.f32 %v902, %v1014
        %v1016 = vpop.f32.mrf.mxu0
        %v1017 = vadd.f32 %v904, %v1016
        %v1018 = vpop.f32.mrf.mxu0
        %v1019 = vadd.f32 %v906, %v1018
        %1020 = vmatprep.mubr.bf16.mxu0 %v458
        %1021 = vmatmul.mubr.bf16.gmra.mxu0 %v457
        %v1022 = vpop.f32.mrf.mxu0
        %v1023 = vadd.f32 %v910, %v1022
        %v1024 = vpop.f32.mrf.mxu0
        %v1025 = vadd.f32 %v912, %v1024
        %v1026 = vpop.f32.mrf.mxu0
        %v1027 = vadd.f32 %v914, %v1026
        %v1028 = vpop.f32.mrf.mxu0
        %v1029 = vadd.f32 %v916, %v1028
        %1030 = vmatprep.mubr.bf16.mxu0 %v462
        %1031 = vmatmul.mubr.bf16.gmra.mxu0 %v461
        %v1032 = vpop.f32.mrf.mxu0
        %v1033 = vadd.f32 %v920, %v1032
        %v1034 = vpop.f32.mrf.mxu0
        %v1035 = vadd.f32 %v922, %v1034
        %v1036 = vpop.f32.mrf.mxu0
        %v1037 = vadd.f32 %v924, %v1036
        %v1038 = vpop.f32.mrf.mxu0
        %v1039 = vadd.f32 %v926, %v1038
        %1040 = vdwg.mxu0
        %v1041 = vld [vmem:[%s224] sm:$0xff]
        %v1042 = vld [vmem:[%s224 + $0x8] sm:$0xff]
        %v1043 = vld [vmem:[%s224 + $0x10] sm:$0xff]
        %v1044 = vld [vmem:[%s224 + $0x18] sm:$0xff]
        %v1045 = vld [vmem:[%s224 + $0x20] sm:$0xff]
        %v1046 = vld [vmem:[%s224 + $0x28] sm:$0xff]
        %v1047 = vld [vmem:[%s224 + $0x30] sm:$0xff]
        %v1048 = vld [vmem:[%s224 + $0x38] sm:$0xff]
        %v1049 = vld [vmem:[%s224 + $0x40] sm:$0xff]
        %v1050 = vld [vmem:[%s224 + $0x48] sm:$0xff]
        %v1051 = vld [vmem:[%s224 + $0x50] sm:$0xff]
        %v1052 = vld [vmem:[%s224 + $0x58] sm:$0xff]
        %v1053 = vld [vmem:[%s224 + $0x60] sm:$0xff]
        %v1054 = vld [vmem:[%s224 + $0x68] sm:$0xff]
        %v1055 = vld [vmem:[%s224 + $0x70] sm:$0xff]
        %v1056 = vld [vmem:[%s224 + $0x78] sm:$0xff]
        %v1057 = vld [vmem:[%s224 + $0x80] sm:$0xff]
        %v1058 = vld [vmem:[%s224 + $0x88] sm:$0xff]
        %v1059 = vld [vmem:[%s224 + $0x90] sm:$0xff]
        %v1060 = vld [vmem:[%s224 + $0x98] sm:$0xff]
        %v1061 = vld [vmem:[%s224 + $0xa0] sm:$0xff]
        %v1062 = vld [vmem:[%s224 + $0xa8] sm:$0xff]
        %v1063 = vld [vmem:[%s224 + $0xb0] sm:$0xff]
        %v1064 = vld [vmem:[%s224 + $0xb8] sm:$0xff]
        %v1065 = vld [vmem:[%s224 + $0xc0] sm:$0xff]
        %v1066 = vld [vmem:[%s224 + $0xc8] sm:$0xff]
        %v1067 = vld [vmem:[%s224 + $0xd0] sm:$0xff]
        %v1068 = vld [vmem:[%s224 + $0xd8] sm:$0xff]
        %v1069 = vld [vmem:[%s224 + $0xe0] sm:$0xff]
        %v1070 = vld [vmem:[%s224 + $0xe8] sm:$0xff]
        %v1071 = vld [vmem:[%s224 + $0xf0] sm:$0xff]
        %v1072 = vld [vmem:[%s224 + $0xf8] sm:$0xff]
        %v1073 = vadd.f32 %v963, %v1041
        %v1074 = vadd.f32 %v965, %v1042
        %v1075 = vadd.f32 %v967, %v1043
        %v1076 = vadd.f32 %v969, %v1044
        %v1077 = vadd.f32 %v973, %v1045
        %v1078 = vadd.f32 %v975, %v1046
        %v1079 = vadd.f32 %v977, %v1047
        %v1080 = vadd.f32 %v979, %v1048
        %v1081 = vadd.f32 %v983, %v1049
        %v1082 = vadd.f32 %v985, %v1050
        %v1083 = vadd.f32 %v987, %v1051
        %v1084 = vadd.f32 %v989, %v1052
        %v1085 = vadd.f32 %v993, %v1053
        %v1086 = vadd.f32 %v995, %v1054
        %v1087 = vadd.f32 %v997, %v1055
        %v1088 = vadd.f32 %v999, %v1056
        %v1089 = vadd.f32 %v1003, %v1057
        %v1090 = vadd.f32 %v1005, %v1058
        %v1091 = vadd.f32 %v1007, %v1059
        %v1092 = vadd.f32 %v1009, %v1060
        %v1093 = vadd.f32 %v1013, %v1061
        %v1094 = vadd.f32 %v1015, %v1062
        %v1095 = vadd.f32 %v1017, %v1063
        %v1096 = vadd.f32 %v1019, %v1064
        %v1097 = vadd.f32 %v1023, %v1065
        %v1098 = vadd.f32 %v1025, %v1066
        %v1099 = vadd.f32 %v1027, %v1067
        %v1100 = vadd.f32 %v1029, %v1068
        %v1101 = vadd.f32 %v1033, %v1069
        %v1102 = vadd.f32 %v1035, %v1070
        %v1103 = vadd.f32 %v1037, %v1071
        %v1104 = vadd.f32 %v1039, %v1072
        %1105 = vst [vmem:[%s211] sm:$0xff] %v1073
        %1106 = vst [vmem:[%s211 + $0x8] sm:$0xff] %v1074
        %1107 = vst [vmem:[%s211 + $0x10] sm:$0xff] %v1075
        %1108 = vst [vmem:[%s211 + $0x18] sm:$0xff] %v1076
        %1109 = vst [vmem:[%s211 + $0x20] sm:$0xff] %v1077
        %1110 = vst [vmem:[%s211 + $0x28] sm:$0xff] %v1078
        %1111 = vst [vmem:[%s211 + $0x30] sm:$0xff] %v1079
        %1112 = vst [vmem:[%s211 + $0x38] sm:$0xff] %v1080
        %1113 = vst [vmem:[%s211 + $0x40] sm:$0xff] %v1081
        %1114 = vst [vmem:[%s211 + $0x48] sm:$0xff] %v1082
        %1115 = vst [vmem:[%s211 + $0x50] sm:$0xff] %v1083
        %1116 = vst [vmem:[%s211 + $0x58] sm:$0xff] %v1084
        %1117 = vst [vmem:[%s211 + $0x60] sm:$0xff] %v1085
        %1118 = vst [vmem:[%s211 + $0x68] sm:$0xff] %v1086
        %1119 = vst [vmem:[%s211 + $0x70] sm:$0xff] %v1087
        %1120 = vst [vmem:[%s211 + $0x78] sm:$0xff] %v1088
        %1121 = vst [vmem:[%s211 + $0x80] sm:$0xff] %v1089
        %1122 = vst [vmem:[%s211 + $0x88] sm:$0xff] %v1090
        %1123 = vst [vmem:[%s211 + $0x90] sm:$0xff] %v1091
        %1124 = vst [vmem:[%s211 + $0x98] sm:$0xff] %v1092
        %1125 = vst [vmem:[%s211 + $0xa0] sm:$0xff] %v1093
        %1126 = vst [vmem:[%s211 + $0xa8] sm:$0xff] %v1094
        %1127 = vst [vmem:[%s211 + $0xb0] sm:$0xff] %v1095
        %1128 = vst [vmem:[%s211 + $0xb8] sm:$0xff] %v1096
        %1129 = vst [vmem:[%s211 + $0xc0] sm:$0xff] %v1097
        %1130 = vst [vmem:[%s211 + $0xc8] sm:$0xff] %v1098
        %1131 = vst [vmem:[%s211 + $0xd0] sm:$0xff] %v1099
        %1132 = vst [vmem:[%s211 + $0xd8] sm:$0xff] %v1100
        %1133 = vst [vmem:[%s211 + $0xe0] sm:$0xff] %v1101
        %1134 = vst [vmem:[%s211 + $0xe8] sm:$0xff] %v1102
        %1135 = vst [vmem:[%s211 + $0xf0] sm:$0xff] %v1103
        %1136 = vst [vmem:[%s211 + $0xf8] sm:$0xff] %v1104
        %s1137 = sand.u32 %s120, 1
        %s1138 = scalar_lea.sflag [#allocation3], %s1137
        %s1139 = sand.u32 %s120, 1
        %s1140 = smul.addr %s1139, 256
        %s1141 = scalar_lea.vmem [#allocation2], %s1140
        // Predicated region
        $region37: #{block_forward.7} parent=35 // pred_check
          %p1142 = pneg %p130
        $region38: #{block_forward.7} parent=35 // pred_check_branch
          %1144 = sbr.rel (%p1142) target = $region40
        $region39: #{block_forward.7} parent=35 // pred_region
          %s1145 = smul.u32 16, %s18
          %s1147 = ssub.s32 4096, 4096
          %1148 = vsyncadd %s1138, %s1147
          %s1149 = smul.addr %s1145, 2
          %s1150 = smul.addr %s1149, 128
          %s1151 = scalar_lea.hbm %s4, %s1150
          %s1152 = sshll.u32 %s1141, 4
          %s1153 = int_to_ptr.vmem [resolvable:$true] %s1152
          %1158 = dma.vmem_to_hbm [thread:$0]  %s1153, 4096, %s1151, %s1138, 256, 256, 16
        $region40: #{block_forward.7} parent=35 // pred_fallthru
          _
      $region36: #{block_forward.7} parent=5 // pred_fallthru
        _
      %p1159 = scmp.le.s32.totalorder 2, %s13
      // Predicated region
      $region41: #{block_forward.7} parent=5 // pred_check
        %p1160 = pneg %p1159
      $region42: #{block_forward.7} parent=5 // pred_check_branch
        %1162 = sbr.rel (%p1160) target = $region44
      $region43: #{block_forward.7} parent=5 // pred_region
        %s1163 = ssub.s32 %s13, 2
        // Predicated region
        $region45: #{block_forward.7} parent=43 // pred_check
          %p1164 = pneg %p136
        $region46: #{block_forward.7} parent=43 // pred_check_branch
          %1166 = sbr.rel (%p1164) target = $region48
        $region47: #{block_forward.7} parent=43 // pred_region
          %s1167 = sand.u32 %s121, 1
          %s1168 = scalar_lea.sflag [#allocation3], %s1167
          %s1169 = sand.u32 %s121, 1
          %s1170 = smul.addr %s1169, 256
          %s1171 = scalar_lea.vmem [#allocation2], %s1170
          %1172 = dma.done %s1168, 4096
        $region48: #{block_forward.7} parent=43 // pred_fallthru
          _
      $region44: #{block_forward.7} parent=5 // pred_fallthru
        _
    $region6: #{block_forward.7} parent=1 // loop_footer
      %s17 = sadd.s32 1, %s13
    $region7: #{block_forward.7} parent=1 // loop_footer_branch
      %12 = sbr.rel target = $region3
    $region8: #{block_forward.7} parent=1 // loop_exit
      _
    %1173 = vsyncpa [#allocation3], 1
    %s1174 = scalar_lea.sflag [#allocation3], 1
    %1175 = vsyncpa %s1174, 1

// kernel: block_forward.6
$region0: #{block_forward.6}
  #allocation0 [shape = 'u32[]', space=smem, size = 0x4, offset = 0x4, fixed_abs, tag = 'smem constant byte address 0x4 - core index']
  #allocation1 [shape = 'u32[144,128]{1,0:T(1,128)}', space=vmem, size = 0x12000, scoped, tag = 'internal scratch']
  %s0 = inlined_call_operand.vmem [shape: bf16[256,256], index: 0, kind: input, shape index: {}]
  %s1 = inlined_call_operand.vmem [shape: f32[256,256], index: 1, kind: input, shape index: {}]
  %s2 = inlined_call_operand.vmem [shape: bf16[256,256], index: 2, kind: input, shape index: {}]
  %s3 = inlined_call_operand.vmem [shape: f32[1,256], index: 3, kind: input, shape index: {}]
  %s4 = inlined_call_operand.vmem [shape: f32[1,256], index: 4, kind: input, shape index: {}]
  %s5 = inlined_call_operand.vmem [shape: f32[1,256], index: 5, kind: input, shape index: {}]
  %s6 = inlined_call_operand.vmem [shape: bf16[256,512], index: 6, kind: input, shape index: {}]
  %s7 = inlined_call_operand.vmem [shape: f32[1,512], index: 7, kind: input, shape index: {}]
  %s8 = inlined_call_operand.vmem [shape: f32[256,256], index: 8, kind: output, shape index: {0}]
  %s9 = inlined_call_operand.vmem [shape: bf16[256,512], index: 9, kind: output, shape index: {1}]
  %10 = xla_tuple %s8, %s9
  %s11 = sld [smem:[#allocation0]]
  $region73: #{block_forward.6} parent=0
    _
  %s13 = ssub.s32 1, %s11
  %s14 = scalar_select 0, %s13, %s11
  loop: start=0, step=1, limit=4
  $region2: #{block_forward.6} parent=0 // loop_pre_header
    _
  $region3: #{block_forward.6} parent=0 // loop_header
    %s16 = sphi 0, %s20
    %p17 = scmp.ge.s32.totalorder %s16, 4
    %s26 = sphi 0, %s28
    %s29 = sphi 0, %s26
    %s30 = sphi 0, %s29
    %s46 = sphi 0, %s30
    %s52 = sphi 0, %s54
    %s55 = sphi 0, %s52
    %s56 = sphi 0, %s55
    %s72 = sphi 0, %s56
    %s76 = sphi 0, %s76
    %s78 = sphi 0, %s76
    %s79 = sphi 0, %s78
    %s93 = sphi 0, %s79
    %s97 = sphi 0, %s97
    %s99 = sphi 0, %s97
    %s100 = sphi 0, %s99
    %s114 = sphi 0, %s100
    %s118 = sphi 0, %s118
    %s120 = sphi 0, %s118
    %s121 = sphi 0, %s120
    %s135 = sphi 0, %s121
    %s139 = sphi 0, %s139
    %s141 = sphi 0, %s139
    %s142 = sphi 0, %s141
    %s156 = sphi 0, %s142
    %s160 = sphi 0, %s160
    %s162 = sphi 0, %s160
    %s163 = sphi 0, %s162
    %s177 = sphi 0, %s163
    %s181 = sphi 0, %s181
    %s183 = sphi 0, %s181
    %s184 = sphi 0, %s183
    %s198 = sphi 0, %s184
    %s204 = sphi 0, %s206
    %s207 = sphi 0, %s204
    %s208 = sphi 0, %s207
    %s224 = sphi 0, %s208
    %s230 = sphi 0, %s232
    %s233 = sphi 0, %s230
    %s234 = sphi 0, %s233
    %s250 = sphi 0, %s234
  $region4: #{block_forward.6} parent=0 // loop_header_branch
    %19 = sbr.rel (%p17) target = $region8
  $region5: #{block_forward.6} parent=0 // loop_body
    %s21 = ssub.s32 %s16, 1
    %s22 = ssub.s32 %s16, 2
    %s23 = sadd.s32 %s16, 1
    %s24 = ssub.s32 %s16, %s23
    %p25 = scmp.eq.s32.totalorder %s24, 0
    %s27 = sadd.s32 %s26, 1
    %s28 = scalar_select %p25, %s26, %s27
    %p31 = pneg %p25
    %p32 = scmp.eq.s32.totalorder %s16, 1
    %p33 = por %p31, %p32
    %p34 = scmp.ne.s32.totalorder %s26, %s29
    %p35 = scmp.eq.s32.totalorder %s16, 0
    %p36 = por %p34, %p35
    %p37 = scmp.ne.s32.totalorder %s26, %s29
    %p38 = scmp.eq.s32.totalorder %s21, 1
    %p39 = por %p37, %p38
    %p40 = scmp.ne.s32.totalorder %s29, %s30
    %p41 = scmp.eq.s32.totalorder %s21, 0
    %p42 = por %p40, %p41
    %p43 = scmp.ne.s32.totalorder %s29, %s30
    %p44 = scmp.eq.s32.totalorder %s22, 1
    %p45 = por %p43, %p44
    %p47 = scmp.ne.s32.totalorder %s30, %s46
    %p48 = scmp.eq.s32.totalorder %s22, 0
    %p49 = por %p47, %p48
    %s50 = ssub.s32 %s16, %s23
    %p51 = scmp.eq.s32.totalorder %s50, 0
    %s53 = sadd.s32 %s52, 1
    %s54 = scalar_select %p51, %s52, %s53
    %p57 = pneg %p51
    %p58 = scmp.eq.s32.totalorder %s16, 1
    %p59 = por %p57, %p58
    %p60 = scmp.ne.s32.totalorder %s52, %s55
    %p61 = scmp.eq.s32.totalorder %s16, 0
    %p62 = por %p60, %p61
    %p63 = scmp.ne.s32.totalorder %s52, %s55
    %p64 = scmp.eq.s32.totalorder %s21, 1
    %p65 = por %p63, %p64
    %p66 = scmp.ne.s32.totalorder %s55, %s56
    %p67 = scmp.eq.s32.totalorder %s21, 0
    %p68 = por %p66, %p67
    %p69 = scmp.ne.s32.totalorder %s55, %s56
    %p70 = scmp.eq.s32.totalorder %s22, 1
    %p71 = por %p69, %p70
    %p73 = scmp.ne.s32.totalorder %s56, %s72
    %p74 = scmp.eq.s32.totalorder %s22, 0
    %p75 = por %p73, %p74
    %s77 = sadd.s32 %s76, 1
    %p80 = scmp.eq.s32.totalorder %s16, 1
    %p81 = scmp.ne.s32.totalorder %s76, %s78
    %p82 = scmp.eq.s32.totalorder %s16, 0
    %p83 = por %p81, %p82
    %p84 = scmp.ne.s32.totalorder %s76, %s78
    %p85 = scmp.eq.s32.totalorder %s21, 1
    %p86 = por %p84, %p85
    %p87 = scmp.ne.s32.totalorder %s78, %s79
    %p88 = scmp.eq.s32.totalorder %s21, 0
    %p89 = por %p87, %p88
    %p90 = scmp.ne.s32.totalorder %s78, %s79
    %p91 = scmp.eq.s32.totalorder %s22, 1
    %p92 = por %p90, %p91
    %p94 = scmp.ne.s32.totalorder %s79, %s93
    %p95 = scmp.eq.s32.totalorder %s22, 0
    %p96 = por %p94, %p95
    %s98 = sadd.s32 %s97, 1
    %p101 = scmp.eq.s32.totalorder %s16, 1
    %p102 = scmp.ne.s32.totalorder %s97, %s99
    %p103 = scmp.eq.s32.totalorder %s16, 0
    %p104 = por %p102, %p103
    %p105 = scmp.ne.s32.totalorder %s97, %s99
    %p106 = scmp.eq.s32.totalorder %s21, 1
    %p107 = por %p105, %p106
    %p108 = scmp.ne.s32.totalorder %s99, %s100
    %p109 = scmp.eq.s32.totalorder %s21, 0
    %p110 = por %p108, %p109
    %p111 = scmp.ne.s32.totalorder %s99, %s100
    %p112 = scmp.eq.s32.totalorder %s22, 1
    %p113 = por %p111, %p112
    %p115 = scmp.ne.s32.totalorder %s100, %s114
    %p116 = scmp.eq.s32.totalorder %s22, 0
    %p117 = por %p115, %p116
    %s119 = sadd.s32 %s118, 1
    %p122 = scmp.eq.s32.totalorder %s16, 1
    %p123 = scmp.ne.s32.totalorder %s118, %s120
    %p124 = scmp.eq.s32.totalorder %s16, 0
    %p125 = por %p123, %p124
    %p126 = scmp.ne.s32.totalorder %s118, %s120
    %p127 = scmp.eq.s32.totalorder %s21, 1
    %p128 = por %p126, %p127
    %p129 = scmp.ne.s32.totalorder %s120, %s121
    %p130 = scmp.eq.s32.totalorder %s21, 0
    %p131 = por %p129, %p130
    %p132 = scmp.ne.s32.totalorder %s120, %s121
    %p133 = scmp.eq.s32.totalorder %s22, 1
    %p134 = por %p132, %p133
    %p136 = scmp.ne.s32.totalorder %s121, %s135
    %p137 = scmp.eq.s32.totalorder %s22, 0
    %p138 = por %p136, %p137
    %s140 = sadd.s32 %s139, 1
    %p143 = scmp.eq.s32.totalorder %s16, 1
    %p144 = scmp.ne.s32.totalorder %s139, %s141
    %p145 = scmp.eq.s32.totalorder %s16, 0
    %p146 = por %p144, %p145
    %p147 = scmp.ne.s32.totalorder %s139, %s141
    %p148 = scmp.eq.s32.totalorder %s21, 1
    %p149 = por %p147, %p148
    %p150 = scmp.ne.s32.totalorder %s141, %s142
    %p151 = scmp.eq.s32.totalorder %s21, 0
    %p152 = por %p150, %p151
    %p153 = scmp.ne.s32.totalorder %s141, %s142
    %p154 = scmp.eq.s32.totalorder %s22, 1
    %p155 = por %p153, %p154
    %p157 = scmp.ne.s32.totalorder %s142, %s156
    %p158 = scmp.eq.s32.totalorder %s22, 0
    %p159 = por %p157, %p158
    %s161 = sadd.s32 %s160, 1
    %p164 = scmp.eq.s32.totalorder %s16, 1
    %p165 = scmp.ne.s32.totalorder %s160, %s162
    %p166 = scmp.eq.s32.totalorder %s16, 0
    %p167 = por %p165, %p166
    %p168 = scmp.ne.s32.totalorder %s160, %s162
    %p169 = scmp.eq.s32.totalorder %s21, 1
    %p170 = por %p168, %p169
    %p171 = scmp.ne.s32.totalorder %s162, %s163
    %p172 = scmp.eq.s32.totalorder %s21, 0
    %p173 = por %p171, %p172
    %p174 = scmp.ne.s32.totalorder %s162, %s163
    %p175 = scmp.eq.s32.totalorder %s22, 1
    %p176 = por %p174, %p175
    %p178 = scmp.ne.s32.totalorder %s163, %s177
    %p179 = scmp.eq.s32.totalorder %s22, 0
    %p180 = por %p178, %p179
    %s182 = sadd.s32 %s181, 1
    %p185 = scmp.eq.s32.totalorder %s16, 1
    %p186 = scmp.ne.s32.totalorder %s181, %s183
    %p187 = scmp.eq.s32.totalorder %s16, 0
    %p188 = por %p186, %p187
    %p189 = scmp.ne.s32.totalorder %s181, %s183
    %p190 = scmp.eq.s32.totalorder %s21, 1
    %p191 = por %p189, %p190
    %p192 = scmp.ne.s32.totalorder %s183, %s184
    %p193 = scmp.eq.s32.totalorder %s21, 0
    %p194 = por %p192, %p193
    %p195 = scmp.ne.s32.totalorder %s183, %s184
    %p196 = scmp.eq.s32.totalorder %s22, 1
    %p197 = por %p195, %p196
    %p199 = scmp.ne.s32.totalorder %s184, %s198
    %p200 = scmp.eq.s32.totalorder %s22, 0
    %p201 = por %p199, %p200
    %s202 = ssub.s32 %s16, %s23
    %p203 = scmp.eq.s32.totalorder %s202, 0
    %s205 = sadd.s32 %s204, 1
    %s206 = scalar_select %p203, %s204, %s205
    %p209 = pneg %p203
    %p210 = scmp.eq.s32.totalorder %s16, 1
    %p211 = por %p209, %p210
    %p212 = scmp.ne.s32.totalorder %s204, %s207
    %p213 = scmp.eq.s32.totalorder %s16, 0
    %p214 = por %p212, %p213
    %p215 = scmp.ne.s32.totalorder %s204, %s207
    %p216 = scmp.eq.s32.totalorder %s21, 1
    %p217 = por %p215, %p216
    %p218 = scmp.ne.s32.totalorder %s207, %s208
    %p219 = scmp.eq.s32.totalorder %s21, 0
    %p220 = por %p218, %p219
    %p221 = scmp.ne.s32.totalorder %s207, %s208
    %p222 = scmp.eq.s32.totalorder %s22, 1
    %p223 = por %p221, %p222
    %p225 = scmp.ne.s32.totalorder %s208, %s224
    %p226 = scmp.eq.s32.totalorder %s22, 0
    %p227 = por %p225, %p226
    %s228 = ssub.s32 %s16, %s23
    %p229 = scmp.eq.s32.totalorder %s228, 0
    %s231 = sadd.s32 %s230, 1
    %s232 = scalar_select %p229, %s230, %s231
    %p235 = pneg %p229
    %p236 = scmp.eq.s32.totalorder %s16, 1
    %p237 = por %p235, %p236
    %p238 = scmp.ne.s32.totalorder %s230, %s233
    %p239 = scmp.eq.s32.totalorder %s16, 0
    %p240 = por %p238, %p239
    %p241 = scmp.ne.s32.totalorder %s230, %s233
    %p242 = scmp.eq.s32.totalorder %s21, 1
    %p243 = por %p241, %p242
    %p244 = scmp.ne.s32.totalorder %s233, %s234
    %p245 = scmp.eq.s32.totalorder %s21, 0
    %p246 = por %p244, %p245
    %p247 = scmp.ne.s32.totalorder %s233, %s234
    %p248 = scmp.eq.s32.totalorder %s22, 1
    %p249 = por %p247, %p248
    %p251 = scmp.ne.s32.totalorder %s234, %s250
    %p252 = scmp.eq.s32.totalorder %s22, 0
    %p253 = por %p251, %p252
    %p254 = scmp.le.s32.totalorder 1, %s16
    %p255 = scmp.lt.s32.totalorder %s16, 3
    %p256 = pnand %p254, %p255
    %p257 = pneg %p256
    // Predicated region
    $region9: #{block_forward.6} parent=5 // pred_check
      _
    $region10: #{block_forward.6} parent=5 // pred_check_branch
      %259 = sbr.rel (%p256) target = $region12
    $region11: #{block_forward.6} parent=5 // pred_region
      %s260 = ssub.s32 %s16, 1
      // Predicated region
      $region13: #{block_forward.6} parent=11 // pred_check
        %p261 = pneg %p89
      $region14: #{block_forward.6} parent=11 // pred_check_branch
        %263 = sbr.rel (%p261) target = $region16
      $region15: #{block_forward.6} parent=11 // pred_region
        _
      $region16: #{block_forward.6} parent=11 // pred_fallthru
        _
      // Predicated region
      $region17: #{block_forward.6} parent=11 // pred_check
        %p264 = pneg %p110
      $region18: #{block_forward.6} parent=11 // pred_check_branch
        %266 = sbr.rel (%p264) target = $region20
      $region19: #{block_forward.6} parent=11 // pred_region
        _
      $region20: #{block_forward.6} parent=11 // pred_fallthru
        _
      // Predicated region
      $region21: #{block_forward.6} parent=11 // pred_check
        %p267 = pneg %p131
      $region22: #{block_forward.6} parent=11 // pred_check_branch
        %269 = sbr.rel (%p267) target = $region24
      $region23: #{block_forward.6} parent=11 // pred_region
        _
      $region24: #{block_forward.6} parent=11 // pred_fallthru
        _
      // Predicated region
      $region25: #{block_forward.6} parent=11 // pred_check
        %p270 = pneg %p152
      $region26: #{block_forward.6} parent=11 // pred_check_branch
        %272 = sbr.rel (%p270) target = $region28
      $region27: #{block_forward.6} parent=11 // pred_region
        _
      $region28: #{block_forward.6} parent=11 // pred_fallthru
        _
      // Predicated region
      $region29: #{block_forward.6} parent=11 // pred_check
        %p273 = pneg %p173
      $region30: #{block_forward.6} parent=11 // pred_check_branch
        %275 = sbr.rel (%p273) target = $region32
      $region31: #{block_forward.6} parent=11 // pred_region
        _
      $region32: #{block_forward.6} parent=11 // pred_fallthru
        _
      // Predicated region
      $region33: #{block_forward.6} parent=11 // pred_check
        %p276 = pneg %p194
      $region34: #{block_forward.6} parent=11 // pred_check_branch
        %278 = sbr.rel (%p276) target = $region36
      $region35: #{block_forward.6} parent=11 // pred_region
        _
      $region36: #{block_forward.6} parent=11 // pred_fallthru
        _
    $region12: #{block_forward.6} parent=5 // pred_fallthru
      _
    %p279 = scmp.lt.s32.totalorder %s16, 2
    // Predicated region
    $region37: #{block_forward.6} parent=5 // pred_check
      %p280 = pneg %p279
    $region38: #{block_forward.6} parent=5 // pred_check_branch
      %282 = sbr.rel (%p280) target = $region40
    $region39: #{block_forward.6} parent=5 // pred_region
      // Predicated region
      $region41: #{block_forward.6} parent=39 // pred_check
        %p283 = pneg %p36
      $region42: #{block_forward.6} parent=39 // pred_check_branch
        %285 = sbr.rel (%p283) target = $region44
      $region43: #{block_forward.6} parent=39 // pred_region
        %s286 = smul.u32 16, %s16
        %p287 = scmp.lt.s32.totalorder %s286, 31
        %s288 = scalar_select %p287, %s286, 31
        %s289 = smul.addr %s288, 2
        %s290 = smul.addr %s289, 4
        %s291 = scalar_lea.vmem %s0, %s290
        %s292 = smul.u32 16, %s16
      $region44: #{block_forward.6} parent=39 // pred_fallthru
        _
      // Predicated region
      $region45: #{block_forward.6} parent=39 // pred_check
        %p293 = pneg %p62
      $region46: #{block_forward.6} parent=39 // pred_check_branch
        %295 = sbr.rel (%p293) target = $region48
      $region47: #{block_forward.6} parent=39 // pred_region
        %s296 = smul.u32 16, %s16
        %p297 = scmp.lt.s32.totalorder %s296, 31
        %s298 = scalar_select %p297, %s296, 31
        %s299 = smul.addr %s298, 2
        %s300 = smul.addr %s299, 8
        %s301 = scalar_lea.vmem %s1, %s300
        %s302 = smul.u32 16, %s16
      $region48: #{block_forward.6} parent=39 // pred_fallthru
        _
    $region40: #{block_forward.6} parent=5 // pred_fallthru
      _
    %p303 = scmp.le.s32.totalorder 1, %s16
    %p304 = scmp.lt.s32.totalorder %s16, 3
    %p305 = pnand %p303, %p304
    %p306 = pneg %p305
    // Predicated region
    $region49: #{block_forward.6} parent=5 // pred_check
      _
    $region50: #{block_forward.6} parent=5 // pred_check_branch
      %308 = sbr.rel (%p305) target = $region52
    $region51: #{block_forward.6} parent=5 // pred_region
      %s309 = ssub.s32 %s16, 1
      %s310 = smul.u32 16, %s21
      %p311 = scmp.lt.s32.totalorder %s310, 31
      %s312 = scalar_select %p311, %s310, 31
      %s313 = smul.addr %s312, 2
      %s314 = smul.addr %s313, 4
      %s315 = scalar_lea.vmem %s0, %s314
      %p316 = pneg %p42
      %p317 = pneg %p39
      %s318 = smul.u32 16, %s21
      %p319 = scmp.lt.s32.totalorder %s318, 31
      %s320 = scalar_select %p319, %s318, 31
      %s321 = smul.addr %s320, 2
      %s322 = smul.addr %s321, 8
      %s323 = scalar_lea.vmem %s1, %s322
      %p324 = pneg %p68
      %p325 = pneg %p65
      %p326 = pneg %p89
      %p327 = pneg %p86
      %p328 = pneg %p110
      %p329 = pneg %p107
      %p330 = pneg %p131
      %p331 = pneg %p128
      %p332 = pneg %p152
      %p333 = pneg %p149
      %p334 = pneg %p173
      %p335 = pneg %p170
      %p336 = pneg %p194
      %p337 = pneg %p191
      %p338 = pneg %p220
      %p339 = pneg %p217
      %s340 = smul.u32 16, %s21
      %p341 = scmp.lt.s32.totalorder %s340, 31
      %s342 = scalar_select %p341, %s340, 31
      %s343 = smul.addr %s342, 2
      %s344 = smul.addr %s343, 8
      %s345 = scalar_lea.vmem %s8, %s344
      %p346 = pneg %p246
      %p347 = pneg %p243
      %s348 = smul.u32 16, %s21
      %p349 = scmp.lt.s32.totalorder %s348, 31
      %s350 = scalar_select %p349, %s348, 31
      %s351 = smul.addr %s350, 4
      %s352 = smul.addr %s351, 4
      %s353 = scalar_lea.vmem %s9, %s352
      %s354 = smul.u32 16, %s21
      %p355 = scmp.lt.s32.totalorder %s354, 31
      %s356 = scalar_select %p355, %s354, 31
      %s357 = smul.addr %s356, 2
      %s358 = smul.addr %s357, 4
      %s359 = scalar_lea.vmem %s0, %s358
      %s360 = smul.u32 16, %s21
      %s361 = smul.u32 16, %s21
      %p362 = scmp.lt.s32.totalorder %s361, 31
      %s363 = scalar_select %p362, %s361, 31
      %s364 = smul.addr %s363, 2
      %s365 = smul.addr %s364, 8
      %s366 = scalar_lea.vmem %s1, %s365
      %s367 = smul.u32 16, %s21
      %s368 = smul.u32 16, %s21
      %p369 = scmp.lt.s32.totalorder %s368, 31
      %s370 = scalar_select %p369, %s368, 31
      %s371 = smul.addr %s370, 2
      %s372 = smul.addr %s371, 8
      %s373 = scalar_lea.vmem %s8, %s372
      %s374 = smul.u32 16, %s21
      %s375 = smul.u32 16, %s21
      %p376 = scmp.lt.s32.totalorder %s375, 31
      %s377 = scalar_select %p376, %s375, 31
      %s378 = smul.addr %s377, 4
      %s379 = smul.addr %s378, 4
      %s380 = scalar_lea.vmem %s9, %s379
      %s381 = smul.u32 16, %s21
      %v382 = vld [vmem:[%s359] sm:$0xff]
      %v383 = vld [vmem:[%s359 + $0x8] sm:$0xff]
      %v384 = vld [vmem:[%s359 + $0x10] sm:$0xff]
      %v385 = vld [vmem:[%s359 + $0x18] sm:$0xff]
      %v386 = vld [vmem:[%s359 + $0x20] sm:$0xff]
      %v387 = vld [vmem:[%s359 + $0x28] sm:$0xff]
      %v388 = vld [vmem:[%s359 + $0x30] sm:$0xff]
      %v389 = vld [vmem:[%s359 + $0x38] sm:$0xff]
      %v390 = vld [vmem:[%s359 + $0x40] sm:$0xff]
      %v391 = vld [vmem:[%s359 + $0x48] sm:$0xff]
      %v392 = vld [vmem:[%s359 + $0x50] sm:$0xff]
      %v393 = vld [vmem:[%s359 + $0x58] sm:$0xff]
      %v394 = vld [vmem:[%s359 + $0x60] sm:$0xff]
      %v395 = vld [vmem:[%s359 + $0x68] sm:$0xff]
      %v396 = vld [vmem:[%s359 + $0x70] sm:$0xff]
      %v397 = vld [vmem:[%s359 + $0x78] sm:$0xff]
      %v398 = vld [vmem:[%s2] sm:$0xff]
      %v399 = vld [vmem:[%s2 + $0x8] sm:$0xff]
      %v400 = vld [vmem:[%s2 + $0x10] sm:$0xff]
      %v401 = vld [vmem:[%s2 + $0x18] sm:$0xff]
      %v402 = vld [vmem:[%s2 + $0x20] sm:$0xff]
      %v403 = vld [vmem:[%s2 + $0x28] sm:$0xff]
      %v404 = vld [vmem:[%s2 + $0x30] sm:$0xff]
      %v405 = vld [vmem:[%s2 + $0x38] sm:$0xff]
      %v406 = vld [vmem:[%s2 + $0x40] sm:$0xff]
      %v407 = vld [vmem:[%s2 + $0x48] sm:$0xff]
      %v408 = vld [vmem:[%s2 + $0x50] sm:$0xff]
      %v409 = vld [vmem:[%s2 + $0x58] sm:$0xff]
      %v410 = vld [vmem:[%s2 + $0x60] sm:$0xff]
      %v411 = vld [vmem:[%s2 + $0x68] sm:$0xff]
      %v412 = vld [vmem:[%s2 + $0x70] sm:$0xff]
      %v413 = vld [vmem:[%s2 + $0x78] sm:$0xff]
      %v414 = vld [vmem:[%s2 + $0x80] sm:$0xff]
      %v415 = vld [vmem:[%s2 + $0x88] sm:$0xff]
      %v416 = vld [vmem:[%s2 + $0x90] sm:$0xff]
      %v417 = vld [vmem:[%s2 + $0x98] sm:$0xff]
      %v418 = vld [vmem:[%s2 + $0xa0] sm:$0xff]
      %v419 = vld [vmem:[%s2 + $0xa8] sm:$0xff]
      %v420 = vld [vmem:[%s2 + $0xb0] sm:$0xff]
      %v421 = vld [vmem:[%s2 + $0xb8] sm:$0xff]
      %v422 = vld [vmem:[%s2 + $0xc0] sm:$0xff]
      %v423 = vld [vmem:[%s2 + $0xc8] sm:$0xff]
      %v424 = vld [vmem:[%s2 + $0xd0] sm:$0xff]
      %v425 = vld [vmem:[%s2 + $0xd8] sm:$0xff]
      %v426 = vld [vmem:[%s2 + $0xe0] sm:$0xff]
      %v427 = vld [vmem:[%s2 + $0xe8] sm:$0xff]
      %v428 = vld [vmem:[%s2 + $0xf0] sm:$0xff]
      %v429 = vld [vmem:[%s2 + $0xf8] sm:$0xff]
      %v430 = vld [vmem:[%s3] sm:$0x3]
      %v432 = vlaneseq
      %v433 = vshrl.u32 %v432, 7
      %v434 = vsub.s32 0, %v433
      %v435 = vrot.slane %v430, %v434
      %v436 = vlaneseq
      %v437 = vshrl.u32 %v436, 7
      %v438 = vsub.s32 1, %v437
      %v439 = vrot.slane %v430, %v438
      %v458 = vunpack.c.l.b16 %v382
      %v459 = vunpack.c.h.b16 %v382
      %v460 = vunpack.c.l.b16 %v383
      %v461 = vunpack.c.h.b16 %v383
      %v462 = vunpack.c.l.b16 %v384
      %v463 = vunpack.c.h.b16 %v384
      %v464 = vunpack.c.l.b16 %v385
      %v465 = vunpack.c.h.b16 %v385
      %v466 = vunpack.c.l.b16 %v386
      %v467 = vunpack.c.h.b16 %v386
      %v468 = vunpack.c.l.b16 %v387
      %v469 = vunpack.c.h.b16 %v387
      %v470 = vunpack.c.l.b16 %v388
      %v471 = vunpack.c.h.b16 %v388
      %v472 = vunpack.c.l.b16 %v389
      %v473 = vunpack.c.h.b16 %v389
      %v474 = vunpack.c.l.b16 %v390
      %v475 = vunpack.c.h.b16 %v390
      %v476 = vunpack.c.l.b16 %v391
      %v477 = vunpack.c.h.b16 %v391
      %v478 = vunpack.c.l.b16 %v392
      %v479 = vunpack.c.h.b16 %v392
      %v480 = vunpack.c.l.b16 %v393
      %v481 = vunpack.c.h.b16 %v393
      %v482 = vunpack.c.l.b16 %v394
      %v483 = vunpack.c.h.b16 %v394
      %v484 = vunpack.c.l.b16 %v395
      %v485 = vunpack.c.h.b16 %v395
      %v486 = vunpack.c.l.b16 %v396
      %v487 = vunpack.c.h.b16 %v396
      %v488 = vunpack.c.l.b16 %v397
      %v489 = vunpack.c.h.b16 %v397
      %v490 = vpack.c.b16 %v460, %v458
      %v491 = vpack.c.b16 %v461, %v459
      %v492 = vpack.c.b16 %v464, %v462
      %v493 = vpack.c.b16 %v465, %v463
      %v494 = vpack.c.b16 %v468, %v466
      %v495 = vpack.c.b16 %v469, %v467
      %v496 = vpack.c.b16 %v472, %v470
      %v497 = vpack.c.b16 %v473, %v471
      %v498 = vpack.c.b16 %v476, %v474
      %v499 = vpack.c.b16 %v477, %v475
      %v500 = vpack.c.b16 %v480, %v478
      %v501 = vpack.c.b16 %v481, %v479
      %v502 = vpack.c.b16 %v484, %v482
      %v503 = vpack.c.b16 %v485, %v483
      %v504 = vpack.c.b16 %v488, %v486
      %v505 = vpack.c.b16 %v489, %v487
      %v554 = vunpack.c.l.b16 %v398
      %v555 = vunpack.c.h.b16 %v398
      %v556 = vunpack.c.l.b16 %v399
      %v557 = vunpack.c.h.b16 %v399
      %v558 = vunpack.c.l.b16 %v400
      %v559 = vunpack.c.h.b16 %v400
      %v560 = vunpack.c.l.b16 %v401
      %v561 = vunpack.c.h.b16 %v401
      %v562 = vunpack.c.l.b16 %v402
      %v563 = vunpack.c.h.b16 %v402
      %v564 = vunpack.c.l.b16 %v403
      %v565 = vunpack.c.h.b16 %v403
      %v566 = vunpack.c.l.b16 %v404
      %v567 = vunpack.c.h.b16 %v404
      %v568 = vunpack.c.l.b16 %v405
      %v569 = vunpack.c.h.b16 %v405
      %v570 = vunpack.c.l.b16 %v406
      %v571 = vunpack.c.h.b16 %v406
      %v572 = vunpack.c.l.b16 %v407
      %v573 = vunpack.c.h.b16 %v407
      %v574 = vunpack.c.l.b16 %v408
      %v575 = vunpack.c.h.b16 %v408
      %v576 = vunpack.c.l.b16 %v409
      %v577 = vunpack.c.h.b16 %v409
      %v578 = vunpack.c.l.b16 %v410
      %v579 = vunpack.c.h.b16 %v410
      %v580 = vunpack.c.l.b16 %v411
      %v581 = vunpack.c.h.b16 %v411
      %v582 = vunpack.c.l.b16 %v412
      %v583 = vunpack.c.h.b16 %v412
      %v584 = vunpack.c.l.b16 %v413
      %v585 = vunpack.c.h.b16 %v413
      %v586 = vunpack.c.l.b16 %v414
      %v587 = vunpack.c.h.b16 %v414
      %v588 = vunpack.c.l.b16 %v415
      %v589 = vunpack.c.h.b16 %v415
      %v590 = vunpack.c.l.b16 %v416
      %v591 = vunpack.c.h.b16 %v416
      %v592 = vunpack.c.l.b16 %v417
      %v593 = vunpack.c.h.b16 %v417
      %v594 = vunpack.c.l.b16 %v418
      %v595 = vunpack.c.h.b16 %v418
      %v596 = vunpack.c.l.b16 %v419
      %v597 = vunpack.c.h.b16 %v419
      %v598 = vunpack.c.l.b16 %v420
      %v599 = vunpack.c.h.b16 %v420
      %v600 = vunpack.c.l.b16 %v421
      %v601 = vunpack.c.h.b16 %v421
      %v602 = vunpack.c.l.b16 %v422
      %v603 = vunpack.c.h.b16 %v422
      %v604 = vunpack.c.l.b16 %v423
      %v605 = vunpack.c.h.b16 %v423
      %v606 = vunpack.c.l.b16 %v424
      %v607 = vunpack.c.h.b16 %v424
      %v608 = vunpack.c.l.b16 %v425
      %v609 = vunpack.c.h.b16 %v425
      %v610 = vunpack.c.l.b16 %v426
      %v611 = vunpack.c.h.b16 %v426
      %v612 = vunpack.c.l.b16 %v427
      %v613 = vunpack.c.h.b16 %v427
      %v614 = vunpack.c.l.b16 %v428
      %v615 = vunpack.c.h.b16 %v428
      %v616 = vunpack.c.l.b16 %v429
      %v617 = vunpack.c.h.b16 %v429
      %v618 = vpack.c.b16 %v556, %v554
      %v619 = vpack.c.b16 %v557, %v555
      %v620 = vpack.c.b16 %v560, %v558
      %v621 = vpack.c.b16 %v561, %v559
      %v622 = vpack.c.b16 %v564, %v562
      %v623 = vpack.c.b16 %v565, %v563
      %v624 = vpack.c.b16 %v568, %v566
      %v625 = vpack.c.b16 %v569, %v567
      %v626 = vpack.c.b16 %v572, %v570
      %v627 = vpack.c.b16 %v573, %v571
      %v628 = vpack.c.b16 %v576, %v574
      %v629 = vpack.c.b16 %v577, %v575
      %v630 = vpack.c.b16 %v580, %v578
      %v631 = vpack.c.b16 %v581, %v579
      %v632 = vpack.c.b16 %v584, %v582
      %v633 = vpack.c.b16 %v585, %v583
      %v634 = vpack.c.b16 %v588, %v586
      %v635 = vpack.c.b16 %v589, %v587
      %v636 = vpack.c.b16 %v592, %v590
      %v637 = vpack.c.b16 %v593, %v591
      %v638 = vpack.c.b16 %v596, %v594
      %v639 = vpack.c.b16 %v597, %v595
      %v640 = vpack.c.b16 %v600, %v598
      %v641 = vpack.c.b16 %v601, %v599
      %v642 = vpack.c.b16 %v604, %v602
      %v643 = vpack.c.b16 %v605, %v603
      %v644 = vpack.c.b16 %v608, %v606
      %v645 = vpack.c.b16 %v609, %v607
      %v646 = vpack.c.b16 %v612, %v610
      %v647 = vpack.c.b16 %v613, %v611
      %v648 = vpack.c.b16 %v616, %v614
      %v649 = vpack.c.b16 %v617, %v615
      %682 = vmatprep.subr.bf16.mxu0 %v633
      %683 = vmatpush1.bf16.msra.mxu0 %v632
      %684 = vmatprep.subr.bf16.mxu0 %v631
      %685 = vmatpush1.bf16.msra.mxu0 %v630
      %686 = vmatprep.subr.bf16.mxu0 %v629
      %687 = vmatpush1.bf16.msra.mxu0 %v628
      %688 = vmatprep.subr.bf16.mxu0 %v627
      %689 = vmatpush1.bf16.msra.mxu0 %v626
      %690 = vmatprep.subr.bf16.mxu0 %v625
      %691 = vmatpush1.bf16.msra.mxu0 %v624
      %692 = vmatprep.subr.bf16.mxu0 %v623
      %693 = vmatpush1.bf16.msra.mxu0 %v622
      %694 = vmatprep.subr.bf16.mxu0 %v621
      %695 = vmatpush1.bf16.msra.mxu0 %v620
      %696 = vmatprep.subr.bf16.mxu0 %v619
      %697 = vmatpush1.bf16.msra.mxu0 %v618
      %698 = vmatprep.subr.bf16.mxu0 %v649
      %699 = vmatpush2.bf16.msra.mxu0 %v648
      %700 = vmatprep.subr.bf16.mxu0 %v647
      %701 = vmatpush2.bf16.msra.mxu0 %v646
      %702 = vmatprep.subr.bf16.mxu0 %v645
      %703 = vmatpush2.bf16.msra.mxu0 %v644
      %704 = vmatprep.subr.bf16.mxu0 %v643
      %705 = vmatpush2.bf16.msra.mxu0 %v642
      %706 = vmatprep.subr.bf16.mxu0 %v641
      %707 = vmatpush2.bf16.msra.mxu0 %v640
      %708 = vmatprep.subr.bf16.mxu0 %v639
      %709 = vmatpush2.bf16.msra.mxu0 %v638
      %710 = vmatprep.subr.bf16.mxu0 %v637
      %711 = vmatpush2.bf16.msra.mxu0 %v636
      %712 = vmatprep.subr.bf16.mxu0 %v635
      %713 = vmatpush2.bf16.msra.mxu0 %v634
      %714 = vmatprep.mubr.bf16.mxu0 %v491
      %715 = vmatmul.mubr.bf16.gmra.mxu0 %v490
      %v716 = vpop.f32.mrf.mxu0
      %v717 = vadd.f32 %v435, %v716
      %v718 = vpop.f32.mrf.mxu0
      %v719 = vadd.f32 %v439, %v718
      %v720 = vpop.f32.mrf.mxu0
      %v721 = vadd.f32 %v435, %v720
      %v722 = vpop.f32.mrf.mxu0
      %v723 = vadd.f32 %v439, %v722
      %724 = vmatprep.mubr.bf16.mxu0 %v493
      %725 = vmatmul.mubr.bf16.gmra.mxu0 %v492
      %v726 = vpop.f32.mrf.mxu0
      %v727 = vadd.f32 %v435, %v726
      %v728 = vpop.f32.mrf.mxu0
      %v729 = vadd.f32 %v439, %v728
      %v730 = vpop.f32.mrf.mxu0
      %v731 = vadd.f32 %v435, %v730
      %v732 = vpop.f32.mrf.mxu0
      %v733 = vadd.f32 %v439, %v732
      %734 = vmatprep.mubr.bf16.mxu0 %v495
      %735 = vmatmul.mubr.bf16.gmra.mxu0 %v494
      %v736 = vpop.f32.mrf.mxu0
      %v737 = vadd.f32 %v435, %v736
      %v738 = vpop.f32.mrf.mxu0
      %v739 = vadd.f32 %v439, %v738
      %v740 = vpop.f32.mrf.mxu0
      %v741 = vadd.f32 %v435, %v740
      %v742 = vpop.f32.mrf.mxu0
      %v743 = vadd.f32 %v439, %v742
      %744 = vmatprep.mubr.bf16.mxu0 %v497
      %745 = vmatmul.mubr.bf16.gmra.mxu0 %v496
      %v746 = vpop.f32.mrf.mxu0
      %v747 = vadd.f32 %v435, %v746
      %v748 = vpop.f32.mrf.mxu0
      %v749 = vadd.f32 %v439, %v748
      %v750 = vpop.f32.mrf.mxu0
      %v751 = vadd.f32 %v435, %v750
      %v752 = vpop.f32.mrf.mxu0
      %v753 = vadd.f32 %v439, %v752
      %754 = vmatprep.mubr.bf16.mxu0 %v499
      %755 = vmatmul.mubr.bf16.gmra.mxu0 %v498
      %v756 = vpop.f32.mrf.mxu0
      %v757 = vadd.f32 %v435, %v756
      %v758 = vpop.f32.mrf.mxu0
      %v759 = vadd.f32 %v439, %v758
      %v760 = vpop.f32.mrf.mxu0
      %v761 = vadd.f32 %v435, %v760
      %v762 = vpop.f32.mrf.mxu0
      %v763 = vadd.f32 %v439, %v762
      %764 = vmatprep.mubr.bf16.mxu0 %v501
      %765 = vmatmul.mubr.bf16.gmra.mxu0 %v500
      %v766 = vpop.f32.mrf.mxu0
      %v767 = vadd.f32 %v435, %v766
      %v768 = vpop.f32.mrf.mxu0
      %v769 = vadd.f32 %v439, %v768
      %v770 = vpop.f32.mrf.mxu0
      %v771 = vadd.f32 %v435, %v770
      %v772 = vpop.f32.mrf.mxu0
      %v773 = vadd.f32 %v439, %v772
      %774 = vmatprep.mubr.bf16.mxu0 %v503
      %775 = vmatmul.mubr.bf16.gmra.mxu0 %v502
      %v776 = vpop.f32.mrf.mxu0
      %v777 = vadd.f32 %v435, %v776
      %v778 = vpop.f32.mrf.mxu0
      %v779 = vadd.f32 %v439, %v778
      %v780 = vpop.f32.mrf.mxu0
      %v781 = vadd.f32 %v435, %v780
      %v782 = vpop.f32.mrf.mxu0
      %v783 = vadd.f32 %v439, %v782
      %784 = vmatprep.mubr.bf16.mxu0 %v505
      %785 = vmatmul.mubr.bf16.gmra.mxu0 %v504
      %v786 = vpop.f32.mrf.mxu0
      %v787 = vadd.f32 %v435, %v786
      %v788 = vpop.f32.mrf.mxu0
      %v789 = vadd.f32 %v439, %v788
      %v790 = vpop.f32.mrf.mxu0
      %v791 = vadd.f32 %v435, %v790
      %v792 = vpop.f32.mrf.mxu0
      %v793 = vadd.f32 %v439, %v792
      %794 = vdwg.mxu0
      %v795 = vld [vmem:[%s366] sm:$0xff]
      %v796 = vld [vmem:[%s366 + $0x8] sm:$0xff]
      %v797 = vld [vmem:[%s366 + $0x10] sm:$0xff]
      %v798 = vld [vmem:[%s366 + $0x18] sm:$0xff]
      %v799 = vld [vmem:[%s366 + $0x20] sm:$0xff]
      %v800 = vld [vmem:[%s366 + $0x28] sm:$0xff]
      %v801 = vld [vmem:[%s366 + $0x30] sm:$0xff]
      %v802 = vld [vmem:[%s366 + $0x38] sm:$0xff]
      %v803 = vld [vmem:[%s366 + $0x40] sm:$0xff]
      %v804 = vld [vmem:[%s366 + $0x48] sm:$0xff]
      %v805 = vld [vmem:[%s366 + $0x50] sm:$0xff]
      %v806 = vld [vmem:[%s366 + $0x58] sm:$0xff]
      %v807 = vld [vmem:[%s366 + $0x60] sm:$0xff]
      %v808 = vld [vmem:[%s366 + $0x68] sm:$0xff]
      %v809 = vld [vmem:[%s366 + $0x70] sm:$0xff]
      %v810 = vld [vmem:[%s366 + $0x78] sm:$0xff]
      %v811 = vld [vmem:[%s366 + $0x80] sm:$0xff]
      %v812 = vld [vmem:[%s366 + $0x88] sm:$0xff]
      %v813 = vld [vmem:[%s366 + $0x90] sm:$0xff]
      %v814 = vld [vmem:[%s366 + $0x98] sm:$0xff]
      %v815 = vld [vmem:[%s366 + $0xa0] sm:$0xff]
      %v816 = vld [vmem:[%s366 + $0xa8] sm:$0xff]
      %v817 = vld [vmem:[%s366 + $0xb0] sm:$0xff]
      %v818 = vld [vmem:[%s366 + $0xb8] sm:$0xff]
      %v819 = vld [vmem:[%s366 + $0xc0] sm:$0xff]
      %v820 = vld [vmem:[%s366 + $0xc8] sm:$0xff]
      %v821 = vld [vmem:[%s366 + $0xd0] sm:$0xff]
      %v822 = vld [vmem:[%s366 + $0xd8] sm:$0xff]
      %v823 = vld [vmem:[%s366 + $0xe0] sm:$0xff]
      %v824 = vld [vmem:[%s366 + $0xe8] sm:$0xff]
      %v825 = vld [vmem:[%s366 + $0xf0] sm:$0xff]
      %v826 = vld [vmem:[%s366 + $0xf8] sm:$0xff]
      %v827 = vadd.f32 %v717, %v795
      %v828 = vadd.f32 %v719, %v796
      %v829 = vadd.f32 %v721, %v797
      %v830 = vadd.f32 %v723, %v798
      %v831 = vadd.f32 %v727, %v799
      %v832 = vadd.f32 %v729, %v800
      %v833 = vadd.f32 %v731, %v801
      %v834 = vadd.f32 %v733, %v802
      %v835 = vadd.f32 %v737, %v803
      %v836 = vadd.f32 %v739, %v804
      %v837 = vadd.f32 %v741, %v805
      %v838 = vadd.f32 %v743, %v806
      %v839 = vadd.f32 %v747, %v807
      %v840 = vadd.f32 %v749, %v808
      %v841 = vadd.f32 %v751, %v809
      %v842 = vadd.f32 %v753, %v810
      %v843 = vadd.f32 %v757, %v811
      %v844 = vadd.f32 %v759, %v812
      %v845 = vadd.f32 %v761, %v813
      %v846 = vadd.f32 %v763, %v814
      %v847 = vadd.f32 %v767, %v815
      %v848 = vadd.f32 %v769, %v816
      %v849 = vadd.f32 %v771, %v817
      %v850 = vadd.f32 %v773, %v818
      %v851 = vadd.f32 %v777, %v819
      %v852 = vadd.f32 %v779, %v820
      %v853 = vadd.f32 %v781, %v821
      %v854 = vadd.f32 %v783, %v822
      %v855 = vadd.f32 %v787, %v823
      %v856 = vadd.f32 %v789, %v824
      %v857 = vadd.f32 %v791, %v825
      %v858 = vadd.f32 %v793, %v826
      %859 = vst [vmem:[%s373] sm:$0xff] %v827
      %860 = vst [vmem:[%s373 + $0x8] sm:$0xff] %v828
      %861 = vst [vmem:[%s373 + $0x10] sm:$0xff] %v829
      %862 = vst [vmem:[%s373 + $0x18] sm:$0xff] %v830
      %863 = vst [vmem:[%s373 + $0x20] sm:$0xff] %v831
      %864 = vst [vmem:[%s373 + $0x28] sm:$0xff] %v832
      %865 = vst [vmem:[%s373 + $0x30] sm:$0xff] %v833
      %866 = vst [vmem:[%s373 + $0x38] sm:$0xff] %v834
      %867 = vst [vmem:[%s373 + $0x40] sm:$0xff] %v835
      %868 = vst [vmem:[%s373 + $0x48] sm:$0xff] %v836
      %869 = vst [vmem:[%s373 + $0x50] sm:$0xff] %v837
      %870 = vst [vmem:[%s373 + $0x58] sm:$0xff] %v838
      %871 = vst [vmem:[%s373 + $0x60] sm:$0xff] %v839
      %872 = vst [vmem:[%s373 + $0x68] sm:$0xff] %v840
      %873 = vst [vmem:[%s373 + $0x70] sm:$0xff] %v841
      %874 = vst [vmem:[%s373 + $0x78] sm:$0xff] %v842
      %875 = vst [vmem:[%s373 + $0x80] sm:$0xff] %v843
      %876 = vst [vmem:[%s373 + $0x88] sm:$0xff] %v844
      %877 = vst [vmem:[%s373 + $0x90] sm:$0xff] %v845
      %878 = vst [vmem:[%s373 + $0x98] sm:$0xff] %v846
      %879 = vst [vmem:[%s373 + $0xa0] sm:$0xff] %v847
      %880 = vst [vmem:[%s373 + $0xa8] sm:$0xff] %v848
      %881 = vst [vmem:[%s373 + $0xb0] sm:$0xff] %v849
      %882 = vst [vmem:[%s373 + $0xb8] sm:$0xff] %v850
      %883 = vst [vmem:[%s373 + $0xc0] sm:$0xff] %v851
      %884 = vst [vmem:[%s373 + $0xc8] sm:$0xff] %v852
      %885 = vst [vmem:[%s373 + $0xd0] sm:$0xff] %v853
      %886 = vst [vmem:[%s373 + $0xd8] sm:$0xff] %v854
      %887 = vst [vmem:[%s373 + $0xe0] sm:$0xff] %v855
      %888 = vst [vmem:[%s373 + $0xe8] sm:$0xff] %v856
      %889 = vst [vmem:[%s373 + $0xf0] sm:$0xff] %v857
      %890 = vst [vmem:[%s373 + $0xf8] sm:$0xff] %v858
      %v891 = vadd.f32 %v827, %v828
      %892 = vadd.xlane.f32.xlu0 %v891
      %v893 = vpop.xlane.xlu0 %892
      %v894 = vadd.f32 %v829, %v830
      %895 = vadd.xlane.f32.xlu0 %v894
      %v896 = vpop.xlane.xlu0 %895
      %v897 = vadd.f32 %v831, %v832
      %898 = vadd.xlane.f32.xlu0 %v897
      %v899 = vpop.xlane.xlu0 %898
      %v900 = vadd.f32 %v833, %v834
      %901 = vadd.xlane.f32.xlu0 %v900
      %v902 = vpop.xlane.xlu0 %901
      %v903 = vadd.f32 %v835, %v836
      %904 = vadd.xlane.f32.xlu0 %v903
      %v905 = vpop.xlane.xlu0 %904
      %v906 = vadd.f32 %v837, %v838
      %907 = vadd.xlane.f32.xlu0 %v906
      %v908 = vpop.xlane.xlu0 %907
      %v909 = vadd.f32 %v839, %v840
      %910 = vadd.xlane.f32.xlu0 %v909
      %v911 = vpop.xlane.xlu0 %910
      %v912 = vadd.f32 %v841, %v842
      %913 = vadd.xlane.f32.xlu0 %v912
      %v914 = vpop.xlane.xlu0 %913
      %v915 = vadd.f32 %v843, %v844
      %916 = vadd.xlane.f32.xlu0 %v915
      %v917 = vpop.xlane.xlu0 %916
      %v918 = vadd.f32 %v845, %v846
      %919 = vadd.xlane.f32.xlu0 %v918
      %v920 = vpop.xlane.xlu0 %919
      %v921 = vadd.f32 %v847, %v848
      %922 = vadd.xlane.f32.xlu0 %v921
      %v923 = vpop.xlane.xlu0 %922
      %v924 = vadd.f32 %v849, %v850
      %925 = vadd.xlane.f32.xlu0 %v924
      %v926 = vpop.xlane.xlu0 %925
      %v927 = vadd.f32 %v851, %v852
      %928 = vadd.xlane.f32.xlu0 %v927
      %v929 = vpop.xlane.xlu0 %928
      %v930 = vadd.f32 %v853, %v854
      %931 = vadd.xlane.f32.xlu0 %v930
      %v932 = vpop.xlane.xlu0 %931
      %v933 = vadd.f32 %v855, %v856
      %934 = vadd.xlane.f32.xlu0 %v933
      %v935 = vpop.xlane.xlu0 %934
      %v936 = vadd.f32 %v857, %v858
      %937 = vadd.xlane.f32.xlu0 %v936
      %v938 = vpop.xlane.xlu0 %937
      %v939 = vmul.f32 %v893, 0.00390625
      %v940 = vmul.f32 %v896, 0.00390625
      %v941 = vmul.f32 %v899, 0.00390625
      %v942 = vmul.f32 %v902, 0.00390625
      %v943 = vmul.f32 %v905, 0.00390625
      %v944 = vmul.f32 %v908, 0.00390625
      %v945 = vmul.f32 %v911, 0.00390625
      %v946 = vmul.f32 %v914, 0.00390625
      %v947 = vmul.f32 %v917, 0.00390625
      %v948 = vmul.f32 %v920, 0.00390625
      %v949 = vmul.f32 %v923, 0.00390625
      %v950 = vmul.f32 %v926, 0.00390625
      %v951 = vmul.f32 %v929, 0.00390625
      %v952 = vmul.f32 %v932, 0.00390625
      %v953 = vmul.f32 %v935, 0.00390625
      %v954 = vmul.f32 %v938, 0.00390625
      %v955 = vsub.f32 %v827, %v939
      %v956 = vsub.f32 %v828, %v939
      %v957 = vsub.f32 %v829, %v940
      %v958 = vsub.f32 %v830, %v940
      %v959 = vsub.f32 %v831, %v941
      %v960 = vsub.f32 %v832, %v941
      %v961 = vsub.f32 %v833, %v942
      %v962 = vsub.f32 %v834, %v942
      %v963 = vsub.f32 %v835, %v943
      %v964 = vsub.f32 %v836, %v943
      %v965 = vsub.f32 %v837, %v944
      %v966 = vsub.f32 %v838, %v944
      %v967 = vsub.f32 %v839, %v945
      %v968 = vsub.f32 %v840, %v945
      %v969 = vsub.f32 %v841, %v946
      %v970 = vsub.f32 %v842, %v946
      %v971 = vsub.f32 %v843, %v947
      %v972 = vsub.f32 %v844, %v947
      %v973 = vsub.f32 %v845, %v948
      %v974 = vsub.f32 %v846, %v948
      %v975 = vsub.f32 %v847, %v949
      %v976 = vsub.f32 %v848, %v949
      %v977 = vsub.f32 %v849, %v950
      %v978 = vsub.f32 %v850, %v950
      %v979 = vsub.f32 %v851, %v951
      %v980 = vsub.f32 %v852, %v951
      %v981 = vsub.f32 %v853, %v952
      %v982 = vsub.f32 %v854, %v952
      %v983 = vsub.f32 %v855, %v953
      %v984 = vsub.f32 %v856, %v953
      %v985 = vsub.f32 %v857, %v954
      %v986 = vsub.f32 %v858, %v954
      %v987 = vmul.f32 %v955, %v955
      %v988 = vmul.f32 %v956, %v956
      %v989 = vmul.f32 %v957, %v957
      %v990 = vmul.f32 %v958, %v958
      %v991 = vmul.f32 %v959, %v959
      %v992 = vmul.f32 %v960, %v960
      %v993 = vmul.f32 %v961, %v961
      %v994 = vmul.f32 %v962, %v962
      %v995 = vmul.f32 %v963, %v963
      %v996 = vmul.f32 %v964, %v964
      %v997 = vmul.f32 %v965, %v965
      %v998 = vmul.f32 %v966, %v966
      %v999 = vmul.f32 %v967, %v967
      %v1000 = vmul.f32 %v968, %v968
      %v1001 = vmul.f32 %v969, %v969
      %v1002 = vmul.f32 %v970, %v970
      %v1003 = vmul.f32 %v971, %v971
      %v1004 = vmul.f32 %v972, %v972
      %v1005 = vmul.f32 %v973, %v973
      %v1006 = vmul.f32 %v974, %v974
      %v1007 = vmul.f32 %v975, %v975
      %v1008 = vmul.f32 %v976, %v976
      %v1009 = vmul.f32 %v977, %v977
      %v1010 = vmul.f32 %v978, %v978
      %v1011 = vmul.f32 %v979, %v979
      %v1012 = vmul.f32 %v980, %v980
      %v1013 = vmul.f32 %v981, %v981
      %v1014 = vmul.f32 %v982, %v982
      %v1015 = vmul.f32 %v983, %v983
      %v1016 = vmul.f32 %v984, %v984
      %v1017 = vmul.f32 %v985, %v985
      %v1018 = vmul.f32 %v986, %v986
      %v1019 = vadd.f32 %v987, %v988
      %1020 = vadd.xlane.f32.xlu0 %v1019
      %v1021 = vpop.xlane.xlu0 %1020
      %v1022 = vadd.f32 %v989, %v990
      %1023 = vadd.xlane.f32.xlu0 %v1022
      %v1024 = vpop.xlane.xlu0 %1023
      %v1025 = vadd.f32 %v991, %v992
      %1026 = vadd.xlane.f32.xlu0 %v1025
      %v1027 = vpop.xlane.xlu0 %1026
      %v1028 = vadd.f32 %v993, %v994
      %1029 = vadd.xlane.f32.xlu0 %v1028
      %v1030 = vpop.xlane.xlu0 %1029
      %v1031 = vadd.f32 %v995, %v996
      %1032 = vadd.xlane.f32.xlu0 %v1031
      %v1033 = vpop.xlane.xlu0 %1032
      %v1034 = vadd.f32 %v997, %v998
      %1035 = vadd.xlane.f32.xlu0 %v1034
      %v1036 = vpop.xlane.xlu0 %1035
      %v1037 = vadd.f32 %v999, %v1000
      %1038 = vadd.xlane.f32.xlu0 %v1037
      %v1039 = vpop.xlane.xlu0 %1038
      %v1040 = vadd.f32 %v1001, %v1002
      %1041 = vadd.xlane.f32.xlu0 %v1040
      %v1042 = vpop.xlane.xlu0 %1041
      %v1043 = vadd.f32 %v1003, %v1004
      %1044 = vadd.xlane.f32.xlu0 %v1043
      %v1045 = vpop.xlane.xlu0 %1044
      %v1046 = vadd.f32 %v1005, %v1006
      %1047 = vadd.xlane.f32.xlu0 %v1046
      %v1048 = vpop.xlane.xlu0 %1047
      %v1049 = vadd.f32 %v1007, %v1008
      %1050 = vadd.xlane.f32.xlu0 %v1049
      %v1051 = vpop.xlane.xlu0 %1050
      %v1052 = vadd.f32 %v1009, %v1010
      %1053 = vadd.xlane.f32.xlu0 %v1052
      %v1054 = vpop.xlane.xlu0 %1053
      %v1055 = vadd.f32 %v1011, %v1012
      %1056 = vadd.xlane.f32.xlu0 %v1055
      %v1057 = vpop.xlane.xlu0 %1056
      %v1058 = vadd.f32 %v1013, %v1014
      %1059 = vadd.xlane.f32.xlu0 %v1058
      %v1060 = vpop.xlane.xlu0 %1059
      %v1061 = vadd.f32 %v1015, %v1016
      %1062 = vadd.xlane.f32.xlu0 %v1061
      %v1063 = vpop.xlane.xlu0 %1062
      %v1064 = vadd.f32 %v1017, %v1018
      %1065 = vadd.xlane.f32.xlu0 %v1064
      %v1066 = vpop.xlane.xlu0 %1065
      %v1067 = vmul.f32 %v1021, 0.00390625
      %v1068 = vmul.f32 %v1024, 0.00390625
      %v1069 = vmul.f32 %v1027, 0.00390625
      %v1070 = vmul.f32 %v1030, 0.00390625
      %v1071 = vmul.f32 %v1033, 0.00390625
      %v1072 = vmul.f32 %v1036, 0.00390625
      %v1073 = vmul.f32 %v1039, 0.00390625
      %v1074 = vmul.f32 %v1042, 0.00390625
      %v1075 = vmul.f32 %v1045, 0.00390625
      %v1076 = vmul.f32 %v1048, 0.00390625
      %v1077 = vmul.f32 %v1051, 0.00390625
      %v1078 = vmul.f32 %v1054, 0.00390625
      %v1079 = vmul.f32 %v1057, 0.00390625
      %v1080 = vmul.f32 %v1060, 0.00390625
      %v1081 = vmul.f32 %v1063, 0.00390625
      %v1082 = vmul.f32 %v1066, 0.00390625
      %v1083 = vadd.f32 %v1067, 1e-05
      %v1084 = vadd.f32 %v1068, 1e-05
      %v1085 = vadd.f32 %v1069, 1e-05
      %v1086 = vadd.f32 %v1070, 1e-05
      %v1087 = vadd.f32 %v1071, 1e-05
      %v1088 = vadd.f32 %v1072, 1e-05
      %v1089 = vadd.f32 %v1073, 1e-05
      %v1090 = vadd.f32 %v1074, 1e-05
      %v1091 = vadd.f32 %v1075, 1e-05
      %v1092 = vadd.f32 %v1076, 1e-05
      %v1093 = vadd.f32 %v1077, 1e-05
      %v1094 = vadd.f32 %v1078, 1e-05
      %v1095 = vadd.f32 %v1079, 1e-05
      %v1096 = vadd.f32 %v1080, 1e-05
      %v1097 = vadd.f32 %v1081, 1e-05
      %v1098 = vadd.f32 %v1082, 1e-05
      %v1099 = vrsqrt.pop %v1083
      %v1100 = vrsqrt.pop %v1084
      %v1101 = vrsqrt.pop %v1085
      %v1102 = vrsqrt.pop %v1086
      %v1103 = vrsqrt.pop %v1087
      %v1104 = vrsqrt.pop %v1088
      %v1105 = vrsqrt.pop %v1089
      %v1106 = vrsqrt.pop %v1090
      %v1107 = vrsqrt.pop %v1091
      %v1108 = vrsqrt.pop %v1092
      %v1109 = vrsqrt.pop %v1093
      %v1110 = vrsqrt.pop %v1094
      %v1111 = vrsqrt.pop %v1095
      %v1112 = vrsqrt.pop %v1096
      %v1113 = vrsqrt.pop %v1097
      %v1114 = vrsqrt.pop %v1098
      %v1115 = vmul.f32 %v955, %v1099
      %v1116 = vmul.f32 %v956, %v1099
      %v1117 = vmul.f32 %v957, %v1100
      %v1118 = vmul.f32 %v958, %v1100
      %v1119 = vmul.f32 %v959, %v1101
      %v1120 = vmul.f32 %v960, %v1101
      %v1121 = vmul.f32 %v961, %v1102
      %v1122 = vmul.f32 %v962, %v1102
      %v1123 = vmul.f32 %v963, %v1103
      %v1124 = vmul.f32 %v964, %v1103
      %v1125 = vmul.f32 %v965, %v1104
      %v1126 = vmul.f32 %v966, %v1104
      %v1127 = vmul.f32 %v967, %v1105
      %v1128 = vmul.f32 %v968, %v1105
      %v1129 = vmul.f32 %v969, %v1106
      %v1130 = vmul.f32 %v970, %v1106
      %v1131 = vmul.f32 %v971, %v1107
      %v1132 = vmul.f32 %v972, %v1107
      %v1133 = vmul.f32 %v973, %v1108
      %v1134 = vmul.f32 %v974, %v1108
      %v1135 = vmul.f32 %v975, %v1109
      %v1136 = vmul.f32 %v976, %v1109
      %v1137 = vmul.f32 %v977, %v1110
      %v1138 = vmul.f32 %v978, %v1110
      %v1139 = vmul.f32 %v979, %v1111
      %v1140 = vmul.f32 %v980, %v1111
      %v1141 = vmul.f32 %v981, %v1112
      %v1142 = vmul.f32 %v982, %v1112
      %v1143 = vmul.f32 %v983, %v1113
      %v1144 = vmul.f32 %v984, %v1113
      %v1145 = vmul.f32 %v985, %v1114
      %v1146 = vmul.f32 %v986, %v1114
      %v1147 = vld [vmem:[%s4] sm:$0x3]
      %v1149 = vlaneseq
      %v1150 = vshrl.u32 %v1149, 7
      %v1151 = vsub.s32 0, %v1150
      %v1152 = vrot.slane %v1147, %v1151
      %v1153 = vlaneseq
      %v1154 = vshrl.u32 %v1153, 7
      %v1155 = vsub.s32 1, %v1154
      %v1156 = vrot.slane %v1147, %v1155
      %v1159 = vmul.f32 %v1115, %v1152
      %v1160 = vmul.f32 %v1116, %v1156
      %v1161 = vmul.f32 %v1117, %v1152
      %v1162 = vmul.f32 %v1118, %v1156
      %v1163 = vmul.f32 %v1119, %v1152
      %v1164 = vmul.f32 %v1120, %v1156
      %v1165 = vmul.f32 %v1121, %v1152
      %v1166 = vmul.f32 %v1122, %v1156
      %v1167 = vmul.f32 %v1123, %v1152
      %v1168 = vmul.f32 %v1124, %v1156
      %v1169 = vmul.f32 %v1125, %v1152
      %v1170 = vmul.f32 %v1126, %v1156
      %v1171 = vmul.f32 %v1127, %v1152
      %v1172 = vmul.f32 %v1128, %v1156
      %v1173 = vmul.f32 %v1129, %v1152
      %v1174 = vmul.f32 %v1130, %v1156
      %v1175 = vmul.f32 %v1131, %v1152
      %v1176 = vmul.f32 %v1132, %v1156
      %v1177 = vmul.f32 %v1133, %v1152
      %v1178 = vmul.f32 %v1134, %v1156
      %v1179 = vmul.f32 %v1135, %v1152
      %v1180 = vmul.f32 %v1136, %v1156
      %v1181 = vmul.f32 %v1137, %v1152
      %v1182 = vmul.f32 %v1138, %v1156
      %v1183 = vmul.f32 %v1139, %v1152
      %v1184 = vmul.f32 %v1140, %v1156
      %v1185 = vmul.f32 %v1141, %v1152
      %v1186 = vmul.f32 %v1142, %v1156
      %v1187 = vmul.f32 %v1143, %v1152
      %v1188 = vmul.f32 %v1144, %v1156
      %v1189 = vmul.f32 %v1145, %v1152
      %v1190 = vmul.f32 %v1146, %v1156
      %v1191 = vld [vmem:[%s5] sm:$0x3]
      %v1193 = vlaneseq
      %v1194 = vshrl.u32 %v1193, 7
      %v1195 = vsub.s32 0, %v1194
      %v1196 = vrot.slane %v1191, %v1195
      %v1197 = vlaneseq
      %v1198 = vshrl.u32 %v1197, 7
      %v1199 = vsub.s32 1, %v1198
      %v1200 = vrot.slane %v1191, %v1199
      %v1203 = vadd.f32 %v1159, %v1196
      %v1204 = vadd.f32 %v1160, %v1200
      %v1205 = vadd.f32 %v1161, %v1196
      %v1206 = vadd.f32 %v1162, %v1200
      %v1207 = vadd.f32 %v1163, %v1196
      %v1208 = vadd.f32 %v1164, %v1200
      %v1209 = vadd.f32 %v1165, %v1196
      %v1210 = vadd.f32 %v1166, %v1200
      %v1211 = vadd.f32 %v1167, %v1196
      %v1212 = vadd.f32 %v1168, %v1200
      %v1213 = vadd.f32 %v1169, %v1196
      %v1214 = vadd.f32 %v1170, %v1200
      %v1215 = vadd.f32 %v1171, %v1196
      %v1216 = vadd.f32 %v1172, %v1200
      %v1217 = vadd.f32 %v1173, %v1196
      %v1218 = vadd.f32 %v1174, %v1200
      %v1219 = vadd.f32 %v1175, %v1196
      %v1220 = vadd.f32 %v1176, %v1200
      %v1221 = vadd.f32 %v1177, %v1196
      %v1222 = vadd.f32 %v1178, %v1200
      %v1223 = vadd.f32 %v1179, %v1196
      %v1224 = vadd.f32 %v1180, %v1200
      %v1225 = vadd.f32 %v1181, %v1196
      %v1226 = vadd.f32 %v1182, %v1200
      %v1227 = vadd.f32 %v1183, %v1196
      %v1228 = vadd.f32 %v1184, %v1200
      %v1229 = vadd.f32 %v1185, %v1196
      %v1230 = vadd.f32 %v1186, %v1200
      %v1231 = vadd.f32 %v1187, %v1196
      %v1232 = vadd.f32 %v1188, %v1200
      %v1233 = vadd.f32 %v1189, %v1196
      %v1234 = vadd.f32 %v1190, %v1200
      %v1235 = vpack.c.bf16 %v1205, %v1203
      %v1236 = vpack.c.bf16 %v1206, %v1204
      %v1237 = vpack.c.bf16 %v1209, %v1207
      %v1238 = vpack.c.bf16 %v1210, %v1208
      %v1239 = vpack.c.bf16 %v1213, %v1211
      %v1240 = vpack.c.bf16 %v1214, %v1212
      %v1241 = vpack.c.bf16 %v1217, %v1215
      %v1242 = vpack.c.bf16 %v1218, %v1216
      %v1243 = vpack.c.bf16 %v1221, %v1219
      %v1244 = vpack.c.bf16 %v1222, %v1220
      %v1245 = vpack.c.bf16 %v1225, %v1223
      %v1246 = vpack.c.bf16 %v1226, %v1224
      %v1247 = vpack.c.bf16 %v1229, %v1227
      %v1248 = vpack.c.bf16 %v1230, %v1228
      %v1249 = vpack.c.bf16 %v1233, %v1231
      %v1250 = vpack.c.bf16 %v1234, %v1232
      %v1251 = vld [vmem:[%s6] sm:$0xff]
      %v1252 = vld [vmem:[%s6 + $0x8] sm:$0xff]
      %v1253 = vld [vmem:[%s6 + $0x10] sm:$0xff]
      %v1254 = vld [vmem:[%s6 + $0x18] sm:$0xff]
      %v1255 = vld [vmem:[%s6 + $0x20] sm:$0xff]
      %v1256 = vld [vmem:[%s6 + $0x28] sm:$0xff]
      %v1257 = vld [vmem:[%s6 + $0x30] sm:$0xff]
      %v1258 = vld [vmem:[%s6 + $0x38] sm:$0xff]
      %v1259 = vld [vmem:[%s6 + $0x40] sm:$0xff]
      %v1260 = vld [vmem:[%s6 + $0x48] sm:$0xff]
      %v1261 = vld [vmem:[%s6 + $0x50] sm:$0xff]
      %v1262 = vld [vmem:[%s6 + $0x58] sm:$0xff]
      %v1263 = vld [vmem:[%s6 + $0x60] sm:$0xff]
      %v1264 = vld [vmem:[%s6 + $0x68] sm:$0xff]
      %v1265 = vld [vmem:[%s6 + $0x70] sm:$0xff]
      %v1266 = vld [vmem:[%s6 + $0x78] sm:$0xff]
      %v1267 = vld [vmem:[%s6 + $0x80] sm:$0xff]
      %v1268 = vld [vmem:[%s6 + $0x88] sm:$0xff]
      %v1269 = vld [vmem:[%s6 + $0x90] sm:$0xff]
      %v1270 = vld [vmem:[%s6 + $0x98] sm:$0xff]
      %v1271 = vld [vmem:[%s6 + $0xa0] sm:$0xff]
      %v1272 = vld [vmem:[%s6 + $0xa8] sm:$0xff]
      %v1273 = vld [vmem:[%s6 + $0xb0] sm:$0xff]
      %v1274 = vld [vmem:[%s6 + $0xb8] sm:$0xff]
      %v1275 = vld [vmem:[%s6 + $0xc0] sm:$0xff]
      %v1276 = vld [vmem:[%s6 + $0xc8] sm:$0xff]
      %v1277 = vld [vmem:[%s6 + $0xd0] sm:$0xff]
      %v1278 = vld [vmem:[%s6 + $0xd8] sm:$0xff]
      %v1279 = vld [vmem:[%s6 + $0xe0] sm:$0xff]
      %v1280 = vld [vmem:[%s6 + $0xe8] sm:$0xff]
      %v1281 = vld [vmem:[%s6 + $0xf0] sm:$0xff]
      %v1282 = vld [vmem:[%s6 + $0xf8] sm:$0xff]
      %v1283 = vld [vmem:[%s6 + $0x100] sm:$0xff]
      %v1284 = vld [vmem:[%s6 + $0x108] sm:$0xff]
      %v1285 = vld [vmem:[%s6 + $0x110] sm:$0xff]
      %v1286 = vld [vmem:[%s6 + $0x118] sm:$0xff]
      %v1287 = vld [vmem:[%s6 + $0x120] sm:$0xff]
      %v1288 = vld [vmem:[%s6 + $0x128] sm:$0xff]
      %v1289 = vld [vmem:[%s6 + $0x130] sm:$0xff]
      %v1290 = vld [vmem:[%s6 + $0x138] sm:$0xff]
      %v1291 = vld [vmem:[%s6 + $0x140] sm:$0xff]
      %v1292 = vld [vmem:[%s6 + $0x148] sm:$0xff]
      %v1293 = vld [vmem:[%s6 + $0x150] sm:$0xff]
      %v1294 = vld [vmem:[%s6 + $0x158] sm:$0xff]
      %v1295 = vld [vmem:[%s6 + $0x160] sm:$0xff]
      %v1296 = vld [vmem:[%s6 + $0x168] sm:$0xff]
      %v1297 = vld [vmem:[%s6 + $0x170] sm:$0xff]
      %v1298 = vld [vmem:[%s6 + $0x178] sm:$0xff]
      %v1299 = vld [vmem:[%s6 + $0x180] sm:$0xff]
      %v1300 = vld [vmem:[%s6 + $0x188] sm:$0xff]
      %v1301 = vld [vmem:[%s6 + $0x190] sm:$0xff]
      %v1302 = vld [vmem:[%s6 + $0x198] sm:$0xff]
      %v1303 = vld [vmem:[%s6 + $0x1a0] sm:$0xff]
      %v1304 = vld [vmem:[%s6 + $0x1a8] sm:$0xff]
      %v1305 = vld [vmem:[%s6 + $0x1b0] sm:$0xff]
      %v1306 = vld [vmem:[%s6 + $0x1b8] sm:$0xff]
      %v1307 = vld [vmem:[%s6 + $0x1c0] sm:$0xff]
      %v1308 = vld [vmem:[%s6 + $0x1c8] sm:$0xff]
      %v1309 = vld [vmem:[%s6 + $0x1d0] sm:$0xff]
      %v1310 = vld [vmem:[%s6 + $0x1d8] sm:$0xff]
      %v1311 = vld [vmem:[%s6 + $0x1e0] sm:$0xff]
      %v1312 = vld [vmem:[%s6 + $0x1e8] sm:$0xff]
      %v1313 = vld [vmem:[%s6 + $0x1f0] sm:$0xff]
      %v1314 = vld [vmem:[%s6 + $0x1f8] sm:$0xff]
      %v1315 = vld [vmem:[%s7] sm:$0xf]
      %v1317 = vlaneseq
      %v1318 = vshrl.u32 %v1317, 7
      %v1319 = vsub.s32 0, %v1318
      %v1320 = vrot.slane %v1315, %v1319
      %v1321 = vlaneseq
      %v1322 = vshrl.u32 %v1321, 7
      %v1323 = vsub.s32 1, %v1322
      %v1324 = vrot.slane %v1315, %v1323
      %v1325 = vlaneseq
      %v1326 = vshrl.u32 %v1325, 7
      %v1327 = vsub.s32 2, %v1326
      %v1328 = vrot.slane %v1315, %v1327
      %v1329 = vlaneseq
      %v1330 = vshrl.u32 %v1329, 7
      %v1331 = vsub.s32 3, %v1330
      %v1332 = vrot.slane %v1315, %v1331
      %v1401 = vunpack.c.l.b16 %v1251
      %v1402 = vunpack.c.h.b16 %v1251
      %v1403 = vunpack.c.l.b16 %v1252
      %v1404 = vunpack.c.h.b16 %v1252
      %v1405 = vunpack.c.l.b16 %v1253
      %v1406 = vunpack.c.h.b16 %v1253
      %v1407 = vunpack.c.l.b16 %v1254
      %v1408 = vunpack.c.h.b16 %v1254
      %v1409 = vunpack.c.l.b16 %v1255
      %v1410 = vunpack.c.h.b16 %v1255
      %v1411 = vunpack.c.l.b16 %v1256
      %v1412 = vunpack.c.h.b16 %v1256
      %v1413 = vunpack.c.l.b16 %v1257
      %v1414 = vunpack.c.h.b16 %v1257
      %v1415 = vunpack.c.l.b16 %v1258
      %v1416 = vunpack.c.h.b16 %v1258
      %v1417 = vunpack.c.l.b16 %v1259
      %v1418 = vunpack.c.h.b16 %v1259
      %v1419 = vunpack.c.l.b16 %v1260
      %v1420 = vunpack.c.h.b16 %v1260
      %v1421 = vunpack.c.l.b16 %v1261
      %v1422 = vunpack.c.h.b16 %v1261
      %v1423 = vunpack.c.l.b16 %v1262
      %v1424 = vunpack.c.h.b16 %v1262
      %v1425 = vunpack.c.l.b16 %v1263
      %v1426 = vunpack.c.h.b16 %v1263
      %v1427 = vunpack.c.l.b16 %v1264
      %v1428 = vunpack.c.h.b16 %v1264
      %v1429 = vunpack.c.l.b16 %v1265
      %v1430 = vunpack.c.h.b16 %v1265
      %v1431 = vunpack.c.l.b16 %v1266
      %v1432 = vunpack.c.h.b16 %v1266
      %v1433 = vunpack.c.l.b16 %v1267
      %v1434 = vunpack.c.h.b16 %v1267
      %v1435 = vunpack.c.l.b16 %v1268
      %v1436 = vunpack.c.h.b16 %v1268
      %v1437 = vunpack.c.l.b16 %v1269
      %v1438 = vunpack.c.h.b16 %v1269
      %v1439 = vunpack.c.l.b16 %v1270
      %v1440 = vunpack.c.h.b16 %v1270
      %v1441 = vunpack.c.l.b16 %v1271
      %v1442 = vunpack.c.h.b16 %v1271
      %v1443 = vunpack.c.l.b16 %v1272
      %v1444 = vunpack.c.h.b16 %v1272
      %v1445 = vunpack.c.l.b16 %v1273
      %v1446 = vunpack.c.h.b16 %v1273
      %v1447 = vunpack.c.l.b16 %v1274
      %v1448 = vunpack.c.h.b16 %v1274
      %v1449 = vunpack.c.l.b16 %v1275
      %v1450 = vunpack.c.h.b16 %v1275
      %v1451 = vunpack.c.l.b16 %v1276
      %v1452 = vunpack.c.h.b16 %v1276
      %v1453 = vunpack.c.l.b16 %v1277
      %v1454 = vunpack.c.h.b16 %v1277
      %v1455 = vunpack.c.l.b16 %v1278
      %v1456 = vunpack.c.h.b16 %v1278
      %v1457 = vunpack.c.l.b16 %v1279
      %v1458 = vunpack.c.h.b16 %v1279
      %v1459 = vunpack.c.l.b16 %v1280
      %v1460 = vunpack.c.h.b16 %v1280
      %v1461 = vunpack.c.l.b16 %v1281
      %v1462 = vunpack.c.h.b16 %v1281
      %v1463 = vunpack.c.l.b16 %v1282
      %v1464 = vunpack.c.h.b16 %v1282
      %v1465 = vunpack.c.l.b16 %v1283
      %v1466 = vunpack.c.h.b16 %v1283
      %v1467 = vunpack.c.l.b16 %v1284
      %v1468 = vunpack.c.h.b16 %v1284
      %v1469 = vunpack.c.l.b16 %v1285
      %v1470 = vunpack.c.h.b16 %v1285
      %v1471 = vunpack.c.l.b16 %v1286
      %v1472 = vunpack.c.h.b16 %v1286
      %v1473 = vunpack.c.l.b16 %v1287
      %v1474 = vunpack.c.h.b16 %v1287
      %v1475 = vunpack.c.l.b16 %v1288
      %v1476 = vunpack.c.h.b16 %v1288
      %v1477 = vunpack.c.l.b16 %v1289
      %v1478 = vunpack.c.h.b16 %v1289
      %v1479 = vunpack.c.l.b16 %v1290
      %v1480 = vunpack.c.h.b16 %v1290
      %v1481 = vunpack.c.l.b16 %v1291
      %v1482 = vunpack.c.h.b16 %v1291
      %v1483 = vunpack.c.l.b16 %v1292
      %v1484 = vunpack.c.h.b16 %v1292
      %v1485 = vunpack.c.l.b16 %v1293
      %v1486 = vunpack.c.h.b16 %v1293
      %v1487 = vunpack.c.l.b16 %v1294
      %v1488 = vunpack.c.h.b16 %v1294
      %v1489 = vunpack.c.l.b16 %v1295
      %v1490 = vunpack.c.h.b16 %v1295
      %v1491 = vunpack.c.l.b16 %v1296
      %v1492 = vunpack.c.h.b16 %v1296
      %v1493 = vunpack.c.l.b16 %v1297
      %v1494 = vunpack.c.h.b16 %v1297
      %v1495 = vunpack.c.l.b16 %v1298
      %v1496 = vunpack.c.h.b16 %v1298
      %v1497 = vunpack.c.l.b16 %v1299
      %v1498 = vunpack.c.h.b16 %v1299
      %v1499 = vunpack.c.l.b16 %v1300
      %v1500 = vunpack.c.h.b16 %v1300
      %v1501 = vunpack.c.l.b16 %v1301
      %v1502 = vunpack.c.h.b16 %v1301
      %v1503 = vunpack.c.l.b16 %v1302
      %v1504 = vunpack.c.h.b16 %v1302
      %v1505 = vunpack.c.l.b16 %v1303
      %v1506 = vunpack.c.h.b16 %v1303
      %v1507 = vunpack.c.l.b16 %v1304
      %v1508 = vunpack.c.h.b16 %v1304
      %v1509 = vunpack.c.l.b16 %v1305
      %v1510 = vunpack.c.h.b16 %v1305
      %v1511 = vunpack.c.l.b16 %v1306
      %v1512 = vunpack.c.h.b16 %v1306
      %v1513 = vunpack.c.l.b16 %v1307
      %v1514 = vunpack.c.h.b16 %v1307
      %v1515 = vunpack.c.l.b16 %v1308
      %v1516 = vunpack.c.h.b16 %v1308
      %v1517 = vunpack.c.l.b16 %v1309
      %v1518 = vunpack.c.h.b16 %v1309
      %v1519 = vunpack.c.l.b16 %v1310
      %v1520 = vunpack.c.h.b16 %v1310
      %v1521 = vunpack.c.l.b16 %v1311
      %v1522 = vunpack.c.h.b16 %v1311
      %v1523 = vunpack.c.l.b16 %v1312
      %v1524 = vunpack.c.h.b16 %v1312
      %v1525 = vunpack.c.l.b16 %v1313
      %v1526 = vunpack.c.h.b16 %v1313
      %v1527 = vunpack.c.l.b16 %v1314
      %v1528 = vunpack.c.h.b16 %v1314
      %v1529 = vpack.c.b16 %v1405, %v1401
      %v1530 = vpack.c.b16 %v1406, %v1402
      %v1531 = vpack.c.b16 %v1407, %v1403
      %v1532 = vpack.c.b16 %v1408, %v1404
      %v1533 = vpack.c.b16 %v1413, %v1409
      %v1534 = vpack.c.b16 %v1414, %v1410
      %v1535 = vpack.c.b16 %v1415, %v1411
      %v1536 = vpack.c.b16 %v1416, %v1412
      %v1537 = vpack.c.b16 %v1421, %v1417
      %v1538 = vpack.c.b16 %v1422, %v1418
      %v1539 = vpack.c.b16 %v1423, %v1419
      %v1540 = vpack.c.b16 %v1424, %v1420
      %v1541 = vpack.c.b16 %v1429, %v1425
      %v1542 = vpack.c.b16 %v1430, %v1426
      %v1543 = vpack.c.b16 %v1431, %v1427
      %v1544 = vpack.c.b16 %v1432, %v1428
      %v1545 = vpack.c.b16 %v1437, %v1433
      %v1546 = vpack.c.b16 %v1438, %v1434
      %v1547 = vpack.c.b16 %v1439, %v1435
      %v1548 = vpack.c.b16 %v1440, %v1436
      %v1549 = vpack.c.b16 %v1445, %v1441
      %v1550 = vpack.c.b16 %v1446, %v1442
      %v1551 = vpack.c.b16 %v1447, %v1443
      %v1552 = vpack.c.b16 %v1448, %v1444
      %v1553 = vpack.c.b16 %v1453, %v1449
      %v1554 = vpack.c.b16 %v1454, %v1450
      %v1555 = vpack.c.b16 %v1455, %v1451
      %v1556 = vpack.c.b16 %v1456, %v1452
      %v1557 = vpack.c.b16 %v1461, %v1457
      %v1558 = vpack.c.b16 %v1462, %v1458
      %v1559 = vpack.c.b16 %v1463, %v1459
      %v1560 = vpack.c.b16 %v1464, %v1460
      %v1561 = vpack.c.b16 %v1469, %v1465
      %v1562 = vpack.c.b16 %v1470, %v1466
      %v1563 = vpack.c.b16 %v1471, %v1467
      %v1564 = vpack.c.b16 %v1472, %v1468
      %v1565 = vpack.c.b16 %v1477, %v1473
      %v1566 = vpack.c.b16 %v1478, %v1474
      %v1567 = vpack.c.b16 %v1479, %v1475
      %v1568 = vpack.c.b16 %v1480, %v1476
      %v1569 = vpack.c.b16 %v1485, %v1481
      %v1570 = vpack.c.b16 %v1486, %v1482
      %v1571 = vpack.c.b16 %v1487, %v1483
      %v1572 = vpack.c.b16 %v1488, %v1484
      %v1573 = vpack.c.b16 %v1493, %v1489
      %v1574 = vpack.c.b16 %v1494, %v1490
      %v1575 = vpack.c.b16 %v1495, %v1491
      %v1576 = vpack.c.b16 %v1496, %v1492
      %v1577 = vpack.c.b16 %v1501, %v1497
      %v1578 = vpack.c.b16 %v1502, %v1498
      %v1579 = vpack.c.b16 %v1503, %v1499
      %v1580 = vpack.c.b16 %v1504, %v1500
      %v1581 = vpack.c.b16 %v1509, %v1505
      %v1582 = vpack.c.b16 %v1510, %v1506
      %v1583 = vpack.c.b16 %v1511, %v1507
      %v1584 = vpack.c.b16 %v1512, %v1508
      %v1585 = vpack.c.b16 %v1517, %v1513
      %v1586 = vpack.c.b16 %v1518, %v1514
      %v1587 = vpack.c.b16 %v1519, %v1515
      %v1588 = vpack.c.b16 %v1520, %v1516
      %v1589 = vpack.c.b16 %v1525, %v1521
      %v1590 = vpack.c.b16 %v1526, %v1522
      %v1591 = vpack.c.b16 %v1527, %v1523
      %v1592 = vpack.c.b16 %v1528, %v1524
      %1657 = vmatprep.subr.bf16.mxu0 %v1558
      %1658 = vmatpush1.bf16.msra.mxu0 %v1557
      %1659 = vmatprep.subr.bf16.mxu0 %v1554
      %1660 = vmatpush1.bf16.msra.mxu0 %v1553
      %1661 = vmatprep.subr.bf16.mxu0 %v1550
      %1662 = vmatpush1.bf16.msra.mxu0 %v1549
      %1663 = vmatprep.subr.bf16.mxu0 %v1546
      %1664 = vmatpush1.bf16.msra.mxu0 %v1545
      %1665 = vmatprep.subr.bf16.mxu0 %v1542
      %1666 = vmatpush1.bf16.msra.mxu0 %v1541
      %1667 = vmatprep.subr.bf16.mxu0 %v1538
      %1668 = vmatpush1.bf16.msra.mxu0 %v1537
      %1669 = vmatprep.subr.bf16.mxu0 %v1534
      %1670 = vmatpush1.bf16.msra.mxu0 %v1533
      %1671 = vmatprep.subr.bf16.mxu0 %v1530
      %1672 = vmatpush1.bf16.msra.mxu0 %v1529
      %1673 = vmatprep.subr.bf16.mxu0 %v1590
      %1674 = vmatpush2.bf16.msra.mxu0 %v1589
      %1675 = vmatprep.subr.bf16.mxu0 %v1586
      %1676 = vmatpush2.bf16.msra.mxu0 %v1585
      %1677 = vmatprep.subr.bf16.mxu0 %v1582
      %1678 = vmatpush2.bf16.msra.mxu0 %v1581
      %1679 = vmatprep.subr.bf16.mxu0 %v1578
      %1680 = vmatpush2.bf16.msra.mxu0 %v1577
      %1681 = vmatprep.subr.bf16.mxu0 %v1574
      %1682 = vmatpush2.bf16.msra.mxu0 %v1573
      %1683 = vmatprep.subr.bf16.mxu0 %v1570
      %1684 = vmatpush2.bf16.msra.mxu0 %v1569
      %1685 = vmatprep.subr.bf16.mxu0 %v1566
      %1686 = vmatpush2.bf16.msra.mxu0 %v1565
      %1687 = vmatprep.subr.bf16.mxu0 %v1562
      %1688 = vmatpush2.bf16.msra.mxu0 %v1561
      %1689 = vmatprep.mubr.bf16.mxu0 %v1236
      %1690 = vmatmul.mubr.bf16.gmra.mxu0 %v1235
      %v1691 = vpop.f32.mrf.mxu0
      %v1692 = vadd.f32 %v1320, %v1691
      %v1693 = vpop.f32.mrf.mxu0
      %v1694 = vadd.f32 %v1324, %v1693
      %v1695 = vpop.f32.mrf.mxu0
      %v1696 = vadd.f32 %v1320, %v1695
      %v1697 = vpop.f32.mrf.mxu0
      %v1698 = vadd.f32 %v1324, %v1697
      %1699 = vmatprep.mubr.bf16.mxu0 %v1238
      %1700 = vmatmul.mubr.bf16.gmra.mxu0 %v1237
      %v1701 = vpop.f32.mrf.mxu0
      %v1702 = vadd.f32 %v1320, %v1701
      %v1703 = vpop.f32.mrf.mxu0
      %v1704 = vadd.f32 %v1324, %v1703
      %v1705 = vpop.f32.mrf.mxu0
      %v1706 = vadd.f32 %v1320, %v1705
      %v1707 = vpop.f32.mrf.mxu0
      %v1708 = vadd.f32 %v1324, %v1707
      %1709 = vmatprep.mubr.bf16.mxu0 %v1240
      %1710 = vmatmul.mubr.bf16.gmra.mxu0 %v1239
      %v1711 = vpop.f32.mrf.mxu0
      %v1712 = vadd.f32 %v1320, %v1711
      %v1713 = vpop.f32.mrf.mxu0
      %v1714 = vadd.f32 %v1324, %v1713
      %v1715 = vpop.f32.mrf.mxu0
      %v1716 = vadd.f32 %v1320, %v1715
      %v1717 = vpop.f32.mrf.mxu0
      %v1718 = vadd.f32 %v1324, %v1717
      %1719 = vmatprep.mubr.bf16.mxu0 %v1242
      %1720 = vmatmul.mubr.bf16.gmra.mxu0 %v1241
      %v1721 = vpop.f32.mrf.mxu0
      %v1722 = vadd.f32 %v1320, %v1721
      %v1723 = vpop.f32.mrf.mxu0
      %v1724 = vadd.f32 %v1324, %v1723
      %v1725 = vpop.f32.mrf.mxu0
      %v1726 = vadd.f32 %v1320, %v1725
      %v1727 = vpop.f32.mrf.mxu0
      %v1728 = vadd.f32 %v1324, %v1727
      %1729 = vmatprep.mubr.bf16.mxu0 %v1244
      %1730 = vmatmul.mubr.bf16.gmra.mxu0 %v1243
      %v1731 = vpop.f32.mrf.mxu0
      %v1732 = vadd.f32 %v1320, %v1731
      %v1733 = vpop.f32.mrf.mxu0
      %v1734 = vadd.f32 %v1324, %v1733
      %v1735 = vpop.f32.mrf.mxu0
      %v1736 = vadd.f32 %v1320, %v1735
      %v1737 = vpop.f32.mrf.mxu0
      %v1738 = vadd.f32 %v1324, %v1737
      %1739 = vmatprep.mubr.bf16.mxu0 %v1246
      %1740 = vmatmul.mubr.bf16.gmra.mxu0 %v1245
      %v1741 = vpop.f32.mrf.mxu0
      %v1742 = vadd.f32 %v1320, %v1741
      %v1743 = vpop.f32.mrf.mxu0
      %v1744 = vadd.f32 %v1324, %v1743
      %v1745 = vpop.f32.mrf.mxu0
      %v1746 = vadd.f32 %v1320, %v1745
      %v1747 = vpop.f32.mrf.mxu0
      %v1748 = vadd.f32 %v1324, %v1747
      %1749 = vmatprep.mubr.bf16.mxu0 %v1248
      %1750 = vmatmul.mubr.bf16.gmra.mxu0 %v1247
      %v1751 = vpop.f32.mrf.mxu0
      %v1752 = vadd.f32 %v1320, %v1751
      %v1753 = vpop.f32.mrf.mxu0
      %v1754 = vadd.f32 %v1324, %v1753
      %v1755 = vpop.f32.mrf.mxu0
      %v1756 = vadd.f32 %v1320, %v1755
      %v1757 = vpop.f32.mrf.mxu0
      %v1758 = vadd.f32 %v1324, %v1757
      %1759 = vmatprep.mubr.bf16.mxu0 %v1250
      %1760 = vmatmul.mubr.bf16.gmra.mxu0 %v1249
      %v1761 = vpop.f32.mrf.mxu0
      %v1762 = vadd.f32 %v1320, %v1761
      %v1763 = vpop.f32.mrf.mxu0
      %v1764 = vadd.f32 %v1324, %v1763
      %v1765 = vpop.f32.mrf.mxu0
      %v1766 = vadd.f32 %v1320, %v1765
      %v1767 = vpop.f32.mrf.mxu0
      %v1768 = vadd.f32 %v1324, %v1767
      %1769 = vdwg.mxu0
      %1770 = vmatprep.subr.bf16.mxu0 %v1560
      %1771 = vmatpush1.bf16.msra.mxu0 %v1559
      %1772 = vmatprep.subr.bf16.mxu0 %v1556
      %1773 = vmatpush1.bf16.msra.mxu0 %v1555
      %1774 = vmatprep.subr.bf16.mxu0 %v1552
      %1775 = vmatpush1.bf16.msra.mxu0 %v1551
      %1776 = vmatprep.subr.bf16.mxu0 %v1548
      %1777 = vmatpush1.bf16.msra.mxu0 %v1547
      %1778 = vmatprep.subr.bf16.mxu0 %v1544
      %1779 = vmatpush1.bf16.msra.mxu0 %v1543
      %1780 = vmatprep.subr.bf16.mxu0 %v1540
      %1781 = vmatpush1.bf16.msra.mxu0 %v1539
      %1782 = vmatprep.subr.bf16.mxu0 %v1536
      %1783 = vmatpush1.bf16.msra.mxu0 %v1535
      %1784 = vmatprep.subr.bf16.mxu0 %v1532
      %1785 = vmatpush1.bf16.msra.mxu0 %v1531
      %1786 = vmatprep.subr.bf16.mxu0 %v1592
      %1787 = vmatpush2.bf16.msra.mxu0 %v1591
      %1788 = vmatprep.subr.bf16.mxu0 %v1588
      %1789 = vmatpush2.bf16.msra.mxu0 %v1587
      %1790 = vmatprep.subr.bf16.mxu0 %v1584
      %1791 = vmatpush2.bf16.msra.mxu0 %v1583
      %1792 = vmatprep.subr.bf16.mxu0 %v1580
      %1793 = vmatpush2.bf16.msra.mxu0 %v1579
      %1794 = vmatprep.subr.bf16.mxu0 %v1576
      %1795 = vmatpush2.bf16.msra.mxu0 %v1575
      %1796 = vmatprep.subr.bf16.mxu0 %v1572
      %1797 = vmatpush2.bf16.msra.mxu0 %v1571
      %1798 = vmatprep.subr.bf16.mxu0 %v1568
      %1799 = vmatpush2.bf16.msra.mxu0 %v1567
      %1800 = vmatprep.subr.bf16.mxu0 %v1564
      %1801 = vmatpush2.bf16.msra.mxu0 %v1563
      %1802 = vmatprep.mubr.bf16.mxu0 %v1236
      %1803 = vmatmul.mubr.bf16.gmra.mxu0 %v1235
      %v1804 = vpop.f32.mrf.mxu0
      %v1805 = vadd.f32 %v1328, %v1804
      %v1806 = vpop.f32.mrf.mxu0
      %v1807 = vadd.f32 %v1332, %v1806
      %v1808 = vpop.f32.mrf.mxu0
      %v1809 = vadd.f32 %v1328, %v1808
      %v1810 = vpop.f32.mrf.mxu0
      %v1811 = vadd.f32 %v1332, %v1810
      %1812 = vmatprep.mubr.bf16.mxu0 %v1238
      %1813 = vmatmul.mubr.bf16.gmra.mxu0 %v1237
      %v1814 = vpop.f32.mrf.mxu0
      %v1815 = vadd.f32 %v1328, %v1814
      %v1816 = vpop.f32.mrf.mxu0
      %v1817 = vadd.f32 %v1332, %v1816
      %v1818 = vpop.f32.mrf.mxu0
      %v1819 = vadd.f32 %v1328, %v1818
      %v1820 = vpop.f32.mrf.mxu0
      %v1821 = vadd.f32 %v1332, %v1820
      %1822 = vmatprep.mubr.bf16.mxu0 %v1240
      %1823 = vmatmul.mubr.bf16.gmra.mxu0 %v1239
      %v1824 = vpop.f32.mrf.mxu0
      %v1825 = vadd.f32 %v1328, %v1824
      %v1826 = vpop.f32.mrf.mxu0
      %v1827 = vadd.f32 %v1332, %v1826
      %v1828 = vpop.f32.mrf.mxu0
      %v1829 = vadd.f32 %v1328, %v1828
      %v1830 = vpop.f32.mrf.mxu0
      %v1831 = vadd.f32 %v1332, %v1830
      %1832 = vmatprep.mubr.bf16.mxu0 %v1242
      %1833 = vmatmul.mubr.bf16.gmra.mxu0 %v1241
      %v1834 = vpop.f32.mrf.mxu0
      %v1835 = vadd.f32 %v1328, %v1834
      %v1836 = vpop.f32.mrf.mxu0
      %v1837 = vadd.f32 %v1332, %v1836
      %v1838 = vpop.f32.mrf.mxu0
      %v1839 = vadd.f32 %v1328, %v1838
      %v1840 = vpop.f32.mrf.mxu0
      %v1841 = vadd.f32 %v1332, %v1840
      %1842 = vmatprep.mubr.bf16.mxu0 %v1244
      %1843 = vmatmul.mubr.bf16.gmra.mxu0 %v1243
      %v1844 = vpop.f32.mrf.mxu0
      %v1845 = vadd.f32 %v1328, %v1844
      %v1846 = vpop.f32.mrf.mxu0
      %v1847 = vadd.f32 %v1332, %v1846
      %v1848 = vpop.f32.mrf.mxu0
      %v1849 = vadd.f32 %v1328, %v1848
      %v1850 = vpop.f32.mrf.mxu0
      %v1851 = vadd.f32 %v1332, %v1850
      %1852 = vmatprep.mubr.bf16.mxu0 %v1246
      %1853 = vmatmul.mubr.bf16.gmra.mxu0 %v1245
      %v1854 = vpop.f32.mrf.mxu0
      %v1855 = vadd.f32 %v1328, %v1854
      %v1856 = vpop.f32.mrf.mxu0
      %v1857 = vadd.f32 %v1332, %v1856
      %v1858 = vpop.f32.mrf.mxu0
      %v1859 = vadd.f32 %v1328, %v1858
      %v1860 = vpop.f32.mrf.mxu0
      %v1861 = vadd.f32 %v1332, %v1860
      %1862 = vmatprep.mubr.bf16.mxu0 %v1248
      %1863 = vmatmul.mubr.bf16.gmra.mxu0 %v1247
      %v1864 = vpop.f32.mrf.mxu0
      %v1865 = vadd.f32 %v1328, %v1864
      %v1866 = vpop.f32.mrf.mxu0
      %v1867 = vadd.f32 %v1332, %v1866
      %v1868 = vpop.f32.mrf.mxu0
      %v1869 = vadd.f32 %v1328, %v1868
      %v1870 = vpop.f32.mrf.mxu0
      %v1871 = vadd.f32 %v1332, %v1870
      %1872 = vmatprep.mubr.bf16.mxu0 %v1250
      %1873 = vmatmul.mubr.bf16.gmra.mxu0 %v1249
      %v1874 = vpop.f32.mrf.mxu0
      %v1875 = vadd.f32 %v1328, %v1874
      %v1876 = vpop.f32.mrf.mxu0
      %v1877 = vadd.f32 %v1332, %v1876
      %v1878 = vpop.f32.mrf.mxu0
      %v1879 = vadd.f32 %v1328, %v1878
      %v1880 = vpop.f32.mrf.mxu0
      %v1881 = vadd.f32 %v1332, %v1880
      %1882 = vdwg.mxu0
      %v1883 = vmul.f32 %v1692, 0.5
      %v1884 = vmul.f32 %v1694, 0.5
      %v1885 = vmul.f32 %v1805, 0.5
      %v1886 = vmul.f32 %v1807, 0.5
      %v1887 = vmul.f32 %v1696, 0.5
      %v1888 = vmul.f32 %v1698, 0.5
      %v1889 = vmul.f32 %v1809, 0.5
      %v1890 = vmul.f32 %v1811, 0.5
      %v1891 = vmul.f32 %v1702, 0.5
      %v1892 = vmul.f32 %v1704, 0.5
      %v1893 = vmul.f32 %v1815, 0.5
      %v1894 = vmul.f32 %v1817, 0.5
      %v1895 = vmul.f32 %v1706, 0.5
      %v1896 = vmul.f32 %v1708, 0.5
      %v1897 = vmul.f32 %v1819, 0.5
      %v1898 = vmul.f32 %v1821, 0.5
      %v1899 = vmul.f32 %v1712, 0.5
      %v1900 = vmul.f32 %v1714, 0.5
      %v1901 = vmul.f32 %v1825, 0.5
      %v1902 = vmul.f32 %v1827, 0.5
      %v1903 = vmul.f32 %v1716, 0.5
      %v1904 = vmul.f32 %v1718, 0.5
      %v1905 = vmul.f32 %v1829, 0.5
      %v1906 = vmul.f32 %v1831, 0.5
      %v1907 = vmul.f32 %v1722, 0.5
      %v1908 = vmul.f32 %v1724, 0.5
      %v1909 = vmul.f32 %v1835, 0.5
      %v1910 = vmul.f32 %v1837, 0.5
      %v1911 = vmul.f32 %v1726, 0.5
      %v1912 = vmul.f32 %v1728, 0.5
      %v1913 = vmul.f32 %v1839, 0.5
      %v1914 = vmul.f32 %v1841, 0.5
      %v1915 = vmul.f32 %v1732, 0.5
      %v1916 = vmul.f32 %v1734, 0.5
      %v1917 = vmul.f32 %v1845, 0.5
      %v1918 = vmul.f32 %v1847, 0.5
      %v1919 = vmul.f32 %v1736, 0.5
      %v1920 = vmul.f32 %v1738, 0.5
      %v1921 = vmul.f32 %v1849, 0.5
      %v1922 = vmul.f32 %v1851, 0.5
      %v1923 = vmul.f32 %v1742, 0.5
      %v1924 = vmul.f32 %v1744, 0.5
      %v1925 = vmul.f32 %v1855, 0.5
      %v1926 = vmul.f32 %v1857, 0.5
      %v1927 = vmul.f32 %v1746, 0.5
      %v1928 = vmul.f32 %v1748, 0.5
      %v1929 = vmul.f32 %v1859, 0.5
      %v1930 = vmul.f32 %v1861, 0.5
      %v1931 = vmul.f32 %v1752, 0.5
      %v1932 = vmul.f32 %v1754, 0.5
      %v1933 = vmul.f32 %v1865, 0.5
      %v1934 = vmul.f32 %v1867, 0.5
      %v1935 = vmul.f32 %v1756, 0.5
      %v1936 = vmul.f32 %v1758, 0.5
      %v1937 = vmul.f32 %v1869, 0.5
      %v1938 = vmul.f32 %v1871, 0.5
      %v1939 = vmul.f32 %v1762, 0.5
      %v1940 = vmul.f32 %v1764, 0.5
      %v1941 = vmul.f32 %v1875, 0.5
      %v1942 = vmul.f32 %v1877, 0.5
      %v1943 = vmul.f32 %v1766, 0.5
      %v1944 = vmul.f32 %v1768, 0.5
      %v1945 = vmul.f32 %v1879, 0.5
      %v1946 = vmul.f32 %v1881, 0.5
      %v1947 = vmul.f32 %v1692, 0.70710677
      %v1948 = vmul.f32 %v1694, 0.70710677
      %v1949 = vmul.f32 %v1805, 0.70710677
      %v1950 = vmul.f32 %v1807, 0.70710677
      %v1951 = vmul.f32 %v1696, 0.70710677
      %v1952 = vmul.f32 %v1698, 0.70710677
      %v1953 = vmul.f32 %v1809, 0.70710677
      %v1954 = vmul.f32 %v1811, 0.70710677
      %v1955 = vmul.f32 %v1702, 0.70710677
      %v1956 = vmul.f32 %v1704, 0.70710677
      %v1957 = vmul.f32 %v1815, 0.70710677
      %v1958 = vmul.f32 %v1817, 0.70710677
      %v1959 = vmul.f32 %v1706, 0.70710677
      %v1960 = vmul.f32 %v1708, 0.70710677
      %v1961 = vmul.f32 %v1819, 0.70710677
      %v1962 = vmul.f32 %v1821, 0.70710677
      %v1963 = vmul.f32 %v1712, 0.70710677
      %v1964 = vmul.f32 %v1714, 0.70710677
      %v1965 = vmul.f32 %v1825, 0.70710677
      %v1966 = vmul.f32 %v1827, 0.70710677
      %v1967 = vmul.f32 %v1716, 0.70710677
      %v1968 = vmul.f32 %v1718, 0.70710677
      %v1969 = vmul.f32 %v1829, 0.70710677
      %v1970 = vmul.f32 %v1831, 0.70710677
      %v1971 = vmul.f32 %v1722, 0.70710677
      %v1972 = vmul.f32 %v1724, 0.70710677
      %v1973 = vmul.f32 %v1835, 0.70710677
      %v1974 = vmul.f32 %v1837, 0.70710677
      %v1975 = vmul.f32 %v1726, 0.70710677
      %v1976 = vmul.f32 %v1728, 0.70710677
      %v1977 = vmul.f32 %v1839, 0.70710677
      %v1978 = vmul.f32 %v1841, 0.70710677
      %v1979 = vmul.f32 %v1732, 0.70710677
      %v1980 = vmul.f32 %v1734, 0.70710677
      %v1981 = vmul.f32 %v1845, 0.70710677
      %v1982 = vmul.f32 %v1847, 0.70710677
      %v1983 = vmul.f32 %v1736, 0.70710677
      %v1984 = vmul.f32 %v1738, 0.70710677
      %v1985 = vmul.f32 %v1849, 0.70710677
      %v1986 = vmul.f32 %v1851, 0.70710677
      %v1987 = vmul.f32 %v1742, 0.70710677
      %v1988 = vmul.f32 %v1744, 0.70710677
      %v1989 = vmul.f32 %v1855, 0.70710677
      %v1990 = vmul.f32 %v1857, 0.70710677
      %v1991 = vmul.f32 %v1746, 0.70710677
      %v1992 = vmul.f32 %v1748, 0.70710677
      %v1993 = vmul.f32 %v1859, 0.70710677
      %v1994 = vmul.f32 %v1861, 0.70710677
      %v1995 = vmul.f32 %v1752, 0.70710677
      %v1996 = vmul.f32 %v1754, 0.70710677
      %v1997 = vmul.f32 %v1865, 0.70710677
      %v1998 = vmul.f32 %v1867, 0.70710677
      %v1999 = vmul.f32 %v1756, 0.70710677
      %v2000 = vmul.f32 %v1758, 0.70710677
      %v2001 = vmul.f32 %v1869, 0.70710677
      %v2002 = vmul.f32 %v1871, 0.70710677
      %v2003 = vmul.f32 %v1762, 0.70710677
      %v2004 = vmul.f32 %v1764, 0.70710677
      %v2005 = vmul.f32 %v1875, 0.70710677
      %v2006 = vmul.f32 %v1877, 0.70710677
      %v2007 = vmul.f32 %v1766, 0.70710677
      %v2008 = vmul.f32 %v1768, 0.70710677
      %v2009 = vmul.f32 %v1879, 0.70710677
      %v2010 = vmul.f32 %v1881, 0.70710677
      %vm2011 = vcmp.ge.f32.partialorder %v1947, 0.0
      %vm2012 = vcmp.ge.f32.partialorder %v1948, 0.0
      %vm2013 = vcmp.ge.f32.partialorder %v1949, 0.0
      %vm2014 = vcmp.ge.f32.partialorder %v1950, 0.0
      %vm2015 = vcmp.ge.f32.partialorder %v1951, 0.0
      %vm2016 = vcmp.ge.f32.partialorder %v1952, 0.0
      %vm2017 = vcmp.ge.f32.partialorder %v1953, 0.0
      %vm2018 = vcmp.ge.f32.partialorder %v1954, 0.0
      %vm2019 = vcmp.ge.f32.partialorder %v1955, 0.0
      %vm2020 = vcmp.ge.f32.partialorder %v1956, 0.0
      %vm2021 = vcmp.ge.f32.partialorder %v1957, 0.0
      %vm2022 = vcmp.ge.f32.partialorder %v1958, 0.0
      %vm2023 = vcmp.ge.f32.partialorder %v1959, 0.0
      %vm2024 = vcmp.ge.f32.partialorder %v1960, 0.0
      %vm2025 = vcmp.ge.f32.partialorder %v1961, 0.0
      %vm2026 = vcmp.ge.f32.partialorder %v1962, 0.0
      %vm2027 = vcmp.ge.f32.partialorder %v1963, 0.0
      %vm2028 = vcmp.ge.f32.partialorder %v1964, 0.0
      %vm2029 = vcmp.ge.f32.partialorder %v1965, 0.0
      %vm2030 = vcmp.ge.f32.partialorder %v1966, 0.0
      %vm2031 = vcmp.ge.f32.partialorder %v1967, 0.0
      %vm2032 = vcmp.ge.f32.partialorder %v1968, 0.0
      %vm2033 = vcmp.ge.f32.partialorder %v1969, 0.0
      %vm2034 = vcmp.ge.f32.partialorder %v1970, 0.0
      %vm2035 = vcmp.ge.f32.partialorder %v1971, 0.0
      %vm2036 = vcmp.ge.f32.partialorder %v1972, 0.0
      %vm2037 = vcmp.ge.f32.partialorder %v1973, 0.0
      %vm2038 = vcmp.ge.f32.partialorder %v1974, 0.0
      %vm2039 = vcmp.ge.f32.partialorder %v1975, 0.0
      %vm2040 = vcmp.ge.f32.partialorder %v1976, 0.0
      %vm2041 = vcmp.ge.f32.partialorder %v1977, 0.0
      %vm2042 = vcmp.ge.f32.partialorder %v1978, 0.0
      %vm2043 = vcmp.ge.f32.partialorder %v1979, 0.0
      %vm2044 = vcmp.ge.f32.partialorder %v1980, 0.0
      %vm2045 = vcmp.ge.f32.partialorder %v1981, 0.0
      %vm2046 = vcmp.ge.f32.partialorder %v1982, 0.0
      %vm2047 = vcmp.ge.f32.partialorder %v1983, 0.0
      %vm2048 = vcmp.ge.f32.partialorder %v1984, 0.0
      %vm2049 = vcmp.ge.f32.partialorder %v1985, 0.0
      %vm2050 = vcmp.ge.f32.partialorder %v1986, 0.0
      %vm2051 = vcmp.ge.f32.partialorder %v1987, 0.0
      %vm2052 = vcmp.ge.f32.partialorder %v1988, 0.0
      %vm2053 = vcmp.ge.f32.partialorder %v1989, 0.0
      %vm2054 = vcmp.ge.f32.partialorder %v1990, 0.0
      %vm2055 = vcmp.ge.f32.partialorder %v1991, 0.0
      %vm2056 = vcmp.ge.f32.partialorder %v1992, 0.0
      %vm2057 = vcmp.ge.f32.partialorder %v1993, 0.0
      %vm2058 = vcmp.ge.f32.partialorder %v1994, 0.0
      %vm2059 = vcmp.ge.f32.partialorder %v1995, 0.0
      %vm2060 = vcmp.ge.f32.partialorder %v1996, 0.0
      %vm2061 = vcmp.ge.f32.partialorder %v1997, 0.0
      %vm2062 = vcmp.ge.f32.partialorder %v1998, 0.0
      %vm2063 = vcmp.ge.f32.partialorder %v1999, 0.0
      %vm2064 = vcmp.ge.f32.partialorder %v2000, 0.0
      %vm2065 = vcmp.ge.f32.partialorder %v2001, 0.0
      %vm2066 = vcmp.ge.f32.partialorder %v2002, 0.0
      %vm2067 = vcmp.ge.f32.partialorder %v2003, 0.0
      %vm2068 = vcmp.ge.f32.partialorder %v2004, 0.0
      %vm2069 = vcmp.ge.f32.partialorder %v2005, 0.0
      %vm2070 = vcmp.ge.f32.partialorder %v2006, 0.0
      %vm2071 = vcmp.ge.f32.partialorder %v2007, 0.0
      %vm2072 = vcmp.ge.f32.partialorder %v2008, 0.0
      %vm2073 = vcmp.ge.f32.partialorder %v2009, 0.0
      %vm2074 = vcmp.ge.f32.partialorder %v2010, 0.0
      %v2075 = vsel %vm2011, 1.0, -1.0
      %v2076 = vsel %vm2012, 1.0, -1.0
      %v2077 = vsel %vm2013, 1.0, -1.0
      %v2078 = vsel %vm2014, 1.0, -1.0
      %v2079 = vsel %vm2015, 1.0, -1.0
      %v2080 = vsel %vm2016, 1.0, -1.0
      %v2081 = vsel %vm2017, 1.0, -1.0
      %v2082 = vsel %vm2018, 1.0, -1.0
      %v2083 = vsel %vm2019, 1.0, -1.0
      %v2084 = vsel %vm2020, 1.0, -1.0
      %v2085 = vsel %vm2021, 1.0, -1.0
      %v2086 = vsel %vm2022, 1.0, -1.0
      %v2087 = vsel %vm2023, 1.0, -1.0
      %v2088 = vsel %vm2024, 1.0, -1.0
      %v2089 = vsel %vm2025, 1.0, -1.0
      %v2090 = vsel %vm2026, 1.0, -1.0
      %v2091 = vsel %vm2027, 1.0, -1.0
      %v2092 = vsel %vm2028, 1.0, -1.0
      %v2093 = vsel %vm2029, 1.0, -1.0
      %v2094 = vsel %vm2030, 1.0, -1.0
      %v2095 = vsel %vm2031, 1.0, -1.0
      %v2096 = vsel %vm2032, 1.0, -1.0
      %v2097 = vsel %vm2033, 1.0, -1.0
      %v2098 = vsel %vm2034, 1.0, -1.0
      %v2099 = vsel %vm2035, 1.0, -1.0
      %v2100 = vsel %vm2036, 1.0, -1.0
      %v2101 = vsel %vm2037, 1.0, -1.0
      %v2102 = vsel %vm2038, 1.0, -1.0
      %v2103 = vsel %vm2039, 1.0, -1.0
      %v2104 = vsel %vm2040, 1.0, -1.0
      %v2105 = vsel %vm2041, 1.0, -1.0
      %v2106 = vsel %vm2042, 1.0, -1.0
      %v2107 = vsel %vm2043, 1.0, -1.0
      %v2108 = vsel %vm2044, 1.0, -1.0
      %v2109 = vsel %vm2045, 1.0, -1.0
      %v2110 = vsel %vm2046, 1.0, -1.0
      %v2111 = vsel %vm2047, 1.0, -1.0
      %v2112 = vsel %vm2048, 1.0, -1.0
      %v2113 = vsel %vm2049, 1.0, -1.0
      %v2114 = vsel %vm2050, 1.0, -1.0
      %v2115 = vsel %vm2051, 1.0, -1.0
      %v2116 = vsel %vm2052, 1.0, -1.0
      %v2117 = vsel %vm2053, 1.0, -1.0
      %v2118 = vsel %vm2054, 1.0, -1.0
      %v2119 = vsel %vm2055, 1.0, -1.0
      %v2120 = vsel %vm2056, 1.0, -1.0
      %v2121 = vsel %vm2057, 1.0, -1.0
      %v2122 = vsel %vm2058, 1.0, -1.0
      %v2123 = vsel %vm2059, 1.0, -1.0
      %v2124 = vsel %vm2060, 1.0, -1.0
      %v2125 = vsel %vm2061, 1.0, -1.0
      %v2126 = vsel %vm2062, 1.0, -1.0
      %v2127 = vsel %vm2063, 1.0, -1.0
      %v2128 = vsel %vm2064, 1.0, -1.0
      %v2129 = vsel %vm2065, 1.0, -1.0
      %v2130 = vsel %vm2066, 1.0, -1.0
      %v2131 = vsel %vm2067, 1.0, -1.0
      %v2132 = vsel %vm2068, 1.0, -1.0
      %v2133 = vsel %vm2069, 1.0, -1.0
      %v2134 = vsel %vm2070, 1.0, -1.0
      %v2135 = vsel %vm2071, 1.0, -1.0
      %v2136 = vsel %vm2072, 1.0, -1.0
      %v2137 = vsel %vm2073, 1.0, -1.0
      %v2138 = vsel %vm2074, 1.0, -1.0
      %v2139 = vand.u32 2147483647, %v1947
      %v2140 = vand.u32 2147483647, %v1948
      %v2141 = vand.u32 2147483647, %v1949
      %v2142 = vand.u32 2147483647, %v1950
      %v2143 = vand.u32 2147483647, %v1951
      %v2144 = vand.u32 2147483647, %v1952
      %v2145 = vand.u32 2147483647, %v1953
      %v2146 = vand.u32 2147483647, %v1954
      %v2147 = vand.u32 2147483647, %v1955
      %v2148 = vand.u32 2147483647, %v1956
      %v2149 = vand.u32 2147483647, %v1957
      %v2150 = vand.u32 2147483647, %v1958
      %v2151 = vand.u32 2147483647, %v1959
      %v2152 = vand.u32 2147483647, %v1960
      %v2153 = vand.u32 2147483647, %v1961
      %v2154 = vand.u32 2147483647, %v1962
      %v2155 = vand.u32 2147483647, %v1963
      %v2156 = vand.u32 2147483647, %v1964
      %v2157 = vand.u32 2147483647, %v1965
      %v2158 = vand.u32 2147483647, %v1966
      %v2159 = vand.u32 2147483647, %v1967
      %v2160 = vand.u32 2147483647, %v1968
      %v2161 = vand.u32 2147483647, %v1969
      %v2162 = vand.u32 2147483647, %v1970
      %v2163 = vand.u32 2147483647, %v1971
      %v2164 = vand.u32 2147483647, %v1972
      %v2165 = vand.u32 2147483647, %v1973
      %v2166 = vand.u32 2147483647, %v1974
      %v2167 = vand.u32 2147483647, %v1975
      %v2168 = vand.u32 2147483647, %v1976
      %v2169 = vand.u32 2147483647, %v1977
      %v2170 = vand.u32 2147483647, %v1978
      %v2171 = vand.u32 2147483647, %v1979
      %v2172 = vand.u32 2147483647, %v1980
      %v2173 = vand.u32 2147483647, %v1981
      %v2174 = vand.u32 2147483647, %v1982
      %v2175 = vand.u32 2147483647, %v1983
      %v2176 = vand.u32 2147483647, %v1984
      %v2177 = vand.u32 2147483647, %v1985
      %v2178 = vand.u32 2147483647, %v1986
      %v2179 = vand.u32 2147483647, %v1987
      %v2180 = vand.u32 2147483647, %v1988
      %v2181 = vand.u32 2147483647, %v1989
      %v2182 = vand.u32 2147483647, %v1990
      %v2183 = vand.u32 2147483647, %v1991
      %v2184 = vand.u32 2147483647, %v1992
      %v2185 = vand.u32 2147483647, %v1993
      %v2186 = vand.u32 2147483647, %v1994
      %v2187 = vand.u32 2147483647, %v1995
      %v2188 = vand.u32 2147483647, %v1996
      %v2189 = vand.u32 2147483647, %v1997
      %v2190 = vand.u32 2147483647, %v1998
      %v2191 = vand.u32 2147483647, %v1999
      %v2192 = vand.u32 2147483647, %v2000
      %v2193 = vand.u32 2147483647, %v2001
      %v2194 = vand.u32 2147483647, %v2002
      %v2195 = vand.u32 2147483647, %v2003
      %v2196 = vand.u32 2147483647, %v2004
      %v2197 = vand.u32 2147483647, %v2005
      %v2198 = vand.u32 2147483647, %v2006
      %v2199 = vand.u32 2147483647, %v2007
      %v2200 = vand.u32 2147483647, %v2008
      %v2201 = vand.u32 2147483647, %v2009
      %v2202 = vand.u32 2147483647, %v2010
      %v2203 = vmul.f32 %v2139, 0.3275911
      %v2204 = vmul.f32 %v2140, 0.3275911
      %v2205 = vmul.f32 %v2141, 0.3275911
      %v2206 = vmul.f32 %v2142, 0.3275911
      %v2207 = vmul.f32 %v2143, 0.3275911
      %v2208 = vmul.f32 %v2144, 0.3275911
      %v2209 = vmul.f32 %v2145, 0.3275911
      %v2210 = vmul.f32 %v2146, 0.3275911
      %v2211 = vmul.f32 %v2147, 0.3275911
      %v2212 = vmul.f32 %v2148, 0.3275911
      %v2213 = vmul.f32 %v2149, 0.3275911
      %v2214 = vmul.f32 %v2150, 0.3275911
      %v2215 = vmul.f32 %v2151, 0.3275911
      %v2216 = vmul.f32 %v2152, 0.3275911
      %v2217 = vmul.f32 %v2153, 0.3275911
      %v2218 = vmul.f32 %v2154, 0.3275911
      %v2219 = vmul.f32 %v2155, 0.3275911
      %v2220 = vmul.f32 %v2156, 0.3275911
      %v2221 = vmul.f32 %v2157, 0.3275911
      %v2222 = vmul.f32 %v2158, 0.3275911
      %v2223 = vmul.f32 %v2159, 0.3275911
      %v2224 = vmul.f32 %v2160, 0.3275911
      %v2225 = vmul.f32 %v2161, 0.3275911
      %v2226 = vmul.f32 %v2162, 0.3275911
      %v2227 = vmul.f32 %v2163, 0.3275911
      %v2228 = vmul.f32 %v2164, 0.3275911
      %v2229 = vmul.f32 %v2165, 0.3275911
      %v2230 = vmul.f32 %v2166, 0.3275911
      %v2231 = vmul.f32 %v2167, 0.3275911
      %v2232 = vmul.f32 %v2168, 0.3275911
      %v2233 = vmul.f32 %v2169, 0.3275911
      %v2234 = vmul.f32 %v2170, 0.3275911
      %v2235 = vmul.f32 %v2171, 0.3275911
      %v2236 = vmul.f32 %v2172, 0.3275911
      %v2237 = vmul.f32 %v2173, 0.3275911
      %v2238 = vmul.f32 %v2174, 0.3275911
      %v2239 = vmul.f32 %v2175, 0.3275911
      %v2240 = vmul.f32 %v2176, 0.3275911
      %v2241 = vmul.f32 %v2177, 0.3275911
      %v2242 = vmul.f32 %v2178, 0.3275911
      %v2243 = vmul.f32 %v2179, 0.3275911
      %v2244 = vmul.f32 %v2180, 0.3275911
      %v2245 = vmul.f32 %v2181, 0.3275911
      %v2246 = vmul.f32 %v2182, 0.3275911
      %v2247 = vmul.f32 %v2183, 0.3275911
      %v2248 = vmul.f32 %v2184, 0.3275911
      %v2249 = vmul.f32 %v2185, 0.3275911
      %v2250 = vmul.f32 %v2186, 0.3275911
      %v2251 = vmul.f32 %v2187, 0.3275911
      %v2252 = vmul.f32 %v2188, 0.3275911
      %v2253 = vmul.f32 %v2189, 0.3275911
      %v2254 = vmul.f32 %v2190, 0.3275911
      %v2255 = vmul.f32 %v2191, 0.3275911
      %v2256 = vmul.f32 %v2192, 0.3275911
      %v2257 = vmul.f32 %v2193, 0.3275911
      %v2258 = vmul.f32 %v2194, 0.3275911
      %v2259 = vmul.f32 %v2195, 0.3275911
      %v2260 = vmul.f32 %v2196, 0.3275911
      %v2261 = vmul.f32 %v2197, 0.3275911
      %v2262 = vmul.f32 %v2198, 0.3275911
      %v2263 = vmul.f32 %v2199, 0.3275911
      %v2264 = vmul.f32 %v2200, 0.3275911
      %v2265 = vmul.f32 %v2201, 0.3275911
      %v2266 = vmul.f32 %v2202, 0.3275911
      %v2267 = vadd.f32 %v2203, 1.0
      %v2268 = vadd.f32 %v2204, 1.0
      %v2269 = vadd.f32 %v2205, 1.0
      %v2270 = vadd.f32 %v2206, 1.0
      %v2271 = vadd.f32 %v2207, 1.0
      %v2272 = vadd.f32 %v2208, 1.0
      %v2273 = vadd.f32 %v2209, 1.0
      %v2274 = vadd.f32 %v2210, 1.0
      %v2275 = vadd.f32 %v2211, 1.0
      %v2276 = vadd.f32 %v2212, 1.0
      %v2277 = vadd.f32 %v2213, 1.0
      %v2278 = vadd.f32 %v2214, 1.0
      %v2279 = vadd.f32 %v2215, 1.0
      %v2280 = vadd.f32 %v2216, 1.0
      %v2281 = vadd.f32 %v2217, 1.0
      %v2282 = vadd.f32 %v2218, 1.0
      %v2283 = vadd.f32 %v2219, 1.0
      %v2284 = vadd.f32 %v2220, 1.0
      %v2285 = vadd.f32 %v2221, 1.0
      %v2286 = vadd.f32 %v2222, 1.0
      %v2287 = vadd.f32 %v2223, 1.0
      %v2288 = vadd.f32 %v2224, 1.0
      %v2289 = vadd.f32 %v2225, 1.0
      %v2290 = vadd.f32 %v2226, 1.0
      %v2291 = vadd.f32 %v2227, 1.0
      %v2292 = vadd.f32 %v2228, 1.0
      %v2293 = vadd.f32 %v2229, 1.0
      %v2294 = vadd.f32 %v2230, 1.0
      %v2295 = vadd.f32 %v2231, 1.0
      %v2296 = vadd.f32 %v2232, 1.0
      %v2297 = vadd.f32 %v2233, 1.0
      %v2298 = vadd.f32 %v2234, 1.0
      %v2299 = vadd.f32 %v2235, 1.0
      %v2300 = vadd.f32 %v2236, 1.0
      %v2301 = vadd.f32 %v2237, 1.0
      %v2302 = vadd.f32 %v2238, 1.0
      %v2303 = vadd.f32 %v2239, 1.0
      %v2304 = vadd.f32 %v2240, 1.0
      %v2305 = vadd.f32 %v2241, 1.0
      %v2306 = vadd.f32 %v2242, 1.0
      %v2307 = vadd.f32 %v2243, 1.0
      %v2308 = vadd.f32 %v2244, 1.0
      %v2309 = vadd.f32 %v2245, 1.0
      %v2310 = vadd.f32 %v2246, 1.0
      %v2311 = vadd.f32 %v2247, 1.0
      %v2312 = vadd.f32 %v2248, 1.0
      %v2313 = vadd.f32 %v2249, 1.0
      %v2314 = vadd.f32 %v2250, 1.0
      %v2315 = vadd.f32 %v2251, 1.0
      %v2316 = vadd.f32 %v2252, 1.0
      %v2317 = vadd.f32 %v2253, 1.0
      %v2318 = vadd.f32 %v2254, 1.0
      %v2319 = vadd.f32 %v2255, 1.0
      %v2320 = vadd.f32 %v2256, 1.0
      %v2321 = vadd.f32 %v2257, 1.0
      %v2322 = vadd.f32 %v2258, 1.0
      %v2323 = vadd.f32 %v2259, 1.0
      %v2324 = vadd.f32 %v2260, 1.0
      %v2325 = vadd.f32 %v2261, 1.0
      %v2326 = vadd.f32 %v2262, 1.0
      %v2327 = vadd.f32 %v2263, 1.0
      %v2328 = vadd.f32 %v2264, 1.0
      %v2329 = vadd.f32 %v2265, 1.0
      %v2330 = vadd.f32 %v2266, 1.0
      %v2331 = vrcp.pop %v2267
      %v2332 = vmul.f32 1.0, %v2331
      %v2333 = vrcp.pop %v2268
      %v2334 = vmul.f32 1.0, %v2333
      %v2335 = vrcp.pop %v2269
      %v2336 = vmul.f32 1.0, %v2335
      %v2337 = vrcp.pop %v2270
      %v2338 = vmul.f32 1.0, %v2337
      %v2339 = vrcp.pop %v2271
      %v2340 = vmul.f32 1.0, %v2339
      %v2341 = vrcp.pop %v2272
      %v2342 = vmul.f32 1.0, %v2341
      %v2343 = vrcp.pop %v2273
      %v2344 = vmul.f32 1.0, %v2343
      %v2345 = vrcp.pop %v2274
      %v2346 = vmul.f32 1.0, %v2345
      %v2347 = vrcp.pop %v2275
      %v2348 = vmul.f32 1.0, %v2347
      %v2349 = vrcp.pop %v2276
      %v2350 = vmul.f32 1.0, %v2349
      %v2351 = vrcp.pop %v2277
      %v2352 = vmul.f32 1.0, %v2351
      %v2353 = vrcp.pop %v2278
      %v2354 = vmul.f32 1.0, %v2353
      %v2355 = vrcp.pop %v2279
      %v2356 = vmul.f32 1.0, %v2355
      %v2357 = vrcp.pop %v2280
      %v2358 = vmul.f32 1.0, %v2357
      %v2359 = vrcp.pop %v2281
      %v2360 = vmul.f32 1.0, %v2359
      %v2361 = vrcp.pop %v2282
      %v2362 = vmul.f32 1.0, %v2361
      %v2363 = vrcp.pop %v2283
      %v2364 = vmul.f32 1.0, %v2363
      %v2365 = vrcp.pop %v2284
      %v2366 = vmul.f32 1.0, %v2365
      %v2367 = vrcp.pop %v2285
      %v2368 = vmul.f32 1.0, %v2367
      %v2369 = vrcp.pop %v2286
      %v2370 = vmul.f32 1.0, %v2369
      %v2371 = vrcp.pop %v2287
      %v2372 = vmul.f32 1.0, %v2371
      %v2373 = vrcp.pop %v2288
      %v2374 = vmul.f32 1.0, %v2373
      %v2375 = vrcp.pop %v2289
      %v2376 = vmul.f32 1.0, %v2375
      %v2377 = vrcp.pop %v2290
      %v2378 = vmul.f32 1.0, %v2377
      %v2379 = vrcp.pop %v2291
      %v2380 = vmul.f32 1.0, %v2379
      %v2381 = vrcp.pop %v2292
      %v2382 = vmul.f32 1.0, %v2381
      %v2383 = vrcp.pop %v2293
      %v2384 = vmul.f32 1.0, %v2383
      %v2385 = vrcp.pop %v2294
      %v2386 = vmul.f32 1.0, %v2385
      %v2387 = vrcp.pop %v2295
      %v2388 = vmul.f32 1.0, %v2387
      %v2389 = vrcp.pop %v2296
      %v2390 = vmul.f32 1.0, %v2389
      %v2391 = vrcp.pop %v2297
      %v2392 = vmul.f32 1.0, %v2391
      %v2393 = vrcp.pop %v2298
      %v2394 = vmul.f32 1.0, %v2393
      %v2395 = vrcp.pop %v2299
      %v2396 = vmul.f32 1.0, %v2395
      %v2397 = vrcp.pop %v2300
      %v2398 = vmul.f32 1.0, %v2397
      %v2399 = vrcp.pop %v2301
      %v2400 = vmul.f32 1.0, %v2399
      %v2401 = vrcp.pop %v2302
      %v2402 = vmul.f32 1.0, %v2401
      %v2403 = vrcp.pop %v2303
      %v2404 = vmul.f32 1.0, %v2403
      %v2405 = vrcp.pop %v2304
      %v2406 = vmul.f32 1.0, %v2405
      %v2407 = vrcp.pop %v2305
      %v2408 = vmul.f32 1.0, %v2407
      %v2409 = vrcp.pop %v2306
      %v2410 = vmul.f32 1.0, %v2409
      %v2411 = vrcp.pop %v2307
      %v2412 = vmul.f32 1.0, %v2411
      %v2413 = vrcp.pop %v2308
      %v2414 = vmul.f32 1.0, %v2413
      %v2415 = vrcp.pop %v2309
      %v2416 = vmul.f32 1.0, %v2415
      %v2417 = vrcp.pop %v2310
      %v2418 = vmul.f32 1.0, %v2417
      %v2419 = vrcp.pop %v2311
      %v2420 = vmul.f32 1.0, %v2419
      %v2421 = vrcp.pop %v2312
      %v2422 = vmul.f32 1.0, %v2421
      %v2423 = vrcp.pop %v2313
      %v2424 = vmul.f32 1.0, %v2423
      %v2425 = vrcp.pop %v2314
      %v2426 = vmul.f32 1.0, %v2425
      %v2427 = vrcp.pop %v2315
      %v2428 = vmul.f32 1.0, %v2427
      %v2429 = vrcp.pop %v2316
      %v2430 = vmul.f32 1.0, %v2429
      %v2431 = vrcp.pop %v2317
      %v2432 = vmul.f32 1.0, %v2431
      %v2433 = vrcp.pop %v2318
      %v2434 = vmul.f32 1.0, %v2433
      %v2435 = vrcp.pop %v2319
      %v2436 = vmul.f32 1.0, %v2435
      %v2437 = vrcp.pop %v2320
      %v2438 = vmul.f32 1.0, %v2437
      %v2439 = vrcp.pop %v2321
      %v2440 = vmul.f32 1.0, %v2439
      %v2441 = vrcp.pop %v2322
      %v2442 = vmul.f32 1.0, %v2441
      %v2443 = vrcp.pop %v2323
      %v2444 = vmul.f32 1.0, %v2443
      %v2445 = vrcp.pop %v2324
      %v2446 = vmul.f32 1.0, %v2445
      %v2447 = vrcp.pop %v2325
      %v2448 = vmul.f32 1.0, %v2447
      %v2449 = vrcp.pop %v2326
      %v2450 = vmul.f32 1.0, %v2449
      %v2451 = vrcp.pop %v2327
      %v2452 = vmul.f32 1.0, %v2451
      %v2453 = vrcp.pop %v2328
      %v2454 = vmul.f32 1.0, %v2453
      %v2455 = vrcp.pop %v2329
      %v2456 = vmul.f32 1.0, %v2455
      %v2457 = vrcp.pop %v2330
      %v2458 = vmul.f32 1.0, %v2457
      %v2459 = vmul.f32 %v2332, 1.0614054
      %v2460 = vmul.f32 %v2334, 1.0614054
      %v2461 = vmul.f32 %v2336, 1.0614054
      %v2462 = vmul.f32 %v2338, 1.0614054
      %v2463 = vmul.f32 %v2340, 1.0614054
      %v2464 = vmul.f32 %v2342, 1.0614054
      %v2465 = vmul.f32 %v2344, 1.0614054
      %v2466 = vmul.f32 %v2346, 1.0614054
      %v2467 = vmul.f32 %v2348, 1.0614054
      %v2468 = vmul.f32 %v2350, 1.0614054
      %v2469 = vmul.f32 %v2352, 1.0614054
      %v2470 = vmul.f32 %v2354, 1.0614054
      %v2471 = vmul.f32 %v2356, 1.0614054
      %v2472 = vmul.f32 %v2358, 1.0614054
      %v2473 = vmul.f32 %v2360, 1.0614054
      %v2474 = vmul.f32 %v2362, 1.0614054
      %v2475 = vmul.f32 %v2364, 1.0614054
      %v2476 = vmul.f32 %v2366, 1.0614054
      %v2477 = vmul.f32 %v2368, 1.0614054
      %v2478 = vmul.f32 %v2370, 1.0614054
      %v2479 = vmul.f32 %v2372, 1.0614054
      %v2480 = vmul.f32 %v2374, 1.0614054
      %v2481 = vmul.f32 %v2376, 1.0614054
      %v2482 = vmul.f32 %v2378, 1.0614054
      %v2483 = vmul.f32 %v2380, 1.0614054
      %v2484 = vmul.f32 %v2382, 1.0614054
      %v2485 = vmul.f32 %v2384, 1.0614054
      %v2486 = vmul.f32 %v2386, 1.0614054
      %v2487 = vmul.f32 %v2388, 1.0614054
      %v2488 = vmul.f32 %v2390, 1.0614054
      %v2489 = vmul.f32 %v2392, 1.0614054
      %v2490 = vmul.f32 %v2394, 1.0614054
      %v2491 = vmul.f32 %v2396, 1.0614054
      %v2492 = vmul.f32 %v2398, 1.0614054
      %v2493 = vmul.f32 %v2400, 1.0614054
      %v2494 = vmul.f32 %v2402, 1.0614054
      %v2495 = vmul.f32 %v2404, 1.0614054
      %v2496 = vmul.f32 %v2406, 1.0614054
      %v2497 = vmul.f32 %v2408, 1.0614054
      %v2498 = vmul.f32 %v2410, 1.0614054
      %v2499 = vmul.f32 %v2412, 1.0614054
      %v2500 = vmul.f32 %v2414, 1.0614054
      %v2501 = vmul.f32 %v2416, 1.0614054
      %v2502 = vmul.f32 %v2418, 1.0614054
      %v2503 = vmul.f32 %v2420, 1.0614054
      %v2504 = vmul.f32 %v2422, 1.0614054
      %v2505 = vmul.f32 %v2424, 1.0614054
      %v2506 = vmul.f32 %v2426, 1.0614054
      %v2507 = vmul.f32 %v2428, 1.0614054
      %v2508 = vmul.f32 %v2430, 1.0614054
      %v2509 = vmul.f32 %v2432, 1.0614054
      %v2510 = vmul.f32 %v2434, 1.0614054
      %v2511 = vmul.f32 %v2436, 1.0614054
      %v2512 = vmul.f32 %v2438, 1.0614054
      %v2513 = vmul.f32 %v2440, 1.0614054
      %v2514 = vmul.f32 %v2442, 1.0614054
      %v2515 = vmul.f32 %v2444, 1.0614054
      %v2516 = vmul.f32 %v2446, 1.0614054
      %v2517 = vmul.f32 %v2448, 1.0614054
      %v2518 = vmul.f32 %v2450, 1.0614054
      %v2519 = vmul.f32 %v2452, 1.0614054
      %v2520 = vmul.f32 %v2454, 1.0614054
      %v2521 = vmul.f32 %v2456, 1.0614054
      %v2522 = vmul.f32 %v2458, 1.0614054
      %v2523 = vadd.f32 %v2459, -1.4531521
      %v2524 = vadd.f32 %v2460, -1.4531521
      %v2525 = vadd.f32 %v2461, -1.4531521
      %v2526 = vadd.f32 %v2462, -1.4531521
      %v2527 = vadd.f32 %v2463, -1.4531521
      %v2528 = vadd.f32 %v2464, -1.4531521
      %v2529 = vadd.f32 %v2465, -1.4531521
      %v2530 = vadd.f32 %v2466, -1.4531521
      %v2531 = vadd.f32 %v2467, -1.4531521
      %v2532 = vadd.f32 %v2468, -1.4531521
      %v2533 = vadd.f32 %v2469, -1.4531521
      %v2534 = vadd.f32 %v2470, -1.4531521
      %v2535 = vadd.f32 %v2471, -1.4531521
      %v2536 = vadd.f32 %v2472, -1.4531521
      %v2537 = vadd.f32 %v2473, -1.4531521
      %v2538 = vadd.f32 %v2474, -1.4531521
      %v2539 = vadd.f32 %v2475, -1.4531521
      %v2540 = vadd.f32 %v2476, -1.4531521
      %v2541 = vadd.f32 %v2477, -1.4531521
      %v2542 = vadd.f32 %v2478, -1.4531521
      %v2543 = vadd.f32 %v2479, -1.4531521
      %v2544 = vadd.f32 %v2480, -1.4531521
      %v2545 = vadd.f32 %v2481, -1.4531521
      %v2546 = vadd.f32 %v2482, -1.4531521
      %v2547 = vadd.f32 %v2483, -1.4531521
      %v2548 = vadd.f32 %v2484, -1.4531521
      %v2549 = vadd.f32 %v2485, -1.4531521
      %v2550 = vadd.f32 %v2486, -1.4531521
      %v2551 = vadd.f32 %v2487, -1.4531521
      %v2552 = vadd.f32 %v2488, -1.4531521
      %v2553 = vadd.f32 %v2489, -1.4531521
      %v2554 = vadd.f32 %v2490, -1.4531521
      %v2555 = vadd.f32 %v2491, -1.4531521
      %v2556 = vadd.f32 %v2492, -1.4531521
      %v2557 = vadd.f32 %v2493, -1.4531521
      %v2558 = vadd.f32 %v2494, -1.4531521
      %v2559 = vadd.f32 %v2495, -1.4531521
      %v2560 = vadd.f32 %v2496, -1.4531521
      %v2561 = vadd.f32 %v2497, -1.4531521
      %v2562 = vadd.f32 %v2498, -1.4531521
      %v2563 = vadd.f32 %v2499, -1.4531521
      %v2564 = vadd.f32 %v2500, -1.4531521
      %v2565 = vadd.f32 %v2501, -1.4531521
      %v2566 = vadd.f32 %v2502, -1.4531521
      %v2567 = vadd.f32 %v2503, -1.4531521
      %v2568 = vadd.f32 %v2504, -1.4531521
      %v2569 = vadd.f32 %v2505, -1.4531521
      %v2570 = vadd.f32 %v2506, -1.4531521
      %v2571 = vadd.f32 %v2507, -1.4531521
      %v2572 = vadd.f32 %v2508, -1.4531521
      %v2573 = vadd.f32 %v2509, -1.4531521
      %v2574 = vadd.f32 %v2510, -1.4531521
      %v2575 = vadd.f32 %v2511, -1.4531521
      %v2576 = vadd.f32 %v2512, -1.4531521
      %v2577 = vadd.f32 %v2513, -1.4531521
      %v2578 = vadd.f32 %v2514, -1.4531521
      %v2579 = vadd.f32 %v2515, -1.4531521
      %v2580 = vadd.f32 %v2516, -1.4531521
      %v2581 = vadd.f32 %v2517, -1.4531521
      %v2582 = vadd.f32 %v2518, -1.4531521
      %v2583 = vadd.f32 %v2519, -1.4531521
      %v2584 = vadd.f32 %v2520, -1.4531521
      %v2585 = vadd.f32 %v2521, -1.4531521
      %v2586 = vadd.f32 %v2522, -1.4531521
      %v2587 = vmul.f32 %v2523, %v2332
      %v2588 = vmul.f32 %v2524, %v2334
      %v2589 = vmul.f32 %v2525, %v2336
      %v2590 = vmul.f32 %v2526, %v2338
      %v2591 = vmul.f32 %v2527, %v2340
      %v2592 = vmul.f32 %v2528, %v2342
      %v2593 = vmul.f32 %v2529, %v2344
      %v2594 = vmul.f32 %v2530, %v2346
      %v2595 = vmul.f32 %v2531, %v2348
      %v2596 = vmul.f32 %v2532, %v2350
      %v2597 = vmul.f32 %v2533, %v2352
      %v2598 = vmul.f32 %v2534, %v2354
      %v2599 = vmul.f32 %v2535, %v2356
      %v2600 = vmul.f32 %v2536, %v2358
      %v2601 = vmul.f32 %v2537, %v2360
      %v2602 = vmul.f32 %v2538, %v2362
      %v2603 = vmul.f32 %v2539, %v2364
      %v2604 = vmul.f32 %v2540, %v2366
      %v2605 = vmul.f32 %v2541, %v2368
      %v2606 = vmul.f32 %v2542, %v2370
      %v2607 = vmul.f32 %v2543, %v2372
      %v2608 = vmul.f32 %v2544, %v2374
      %v2609 = vmul.f32 %v2545, %v2376
      %v2610 = vmul.f32 %v2546, %v2378
      %v2611 = vmul.f32 %v2547, %v2380
      %v2612 = vmul.f32 %v2548, %v2382
      %v2613 = vmul.f32 %v2549, %v2384
      %v2614 = vmul.f32 %v2550, %v2386
      %v2615 = vmul.f32 %v2551, %v2388
      %v2616 = vmul.f32 %v2552, %v2390
      %v2617 = vmul.f32 %v2553, %v2392
      %v2618 = vmul.f32 %v2554, %v2394
      %v2619 = vmul.f32 %v2555, %v2396
      %v2620 = vmul.f32 %v2556, %v2398
      %v2621 = vmul.f32 %v2557, %v2400
      %v2622 = vmul.f32 %v2558, %v2402
      %v2623 = vmul.f32 %v2559, %v2404
      %v2624 = vmul.f32 %v2560, %v2406
      %v2625 = vmul.f32 %v2561, %v2408
      %v2626 = vmul.f32 %v2562, %v2410
      %v2627 = vmul.f32 %v2563, %v2412
      %v2628 = vmul.f32 %v2564, %v2414
      %v2629 = vmul.f32 %v2565, %v2416
      %v2630 = vmul.f32 %v2566, %v2418
      %v2631 = vmul.f32 %v2567, %v2420
      %v2632 = vmul.f32 %v2568, %v2422
      %v2633 = vmul.f32 %v2569, %v2424
      %v2634 = vmul.f32 %v2570, %v2426
      %v2635 = vmul.f32 %v2571, %v2428
      %v2636 = vmul.f32 %v2572, %v2430
      %v2637 = vmul.f32 %v2573, %v2432
      %v2638 = vmul.f32 %v2574, %v2434
      %v2639 = vmul.f32 %v2575, %v2436
      %v2640 = vmul.f32 %v2576, %v2438
      %v2641 = vmul.f32 %v2577, %v2440
      %v2642 = vmul.f32 %v2578, %v2442
      %v2643 = vmul.f32 %v2579, %v2444
      %v2644 = vmul.f32 %v2580, %v2446
      %v2645 = vmul.f32 %v2581, %v2448
      %v2646 = vmul.f32 %v2582, %v2450
      %v2647 = vmul.f32 %v2583, %v2452
      %v2648 = vmul.f32 %v2584, %v2454
      %v2649 = vmul.f32 %v2585, %v2456
      %v2650 = vmul.f32 %v2586, %v2458
      %v2651 = vadd.f32 %v2587, 1.4214138
      %v2652 = vadd.f32 %v2588, 1.4214138
      %v2653 = vadd.f32 %v2589, 1.4214138
      %v2654 = vadd.f32 %v2590, 1.4214138
      %v2655 = vadd.f32 %v2591, 1.4214138
      %v2656 = vadd.f32 %v2592, 1.4214138
      %v2657 = vadd.f32 %v2593, 1.4214138
      %v2658 = vadd.f32 %v2594, 1.4214138
      %v2659 = vadd.f32 %v2595, 1.4214138
      %v2660 = vadd.f32 %v2596, 1.4214138
      %v2661 = vadd.f32 %v2597, 1.4214138
      %v2662 = vadd.f32 %v2598, 1.4214138
      %v2663 = vadd.f32 %v2599, 1.4214138
      %v2664 = vadd.f32 %v2600, 1.4214138
      %v2665 = vadd.f32 %v2601, 1.4214138
      %v2666 = vadd.f32 %v2602, 1.4214138
      %v2667 = vadd.f32 %v2603, 1.4214138
      %v2668 = vadd.f32 %v2604, 1.4214138
      %v2669 = vadd.f32 %v2605, 1.4214138
      %v2670 = vadd.f32 %v2606, 1.4214138
      %v2671 = vadd.f32 %v2607, 1.4214138
      %v2672 = vadd.f32 %v2608, 1.4214138
      %v2673 = vadd.f32 %v2609, 1.4214138
      %v2674 = vadd.f32 %v2610, 1.4214138
      %v2675 = vadd.f32 %v2611, 1.4214138
      %v2676 = vadd.f32 %v2612, 1.4214138
      %v2677 = vadd.f32 %v2613, 1.4214138
      %v2678 = vadd.f32 %v2614, 1.4214138
      %v2679 = vadd.f32 %v2615, 1.4214138
      %v2680 = vadd.f32 %v2616, 1.4214138
      %v2681 = vadd.f32 %v2617, 1.4214138
      %v2682 = vadd.f32 %v2618, 1.4214138
      %v2683 = vadd.f32 %v2619, 1.4214138
      %v2684 = vadd.f32 %v2620, 1.4214138
      %v2685 = vadd.f32 %v2621, 1.4214138
      %v2686 = vadd.f32 %v2622, 1.4214138
      %v2687 = vadd.f32 %v2623, 1.4214138
      %v2688 = vadd.f32 %v2624, 1.4214138
      %v2689 = vadd.f32 %v2625, 1.4214138
      %v2690 = vadd.f32 %v2626, 1.4214138
      %v2691 = vadd.f32 %v2627, 1.4214138
      %v2692 = vadd.f32 %v2628, 1.4214138
      %v2693 = vadd.f32 %v2629, 1.4214138
      %v2694 = vadd.f32 %v2630, 1.4214138
      %v2695 = vadd.f32 %v2631, 1.4214138
      %v2696 = vadd.f32 %v2632, 1.4214138
      %v2697 = vadd.f32 %v2633, 1.4214138
      %v2698 = vadd.f32 %v2634, 1.4214138
      %v2699 = vadd.f32 %v2635, 1.4214138
      %v2700 = vadd.f32 %v2636, 1.4214138
      %v2701 = vadd.f32 %v2637, 1.4214138
      %v2702 = vadd.f32 %v2638, 1.4214138
      %v2703 = vadd.f32 %v2639, 1.4214138
      %v2704 = vadd.f32 %v2640, 1.4214138
      %v2705 = vadd.f32 %v2641, 1.4214138
      %v2706 = vadd.f32 %v2642, 1.4214138
      %v2707 = vadd.f32 %v2643, 1.4214138
      %v2708 = vadd.f32 %v2644, 1.4214138
      %v2709 = vadd.f32 %v2645, 1.4214138
      %v2710 = vadd.f32 %v2646, 1.4214138
      %v2711 = vadd.f32 %v2647, 1.4214138
      %v2712 = vadd.f32 %v2648, 1.4214138
      %v2713 = vadd.f32 %v2649, 1.4214138
      %v2714 = vadd.f32 %v2650, 1.4214138
      %v2715 = vmul.f32 %v2651, %v2332
      %v2716 = vmul.f32 %v2652, %v2334
      %v2717 = vmul.f32 %v2653, %v2336
      %v2718 = vmul.f32 %v2654, %v2338
      %v2719 = vmul.f32 %v2655, %v2340
      %v2720 = vmul.f32 %v2656, %v2342
      %v2721 = vmul.f32 %v2657, %v2344
      %v2722 = vmul.f32 %v2658, %v2346
      %v2723 = vmul.f32 %v2659, %v2348
      %v2724 = vmul.f32 %v2660, %v2350
      %v2725 = vmul.f32 %v2661, %v2352
      %v2726 = vmul.f32 %v2662, %v2354
      %v2727 = vmul.f32 %v2663, %v2356
      %v2728 = vmul.f32 %v2664, %v2358
      %v2729 = vmul.f32 %v2665, %v2360
      %v2730 = vmul.f32 %v2666, %v2362
      %v2731 = vmul.f32 %v2667, %v2364
      %v2732 = vmul.f32 %v2668, %v2366
      %v2733 = vmul.f32 %v2669, %v2368
      %v2734 = vmul.f32 %v2670, %v2370
      %v2735 = vmul.f32 %v2671, %v2372
      %v2736 = vmul.f32 %v2672, %v2374
      %v2737 = vmul.f32 %v2673, %v2376
      %v2738 = vmul.f32 %v2674, %v2378
      %v2739 = vmul.f32 %v2675, %v2380
      %v2740 = vmul.f32 %v2676, %v2382
      %v2741 = vmul.f32 %v2677, %v2384
      %v2742 = vmul.f32 %v2678, %v2386
      %v2743 = vmul.f32 %v2679, %v2388
      %v2744 = vmul.f32 %v2680, %v2390
      %v2745 = vmul.f32 %v2681, %v2392
      %v2746 = vmul.f32 %v2682, %v2394
      %v2747 = vmul.f32 %v2683, %v2396
      %v2748 = vmul.f32 %v2684, %v2398
      %v2749 = vmul.f32 %v2685, %v2400
      %v2750 = vmul.f32 %v2686, %v2402
      %v2751 = vmul.f32 %v2687, %v2404
      %v2752 = vmul.f32 %v2688, %v2406
      %v2753 = vmul.f32 %v2689, %v2408
      %v2754 = vmul.f32 %v2690, %v2410
      %v2755 = vmul.f32 %v2691, %v2412
      %v2756 = vmul.f32 %v2692, %v2414
      %v2757 = vmul.f32 %v2693, %v2416
      %v2758 = vmul.f32 %v2694, %v2418
      %v2759 = vmul.f32 %v2695, %v2420
      %v2760 = vmul.f32 %v2696, %v2422
      %v2761 = vmul.f32 %v2697, %v2424
      %v2762 = vmul.f32 %v2698, %v2426
      %v2763 = vmul.f32 %v2699, %v2428
      %v2764 = vmul.f32 %v2700, %v2430
      %v2765 = vmul.f32 %v2701, %v2432
      %v2766 = vmul.f32 %v2702, %v2434
      %v2767 = vmul.f32 %v2703, %v2436
      %v2768 = vmul.f32 %v2704, %v2438
      %v2769 = vmul.f32 %v2705, %v2440
      %v2770 = vmul.f32 %v2706, %v2442
      %v2771 = vmul.f32 %v2707, %v2444
      %v2772 = vmul.f32 %v2708, %v2446
      %v2773 = vmul.f32 %v2709, %v2448
      %v2774 = vmul.f32 %v2710, %v2450
      %v2775 = vmul.f32 %v2711, %v2452
      %v2776 = vmul.f32 %v2712, %v2454
      %v2777 = vmul.f32 %v2713, %v2456
      %v2778 = vmul.f32 %v2714, %v2458
      %v2779 = vadd.f32 %v2715, -0.28449672
      %v2780 = vadd.f32 %v2716, -0.28449672
      %v2781 = vadd.f32 %v2717, -0.28449672
      %v2782 = vadd.f32 %v2718, -0.28449672
      %v2783 = vadd.f32 %v2719, -0.28449672
      %v2784 = vadd.f32 %v2720, -0.28449672
      %v2785 = vadd.f32 %v2721, -0.28449672
      %v2786 = vadd.f32 %v2722, -0.28449672
      %v2787 = vadd.f32 %v2723, -0.28449672
      %v2788 = vadd.f32 %v2724, -0.28449672
      %v2789 = vadd.f32 %v2725, -0.28449672
      %v2790 = vadd.f32 %v2726, -0.28449672
      %v2791 = vadd.f32 %v2727, -0.28449672
      %v2792 = vadd.f32 %v2728, -0.28449672
      %v2793 = vadd.f32 %v2729, -0.28449672
      %v2794 = vadd.f32 %v2730, -0.28449672
      %v2795 = vadd.f32 %v2731, -0.28449672
      %v2796 = vadd.f32 %v2732, -0.28449672
      %v2797 = vadd.f32 %v2733, -0.28449672
      %v2798 = vadd.f32 %v2734, -0.28449672
      %v2799 = vadd.f32 %v2735, -0.28449672
      %v2800 = vadd.f32 %v2736, -0.28449672
      %v2801 = vadd.f32 %v2737, -0.28449672
      %v2802 = vadd.f32 %v2738, -0.28449672
      %v2803 = vadd.f32 %v2739, -0.28449672
      %v2804 = vadd.f32 %v2740, -0.28449672
      %v2805 = vadd.f32 %v2741, -0.28449672
      %v2806 = vadd.f32 %v2742, -0.28449672
      %v2807 = vadd.f32 %v2743, -0.28449672
      %v2808 = vadd.f32 %v2744, -0.28449672
      %v2809 = vadd.f32 %v2745, -0.28449672
      %v2810 = vadd.f32 %v2746, -0.28449672
      %v2811 = vadd.f32 %v2747, -0.28449672
      %v2812 = vadd.f32 %v2748, -0.28449672
      %v2813 = vadd.f32 %v2749, -0.28449672
      %v2814 = vadd.f32 %v2750, -0.28449672
      %v2815 = vadd.f32 %v2751, -0.28449672
      %v2816 = vadd.f32 %v2752, -0.28449672
      %v2817 = vadd.f32 %v2753, -0.28449672
      %v2818 = vadd.f32 %v2754, -0.28449672
      %v2819 = vadd.f32 %v2755, -0.28449672
      %v2820 = vadd.f32 %v2756, -0.28449672
      %v2821 = vadd.f32 %v2757, -0.28449672
      %v2822 = vadd.f32 %v2758, -0.28449672
      %v2823 = vadd.f32 %v2759, -0.28449672
      %v2824 = vadd.f32 %v2760, -0.28449672
      %v2825 = vadd.f32 %v2761, -0.28449672
      %v2826 = vadd.f32 %v2762, -0.28449672
      %v2827 = vadd.f32 %v2763, -0.28449672
      %v2828 = vadd.f32 %v2764, -0.28449672
      %v2829 = vadd.f32 %v2765, -0.28449672
      %v2830 = vadd.f32 %v2766, -0.28449672
      %v2831 = vadd.f32 %v2767, -0.28449672
      %v2832 = vadd.f32 %v2768, -0.28449672
      %v2833 = vadd.f32 %v2769, -0.28449672
      %v2834 = vadd.f32 %v2770, -0.28449672
      %v2835 = vadd.f32 %v2771, -0.28449672
      %v2836 = vadd.f32 %v2772, -0.28449672
      %v2837 = vadd.f32 %v2773, -0.28449672
      %v2838 = vadd.f32 %v2774, -0.28449672
      %v2839 = vadd.f32 %v2775, -0.28449672
      %v2840 = vadd.f32 %v2776, -0.28449672
      %v2841 = vadd.f32 %v2777, -0.28449672
      %v2842 = vadd.f32 %v2778, -0.28449672
      %v2843 = vmul.f32 %v2779, %v2332
      %v2844 = vmul.f32 %v2780, %v2334
      %v2845 = vmul.f32 %v2781, %v2336
      %v2846 = vmul.f32 %v2782, %v2338
      %v2847 = vmul.f32 %v2783, %v2340
      %v2848 = vmul.f32 %v2784, %v2342
      %v2849 = vmul.f32 %v2785, %v2344
      %v2850 = vmul.f32 %v2786, %v2346
      %v2851 = vmul.f32 %v2787, %v2348
      %v2852 = vmul.f32 %v2788, %v2350
      %v2853 = vmul.f32 %v2789, %v2352
      %v2854 = vmul.f32 %v2790, %v2354
      %v2855 = vmul.f32 %v2791, %v2356
      %v2856 = vmul.f32 %v2792, %v2358
      %v2857 = vmul.f32 %v2793, %v2360
      %v2858 = vmul.f32 %v2794, %v2362
      %v2859 = vmul.f32 %v2795, %v2364
      %v2860 = vmul.f32 %v2796, %v2366
      %v2861 = vmul.f32 %v2797, %v2368
      %v2862 = vmul.f32 %v2798, %v2370
      %v2863 = vmul.f32 %v2799, %v2372
      %v2864 = vmul.f32 %v2800, %v2374
      %v2865 = vmul.f32 %v2801, %v2376
      %v2866 = vmul.f32 %v2802, %v2378
      %v2867 = vmul.f32 %v2803, %v2380
      %v2868 = vmul.f32 %v2804, %v2382
      %v2869 = vmul.f32 %v2805, %v2384
      %v2870 = vmul.f32 %v2806, %v2386
      %v2871 = vmul.f32 %v2807, %v2388
      %v2872 = vmul.f32 %v2808, %v2390
      %v2873 = vmul.f32 %v2809, %v2392
      %v2874 = vmul.f32 %v2810, %v2394
      %v2875 = vmul.f32 %v2811, %v2396
      %v2876 = vmul.f32 %v2812, %v2398
      %v2877 = vmul.f32 %v2813, %v2400
      %v2878 = vmul.f32 %v2814, %v2402
      %v2879 = vmul.f32 %v2815, %v2404
      %v2880 = vmul.f32 %v2816, %v2406
      %v2881 = vmul.f32 %v2817, %v2408
      %v2882 = vmul.f32 %v2818, %v2410
      %v2883 = vmul.f32 %v2819, %v2412
      %v2884 = vmul.f32 %v2820, %v2414
      %v2885 = vmul.f32 %v2821, %v2416
      %v2886 = vmul.f32 %v2822, %v2418
      %v2887 = vmul.f32 %v2823, %v2420
      %v2888 = vmul.f32 %v2824, %v2422
      %v2889 = vmul.f32 %v2825, %v2424
      %v2890 = vmul.f32 %v2826, %v2426
      %v2891 = vmul.f32 %v2827, %v2428
      %v2892 = vmul.f32 %v2828, %v2430
      %v2893 = vmul.f32 %v2829, %v2432
      %v2894 = vmul.f32 %v2830, %v2434
      %v2895 = vmul.f32 %v2831, %v2436
      %v2896 = vmul.f32 %v2832, %v2438
      %v2897 = vmul.f32 %v2833, %v2440
      %v2898 = vmul.f32 %v2834, %v2442
      %v2899 = vmul.f32 %v2835, %v2444
      %v2900 = vmul.f32 %v2836, %v2446
      %v2901 = vmul.f32 %v2837, %v2448
      %v2902 = vmul.f32 %v2838, %v2450
      %v2903 = vmul.f32 %v2839, %v2452
      %v2904 = vmul.f32 %v2840, %v2454
      %v2905 = vmul.f32 %v2841, %v2456
      %v2906 = vmul.f32 %v2842, %v2458
      %v2907 = vadd.f32 %v2843, 0.2548296
      %v2908 = vadd.f32 %v2844, 0.2548296
      %v2909 = vadd.f32 %v2845, 0.2548296
      %v2910 = vadd.f32 %v2846, 0.2548296
      %v2911 = vadd.f32 %v2847, 0.2548296
      %v2912 = vadd.f32 %v2848, 0.2548296
      %v2913 = vadd.f32 %v2849, 0.2548296
      %v2914 = vadd.f32 %v2850, 0.2548296
      %v2915 = vadd.f32 %v2851, 0.2548296
      %v2916 = vadd.f32 %v2852, 0.2548296
      %v2917 = vadd.f32 %v2853, 0.2548296
      %v2918 = vadd.f32 %v2854, 0.2548296
      %v2919 = vadd.f32 %v2855, 0.2548296
      %v2920 = vadd.f32 %v2856, 0.2548296
      %v2921 = vadd.f32 %v2857, 0.2548296
      %v2922 = vadd.f32 %v2858, 0.2548296
      %v2923 = vadd.f32 %v2859, 0.2548296
      %v2924 = vadd.f32 %v2860, 0.2548296
      %v2925 = vadd.f32 %v2861, 0.2548296
      %v2926 = vadd.f32 %v2862, 0.2548296
      %v2927 = vadd.f32 %v2863, 0.2548296
      %v2928 = vadd.f32 %v2864, 0.2548296
      %v2929 = vadd.f32 %v2865, 0.2548296
      %v2930 = vadd.f32 %v2866, 0.2548296
      %v2931 = vadd.f32 %v2867, 0.2548296
      %v2932 = vadd.f32 %v2868, 0.2548296
      %v2933 = vadd.f32 %v2869, 0.2548296
      %v2934 = vadd.f32 %v2870, 0.2548296
      %v2935 = vadd.f32 %v2871, 0.2548296
      %v2936 = vadd.f32 %v2872, 0.2548296
      %v2937 = vadd.f32 %v2873, 0.2548296
      %v2938 = vadd.f32 %v2874, 0.2548296
      %v2939 = vadd.f32 %v2875, 0.2548296
      %v2940 = vadd.f32 %v2876, 0.2548296
      %v2941 = vadd.f32 %v2877, 0.2548296
      %v2942 = vadd.f32 %v2878, 0.2548296
      %v2943 = vadd.f32 %v2879, 0.2548296
      %v2944 = vadd.f32 %v2880, 0.2548296
      %v2945 = vadd.f32 %v2881, 0.2548296
      %v2946 = vadd.f32 %v2882, 0.2548296
      %v2947 = vadd.f32 %v2883, 0.2548296
      %v2948 = vadd.f32 %v2884, 0.2548296
      %v2949 = vadd.f32 %v2885, 0.2548296
      %v2950 = vadd.f32 %v2886, 0.2548296
      %v2951 = vadd.f32 %v2887, 0.2548296
      %v2952 = vadd.f32 %v2888, 0.2548296
      %v2953 = vadd.f32 %v2889, 0.2548296
      %v2954 = vadd.f32 %v2890, 0.2548296
      %v2955 = vadd.f32 %v2891, 0.2548296
      %v2956 = vadd.f32 %v2892, 0.2548296
      %v2957 = vadd.f32 %v2893, 0.2548296
      %v2958 = vadd.f32 %v2894, 0.2548296
      %v2959 = vadd.f32 %v2895, 0.2548296
      %v2960 = vadd.f32 %v2896, 0.2548296
      %v2961 = vadd.f32 %v2897, 0.2548296
      %v2962 = vadd.f32 %v2898, 0.2548296
      %v2963 = vadd.f32 %v2899, 0.2548296
      %v2964 = vadd.f32 %v2900, 0.2548296
      %v2965 = vadd.f32 %v2901, 0.2548296
      %v2966 = vadd.f32 %v2902, 0.2548296
      %v2967 = vadd.f32 %v2903, 0.2548296
      %v2968 = vadd.f32 %v2904, 0.2548296
      %v2969 = vadd.f32 %v2905, 0.2548296
      %v2970 = vadd.f32 %v2906, 0.2548296
      %v2971 = vmul.f32 %v2907, %v2332
      %v2972 = vmul.f32 %v2908, %v2334
      %v2973 = vmul.f32 %v2909, %v2336
      %v2974 = vmul.f32 %v2910, %v2338
      %v2975 = vmul.f32 %v2911, %v2340
      %v2976 = vmul.f32 %v2912, %v2342
      %v2977 = vmul.f32 %v2913, %v2344
      %v2978 = vmul.f32 %v2914, %v2346
      %v2979 = vmul.f32 %v2915, %v2348
      %v2980 = vmul.f32 %v2916, %v2350
      %v2981 = vmul.f32 %v2917, %v2352
      %v2982 = vmul.f32 %v2918, %v2354
      %v2983 = vmul.f32 %v2919, %v2356
      %v2984 = vmul.f32 %v2920, %v2358
      %v2985 = vmul.f32 %v2921, %v2360
      %v2986 = vmul.f32 %v2922, %v2362
      %v2987 = vmul.f32 %v2923, %v2364
      %v2988 = vmul.f32 %v2924, %v2366
      %v2989 = vmul.f32 %v2925, %v2368
      %v2990 = vmul.f32 %v2926, %v2370
      %v2991 = vmul.f32 %v2927, %v2372
      %v2992 = vmul.f32 %v2928, %v2374
      %v2993 = vmul.f32 %v2929, %v2376
      %v2994 = vmul.f32 %v2930, %v2378
      %v2995 = vmul.f32 %v2931, %v2380
      %v2996 = vmul.f32 %v2932, %v2382
      %v2997 = vmul.f32 %v2933, %v2384
      %v2998 = vmul.f32 %v2934, %v2386
      %v2999 = vmul.f32 %v2935, %v2388
      %v3000 = vmul.f32 %v2936, %v2390
      %v3001 = vmul.f32 %v2937, %v2392
      %v3002 = vmul.f32 %v2938, %v2394
      %v3003 = vmul.f32 %v2939, %v2396
      %v3004 = vmul.f32 %v2940, %v2398
      %v3005 = vmul.f32 %v2941, %v2400
      %v3006 = vmul.f32 %v2942, %v2402
      %v3007 = vmul.f32 %v2943, %v2404
      %v3008 = vmul.f32 %v2944, %v2406
      %v3009 = vmul.f32 %v2945, %v2408
      %v3010 = vmul.f32 %v2946, %v2410
      %v3011 = vmul.f32 %v2947, %v2412
      %v3012 = vmul.f32 %v2948, %v2414
      %v3013 = vmul.f32 %v2949, %v2416
      %v3014 = vmul.f32 %v2950, %v2418
      %v3015 = vmul.f32 %v2951, %v2420
      %v3016 = vmul.f32 %v2952, %v2422
      %v3017 = vmul.f32 %v2953, %v2424
      %v3018 = vmul.f32 %v2954, %v2426
      %v3019 = vmul.f32 %v2955, %v2428
      %v3020 = vmul.f32 %v2956, %v2430
      %v3021 = vmul.f32 %v2957, %v2432
      %v3022 = vmul.f32 %v2958, %v2434
      %v3023 = vmul.f32 %v2959, %v2436
      %v3024 = vmul.f32 %v2960, %v2438
      %v3025 = vmul.f32 %v2961, %v2440
      %v3026 = vmul.f32 %v2962, %v2442
      %v3027 = vmul.f32 %v2963, %v2444
      %v3028 = vmul.f32 %v2964, %v2446
      %v3029 = vmul.f32 %v2965, %v2448
      %v3030 = vmul.f32 %v2966, %v2450
      %v3031 = vmul.f32 %v2967, %v2452
      %v3032 = vmul.f32 %v2968, %v2454
      %v3033 = vmul.f32 %v2969, %v2456
      %v3034 = vmul.f32 %v2970, %v2458
      %v3035 = vsub.f32 0.0, %v2139
      %v3036 = vsub.f32 0.0, %v2140
      %v3037 = vsub.f32 0.0, %v2141
      %v3038 = vsub.f32 0.0, %v2142
      %v3039 = vsub.f32 0.0, %v2143
      %v3040 = vsub.f32 0.0, %v2144
      %v3041 = vsub.f32 0.0, %v2145
      %v3042 = vsub.f32 0.0, %v2146
      %v3043 = vsub.f32 0.0, %v2147
      %v3044 = vsub.f32 0.0, %v2148
      %v3045 = vsub.f32 0.0, %v2149
      %v3046 = vsub.f32 0.0, %v2150
      %v3047 = vsub.f32 0.0, %v2151
      %v3048 = vsub.f32 0.0, %v2152
      %v3049 = vsub.f32 0.0, %v2153
      %v3050 = vsub.f32 0.0, %v2154
      %v3051 = vsub.f32 0.0, %v2155
      %v3052 = vsub.f32 0.0, %v2156
      %v3053 = vsub.f32 0.0, %v2157
      %v3054 = vsub.f32 0.0, %v2158
      %v3055 = vsub.f32 0.0, %v2159
      %v3056 = vsub.f32 0.0, %v2160
      %v3057 = vsub.f32 0.0, %v2161
      %v3058 = vsub.f32 0.0, %v2162
      %v3059 = vsub.f32 0.0, %v2163
      %v3060 = vsub.f32 0.0, %v2164
      %v3061 = vsub.f32 0.0, %v2165
      %v3062 = vsub.f32 0.0, %v2166
      %v3063 = vsub.f32 0.0, %v2167
      %v3064 = vsub.f32 0.0, %v2168
      %v3065 = vsub.f32 0.0, %v2169
      %v3066 = vsub.f32 0.0, %v2170
      %v3067 = vsub.f32 0.0, %v2171
      %v3068 = vsub.f32 0.0, %v2172
      %v3069 = vsub.f32 0.0, %v2173
      %v3070 = vsub.f32 0.0, %v2174
      %v3071 = vsub.f32 0.0, %v2175
      %v3072 = vsub.f32 0.0, %v2176
      %v3073 = vsub.f32 0.0, %v2177
      %v3074 = vsub.f32 0.0, %v2178
      %v3075 = vsub.f32 0.0, %v2179
      %v3076 = vsub.f32 0.0, %v2180
      %v3077 = vsub.f32 0.0, %v2181
      %v3078 = vsub.f32 0.0, %v2182
      %v3079 = vsub.f32 0.0, %v2183
      %v3080 = vsub.f32 0.0, %v2184
      %v3081 = vsub.f32 0.0, %v2185
      %v3082 = vsub.f32 0.0, %v2186
      %v3083 = vsub.f32 0.0, %v2187
      %v3084 = vsub.f32 0.0, %v2188
      %v3085 = vsub.f32 0.0, %v2189
      %v3086 = vsub.f32 0.0, %v2190
      %v3087 = vsub.f32 0.0, %v2191
      %v3088 = vsub.f32 0.0, %v2192
      %v3089 = vsub.f32 0.0, %v2193
      %v3090 = vsub.f32 0.0, %v2194
      %v3091 = vsub.f32 0.0, %v2195
      %v3092 = vsub.f32 0.0, %v2196
      %v3093 = vsub.f32 0.0, %v2197
      %v3094 = vsub.f32 0.0, %v2198
      %v3095 = vsub.f32 0.0, %v2199
      %v3096 = vsub.f32 0.0, %v2200
      %v3097 = vsub.f32 0.0, %v2201
      %v3098 = vsub.f32 0.0, %v2202
      %v3099 = vmul.f32 %v3035, %v2139
      %v3100 = vmul.f32 %v3036, %v2140
      %v3101 = vmul.f32 %v3037, %v2141
      %v3102 = vmul.f32 %v3038, %v2142
      %v3103 = vmul.f32 %v3039, %v2143
      %v3104 = vmul.f32 %v3040, %v2144
      %v3105 = vmul.f32 %v3041, %v2145
      %v3106 = vmul.f32 %v3042, %v2146
      %v3107 = vmul.f32 %v3043, %v2147
      %v3108 = vmul.f32 %v3044, %v2148
      %v3109 = vmul.f32 %v3045, %v2149
      %v3110 = vmul.f32 %v3046, %v2150
      %v3111 = vmul.f32 %v3047, %v2151
      %v3112 = vmul.f32 %v3048, %v2152
      %v3113 = vmul.f32 %v3049, %v2153
      %v3114 = vmul.f32 %v3050, %v2154
      %v3115 = vmul.f32 %v3051, %v2155
      %v3116 = vmul.f32 %v3052, %v2156
      %v3117 = vmul.f32 %v3053, %v2157
      %v3118 = vmul.f32 %v3054, %v2158
      %v3119 = vmul.f32 %v3055, %v2159
      %v3120 = vmul.f32 %v3056, %v2160
      %v3121 = vmul.f32 %v3057, %v2161
      %v3122 = vmul.f32 %v3058, %v2162
      %v3123 = vmul.f32 %v3059, %v2163
      %v3124 = vmul.f32 %v3060, %v2164
      %v3125 = vmul.f32 %v3061, %v2165
      %v3126 = vmul.f32 %v3062, %v2166
      %v3127 = vmul.f32 %v3063, %v2167
      %v3128 = vmul.f32 %v3064, %v2168
      %v3129 = vmul.f32 %v3065, %v2169
      %v3130 = vmul.f32 %v3066, %v2170
      %v3131 = vmul.f32 %v3067, %v2171
      %v3132 = vmul.f32 %v3068, %v2172
      %v3133 = vmul.f32 %v3069, %v2173
      %v3134 = vmul.f32 %v3070, %v2174
      %v3135 = vmul.f32 %v3071, %v2175
      %v3136 = vmul.f32 %v3072, %v2176
      %v3137 = vmul.f32 %v3073, %v2177
      %v3138 = vmul.f32 %v3074, %v2178
      %v3139 = vmul.f32 %v3075, %v2179
      %v3140 = vmul.f32 %v3076, %v2180
      %v3141 = vmul.f32 %v3077, %v2181
      %v3142 = vmul.f32 %v3078, %v2182
      %v3143 = vmul.f32 %v3079, %v2183
      %v3144 = vmul.f32 %v3080, %v2184
      %v3145 = vmul.f32 %v3081, %v2185
      %v3146 = vmul.f32 %v3082, %v2186
      %v3147 = vmul.f32 %v3083, %v2187
      %v3148 = vmul.f32 %v3084, %v2188
      %v3149 = vmul.f32 %v3085, %v2189
      %v3150 = vmul.f32 %v3086, %v2190
      %v3151 = vmul.f32 %v3087, %v2191
      %v3152 = vmul.f32 %v3088, %v2192
      %v3153 = vmul.f32 %v3089, %v2193
      %v3154 = vmul.f32 %v3090, %v2194
      %v3155 = vmul.f32 %v3091, %v2195
      %v3156 = vmul.f32 %v3092, %v2196
      %v3157 = vmul.f32 %v3093, %v2197
      %v3158 = vmul.f32 %v3094, %v2198
      %v3159 = vmul.f32 %v3095, %v2199
      %v3160 = vmul.f32 %v3096, %v2200
      %v3161 = vmul.f32 %v3097, %v2201
      %v3162 = vmul.f32 %v3098, %v2202
      %v3163 = vmul.f32 %v3099, 1.442695
      %v3164 = vpow.pop %v3163
      %v3165 = vmul.f32 %v3100, 1.442695
      %v3166 = vpow.pop %v3165
      %v3167 = vmul.f32 %v3101, 1.442695
      %v3168 = vpow.pop %v3167
      %v3169 = vmul.f32 %v3102, 1.442695
      %v3170 = vpow.pop %v3169
      %v3171 = vmul.f32 %v3103, 1.442695
      %v3172 = vpow.pop %v3171
      %v3173 = vmul.f32 %v3104, 1.442695
      %v3174 = vpow.pop %v3173
      %v3175 = vmul.f32 %v3105, 1.442695
      %v3176 = vpow.pop %v3175
      %v3177 = vmul.f32 %v3106, 1.442695
      %v3178 = vpow.pop %v3177
      %v3179 = vmul.f32 %v3107, 1.442695
      %v3180 = vpow.pop %v3179
      %v3181 = vmul.f32 %v3108, 1.442695
      %v3182 = vpow.pop %v3181
      %v3183 = vmul.f32 %v3109, 1.442695
      %v3184 = vpow.pop %v3183
      %v3185 = vmul.f32 %v3110, 1.442695
      %v3186 = vpow.pop %v3185
      %v3187 = vmul.f32 %v3111, 1.442695
      %v3188 = vpow.pop %v3187
      %v3189 = vmul.f32 %v3112, 1.442695
      %v3190 = vpow.pop %v3189
      %v3191 = vmul.f32 %v3113, 1.442695
      %v3192 = vpow.pop %v3191
      %v3193 = vmul.f32 %v3114, 1.442695
      %v3194 = vpow.pop %v3193
      %v3195 = vmul.f32 %v3115, 1.442695
      %v3196 = vpow.pop %v3195
      %v3197 = vmul.f32 %v3116, 1.442695
      %v3198 = vpow.pop %v3197
      %v3199 = vmul.f32 %v3117, 1.442695
      %v3200 = vpow.pop %v3199
      %v3201 = vmul.f32 %v3118, 1.442695
      %v3202 = vpow.pop %v3201
      %v3203 = vmul.f32 %v3119, 1.442695
      %v3204 = vpow.pop %v3203
      %v3205 = vmul.f32 %v3120, 1.442695
      %v3206 = vpow.pop %v3205
      %v3207 = vmul.f32 %v3121, 1.442695
      %v3208 = vpow.pop %v3207
      %v3209 = vmul.f32 %v3122, 1.442695
      %v3210 = vpow.pop %v3209
      %v3211 = vmul.f32 %v3123, 1.442695
      %v3212 = vpow.pop %v3211
      %v3213 = vmul.f32 %v3124, 1.442695
      %v3214 = vpow.pop %v3213
      %v3215 = vmul.f32 %v3125, 1.442695
      %v3216 = vpow.pop %v3215
      %v3217 = vmul.f32 %v3126, 1.442695
      %v3218 = vpow.pop %v3217
      %v3219 = vmul.f32 %v3127, 1.442695
      %v3220 = vpow.pop %v3219
      %v3221 = vmul.f32 %v3128, 1.442695
      %v3222 = vpow.pop %v3221
      %v3223 = vmul.f32 %v3129, 1.442695
      %v3224 = vpow.pop %v3223
      %v3225 = vmul.f32 %v3130, 1.442695
      %v3226 = vpow.pop %v3225
      %v3227 = vmul.f32 %v3131, 1.442695
      %v3228 = vpow.pop %v3227
      %v3229 = vmul.f32 %v3132, 1.442695
      %v3230 = vpow.pop %v3229
      %v3231 = vmul.f32 %v3133, 1.442695
      %v3232 = vpow.pop %v3231
      %v3233 = vmul.f32 %v3134, 1.442695
      %v3234 = vpow.pop %v3233
      %v3235 = vmul.f32 %v3135, 1.442695
      %v3236 = vpow.pop %v3235
      %v3237 = vmul.f32 %v3136, 1.442695
      %v3238 = vpow.pop %v3237
      %v3239 = vmul.f32 %v3137, 1.442695
      %v3240 = vpow.pop %v3239
      %v3241 = vmul.f32 %v3138, 1.442695
      %v3242 = vpow.pop %v3241
      %v3243 = vmul.f32 %v3139, 1.442695
      %v3244 = vpow.pop %v3243
      %v3245 = vmul.f32 %v3140, 1.442695
      %v3246 = vpow.pop %v3245
      %v3247 = vmul.f32 %v3141, 1.442695
      %v3248 = vpow.pop %v3247
      %v3249 = vmul.f32 %v3142, 1.442695
      %v3250 = vpow.pop %v3249
      %v3251 = vmul.f32 %v3143, 1.442695
      %v3252 = vpow.pop %v3251
      %v3253 = vmul.f32 %v3144, 1.442695
      %v3254 = vpow.pop %v3253
      %v3255 = vmul.f32 %v3145, 1.442695
      %v3256 = vpow.pop %v3255
      %v3257 = vmul.f32 %v3146, 1.442695
      %v3258 = vpow.pop %v3257
      %v3259 = vmul.f32 %v3147, 1.442695
      %v3260 = vpow.pop %v3259
      %v3261 = vmul.f32 %v3148, 1.442695
      %v3262 = vpow.pop %v3261
      %v3263 = vmul.f32 %v3149, 1.442695
      %v3264 = vpow.pop %v3263
      %v3265 = vmul.f32 %v3150, 1.442695
      %v3266 = vpow.pop %v3265
      %v3267 = vmul.f32 %v3151, 1.442695
      %v3268 = vpow.pop %v3267
      %v3269 = vmul.f32 %v3152, 1.442695
      %v3270 = vpow.pop %v3269
      %v3271 = vmul.f32 %v3153, 1.442695
      %v3272 = vpow.pop %v3271
      %v3273 = vmul.f32 %v3154, 1.442695
      %v3274 = vpow.pop %v3273
      %v3275 = vmul.f32 %v3155, 1.442695
      %v3276 = vpow.pop %v3275
      %v3277 = vmul.f32 %v3156, 1.442695
      %v3278 = vpow.pop %v3277
      %v3279 = vmul.f32 %v3157, 1.442695
      %v3280 = vpow.pop %v3279
      %v3281 = vmul.f32 %v3158, 1.442695
      %v3282 = vpow.pop %v3281
      %v3283 = vmul.f32 %v3159, 1.442695
      %v3284 = vpow.pop %v3283
      %v3285 = vmul.f32 %v3160, 1.442695
      %v3286 = vpow.pop %v3285
      %v3287 = vmul.f32 %v3161, 1.442695
      %v3288 = vpow.pop %v3287
      %v3289 = vmul.f32 %v3162, 1.442695
      %v3290 = vpow.pop %v3289
      %v3291 = vmul.f32 %v2971, %v3164
      %v3292 = vmul.f32 %v2972, %v3166
      %v3293 = vmul.f32 %v2973, %v3168
      %v3294 = vmul.f32 %v2974, %v3170
      %v3295 = vmul.f32 %v2975, %v3172
      %v3296 = vmul.f32 %v2976, %v3174
      %v3297 = vmul.f32 %v2977, %v3176
      %v3298 = vmul.f32 %v2978, %v3178
      %v3299 = vmul.f32 %v2979, %v3180
      %v3300 = vmul.f32 %v2980, %v3182
      %v3301 = vmul.f32 %v2981, %v3184
      %v3302 = vmul.f32 %v2982, %v3186
      %v3303 = vmul.f32 %v2983, %v3188
      %v3304 = vmul.f32 %v2984, %v3190
      %v3305 = vmul.f32 %v2985, %v3192
      %v3306 = vmul.f32 %v2986, %v3194
      %v3307 = vmul.f32 %v2987, %v3196
      %v3308 = vmul.f32 %v2988, %v3198
      %v3309 = vmul.f32 %v2989, %v3200
      %v3310 = vmul.f32 %v2990, %v3202
      %v3311 = vmul.f32 %v2991, %v3204
      %v3312 = vmul.f32 %v2992, %v3206
      %v3313 = vmul.f32 %v2993, %v3208
      %v3314 = vmul.f32 %v2994, %v3210
      %v3315 = vmul.f32 %v2995, %v3212
      %v3316 = vmul.f32 %v2996, %v3214
      %v3317 = vmul.f32 %v2997, %v3216
      %v3318 = vmul.f32 %v2998, %v3218
      %v3319 = vmul.f32 %v2999, %v3220
      %v3320 = vmul.f32 %v3000, %v3222
      %v3321 = vmul.f32 %v3001, %v3224
      %v3322 = vmul.f32 %v3002, %v3226
      %v3323 = vmul.f32 %v3003, %v3228
      %v3324 = vmul.f32 %v3004, %v3230
      %v3325 = vmul.f32 %v3005, %v3232
      %v3326 = vmul.f32 %v3006, %v3234
      %v3327 = vmul.f32 %v3007, %v3236
      %v3328 = vmul.f32 %v3008, %v3238
      %v3329 = vmul.f32 %v3009, %v3240
      %v3330 = vmul.f32 %v3010, %v3242
      %v3331 = vmul.f32 %v3011, %v3244
      %v3332 = vmul.f32 %v3012, %v3246
      %v3333 = vmul.f32 %v3013, %v3248
      %v3334 = vmul.f32 %v3014, %v3250
      %v3335 = vmul.f32 %v3015, %v3252
      %v3336 = vmul.f32 %v3016, %v3254
      %v3337 = vmul.f32 %v3017, %v3256
      %v3338 = vmul.f32 %v3018, %v3258
      %v3339 = vmul.f32 %v3019, %v3260
      %v3340 = vmul.f32 %v3020, %v3262
      %v3341 = vmul.f32 %v3021, %v3264
      %v3342 = vmul.f32 %v3022, %v3266
      %v3343 = vmul.f32 %v3023, %v3268
      %v3344 = vmul.f32 %v3024, %v3270
      %v3345 = vmul.f32 %v3025, %v3272
      %v3346 = vmul.f32 %v3026, %v3274
      %v3347 = vmul.f32 %v3027, %v3276
      %v3348 = vmul.f32 %v3028, %v3278
      %v3349 = vmul.f32 %v3029, %v3280
      %v3350 = vmul.f32 %v3030, %v3282
      %v3351 = vmul.f32 %v3031, %v3284
      %v3352 = vmul.f32 %v3032, %v3286
      %v3353 = vmul.f32 %v3033, %v3288
      %v3354 = vmul.f32 %v3034, %v3290
      %v3355 = vsub.f32 1.0, %v3291
      %v3356 = vsub.f32 1.0, %v3292
      %v3357 = vsub.f32 1.0, %v3293
      %v3358 = vsub.f32 1.0, %v3294
      %v3359 = vsub.f32 1.0, %v3295
      %v3360 = vsub.f32 1.0, %v3296
      %v3361 = vsub.f32 1.0, %v3297
      %v3362 = vsub.f32 1.0, %v3298
      %v3363 = vsub.f32 1.0, %v3299
      %v3364 = vsub.f32 1.0, %v3300
      %v3365 = vsub.f32 1.0, %v3301
      %v3366 = vsub.f32 1.0, %v3302
      %v3367 = vsub.f32 1.0, %v3303
      %v3368 = vsub.f32 1.0, %v3304
      %v3369 = vsub.f32 1.0, %v3305
      %v3370 = vsub.f32 1.0, %v3306
      %v3371 = vsub.f32 1.0, %v3307
      %v3372 = vsub.f32 1.0, %v3308
      %v3373 = vsub.f32 1.0, %v3309
      %v3374 = vsub.f32 1.0, %v3310
      %v3375 = vsub.f32 1.0, %v3311
      %v3376 = vsub.f32 1.0, %v3312
      %v3377 = vsub.f32 1.0, %v3313
      %v3378 = vsub.f32 1.0, %v3314
      %v3379 = vsub.f32 1.0, %v3315
      %v3380 = vsub.f32 1.0, %v3316
      %v3381 = vsub.f32 1.0, %v3317
      %v3382 = vsub.f32 1.0, %v3318
      %v3383 = vsub.f32 1.0, %v3319
      %v3384 = vsub.f32 1.0, %v3320
      %v3385 = vsub.f32 1.0, %v3321
      %v3386 = vsub.f32 1.0, %v3322
      %v3387 = vsub.f32 1.0, %v3323
      %v3388 = vsub.f32 1.0, %v3324
      %v3389 = vsub.f32 1.0, %v3325
      %v3390 = vsub.f32 1.0, %v3326
      %v3391 = vsub.f32 1.0, %v3327
      %v3392 = vsub.f32 1.0, %v3328
      %v3393 = vsub.f32 1.0, %v3329
      %v3394 = vsub.f32 1.0, %v3330
      %v3395 = vsub.f32 1.0, %v3331
      %v3396 = vsub.f32 1.0, %v3332
      %v3397 = vsub.f32 1.0, %v3333
      %v3398 = vsub.f32 1.0, %v3334
      %v3399 = vsub.f32 1.0, %v3335
      %v3400 = vsub.f32 1.0, %v3336
      %v3401 = vsub.f32 1.0, %v3337
      %v3402 = vsub.f32 1.0, %v3338
      %v3403 = vsub.f32 1.0, %v3339
      %v3404 = vsub.f32 1.0, %v3340
      %v3405 = vsub.f32 1.0, %v3341
      %v3406 = vsub.f32 1.0, %v3342
      %v3407 = vsub.f32 1.0, %v3343
      %v3408 = vsub.f32 1.0, %v3344
      %v3409 = vsub.f32 1.0, %v3345
      %v3410 = vsub.f32 1.0, %v3346
      %v3411 = vsub.f32 1.0, %v3347
      %v3412 = vsub.f32 1.0, %v3348
      %v3413 = vsub.f32 1.0, %v3349
      %v3414 = vsub.f32 1.0, %v3350
      %v3415 = vsub.f32 1.0, %v3351
      %v3416 = vsub.f32 1.0, %v3352
      %v3417 = vsub.f32 1.0, %v3353
      %v3418 = vsub.f32 1.0, %v3354
      %v3419 = vmul.f32 %v2075, %v3355
      %v3420 = vmul.f32 %v2076, %v3356
      %v3421 = vmul.f32 %v2077, %v3357
      %v3422 = vmul.f32 %v2078, %v3358
      %v3423 = vmul.f32 %v2079, %v3359
      %v3424 = vmul.f32 %v2080, %v3360
      %v3425 = vmul.f32 %v2081, %v3361
      %v3426 = vmul.f32 %v2082, %v3362
      %v3427 = vmul.f32 %v2083, %v3363
      %v3428 = vmul.f32 %v2084, %v3364
      %v3429 = vmul.f32 %v2085, %v3365
      %v3430 = vmul.f32 %v2086, %v3366
      %v3431 = vmul.f32 %v2087, %v3367
      %v3432 = vmul.f32 %v2088, %v3368
      %v3433 = vmul.f32 %v2089, %v3369
      %v3434 = vmul.f32 %v2090, %v3370
      %v3435 = vmul.f32 %v2091, %v3371
      %v3436 = vmul.f32 %v2092, %v3372
      %v3437 = vmul.f32 %v2093, %v3373
      %v3438 = vmul.f32 %v2094, %v3374
      %v3439 = vmul.f32 %v2095, %v3375
      %v3440 = vmul.f32 %v2096, %v3376
      %v3441 = vmul.f32 %v2097, %v3377
      %v3442 = vmul.f32 %v2098, %v3378
      %v3443 = vmul.f32 %v2099, %v3379
      %v3444 = vmul.f32 %v2100, %v3380
      %v3445 = vmul.f32 %v2101, %v3381
      %v3446 = vmul.f32 %v2102, %v3382
      %v3447 = vmul.f32 %v2103, %v3383
      %v3448 = vmul.f32 %v2104, %v3384
      %v3449 = vmul.f32 %v2105, %v3385
      %v3450 = vmul.f32 %v2106, %v3386
      %v3451 = vmul.f32 %v2107, %v3387
      %v3452 = vmul.f32 %v2108, %v3388
      %v3453 = vmul.f32 %v2109, %v3389
      %v3454 = vmul.f32 %v2110, %v3390
      %v3455 = vmul.f32 %v2111, %v3391
      %v3456 = vmul.f32 %v2112, %v3392
      %v3457 = vmul.f32 %v2113, %v3393
      %v3458 = vmul.f32 %v2114, %v3394
      %v3459 = vmul.f32 %v2115, %v3395
      %v3460 = vmul.f32 %v2116, %v3396
      %v3461 = vmul.f32 %v2117, %v3397
      %v3462 = vmul.f32 %v2118, %v3398
      %v3463 = vmul.f32 %v2119, %v3399
      %v3464 = vmul.f32 %v2120, %v3400
      %v3465 = vmul.f32 %v2121, %v3401
      %v3466 = vmul.f32 %v2122, %v3402
      %v3467 = vmul.f32 %v2123, %v3403
      %v3468 = vmul.f32 %v2124, %v3404
      %v3469 = vmul.f32 %v2125, %v3405
      %v3470 = vmul.f32 %v2126, %v3406
      %v3471 = vmul.f32 %v2127, %v3407
      %v3472 = vmul.f32 %v2128, %v3408
      %v3473 = vmul.f32 %v2129, %v3409
      %v3474 = vmul.f32 %v2130, %v3410
      %v3475 = vmul.f32 %v2131, %v3411
      %v3476 = vmul.f32 %v2132, %v3412
      %v3477 = vmul.f32 %v2133, %v3413
      %v3478 = vmul.f32 %v2134, %v3414
      %v3479 = vmul.f32 %v2135, %v3415
      %v3480 = vmul.f32 %v2136, %v3416
      %v3481 = vmul.f32 %v2137, %v3417
      %v3482 = vmul.f32 %v2138, %v3418
      %v3483 = vadd.f32 %v3419, 1.0
      %v3484 = vadd.f32 %v3420, 1.0
      %v3485 = vadd.f32 %v3421, 1.0
      %v3486 = vadd.f32 %v3422, 1.0
      %v3487 = vadd.f32 %v3423, 1.0
      %v3488 = vadd.f32 %v3424, 1.0
      %v3489 = vadd.f32 %v3425, 1.0
      %v3490 = vadd.f32 %v3426, 1.0
      %v3491 = vadd.f32 %v3427, 1.0
      %v3492 = vadd.f32 %v3428, 1.0
      %v3493 = vadd.f32 %v3429, 1.0
      %v3494 = vadd.f32 %v3430, 1.0
      %v3495 = vadd.f32 %v3431, 1.0
      %v3496 = vadd.f32 %v3432, 1.0
      %v3497 = vadd.f32 %v3433, 1.0
      %v3498 = vadd.f32 %v3434, 1.0
      %v3499 = vadd.f32 %v3435, 1.0
      %v3500 = vadd.f32 %v3436, 1.0
      %v3501 = vadd.f32 %v3437, 1.0
      %v3502 = vadd.f32 %v3438, 1.0
      %v3503 = vadd.f32 %v3439, 1.0
      %v3504 = vadd.f32 %v3440, 1.0
      %v3505 = vadd.f32 %v3441, 1.0
      %v3506 = vadd.f32 %v3442, 1.0
      %v3507 = vadd.f32 %v3443, 1.0
      %v3508 = vadd.f32 %v3444, 1.0
      %v3509 = vadd.f32 %v3445, 1.0
      %v3510 = vadd.f32 %v3446, 1.0
      %v3511 = vadd.f32 %v3447, 1.0
      %v3512 = vadd.f32 %v3448, 1.0
      %v3513 = vadd.f32 %v3449, 1.0
      %v3514 = vadd.f32 %v3450, 1.0
      %v3515 = vadd.f32 %v3451, 1.0
      %v3516 = vadd.f32 %v3452, 1.0
      %v3517 = vadd.f32 %v3453, 1.0
      %v3518 = vadd.f32 %v3454, 1.0
      %v3519 = vadd.f32 %v3455, 1.0
      %v3520 = vadd.f32 %v3456, 1.0
      %v3521 = vadd.f32 %v3457, 1.0
      %v3522 = vadd.f32 %v3458, 1.0
      %v3523 = vadd.f32 %v3459, 1.0
      %v3524 = vadd.f32 %v3460, 1.0
      %v3525 = vadd.f32 %v3461, 1.0
      %v3526 = vadd.f32 %v3462, 1.0
      %v3527 = vadd.f32 %v3463, 1.0
      %v3528 = vadd.f32 %v3464, 1.0
      %v3529 = vadd.f32 %v3465, 1.0
      %v3530 = vadd.f32 %v3466, 1.0
      %v3531 = vadd.f32 %v3467, 1.0
      %v3532 = vadd.f32 %v3468, 1.0
      %v3533 = vadd.f32 %v3469, 1.0
      %v3534 = vadd.f32 %v3470, 1.0
      %v3535 = vadd.f32 %v3471, 1.0
      %v3536 = vadd.f32 %v3472, 1.0
      %v3537 = vadd.f32 %v3473, 1.0
      %v3538 = vadd.f32 %v3474, 1.0
      %v3539 = vadd.f32 %v3475, 1.0
      %v3540 = vadd.f32 %v3476, 1.0
      %v3541 = vadd.f32 %v3477, 1.0
      %v3542 = vadd.f32 %v3478, 1.0
      %v3543 = vadd.f32 %v3479, 1.0
      %v3544 = vadd.f32 %v3480, 1.0
      %v3545 = vadd.f32 %v3481, 1.0
      %v3546 = vadd.f32 %v3482, 1.0
      %v3547 = vmul.f32 %v1883, %v3483
      %v3548 = vmul.f32 %v1884, %v3484
      %v3549 = vmul.f32 %v1885, %v3485
      %v3550 = vmul.f32 %v1886, %v3486
      %v3551 = vmul.f32 %v1887, %v3487
      %v3552 = vmul.f32 %v1888, %v3488
      %v3553 = vmul.f32 %v1889, %v3489
      %v3554 = vmul.f32 %v1890, %v3490
      %v3555 = vmul.f32 %v1891, %v3491
      %v3556 = vmul.f32 %v1892, %v3492
      %v3557 = vmul.f32 %v1893, %v3493
      %v3558 = vmul.f32 %v1894, %v3494
      %v3559 = vmul.f32 %v1895, %v3495
      %v3560 = vmul.f32 %v1896, %v3496
      %v3561 = vmul.f32 %v1897, %v3497
      %v3562 = vmul.f32 %v1898, %v3498
      %v3563 = vmul.f32 %v1899, %v3499
      %v3564 = vmul.f32 %v1900, %v3500
      %v3565 = vmul.f32 %v1901, %v3501
      %v3566 = vmul.f32 %v1902, %v3502
      %v3567 = vmul.f32 %v1903, %v3503
      %v3568 = vmul.f32 %v1904, %v3504
      %v3569 = vmul.f32 %v1905, %v3505
      %v3570 = vmul.f32 %v1906, %v3506
      %v3571 = vmul.f32 %v1907, %v3507
      %v3572 = vmul.f32 %v1908, %v3508
      %v3573 = vmul.f32 %v1909, %v3509
      %v3574 = vmul.f32 %v1910, %v3510
      %v3575 = vmul.f32 %v1911, %v3511
      %v3576 = vmul.f32 %v1912, %v3512
      %v3577 = vmul.f32 %v1913, %v3513
      %v3578 = vmul.f32 %v1914, %v3514
      %v3579 = vmul.f32 %v1915, %v3515
      %v3580 = vmul.f32 %v1916, %v3516
      %v3581 = vmul.f32 %v1917, %v3517
      %v3582 = vmul.f32 %v1918, %v3518
      %v3583 = vmul.f32 %v1919, %v3519
      %v3584 = vmul.f32 %v1920, %v3520
      %v3585 = vmul.f32 %v1921, %v3521
      %v3586 = vmul.f32 %v1922, %v3522
      %v3587 = vmul.f32 %v1923, %v3523
      %v3588 = vmul.f32 %v1924, %v3524
      %v3589 = vmul.f32 %v1925, %v3525
      %v3590 = vmul.f32 %v1926, %v3526
      %v3591 = vmul.f32 %v1927, %v3527
      %v3592 = vmul.f32 %v1928, %v3528
      %v3593 = vmul.f32 %v1929, %v3529
      %v3594 = vmul.f32 %v1930, %v3530
      %v3595 = vmul.f32 %v1931, %v3531
      %v3596 = vmul.f32 %v1932, %v3532
      %v3597 = vmul.f32 %v1933, %v3533
      %v3598 = vmul.f32 %v1934, %v3534
      %v3599 = vmul.f32 %v1935, %v3535
      %v3600 = vmul.f32 %v1936, %v3536
      %v3601 = vmul.f32 %v1937, %v3537
      %v3602 = vmul.f32 %v1938, %v3538
      %v3603 = vmul.f32 %v1939, %v3539
      %v3604 = vmul.f32 %v1940, %v3540
      %v3605 = vmul.f32 %v1941, %v3541
      %v3606 = vmul.f32 %v1942, %v3542
      %v3607 = vmul.f32 %v1943, %v3543
      %v3608 = vmul.f32 %v1944, %v3544
      %v3609 = vmul.f32 %v1945, %v3545
      %v3610 = vmul.f32 %v1946, %v3546
      %v3611 = vpack.c.bf16 %v3551, %v3547
      %v3612 = vpack.c.bf16 %v3552, %v3548
      %v3613 = vpack.c.bf16 %v3553, %v3549
      %v3614 = vpack.c.bf16 %v3554, %v3550
      %v3615 = vpack.c.bf16 %v3559, %v3555
      %v3616 = vpack.c.bf16 %v3560, %v3556
      %v3617 = vpack.c.bf16 %v3561, %v3557
      %v3618 = vpack.c.bf16 %v3562, %v3558
      %v3619 = vpack.c.bf16 %v3567, %v3563
      %v3620 = vpack.c.bf16 %v3568, %v3564
      %v3621 = vpack.c.bf16 %v3569, %v3565
      %v3622 = vpack.c.bf16 %v3570, %v3566
      %v3623 = vpack.c.bf16 %v3575, %v3571
      %v3624 = vpack.c.bf16 %v3576, %v3572
      %v3625 = vpack.c.bf16 %v3577, %v3573
      %v3626 = vpack.c.bf16 %v3578, %v3574
      %v3627 = vpack.c.bf16 %v3583, %v3579
      %v3628 = vpack.c.bf16 %v3584, %v3580
      %v3629 = vpack.c.bf16 %v3585, %v3581
      %v3630 = vpack.c.bf16 %v3586, %v3582
      %v3631 = vpack.c.bf16 %v3591, %v3587
      %v3632 = vpack.c.bf16 %v3592, %v3588
      %v3633 = vpack.c.bf16 %v3593, %v3589
      %v3634 = vpack.c.bf16 %v3594, %v3590
      %v3635 = vpack.c.bf16 %v3599, %v3595
      %v3636 = vpack.c.bf16 %v3600, %v3596
      %v3637 = vpack.c.bf16 %v3601, %v3597
      %v3638 = vpack.c.bf16 %v3602, %v3598
      %v3639 = vpack.c.bf16 %v3607, %v3603
      %v3640 = vpack.c.bf16 %v3608, %v3604
      %v3641 = vpack.c.bf16 %v3609, %v3605
      %v3642 = vpack.c.bf16 %v3610, %v3606
      %v3675 = vunpack.c.l.b16 %v3611
      %v3676 = vunpack.c.l.b16 %v3612
      %v3677 = vunpack.c.l.b16 %v3613
      %v3678 = vunpack.c.l.b16 %v3614
      %v3679 = vunpack.c.h.b16 %v3611
      %v3680 = vunpack.c.h.b16 %v3612
      %v3681 = vunpack.c.h.b16 %v3613
      %v3682 = vunpack.c.h.b16 %v3614
      %v3683 = vunpack.c.l.b16 %v3615
      %v3684 = vunpack.c.l.b16 %v3616
      %v3685 = vunpack.c.l.b16 %v3617
      %v3686 = vunpack.c.l.b16 %v3618
      %v3687 = vunpack.c.h.b16 %v3615
      %v3688 = vunpack.c.h.b16 %v3616
      %v3689 = vunpack.c.h.b16 %v3617
      %v3690 = vunpack.c.h.b16 %v3618
      %v3691 = vunpack.c.l.b16 %v3619
      %v3692 = vunpack.c.l.b16 %v3620
      %v3693 = vunpack.c.l.b16 %v3621
      %v3694 = vunpack.c.l.b16 %v3622
      %v3695 = vunpack.c.h.b16 %v3619
      %v3696 = vunpack.c.h.b16 %v3620
      %v3697 = vunpack.c.h.b16 %v3621
      %v3698 = vunpack.c.h.b16 %v3622
      %v3699 = vunpack.c.l.b16 %v3623
      %v3700 = vunpack.c.l.b16 %v3624
      %v3701 = vunpack.c.l.b16 %v3625
      %v3702 = vunpack.c.l.b16 %v3626
      %v3703 = vunpack.c.h.b16 %v3623
      %v3704 = vunpack.c.h.b16 %v3624
      %v3705 = vunpack.c.h.b16 %v3625
      %v3706 = vunpack.c.h.b16 %v3626
      %v3707 = vunpack.c.l.b16 %v3627
      %v3708 = vunpack.c.l.b16 %v3628
      %v3709 = vunpack.c.l.b16 %v3629
      %v3710 = vunpack.c.l.b16 %v3630
      %v3711 = vunpack.c.h.b16 %v3627
      %v3712 = vunpack.c.h.b16 %v3628
      %v3713 = vunpack.c.h.b16 %v3629
      %v3714 = vunpack.c.h.b16 %v3630
      %v3715 = vunpack.c.l.b16 %v3631
      %v3716 = vunpack.c.l.b16 %v3632
      %v3717 = vunpack.c.l.b16 %v3633
      %v3718 = vunpack.c.l.b16 %v3634
      %v3719 = vunpack.c.h.b16 %v3631
      %v3720 = vunpack.c.h.b16 %v3632
      %v3721 = vunpack.c.h.b16 %v3633
      %v3722 = vunpack.c.h.b16 %v3634
      %v3723 = vunpack.c.l.b16 %v3635
      %v3724 = vunpack.c.l.b16 %v3636
      %v3725 = vunpack.c.l.b16 %v3637
      %v3726 = vunpack.c.l.b16 %v3638
      %v3727 = vunpack.c.h.b16 %v3635
      %v3728 = vunpack.c.h.b16 %v3636
      %v3729 = vunpack.c.h.b16 %v3637
      %v3730 = vunpack.c.h.b16 %v3638
      %v3731 = vunpack.c.l.b16 %v3639
      %v3732 = vunpack.c.l.b16 %v3640
      %v3733 = vunpack.c.l.b16 %v3641
      %v3734 = vunpack.c.l.b16 %v3642
      %v3735 = vunpack.c.h.b16 %v3639
      %v3736 = vunpack.c.h.b16 %v3640
      %v3737 = vunpack.c.h.b16 %v3641
      %v3738 = vunpack.c.h.b16 %v3642
      %v3739 = vpack.c.b16 %v3676, %v3675
      %v3740 = vpack.c.b16 %v3678, %v3677
      %v3741 = vpack.c.b16 %v3680, %v3679
      %v3742 = vpack.c.b16 %v3682, %v3681
      %v3743 = vpack.c.b16 %v3684, %v3683
      %v3744 = vpack.c.b16 %v3686, %v3685
      %v3745 = vpack.c.b16 %v3688, %v3687
      %v3746 = vpack.c.b16 %v3690, %v3689
      %v3747 = vpack.c.b16 %v3692, %v3691
      %v3748 = vpack.c.b16 %v3694, %v3693
      %v3749 = vpack.c.b16 %v3696, %v3695
      %v3750 = vpack.c.b16 %v3698, %v3697
      %v3751 = vpack.c.b16 %v3700, %v3699
      %v3752 = vpack.c.b16 %v3702, %v3701
      %v3753 = vpack.c.b16 %v3704, %v3703
      %v3754 = vpack.c.b16 %v3706, %v3705
      %v3755 = vpack.c.b16 %v3708, %v3707
      %v3756 = vpack.c.b16 %v3710, %v3709
      %v3757 = vpack.c.b16 %v3712, %v3711
      %v3758 = vpack.c.b16 %v3714, %v3713
      %v3759 = vpack.c.b16 %v3716, %v3715
      %v3760 = vpack.c.b16 %v3718, %v3717
      %v3761 = vpack.c.b16 %v3720, %v3719
      %v3762 = vpack.c.b16 %v3722, %v3721
      %v3763 = vpack.c.b16 %v3724, %v3723
      %v3764 = vpack.c.b16 %v3726, %v3725
      %v3765 = vpack.c.b16 %v3728, %v3727
      %v3766 = vpack.c.b16 %v3730, %v3729
      %v3767 = vpack.c.b16 %v3732, %v3731
      %v3768 = vpack.c.b16 %v3734, %v3733
      %v3769 = vpack.c.b16 %v3736, %v3735
      %v3770 = vpack.c.b16 %v3738, %v3737
      %3803 = vst [vmem:[%s380] sm:$0xff] %v3739
      %3804 = vst [vmem:[%s380 + $0x8] sm:$0xff] %v3740
      %3805 = vst [vmem:[%s380 + $0x10] sm:$0xff] %v3741
      %3806 = vst [vmem:[%s380 + $0x18] sm:$0xff] %v3742
      %3807 = vst [vmem:[%s380 + $0x20] sm:$0xff] %v3743
      %3808 = vst [vmem:[%s380 + $0x28] sm:$0xff] %v3744
      %3809 = vst [vmem:[%s380 + $0x30] sm:$0xff] %v3745
      %3810 = vst [vmem:[%s380 + $0x38] sm:$0xff] %v3746
      %3811 = vst [vmem:[%s380 + $0x40] sm:$0xff] %v3747
      %3812 = vst [vmem:[%s380 + $0x48] sm:$0xff] %v3748
      %3813 = vst [vmem:[%s380 + $0x50] sm:$0xff] %v3749
      %3814 = vst [vmem:[%s380 + $0x58] sm:$0xff] %v3750
      %3815 = vst [vmem:[%s380 + $0x60] sm:$0xff] %v3751
      %3816 = vst [vmem:[%s380 + $0x68] sm:$0xff] %v3752
      %3817 = vst [vmem:[%s380 + $0x70] sm:$0xff] %v3753
      %3818 = vst [vmem:[%s380 + $0x78] sm:$0xff] %v3754
      %3819 = vst [vmem:[%s380 + $0x80] sm:$0xff] %v3755
      %3820 = vst [vmem:[%s380 + $0x88] sm:$0xff] %v3756
      %3821 = vst [vmem:[%s380 + $0x90] sm:$0xff] %v3757
      %3822 = vst [vmem:[%s380 + $0x98] sm:$0xff] %v3758
      %3823 = vst [vmem:[%s380 + $0xa0] sm:$0xff] %v3759
      %3824 = vst [vmem:[%s380 + $0xa8] sm:$0xff] %v3760
      %3825 = vst [vmem:[%s380 + $0xb0] sm:$0xff] %v3761
      %3826 = vst [vmem:[%s380 + $0xb8] sm:$0xff] %v3762
      %3827 = vst [vmem:[%s380 + $0xc0] sm:$0xff] %v3763
      %3828 = vst [vmem:[%s380 + $0xc8] sm:$0xff] %v3764
      %3829 = vst [vmem:[%s380 + $0xd0] sm:$0xff] %v3765
      %3830 = vst [vmem:[%s380 + $0xd8] sm:$0xff] %v3766
      %3831 = vst [vmem:[%s380 + $0xe0] sm:$0xff] %v3767
      %3832 = vst [vmem:[%s380 + $0xe8] sm:$0xff] %v3768
      %3833 = vst [vmem:[%s380 + $0xf0] sm:$0xff] %v3769
      %3834 = vst [vmem:[%s380 + $0xf8] sm:$0xff] %v3770
      %s3835 = smul.u32 16, %s21
      %p3836 = scmp.lt.s32.totalorder %s3835, 31
      %s3837 = scalar_select %p3836, %s3835, 31
      %s3838 = smul.addr %s3837, 2
      %s3839 = smul.addr %s3838, 8
      %s3840 = scalar_lea.vmem %s8, %s3839
      %s3841 = smul.u32 16, %s21
      %p3842 = scmp.lt.s32.totalorder %s3841, 31
      %s3843 = scalar_select %p3842, %s3841, 31
      %s3844 = smul.addr %s3843, 4
      %s3845 = smul.addr %s3844, 4
      %s3846 = scalar_lea.vmem %s9, %s3845
      // Predicated region
      $region53: #{block_forward.6} parent=51 // pred_check
        %p3847 = pneg %p217
      $region54: #{block_forward.6} parent=51 // pred_check_branch
        %3849 = sbr.rel (%p3847) target = $region56
      $region55: #{block_forward.6} parent=51 // pred_region
        %s3850 = smul.u32 16, %s21
      $region56: #{block_forward.6} parent=51 // pred_fallthru
        _
      // Predicated region
      $region57: #{block_forward.6} parent=51 // pred_check
        %p3851 = pneg %p243
      $region58: #{block_forward.6} parent=51 // pred_check_branch
        %3853 = sbr.rel (%p3851) target = $region60
      $region59: #{block_forward.6} parent=51 // pred_region
        %s3854 = smul.u32 16, %s21
      $region60: #{block_forward.6} parent=51 // pred_fallthru
        _
    $region52: #{block_forward.6} parent=5 // pred_fallthru
      _
    %p3855 = scmp.le.s32.totalorder 2, %s16
    // Predicated region
    $region61: #{block_forward.6} parent=5 // pred_check
      %p3856 = pneg %p3855
    $region62: #{block_forward.6} parent=5 // pred_check_branch
      %3858 = sbr.rel (%p3856) target = $region64
    $region63: #{block_forward.6} parent=5 // pred_region
      %s3859 = ssub.s32 %s16, 2
      // Predicated region
      $region65: #{block_forward.6} parent=63 // pred_check
        %p3860 = pneg %p223
      $region66: #{block_forward.6} parent=63 // pred_check_branch
        %3862 = sbr.rel (%p3860) target = $region68
      $region67: #{block_forward.6} parent=63 // pred_region
        %s3863 = smul.u32 16, %s22
        %p3864 = scmp.lt.s32.totalorder %s3863, 31
        %s3865 = scalar_select %p3864, %s3863, 31
        %s3866 = smul.addr %s3865, 2
        %s3867 = smul.addr %s3866, 8
        %s3868 = scalar_lea.vmem %s8, %s3867
      $region68: #{block_forward.6} parent=63 // pred_fallthru
        _
      // Predicated region
      $region69: #{block_forward.6} parent=63 // pred_check
        %p3869 = pneg %p249
      $region70: #{block_forward.6} parent=63 // pred_check_branch
        %3871 = sbr.rel (%p3869) target = $region72
      $region71: #{block_forward.6} parent=63 // pred_region
        %s3872 = smul.u32 16, %s22
        %p3873 = scmp.lt.s32.totalorder %s3872, 31
        %s3874 = scalar_select %p3873, %s3872, 31
        %s3875 = smul.addr %s3874, 4
        %s3876 = smul.addr %s3875, 4
        %s3877 = scalar_lea.vmem %s9, %s3876
      $region72: #{block_forward.6} parent=63 // pred_fallthru
        _
    $region64: #{block_forward.6} parent=5 // pred_fallthru
      _
  $region6: #{block_forward.6} parent=0 // loop_footer
    %s20 = sadd.s32 1, %s16
  $region7: #{block_forward.6} parent=0 // loop_footer_branch
    %15 = sbr.rel target = $region3
  $region8: #{block_forward.6} parent=0 // loop_exit
    _

</llo_original>
